<compile_context>
chip_gen: v5e
topology: v5e:2x2
jax: 0.10.0
libtpu: 0.0.40
codegen_flags: <defaults>
</compile_context>

<pallas_src>
import functools

import jax
import jax.numpy as jnp
from jax.experimental import pallas as pl
from jax.experimental.pallas import tpu as pltpu


def _round_up(n, m):
    return ((n + m - 1) // m) * m


def ann_kernel(x_ref, w1_ref, w2_ref, w3_ref, o_ref):
    # fc1 -> relu  (dropout1 = identity in eval)
    x = x_ref[...]                                   # bf16 (tb, Dp)
    h1 = jnp.dot(x, w1_ref[...], preferred_element_type=jnp.float32)
    h1 = jnp.maximum(h1, 0.0).astype(jnp.bfloat16)
    # fc2 -> relu  (dropout2 = identity in eval)
    h2 = jnp.dot(h1, w2_ref[...], preferred_element_type=jnp.float32)
    h2 = jnp.maximum(h2, 0.0).astype(jnp.bfloat16)
    # fc3 -> relu
    h3 = jnp.dot(h2, w3_ref[...], preferred_element_type=jnp.float32)
    o_ref[...] = jnp.maximum(h3, 0.0)


def prepare_weights(w1, w2, w3, dtype=jnp.bfloat16):
    """One-time weight prep (call at model-load time, NOT per forward call).

    w{1,2,3}: PyTorch nn.Linear layout (out_features, in_features), f32.
    Returns (in, out)-layout, zero-padded, bf16 weights ready for the kernel.
    """
    H, D_in = w1.shape
    D_out = w3.shape[0]
    Dp = _round_up(D_in, 128)   # 784  -> 896
    Hp = _round_up(H, 128)      # 1200 -> 1280
    Op = _round_up(D_out, 128)  # 10   -> 128
    w1p = jnp.zeros((Dp, Hp), dtype).at[:D_in, :H].set(w1.T.astype(dtype))
    w2p = jnp.zeros((Hp, Hp), dtype).at[:H, :H].set(w2.T.astype(dtype))
    w3p = jnp.zeros((Hp, Op), dtype).at[:H, :D_out].set(w3.T.astype(dtype))
    return w1p, w2p, w3p


@functools.partial(jax.jit, static_argnames=("d_in", "d_out"))
def ann_forward(x, w1p, w2p, w3p, *, d_in=784, d_out=10):
    """x: (B, 784) f32; w*p: prepared (padded, transposed, bf16) weights."""
    B = x.shape[0]
    Dp, Hp = w1p.shape
    Op = w3p.shape[1]

    # Batch tiling: up to 256 rows per grid step (multiple of 16 for bf16
    # sublane packing); weights stay VMEM-resident across all steps.
    tb = min(256, _round_up(B, 16))
    Bp = _round_up(B, tb)
    num_tiles = Bp // tb

    # Single fused cast(bf16) + pad copy of the activations.
    xp = jnp.zeros((Bp, Dp), jnp.bfloat16).at[:B, :d_in].set(
        x.astype(jnp.bfloat16))

    out_padded = pl.pallas_call(
        ann_kernel,
        out_shape=jax.ShapeDtypeStruct((Bp, Op), jnp.float32),
        grid_spec=pltpu.PrefetchScalarGridSpec(
            num_scalar_prefetch=0,
            grid=(num_tiles,),
            in_specs=[
                pl.BlockSpec((tb, Dp), lambda i: (i, 0)),   # x: tiled over batch
                pl.BlockSpec((Dp, Hp), lambda i: (0, 0)),   # w1: resident
                pl.BlockSpec((Hp, Hp), lambda i: (0, 0)),   # w2: resident
                pl.BlockSpec((Hp, Op), lambda i: (0, 0)),   # w3: resident
            ],
            out_specs=pl.BlockSpec((tb, Op), lambda i: (i, 0)),
        ),
        compiler_params=pltpu.CompilerParams(
            dimension_semantics=("parallel",),
            vmem_limit_bytes=32 << 20,
        ),
    )(xp, w1p, w2p, w3p)

    return out_padded[:B, :d_out]


def calc_weights(key, shape):
    # Mirrors: (torch.rand(shape) - 0.5) * 0.01 * 2
    return (jax.random.uniform(key, shape, dtype=jnp.float32) - 0.5) * 0.02


def _ref_forward_bf16(x, w1, w2, w3):
    """Plain-JAX reference mirroring the kernel's bf16 numerics."""
    h = x.astype(jnp.bfloat16)
    h = jnp.maximum(jnp.dot(h, w1.T.astype(jnp.bfloat16),
                            preferred_element_type=jnp.float32), 0.0)
    h = h.astype(jnp.bfloat16)
    h = jnp.maximum(jnp.dot(h, w2.T.astype(jnp.bfloat16),
                            preferred_element_type=jnp.float32), 0.0)
    h = h.astype(jnp.bfloat16)
    h = jnp.maximum(jnp.dot(h, w3.T.astype(jnp.bfloat16),
                            preferred_element_type=jnp.float32), 0.0)
    return h


if __name__ == "__main__":
    key = jax.random.PRNGKey(0)
    k_x, k1, k2, k3 = jax.random.split(key, 4)

    B = 2
    x = jax.random.normal(k_x, (B, 784), dtype=jnp.float32)

    # PyTorch nn.Linear weight layout: (out_features, in_features).
    w1 = calc_weights(k1, (1200, 784))
    w2 = calc_weights(k2, (1200, 1200))
    w3 = calc_weights(k3, (10, 1200))

    # One-time weight preparation (model-load time).
    w1p, w2p, w3p = prepare_weights(w1, w2, w3)
    w1p, w2p, w3p = jax.block_until_ready((w1p, w2p, w3p))

    out = ann_forward(x, w1p, w2p, w3p, d_in=784, d_out=10)
    out = jax.block_until_ready(out)
    assert out.shape == (B, 10), out.shape

    # Tight check vs a reference that mirrors the kernel's bf16 numerics.
    ref_bf16 = _ref_forward_bf16(x, w1, w2, w3)
    assert jnp.allclose(out, ref_bf16, atol=1e-4, rtol=1e-3), \
        "mismatch vs bf16-numerics reference"

    # Looser semantic check vs the full-f32 PyTorch-equivalent forward.
    ref_f32 = jnp.maximum(x @ w1.T, 0.0)
    ref_f32 = jnp.maximum(ref_f32 @ w2.T, 0.0)
    ref_f32 = jnp.maximum(ref_f32 @ w3.T, 0.0)
    assert jnp.allclose(out, ref_f32, atol=1e-3, rtol=5e-2), \
        "mismatch vs f32 reference"

    print("KERNEL_OK")
</pallas_src>

<mosaic_0001>
module attributes {stable_mosaic.version = 11 : i64} {
  func.func @ann_kernel(%arg0: i32, %arg1: memref<16x896xbf16, #tpu.memory_space<vmem>>, %arg2: memref<896x1280xbf16, #tpu.memory_space<vmem>>, %arg3: memref<1280x1280xbf16, #tpu.memory_space<vmem>>, %arg4: memref<1280x128xbf16, #tpu.memory_space<vmem>>, %arg5: memref<16x128xf32, #tpu.memory_space<vmem>>) attributes {dimension_semantics = [#tpu.dimension_semantics<parallel>], iteration_bounds = array<i64: 1>, scalar_prefetch = 0 : i64, scratch_operands = 0 : i64, tpu.core_type = #tpu.core_type<tc>, window_params = [{transform_indices = @transform_0, window_bounds = array<i64: 16, 896>}, {pipeline_mode = #tpu.pipeline_mode<synchronous>, transform_indices = @transform_1, window_bounds = array<i64: 896, 1280>}, {pipeline_mode = #tpu.pipeline_mode<synchronous>, transform_indices = @transform_2, window_bounds = array<i64: 1280, 1280>}, {pipeline_mode = #tpu.pipeline_mode<synchronous>, transform_indices = @transform_3, window_bounds = array<i64: 1280, 128>}, {transform_indices = @transform_4, window_bounds = array<i64: 16, 128>}]} {
    %c0 = arith.constant 0 : index
    %c0_0 = arith.constant 0 : index
    %0 = vector.load %arg1[%c0, %c0_0] : memref<16x896xbf16, #tpu.memory_space<vmem>>, vector<16x896xbf16>
    %c0_1 = arith.constant 0 : index
    %c0_2 = arith.constant 0 : index
    %1 = vector.load %arg2[%c0_1, %c0_2] : memref<896x1280xbf16, #tpu.memory_space<vmem>>, vector<896x1280xbf16>
    %cst = arith.constant dense<0.000000e+00> : vector<16x1280xf32>
    %2 = tpu.matmul %0, %1, %cst {dimension_numbers = #tpu.dot_dimension_numbers<[1], [0], [0], [1], [0, 0, 1, 1], [], []>} : vector<16x896xbf16>, vector<896x1280xbf16>, vector<16x1280xf32> -> vector<16x1280xf32>
    %cst_3 = arith.constant 0.000000e+00 : f32
    %3 = vector.broadcast %cst_3 : f32 to vector<16x1280xf32>
    %4 = arith.maximumf %2, %3 : vector<16x1280xf32>
    %5 = arith.truncf %4 : vector<16x1280xf32> to vector<16x1280xbf16>
    %c0_4 = arith.constant 0 : index
    %c0_5 = arith.constant 0 : index
    %6 = vector.load %arg3[%c0_4, %c0_5] : memref<1280x1280xbf16, #tpu.memory_space<vmem>>, vector<1280x1280xbf16>
    %cst_6 = arith.constant dense<0.000000e+00> : vector<16x1280xf32>
    %7 = tpu.matmul %5, %6, %cst_6 {dimension_numbers = #tpu.dot_dimension_numbers<[1], [0], [0], [1], [0, 0, 1, 1], [], []>} : vector<16x1280xbf16>, vector<1280x1280xbf16>, vector<16x1280xf32> -> vector<16x1280xf32>
    %cst_7 = arith.constant 0.000000e+00 : f32
    %8 = vector.broadcast %cst_7 : f32 to vector<16x1280xf32>
    %9 = arith.maximumf %7, %8 : vector<16x1280xf32>
    %10 = arith.truncf %9 : vector<16x1280xf32> to vector<16x1280xbf16>
    %c0_8 = arith.constant 0 : index
    %c0_9 = arith.constant 0 : index
    %11 = vector.load %arg4[%c0_8, %c0_9] : memref<1280x128xbf16, #tpu.memory_space<vmem>>, vector<1280x128xbf16>
    %cst_10 = arith.constant dense<0.000000e+00> : vector<16x128xf32>
    %12 = tpu.matmul %10, %11, %cst_10 {dimension_numbers = #tpu.dot_dimension_numbers<[1], [0], [0], [1], [0, 0, 1, 1], [], []>} : vector<16x1280xbf16>, vector<1280x128xbf16>, vector<16x128xf32> -> vector<16x128xf32>
    %cst_11 = arith.constant 0.000000e+00 : f32
    %13 = vector.broadcast %cst_11 : f32 to vector<16x128xf32>
    %14 = arith.maximumf %12, %13 : vector<16x128xf32>
    %c0_12 = arith.constant 0 : index
    %c0_13 = arith.constant 0 : index
    %15 = vector.load %arg5[%c0_12, %c0_13] : memref<16x128xf32, #tpu.memory_space<vmem>>, vector<16x128xf32>
    tpu.vector_store %arg5[%c0_12, %c0_13], %14 {strides = array<i32>} : memref<16x128xf32, #tpu.memory_space<vmem>>, vector<16x128xf32>,
    return
  }
  func.func @transform_0(%arg0: i32) -> (i32, i32) {
    %c0_i32 = arith.constant 0 : i32
    %c0_i32_0 = arith.constant 0 : i32
    return %arg0, %c0_i32 : i32, i32
  }
  func.func @transform_1(%arg0: i32) -> (i32, i32) {
    %c0_i32 = arith.constant 0 : i32
    %c0_i32_0 = arith.constant 0 : i32
    %c0_i32_1 = arith.constant 0 : i32
    return %c0_i32, %c0_i32_0 : i32, i32
  }
  func.func @transform_2(%arg0: i32) -> (i32, i32) {
    %c0_i32 = arith.constant 0 : i32
    %c0_i32_0 = arith.constant 0 : i32
    %c0_i32_1 = arith.constant 0 : i32
    return %c0_i32, %c0_i32_0 : i32, i32
  }
  func.func @transform_3(%arg0: i32) -> (i32, i32) {
    %c0_i32 = arith.constant 0 : i32
    %c0_i32_0 = arith.constant 0 : i32
    %c0_i32_1 = arith.constant 0 : i32
    return %c0_i32, %c0_i32_0 : i32, i32
  }
  func.func @transform_4(%arg0: i32) -> (i32, i32) {
    %c0_i32 = arith.constant 0 : i32
    %c0_i32_0 = arith.constant 0 : i32
    return %arg0, %c0_i32 : i32, i32
  }
}

</mosaic_0001>

<llo_original>
// kernel: ann_forward.1
$region0: #{ann_forward.1}
  #allocation0 [shape = 'u32[]', space=smem, size = 0x4, offset = 0x4, fixed_abs, tag = 'smem constant byte address 0x4 - core index']
  #allocation1 [shape = 'u32[72,128]{1,0:T(1,128)}', space=vmem, size = 0x9000, scoped, tag = 'internal scratch']
  %s0 = inlined_call_operand.vmem [shape: bf16[16,896], index: 0, kind: input, shape index: {}]
  %s1 = inlined_call_operand.hbm [shape: bf16[896,1280], index: 1, kind: input, shape index: {}]
  %s2 = inlined_call_operand.hbm [shape: bf16[1280,1280], index: 2, kind: input, shape index: {}]
  %s3 = inlined_call_operand.hbm [shape: bf16[1280,128], index: 3, kind: input, shape index: {}]
  %s4 = inlined_call_operand.vmem [shape: f32[16,128], index: 4, kind: output, shape index: {}]
  %s5 = sld [smem:[#allocation0]]
  $region38: #{ann_forward.1} parent=0
    _
  %s7 = ssub.s32 1, %s5
  %s8 = scalar_select 0, %s7, %s5
  $region1: #{ann_forward.1} parent=0
    #allocation2 [shape = 'u8[2293760]{0}', space=vmem, size = 0x230000, scoped, tag = 'input window, operand 1, single buffered']
    #allocation3 [shape = 's32[1]{0}', space=sflag, size = 0x4, scoped, tag = 'scoped memory for ann_forward.1']
    #allocation4 [shape = 'u8[3276800]{0}', space=vmem, size = 0x320000, scoped, tag = 'input window, operand 2, single buffered']
    #allocation5 [shape = 's32[1]{0}', space=sflag, size = 0x4, scoped, tag = 'scoped memory for ann_forward.1']
    #allocation6 [shape = 'u8[327680]{0}', space=vmem, size = 0x50000, scoped, tag = 'input window, operand 3, single buffered']
    %9 = vsyncpa [#allocation3], 0
    %10 = vsyncpa [#allocation5], 0
    // Predicated region
    $region2: #{ann_forward.1} parent=1 // pred_check
      _
    $region3: #{ann_forward.1} parent=1 // pred_check_branch
      %12 = sbr.rel (0) target = $region5
    $region4: #{ann_forward.1} parent=1 // pred_region
      _
    $region5: #{ann_forward.1} parent=1 // pred_fallthru
      _
    // Predicated region
    $region6: #{ann_forward.1} parent=1 // pred_check
      _
    $region7: #{ann_forward.1} parent=1 // pred_check_branch
      %14 = sbr.rel (0) target = $region9
    $region8: #{ann_forward.1} parent=1 // pred_region
      %16 = vsyncadd [#allocation3], 0
      %s17 = sshll.u32 %s1, 4
      %s18 = int_to_ptr.hbm [resolvable:$true] %s17
      %s19 = sshll.u32 [#allocation2], 4
      %s20 = int_to_ptr.vmem [resolvable:$true] %s19
      %25 = dma.hbm_to_vmem [thread:$0]  %s18, 71680, %s20, [#allocation3], 640, 640, 40
    $region9: #{ann_forward.1} parent=1 // pred_fallthru
      _
    // Predicated region
    $region10: #{ann_forward.1} parent=1 // pred_check
      _
    $region11: #{ann_forward.1} parent=1 // pred_check_branch
      %27 = sbr.rel (0) target = $region13
    $region12: #{ann_forward.1} parent=1 // pred_region
      %29 = vsyncadd [#allocation5], 0
      %s30 = sshll.u32 %s2, 4
      %s31 = int_to_ptr.hbm [resolvable:$true] %s30
      %s32 = sshll.u32 [#allocation4], 4
      %s33 = int_to_ptr.vmem [resolvable:$true] %s32
      %38 = dma.hbm_to_vmem [thread:$0]  %s31, 102400, %s33, [#allocation5], 640, 640, 40
    $region13: #{ann_forward.1} parent=1 // pred_fallthru
      _
    // Predicated region
    $region14: #{ann_forward.1} parent=1 // pred_check
      _
    $region15: #{ann_forward.1} parent=1 // pred_check_branch
      %40 = sbr.rel (0) target = $region17
    $region16: #{ann_forward.1} parent=1 // pred_region
      %42 = vsyncadd [#allocation5], 0
      %s43 = sshll.u32 %s3, 4
      %s44 = int_to_ptr.hbm [resolvable:$true] %s43
      %s45 = sshll.u32 [#allocation6], 4
      %s46 = int_to_ptr.vmem [resolvable:$true] %s45
      %51 = dma.hbm_to_vmem [thread:$0]  %s44, 10240, %s46, [#allocation5], 64, 64, 4
    $region17: #{ann_forward.1} parent=1 // pred_fallthru
      _
    // Predicated region
    $region18: #{ann_forward.1} parent=1 // pred_check
      _
    $region19: #{ann_forward.1} parent=1 // pred_check_branch
      %53 = sbr.rel (0) target = $region21
    $region20: #{ann_forward.1} parent=1 // pred_region
      %55 = dma.done [#allocation3], 71680
    $region21: #{ann_forward.1} parent=1 // pred_fallthru
      _
    // Predicated region
    $region22: #{ann_forward.1} parent=1 // pred_check
      _
    $region23: #{ann_forward.1} parent=1 // pred_check_branch
      %57 = sbr.rel (0) target = $region25
    $region24: #{ann_forward.1} parent=1 // pred_region
      %59 = dma.done [#allocation5], 102400
    $region25: #{ann_forward.1} parent=1 // pred_fallthru
      _
    // Predicated region
    $region26: #{ann_forward.1} parent=1 // pred_check
      _
    $region27: #{ann_forward.1} parent=1 // pred_check_branch
      %61 = sbr.rel (0) target = $region29
    $region28: #{ann_forward.1} parent=1 // pred_region
      %63 = dma.done [#allocation5], 10240
    $region29: #{ann_forward.1} parent=1 // pred_fallthru
      _
    %v64 = vld [vmem:[%s0] sm:$0xff]
    %v65 = vld [vmem:[%s0 + $0x8] sm:$0xff]
    %v66 = vld [vmem:[%s0 + $0x10] sm:$0xff]
    %v67 = vld [vmem:[%s0 + $0x18] sm:$0xf]
    %v68 = vld [vmem:[%s0 + $0x1c] sm:$0xff]
    %v69 = vld [vmem:[%s0 + $0x24] sm:$0xff]
    %v70 = vld [vmem:[%s0 + $0x2c] sm:$0xff]
    %v71 = vld [vmem:[%s0 + $0x34] sm:$0xf]
    %v72 = vld [vmem:[#allocation2] sm:$0xff]
    %v73 = vld [vmem:[#allocation2 + $0x8] sm:$0xff]
    %v74 = vld [vmem:[#allocation2 + $0x10] sm:$0xff]
    %v75 = vld [vmem:[#allocation2 + $0x18] sm:$0xff]
    %v76 = vld [vmem:[#allocation2 + $0x20] sm:$0xff]
    %v77 = vld [vmem:[#allocation2 + $0x28] sm:$0xff]
    %v78 = vld [vmem:[#allocation2 + $0x30] sm:$0xff]
    %v79 = vld [vmem:[#allocation2 + $0x38] sm:$0xff]
    %v80 = vld [vmem:[#allocation2 + $0x40] sm:$0xff]
    %v81 = vld [vmem:[#allocation2 + $0x48] sm:$0xff]
    %v82 = vld [vmem:[#allocation2 + $0x50] sm:$0xff]
    %v83 = vld [vmem:[#allocation2 + $0x58] sm:$0xff]
    %v84 = vld [vmem:[#allocation2 + $0x60] sm:$0xff]
    %v85 = vld [vmem:[#allocation2 + $0x68] sm:$0xff]
    %v86 = vld [vmem:[#allocation2 + $0x70] sm:$0xff]
    %v87 = vld [vmem:[#allocation2 + $0x78] sm:$0xff]
    %v88 = vld [vmem:[#allocation2 + $0x80] sm:$0xff]
    %v89 = vld [vmem:[#allocation2 + $0x88] sm:$0xff]
    %v90 = vld [vmem:[#allocation2 + $0x90] sm:$0xff]
    %v91 = vld [vmem:[#allocation2 + $0x98] sm:$0xff]
    %v92 = vld [vmem:[#allocation2 + $0xa0] sm:$0xff]
    %v93 = vld [vmem:[#allocation2 + $0xa8] sm:$0xff]
    %v94 = vld [vmem:[#allocation2 + $0xb0] sm:$0xff]
    %v95 = vld [vmem:[#allocation2 + $0xb8] sm:$0xff]
    %v96 = vld [vmem:[#allocation2 + $0xc0] sm:$0xff]
    %v97 = vld [vmem:[#allocation2 + $0xc8] sm:$0xff]
    %v98 = vld [vmem:[#allocation2 + $0xd0] sm:$0xff]
    %v99 = vld [vmem:[#allocation2 + $0xd8] sm:$0xff]
    %v100 = vld [vmem:[#allocation2 + $0xe0] sm:$0xff]
    %v101 = vld [vmem:[#allocation2 + $0xe8] sm:$0xff]
    %v102 = vld [vmem:[#allocation2 + $0xf0] sm:$0xff]
    %v103 = vld [vmem:[#allocation2 + $0xf8] sm:$0xff]
    %v104 = vld [vmem:[#allocation2 + $0x100] sm:$0xff]
    %v105 = vld [vmem:[#allocation2 + $0x108] sm:$0xff]
    %v106 = vld [vmem:[#allocation2 + $0x110] sm:$0xff]
    %v107 = vld [vmem:[#allocation2 + $0x118] sm:$0xff]
    %v108 = vld [vmem:[#allocation2 + $0x120] sm:$0xff]
    %v109 = vld [vmem:[#allocation2 + $0x128] sm:$0xff]
    %v110 = vld [vmem:[#allocation2 + $0x130] sm:$0xff]
    %v111 = vld [vmem:[#allocation2 + $0x138] sm:$0xff]
    %v112 = vld [vmem:[#allocation2 + $0x140] sm:$0xff]
    %v113 = vld [vmem:[#allocation2 + $0x148] sm:$0xff]
    %v114 = vld [vmem:[#allocation2 + $0x150] sm:$0xff]
    %v115 = vld [vmem:[#allocation2 + $0x158] sm:$0xff]
    %v116 = vld [vmem:[#allocation2 + $0x160] sm:$0xff]
    %v117 = vld [vmem:[#allocation2 + $0x168] sm:$0xff]
    %v118 = vld [vmem:[#allocation2 + $0x170] sm:$0xff]
    %v119 = vld [vmem:[#allocation2 + $0x178] sm:$0xff]
    %v120 = vld [vmem:[#allocation2 + $0x180] sm:$0xff]
    %v121 = vld [vmem:[#allocation2 + $0x188] sm:$0xff]
    %v122 = vld [vmem:[#allocation2 + $0x190] sm:$0xff]
    %v123 = vld [vmem:[#allocation2 + $0x198] sm:$0xff]
    %v124 = vld [vmem:[#allocation2 + $0x1a0] sm:$0xff]
    %v125 = vld [vmem:[#allocation2 + $0x1a8] sm:$0xff]
    %v126 = vld [vmem:[#allocation2 + $0x1b0] sm:$0xff]
    %v127 = vld [vmem:[#allocation2 + $0x1b8] sm:$0xff]
    %v128 = vld [vmem:[#allocation2 + $0x1c0] sm:$0xff]
    %v129 = vld [vmem:[#allocation2 + $0x1c8] sm:$0xff]
    %v130 = vld [vmem:[#allocation2 + $0x1d0] sm:$0xff]
    %v131 = vld [vmem:[#allocation2 + $0x1d8] sm:$0xff]
    %v132 = vld [vmem:[#allocation2 + $0x1e0] sm:$0xff]
    %v133 = vld [vmem:[#allocation2 + $0x1e8] sm:$0xff]
    %v134 = vld [vmem:[#allocation2 + $0x1f0] sm:$0xff]
    %v135 = vld [vmem:[#allocation2 + $0x1f8] sm:$0xff]
    %v136 = vld [vmem:[#allocation2 + $0x200] sm:$0xff]
    %v137 = vld [vmem:[#allocation2 + $0x208] sm:$0xff]
    %v138 = vld [vmem:[#allocation2 + $0x210] sm:$0xff]
    %v139 = vld [vmem:[#allocation2 + $0x218] sm:$0xff]
    %v140 = vld [vmem:[#allocation2 + $0x220] sm:$0xff]
    %v141 = vld [vmem:[#allocation2 + $0x228] sm:$0xff]
    %v142 = vld [vmem:[#allocation2 + $0x230] sm:$0xff]
    %v143 = vld [vmem:[#allocation2 + $0x238] sm:$0xff]
    %v144 = vld [vmem:[#allocation2 + $0x240] sm:$0xff]
    %v145 = vld [vmem:[#allocation2 + $0x248] sm:$0xff]
    %v146 = vld [vmem:[#allocation2 + $0x250] sm:$0xff]
    %v147 = vld [vmem:[#allocation2 + $0x258] sm:$0xff]
    %v148 = vld [vmem:[#allocation2 + $0x260] sm:$0xff]
    %v149 = vld [vmem:[#allocation2 + $0x268] sm:$0xff]
    %v150 = vld [vmem:[#allocation2 + $0x270] sm:$0xff]
    %v151 = vld [vmem:[#allocation2 + $0x278] sm:$0xff]
    %v152 = vld [vmem:[#allocation2 + $0x280] sm:$0xff]
    %v153 = vld [vmem:[#allocation2 + $0x288] sm:$0xff]
    %v154 = vld [vmem:[#allocation2 + $0x290] sm:$0xff]
    %v155 = vld [vmem:[#allocation2 + $0x298] sm:$0xff]
    %v156 = vld [vmem:[#allocation2 + $0x2a0] sm:$0xff]
    %v157 = vld [vmem:[#allocation2 + $0x2a8] sm:$0xff]
    %v158 = vld [vmem:[#allocation2 + $0x2b0] sm:$0xff]
    %v159 = vld [vmem:[#allocation2 + $0x2b8] sm:$0xff]
    %v160 = vld [vmem:[#allocation2 + $0x2c0] sm:$0xff]
    %v161 = vld [vmem:[#allocation2 + $0x2c8] sm:$0xff]
    %v162 = vld [vmem:[#allocation2 + $0x2d0] sm:$0xff]
    %v163 = vld [vmem:[#allocation2 + $0x2d8] sm:$0xff]
    %v164 = vld [vmem:[#allocation2 + $0x2e0] sm:$0xff]
    %v165 = vld [vmem:[#allocation2 + $0x2e8] sm:$0xff]
    %v166 = vld [vmem:[#allocation2 + $0x2f0] sm:$0xff]
    %v167 = vld [vmem:[#allocation2 + $0x2f8] sm:$0xff]
    %v168 = vld [vmem:[#allocation2 + $0x300] sm:$0xff]
    %v169 = vld [vmem:[#allocation2 + $0x308] sm:$0xff]
    %v170 = vld [vmem:[#allocation2 + $0x310] sm:$0xff]
    %v171 = vld [vmem:[#allocation2 + $0x318] sm:$0xff]
    %v172 = vld [vmem:[#allocation2 + $0x320] sm:$0xff]
    %v173 = vld [vmem:[#allocation2 + $0x328] sm:$0xff]
    %v174 = vld [vmem:[#allocation2 + $0x330] sm:$0xff]
    %v175 = vld [vmem:[#allocation2 + $0x338] sm:$0xff]
    %v176 = vld [vmem:[#allocation2 + $0x340] sm:$0xff]
    %v177 = vld [vmem:[#allocation2 + $0x348] sm:$0xff]
    %v178 = vld [vmem:[#allocation2 + $0x350] sm:$0xff]
    %v179 = vld [vmem:[#allocation2 + $0x358] sm:$0xff]
    %v180 = vld [vmem:[#allocation2 + $0x360] sm:$0xff]
    %v181 = vld [vmem:[#allocation2 + $0x368] sm:$0xff]
    %v182 = vld [vmem:[#allocation2 + $0x370] sm:$0xff]
    %v183 = vld [vmem:[#allocation2 + $0x378] sm:$0xff]
    %v184 = vld [vmem:[#allocation2 + $0x380] sm:$0xff]
    %v185 = vld [vmem:[#allocation2 + $0x388] sm:$0xff]
    %v186 = vld [vmem:[#allocation2 + $0x390] sm:$0xff]
    %v187 = vld [vmem:[#allocation2 + $0x398] sm:$0xff]
    %v188 = vld [vmem:[#allocation2 + $0x3a0] sm:$0xff]
    %v189 = vld [vmem:[#allocation2 + $0x3a8] sm:$0xff]
    %v190 = vld [vmem:[#allocation2 + $0x3b0] sm:$0xff]
    %v191 = vld [vmem:[#allocation2 + $0x3b8] sm:$0xff]
    %v192 = vld [vmem:[#allocation2 + $0x3c0] sm:$0xff]
    %v193 = vld [vmem:[#allocation2 + $0x3c8] sm:$0xff]
    %v194 = vld [vmem:[#allocation2 + $0x3d0] sm:$0xff]
    %v195 = vld [vmem:[#allocation2 + $0x3d8] sm:$0xff]
    %v196 = vld [vmem:[#allocation2 + $0x3e0] sm:$0xff]
    %v197 = vld [vmem:[#allocation2 + $0x3e8] sm:$0xff]
    %v198 = vld [vmem:[#allocation2 + $0x3f0] sm:$0xff]
    %v199 = vld [vmem:[#allocation2 + $0x3f8] sm:$0xff]
    %v200 = vld [vmem:[#allocation2 + $0x400] sm:$0xff]
    %v201 = vld [vmem:[#allocation2 + $0x408] sm:$0xff]
    %v202 = vld [vmem:[#allocation2 + $0x410] sm:$0xff]
    %v203 = vld [vmem:[#allocation2 + $0x418] sm:$0xff]
    %v204 = vld [vmem:[#allocation2 + $0x420] sm:$0xff]
    %v205 = vld [vmem:[#allocation2 + $0x428] sm:$0xff]
    %v206 = vld [vmem:[#allocation2 + $0x430] sm:$0xff]
    %v207 = vld [vmem:[#allocation2 + $0x438] sm:$0xff]
    %v208 = vld [vmem:[#allocation2 + $0x440] sm:$0xff]
    %v209 = vld [vmem:[#allocation2 + $0x448] sm:$0xff]
    %v210 = vld [vmem:[#allocation2 + $0x450] sm:$0xff]
    %v211 = vld [vmem:[#allocation2 + $0x458] sm:$0xff]
    %v212 = vld [vmem:[#allocation2 + $0x460] sm:$0xff]
    %v213 = vld [vmem:[#allocation2 + $0x468] sm:$0xff]
    %v214 = vld [vmem:[#allocation2 + $0x470] sm:$0xff]
    %v215 = vld [vmem:[#allocation2 + $0x478] sm:$0xff]
    %v216 = vld [vmem:[#allocation2 + $0x480] sm:$0xff]
    %v217 = vld [vmem:[#allocation2 + $0x488] sm:$0xff]
    %v218 = vld [vmem:[#allocation2 + $0x490] sm:$0xff]
    %v219 = vld [vmem:[#allocation2 + $0x498] sm:$0xff]
    %v220 = vld [vmem:[#allocation2 + $0x4a0] sm:$0xff]
    %v221 = vld [vmem:[#allocation2 + $0x4a8] sm:$0xff]
    %v222 = vld [vmem:[#allocation2 + $0x4b0] sm:$0xff]
    %v223 = vld [vmem:[#allocation2 + $0x4b8] sm:$0xff]
    %v224 = vld [vmem:[#allocation2 + $0x4c0] sm:$0xff]
    %v225 = vld [vmem:[#allocation2 + $0x4c8] sm:$0xff]
    %v226 = vld [vmem:[#allocation2 + $0x4d0] sm:$0xff]
    %v227 = vld [vmem:[#allocation2 + $0x4d8] sm:$0xff]
    %v228 = vld [vmem:[#allocation2 + $0x4e0] sm:$0xff]
    %v229 = vld [vmem:[#allocation2 + $0x4e8] sm:$0xff]
    %v230 = vld [vmem:[#allocation2 + $0x4f0] sm:$0xff]
    %v231 = vld [vmem:[#allocation2 + $0x4f8] sm:$0xff]
    %v232 = vld [vmem:[#allocation2 + $0x500] sm:$0xff]
    %v233 = vld [vmem:[#allocation2 + $0x508] sm:$0xff]
    %v234 = vld [vmem:[#allocation2 + $0x510] sm:$0xff]
    %v235 = vld [vmem:[#allocation2 + $0x518] sm:$0xff]
    %v236 = vld [vmem:[#allocation2 + $0x520] sm:$0xff]
    %v237 = vld [vmem:[#allocation2 + $0x528] sm:$0xff]
    %v238 = vld [vmem:[#allocation2 + $0x530] sm:$0xff]
    %v239 = vld [vmem:[#allocation2 + $0x538] sm:$0xff]
    %v240 = vld [vmem:[#allocation2 + $0x540] sm:$0xff]
    %v241 = vld [vmem:[#allocation2 + $0x548] sm:$0xff]
    %v242 = vld [vmem:[#allocation2 + $0x550] sm:$0xff]
    %v243 = vld [vmem:[#allocation2 + $0x558] sm:$0xff]
    %v244 = vld [vmem:[#allocation2 + $0x560] sm:$0xff]
    %v245 = vld [vmem:[#allocation2 + $0x568] sm:$0xff]
    %v246 = vld [vmem:[#allocation2 + $0x570] sm:$0xff]
    %v247 = vld [vmem:[#allocation2 + $0x578] sm:$0xff]
    %v248 = vld [vmem:[#allocation2 + $0x580] sm:$0xff]
    %v249 = vld [vmem:[#allocation2 + $0x588] sm:$0xff]
    %v250 = vld [vmem:[#allocation2 + $0x590] sm:$0xff]
    %v251 = vld [vmem:[#allocation2 + $0x598] sm:$0xff]
    %v252 = vld [vmem:[#allocation2 + $0x5a0] sm:$0xff]
    %v253 = vld [vmem:[#allocation2 + $0x5a8] sm:$0xff]
    %v254 = vld [vmem:[#allocation2 + $0x5b0] sm:$0xff]
    %v255 = vld [vmem:[#allocation2 + $0x5b8] sm:$0xff]
    %v256 = vld [vmem:[#allocation2 + $0x5c0] sm:$0xff]
    %v257 = vld [vmem:[#allocation2 + $0x5c8] sm:$0xff]
    %v258 = vld [vmem:[#allocation2 + $0x5d0] sm:$0xff]
    %v259 = vld [vmem:[#allocation2 + $0x5d8] sm:$0xff]
    %v260 = vld [vmem:[#allocation2 + $0x5e0] sm:$0xff]
    %v261 = vld [vmem:[#allocation2 + $0x5e8] sm:$0xff]
    %v262 = vld [vmem:[#allocation2 + $0x5f0] sm:$0xff]
    %v263 = vld [vmem:[#allocation2 + $0x5f8] sm:$0xff]
    %v264 = vld [vmem:[#allocation2 + $0x600] sm:$0xff]
    %v265 = vld [vmem:[#allocation2 + $0x608] sm:$0xff]
    %v266 = vld [vmem:[#allocation2 + $0x610] sm:$0xff]
    %v267 = vld [vmem:[#allocation2 + $0x618] sm:$0xff]
    %v268 = vld [vmem:[#allocation2 + $0x620] sm:$0xff]
    %v269 = vld [vmem:[#allocation2 + $0x628] sm:$0xff]
    %v270 = vld [vmem:[#allocation2 + $0x630] sm:$0xff]
    %v271 = vld [vmem:[#allocation2 + $0x638] sm:$0xff]
    %v272 = vld [vmem:[#allocation2 + $0x640] sm:$0xff]
    %v273 = vld [vmem:[#allocation2 + $0x648] sm:$0xff]
    %v274 = vld [vmem:[#allocation2 + $0x650] sm:$0xff]
    %v275 = vld [vmem:[#allocation2 + $0x658] sm:$0xff]
    %v276 = vld [vmem:[#allocation2 + $0x660] sm:$0xff]
    %v277 = vld [vmem:[#allocation2 + $0x668] sm:$0xff]
    %v278 = vld [vmem:[#allocation2 + $0x670] sm:$0xff]
    %v279 = vld [vmem:[#allocation2 + $0x678] sm:$0xff]
    %v280 = vld [vmem:[#allocation2 + $0x680] sm:$0xff]
    %v281 = vld [vmem:[#allocation2 + $0x688] sm:$0xff]
    %v282 = vld [vmem:[#allocation2 + $0x690] sm:$0xff]
    %v283 = vld [vmem:[#allocation2 + $0x698] sm:$0xff]
    %v284 = vld [vmem:[#allocation2 + $0x6a0] sm:$0xff]
    %v285 = vld [vmem:[#allocation2 + $0x6a8] sm:$0xff]
    %v286 = vld [vmem:[#allocation2 + $0x6b0] sm:$0xff]
    %v287 = vld [vmem:[#allocation2 + $0x6b8] sm:$0xff]
    %v288 = vld [vmem:[#allocation2 + $0x6c0] sm:$0xff]
    %v289 = vld [vmem:[#allocation2 + $0x6c8] sm:$0xff]
    %v290 = vld [vmem:[#allocation2 + $0x6d0] sm:$0xff]
    %v291 = vld [vmem:[#allocation2 + $0x6d8] sm:$0xff]
    %v292 = vld [vmem:[#allocation2 + $0x6e0] sm:$0xff]
    %v293 = vld [vmem:[#allocation2 + $0x6e8] sm:$0xff]
    %v294 = vld [vmem:[#allocation2 + $0x6f0] sm:$0xff]
    %v295 = vld [vmem:[#allocation2 + $0x6f8] sm:$0xff]
    %v296 = vld [vmem:[#allocation2 + $0x700] sm:$0xff]
    %v297 = vld [vmem:[#allocation2 + $0x708] sm:$0xff]
    %v298 = vld [vmem:[#allocation2 + $0x710] sm:$0xff]
    %v299 = vld [vmem:[#allocation2 + $0x718] sm:$0xff]
    %v300 = vld [vmem:[#allocation2 + $0x720] sm:$0xff]
    %v301 = vld [vmem:[#allocation2 + $0x728] sm:$0xff]
    %v302 = vld [vmem:[#allocation2 + $0x730] sm:$0xff]
    %v303 = vld [vmem:[#allocation2 + $0x738] sm:$0xff]
    %v304 = vld [vmem:[#allocation2 + $0x740] sm:$0xff]
    %v305 = vld [vmem:[#allocation2 + $0x748] sm:$0xff]
    %v306 = vld [vmem:[#allocation2 + $0x750] sm:$0xff]
    %v307 = vld [vmem:[#allocation2 + $0x758] sm:$0xff]
    %v308 = vld [vmem:[#allocation2 + $0x760] sm:$0xff]
    %v309 = vld [vmem:[#allocation2 + $0x768] sm:$0xff]
    %v310 = vld [vmem:[#allocation2 + $0x770] sm:$0xff]
    %v311 = vld [vmem:[#allocation2 + $0x778] sm:$0xff]
    %v312 = vld [vmem:[#allocation2 + $0x780] sm:$0xff]
    %v313 = vld [vmem:[#allocation2 + $0x788] sm:$0xff]
    %v314 = vld [vmem:[#allocation2 + $0x790] sm:$0xff]
    %v315 = vld [vmem:[#allocation2 + $0x798] sm:$0xff]
    %v316 = vld [vmem:[#allocation2 + $0x7a0] sm:$0xff]
    %v317 = vld [vmem:[#allocation2 + $0x7a8] sm:$0xff]
    %v318 = vld [vmem:[#allocation2 + $0x7b0] sm:$0xff]
    %v319 = vld [vmem:[#allocation2 + $0x7b8] sm:$0xff]
    %v320 = vld [vmem:[#allocation2 + $0x7c0] sm:$0xff]
    %v321 = vld [vmem:[#allocation2 + $0x7c8] sm:$0xff]
    %v322 = vld [vmem:[#allocation2 + $0x7d0] sm:$0xff]
    %v323 = vld [vmem:[#allocation2 + $0x7d8] sm:$0xff]
    %v324 = vld [vmem:[#allocation2 + $0x7e0] sm:$0xff]
    %v325 = vld [vmem:[#allocation2 + $0x7e8] sm:$0xff]
    %v326 = vld [vmem:[#allocation2 + $0x7f0] sm:$0xff]
    %v327 = vld [vmem:[#allocation2 + $0x7f8] sm:$0xff]
    %v328 = vld [vmem:[#allocation2 + $0x800] sm:$0xff]
    %v329 = vld [vmem:[#allocation2 + $0x808] sm:$0xff]
    %v330 = vld [vmem:[#allocation2 + $0x810] sm:$0xff]
    %v331 = vld [vmem:[#allocation2 + $0x818] sm:$0xff]
    %v332 = vld [vmem:[#allocation2 + $0x820] sm:$0xff]
    %v333 = vld [vmem:[#allocation2 + $0x828] sm:$0xff]
    %v334 = vld [vmem:[#allocation2 + $0x830] sm:$0xff]
    %v335 = vld [vmem:[#allocation2 + $0x838] sm:$0xff]
    %v336 = vld [vmem:[#allocation2 + $0x840] sm:$0xff]
    %v337 = vld [vmem:[#allocation2 + $0x848] sm:$0xff]
    %v338 = vld [vmem:[#allocation2 + $0x850] sm:$0xff]
    %v339 = vld [vmem:[#allocation2 + $0x858] sm:$0xff]
    %v340 = vld [vmem:[#allocation2 + $0x860] sm:$0xff]
    %v341 = vld [vmem:[#allocation2 + $0x868] sm:$0xff]
    %v342 = vld [vmem:[#allocation2 + $0x870] sm:$0xff]
    %v343 = vld [vmem:[#allocation2 + $0x878] sm:$0xff]
    %v344 = vld [vmem:[#allocation2 + $0x880] sm:$0xff]
    %v345 = vld [vmem:[#allocation2 + $0x888] sm:$0xff]
    %v346 = vld [vmem:[#allocation2 + $0x890] sm:$0xff]
    %v347 = vld [vmem:[#allocation2 + $0x898] sm:$0xff]
    %v348 = vld [vmem:[#allocation2 + $0x8a0] sm:$0xff]
    %v349 = vld [vmem:[#allocation2 + $0x8a8] sm:$0xff]
    %v350 = vld [vmem:[#allocation2 + $0x8b0] sm:$0xff]
    %v351 = vld [vmem:[#allocation2 + $0x8b8] sm:$0xff]
    %v352 = vld [vmem:[#allocation2 + $0x8c0] sm:$0xff]
    %v353 = vld [vmem:[#allocation2 + $0x8c8] sm:$0xff]
    %v354 = vld [vmem:[#allocation2 + $0x8d0] sm:$0xff]
    %v355 = vld [vmem:[#allocation2 + $0x8d8] sm:$0xff]
    %v356 = vld [vmem:[#allocation2 + $0x8e0] sm:$0xff]
    %v357 = vld [vmem:[#allocation2 + $0x8e8] sm:$0xff]
    %v358 = vld [vmem:[#allocation2 + $0x8f0] sm:$0xff]
    %v359 = vld [vmem:[#allocation2 + $0x8f8] sm:$0xff]
    %v360 = vld [vmem:[#allocation2 + $0x900] sm:$0xff]
    %v361 = vld [vmem:[#allocation2 + $0x908] sm:$0xff]
    %v362 = vld [vmem:[#allocation2 + $0x910] sm:$0xff]
    %v363 = vld [vmem:[#allocation2 + $0x918] sm:$0xff]
    %v364 = vld [vmem:[#allocation2 + $0x920] sm:$0xff]
    %v365 = vld [vmem:[#allocation2 + $0x928] sm:$0xff]
    %v366 = vld [vmem:[#allocation2 + $0x930] sm:$0xff]
    %v367 = vld [vmem:[#allocation2 + $0x938] sm:$0xff]
    %v368 = vld [vmem:[#allocation2 + $0x940] sm:$0xff]
    %v369 = vld [vmem:[#allocation2 + $0x948] sm:$0xff]
    %v370 = vld [vmem:[#allocation2 + $0x950] sm:$0xff]
    %v371 = vld [vmem:[#allocation2 + $0x958] sm:$0xff]
    %v372 = vld [vmem:[#allocation2 + $0x960] sm:$0xff]
    %v373 = vld [vmem:[#allocation2 + $0x968] sm:$0xff]
    %v374 = vld [vmem:[#allocation2 + $0x970] sm:$0xff]
    %v375 = vld [vmem:[#allocation2 + $0x978] sm:$0xff]
    %v376 = vld [vmem:[#allocation2 + $0x980] sm:$0xff]
    %v377 = vld [vmem:[#allocation2 + $0x988] sm:$0xff]
    %v378 = vld [vmem:[#allocation2 + $0x990] sm:$0xff]
    %v379 = vld [vmem:[#allocation2 + $0x998] sm:$0xff]
    %v380 = vld [vmem:[#allocation2 + $0x9a0] sm:$0xff]
    %v381 = vld [vmem:[#allocation2 + $0x9a8] sm:$0xff]
    %v382 = vld [vmem:[#allocation2 + $0x9b0] sm:$0xff]
    %v383 = vld [vmem:[#allocation2 + $0x9b8] sm:$0xff]
    %v384 = vld [vmem:[#allocation2 + $0x9c0] sm:$0xff]
    %v385 = vld [vmem:[#allocation2 + $0x9c8] sm:$0xff]
    %v386 = vld [vmem:[#allocation2 + $0x9d0] sm:$0xff]
    %v387 = vld [vmem:[#allocation2 + $0x9d8] sm:$0xff]
    %v388 = vld [vmem:[#allocation2 + $0x9e0] sm:$0xff]
    %v389 = vld [vmem:[#allocation2 + $0x9e8] sm:$0xff]
    %v390 = vld [vmem:[#allocation2 + $0x9f0] sm:$0xff]
    %v391 = vld [vmem:[#allocation2 + $0x9f8] sm:$0xff]
    %v392 = vld [vmem:[#allocation2 + $0xa00] sm:$0xff]
    %v393 = vld [vmem:[#allocation2 + $0xa08] sm:$0xff]
    %v394 = vld [vmem:[#allocation2 + $0xa10] sm:$0xff]
    %v395 = vld [vmem:[#allocation2 + $0xa18] sm:$0xff]
    %v396 = vld [vmem:[#allocation2 + $0xa20] sm:$0xff]
    %v397 = vld [vmem:[#allocation2 + $0xa28] sm:$0xff]
    %v398 = vld [vmem:[#allocation2 + $0xa30] sm:$0xff]
    %v399 = vld [vmem:[#allocation2 + $0xa38] sm:$0xff]
    %v400 = vld [vmem:[#allocation2 + $0xa40] sm:$0xff]
    %v401 = vld [vmem:[#allocation2 + $0xa48] sm:$0xff]
    %v402 = vld [vmem:[#allocation2 + $0xa50] sm:$0xff]
    %v403 = vld [vmem:[#allocation2 + $0xa58] sm:$0xff]
    %v404 = vld [vmem:[#allocation2 + $0xa60] sm:$0xff]
    %v405 = vld [vmem:[#allocation2 + $0xa68] sm:$0xff]
    %v406 = vld [vmem:[#allocation2 + $0xa70] sm:$0xff]
    %v407 = vld [vmem:[#allocation2 + $0xa78] sm:$0xff]
    %v408 = vld [vmem:[#allocation2 + $0xa80] sm:$0xff]
    %v409 = vld [vmem:[#allocation2 + $0xa88] sm:$0xff]
    %v410 = vld [vmem:[#allocation2 + $0xa90] sm:$0xff]
    %v411 = vld [vmem:[#allocation2 + $0xa98] sm:$0xff]
    %v412 = vld [vmem:[#allocation2 + $0xaa0] sm:$0xff]
    %v413 = vld [vmem:[#allocation2 + $0xaa8] sm:$0xff]
    %v414 = vld [vmem:[#allocation2 + $0xab0] sm:$0xff]
    %v415 = vld [vmem:[#allocation2 + $0xab8] sm:$0xff]
    %v416 = vld [vmem:[#allocation2 + $0xac0] sm:$0xff]
    %v417 = vld [vmem:[#allocation2 + $0xac8] sm:$0xff]
    %v418 = vld [vmem:[#allocation2 + $0xad0] sm:$0xff]
    %v419 = vld [vmem:[#allocation2 + $0xad8] sm:$0xff]
    %v420 = vld [vmem:[#allocation2 + $0xae0] sm:$0xff]
    %v421 = vld [vmem:[#allocation2 + $0xae8] sm:$0xff]
    %v422 = vld [vmem:[#allocation2 + $0xaf0] sm:$0xff]
    %v423 = vld [vmem:[#allocation2 + $0xaf8] sm:$0xff]
    %v424 = vld [vmem:[#allocation2 + $0xb00] sm:$0xff]
    %v425 = vld [vmem:[#allocation2 + $0xb08] sm:$0xff]
    %v426 = vld [vmem:[#allocation2 + $0xb10] sm:$0xff]
    %v427 = vld [vmem:[#allocation2 + $0xb18] sm:$0xff]
    %v428 = vld [vmem:[#allocation2 + $0xb20] sm:$0xff]
    %v429 = vld [vmem:[#allocation2 + $0xb28] sm:$0xff]
    %v430 = vld [vmem:[#allocation2 + $0xb30] sm:$0xff]
    %v431 = vld [vmem:[#allocation2 + $0xb38] sm:$0xff]
    %v432 = vld [vmem:[#allocation2 + $0xb40] sm:$0xff]
    %v433 = vld [vmem:[#allocation2 + $0xb48] sm:$0xff]
    %v434 = vld [vmem:[#allocation2 + $0xb50] sm:$0xff]
    %v435 = vld [vmem:[#allocation2 + $0xb58] sm:$0xff]
    %v436 = vld [vmem:[#allocation2 + $0xb60] sm:$0xff]
    %v437 = vld [vmem:[#allocation2 + $0xb68] sm:$0xff]
    %v438 = vld [vmem:[#allocation2 + $0xb70] sm:$0xff]
    %v439 = vld [vmem:[#allocation2 + $0xb78] sm:$0xff]
    %v440 = vld [vmem:[#allocation2 + $0xb80] sm:$0xff]
    %v441 = vld [vmem:[#allocation2 + $0xb88] sm:$0xff]
    %v442 = vld [vmem:[#allocation2 + $0xb90] sm:$0xff]
    %v443 = vld [vmem:[#allocation2 + $0xb98] sm:$0xff]
    %v444 = vld [vmem:[#allocation2 + $0xba0] sm:$0xff]
    %v445 = vld [vmem:[#allocation2 + $0xba8] sm:$0xff]
    %v446 = vld [vmem:[#allocation2 + $0xbb0] sm:$0xff]
    %v447 = vld [vmem:[#allocation2 + $0xbb8] sm:$0xff]
    %v448 = vld [vmem:[#allocation2 + $0xbc0] sm:$0xff]
    %v449 = vld [vmem:[#allocation2 + $0xbc8] sm:$0xff]
    %v450 = vld [vmem:[#allocation2 + $0xbd0] sm:$0xff]
    %v451 = vld [vmem:[#allocation2 + $0xbd8] sm:$0xff]
    %v452 = vld [vmem:[#allocation2 + $0xbe0] sm:$0xff]
    %v453 = vld [vmem:[#allocation2 + $0xbe8] sm:$0xff]
    %v454 = vld [vmem:[#allocation2 + $0xbf0] sm:$0xff]
    %v455 = vld [vmem:[#allocation2 + $0xbf8] sm:$0xff]
    %v456 = vld [vmem:[#allocation2 + $0xc00] sm:$0xff]
    %v457 = vld [vmem:[#allocation2 + $0xc08] sm:$0xff]
    %v458 = vld [vmem:[#allocation2 + $0xc10] sm:$0xff]
    %v459 = vld [vmem:[#allocation2 + $0xc18] sm:$0xff]
    %v460 = vld [vmem:[#allocation2 + $0xc20] sm:$0xff]
    %v461 = vld [vmem:[#allocation2 + $0xc28] sm:$0xff]
    %v462 = vld [vmem:[#allocation2 + $0xc30] sm:$0xff]
    %v463 = vld [vmem:[#allocation2 + $0xc38] sm:$0xff]
    %v464 = vld [vmem:[#allocation2 + $0xc40] sm:$0xff]
    %v465 = vld [vmem:[#allocation2 + $0xc48] sm:$0xff]
    %v466 = vld [vmem:[#allocation2 + $0xc50] sm:$0xff]
    %v467 = vld [vmem:[#allocation2 + $0xc58] sm:$0xff]
    %v468 = vld [vmem:[#allocation2 + $0xc60] sm:$0xff]
    %v469 = vld [vmem:[#allocation2 + $0xc68] sm:$0xff]
    %v470 = vld [vmem:[#allocation2 + $0xc70] sm:$0xff]
    %v471 = vld [vmem:[#allocation2 + $0xc78] sm:$0xff]
    %v472 = vld [vmem:[#allocation2 + $0xc80] sm:$0xff]
    %v473 = vld [vmem:[#allocation2 + $0xc88] sm:$0xff]
    %v474 = vld [vmem:[#allocation2 + $0xc90] sm:$0xff]
    %v475 = vld [vmem:[#allocation2 + $0xc98] sm:$0xff]
    %v476 = vld [vmem:[#allocation2 + $0xca0] sm:$0xff]
    %v477 = vld [vmem:[#allocation2 + $0xca8] sm:$0xff]
    %v478 = vld [vmem:[#allocation2 + $0xcb0] sm:$0xff]
    %v479 = vld [vmem:[#allocation2 + $0xcb8] sm:$0xff]
    %v480 = vld [vmem:[#allocation2 + $0xcc0] sm:$0xff]
    %v481 = vld [vmem:[#allocation2 + $0xcc8] sm:$0xff]
    %v482 = vld [vmem:[#allocation2 + $0xcd0] sm:$0xff]
    %v483 = vld [vmem:[#allocation2 + $0xcd8] sm:$0xff]
    %v484 = vld [vmem:[#allocation2 + $0xce0] sm:$0xff]
    %v485 = vld [vmem:[#allocation2 + $0xce8] sm:$0xff]
    %v486 = vld [vmem:[#allocation2 + $0xcf0] sm:$0xff]
    %v487 = vld [vmem:[#allocation2 + $0xcf8] sm:$0xff]
    %v488 = vld [vmem:[#allocation2 + $0xd00] sm:$0xff]
    %v489 = vld [vmem:[#allocation2 + $0xd08] sm:$0xff]
    %v490 = vld [vmem:[#allocation2 + $0xd10] sm:$0xff]
    %v491 = vld [vmem:[#allocation2 + $0xd18] sm:$0xff]
    %v492 = vld [vmem:[#allocation2 + $0xd20] sm:$0xff]
    %v493 = vld [vmem:[#allocation2 + $0xd28] sm:$0xff]
    %v494 = vld [vmem:[#allocation2 + $0xd30] sm:$0xff]
    %v495 = vld [vmem:[#allocation2 + $0xd38] sm:$0xff]
    %v496 = vld [vmem:[#allocation2 + $0xd40] sm:$0xff]
    %v497 = vld [vmem:[#allocation2 + $0xd48] sm:$0xff]
    %v498 = vld [vmem:[#allocation2 + $0xd50] sm:$0xff]
    %v499 = vld [vmem:[#allocation2 + $0xd58] sm:$0xff]
    %v500 = vld [vmem:[#allocation2 + $0xd60] sm:$0xff]
    %v501 = vld [vmem:[#allocation2 + $0xd68] sm:$0xff]
    %v502 = vld [vmem:[#allocation2 + $0xd70] sm:$0xff]
    %v503 = vld [vmem:[#allocation2 + $0xd78] sm:$0xff]
    %v504 = vld [vmem:[#allocation2 + $0xd80] sm:$0xff]
    %v505 = vld [vmem:[#allocation2 + $0xd88] sm:$0xff]
    %v506 = vld [vmem:[#allocation2 + $0xd90] sm:$0xff]
    %v507 = vld [vmem:[#allocation2 + $0xd98] sm:$0xff]
    %v508 = vld [vmem:[#allocation2 + $0xda0] sm:$0xff]
    %v509 = vld [vmem:[#allocation2 + $0xda8] sm:$0xff]
    %v510 = vld [vmem:[#allocation2 + $0xdb0] sm:$0xff]
    %v511 = vld [vmem:[#allocation2 + $0xdb8] sm:$0xff]
    %v512 = vld [vmem:[#allocation2 + $0xdc0] sm:$0xff]
    %v513 = vld [vmem:[#allocation2 + $0xdc8] sm:$0xff]
    %v514 = vld [vmem:[#allocation2 + $0xdd0] sm:$0xff]
    %v515 = vld [vmem:[#allocation2 + $0xdd8] sm:$0xff]
    %v516 = vld [vmem:[#allocation2 + $0xde0] sm:$0xff]
    %v517 = vld [vmem:[#allocation2 + $0xde8] sm:$0xff]
    %v518 = vld [vmem:[#allocation2 + $0xdf0] sm:$0xff]
    %v519 = vld [vmem:[#allocation2 + $0xdf8] sm:$0xff]
    %v520 = vld [vmem:[#allocation2 + $0xe00] sm:$0xff]
    %v521 = vld [vmem:[#allocation2 + $0xe08] sm:$0xff]
    %v522 = vld [vmem:[#allocation2 + $0xe10] sm:$0xff]
    %v523 = vld [vmem:[#allocation2 + $0xe18] sm:$0xff]
    %v524 = vld [vmem:[#allocation2 + $0xe20] sm:$0xff]
    %v525 = vld [vmem:[#allocation2 + $0xe28] sm:$0xff]
    %v526 = vld [vmem:[#allocation2 + $0xe30] sm:$0xff]
    %v527 = vld [vmem:[#allocation2 + $0xe38] sm:$0xff]
    %v528 = vld [vmem:[#allocation2 + $0xe40] sm:$0xff]
    %v529 = vld [vmem:[#allocation2 + $0xe48] sm:$0xff]
    %v530 = vld [vmem:[#allocation2 + $0xe50] sm:$0xff]
    %v531 = vld [vmem:[#allocation2 + $0xe58] sm:$0xff]
    %v532 = vld [vmem:[#allocation2 + $0xe60] sm:$0xff]
    %v533 = vld [vmem:[#allocation2 + $0xe68] sm:$0xff]
    %v534 = vld [vmem:[#allocation2 + $0xe70] sm:$0xff]
    %v535 = vld [vmem:[#allocation2 + $0xe78] sm:$0xff]
    %v536 = vld [vmem:[#allocation2 + $0xe80] sm:$0xff]
    %v537 = vld [vmem:[#allocation2 + $0xe88] sm:$0xff]
    %v538 = vld [vmem:[#allocation2 + $0xe90] sm:$0xff]
    %v539 = vld [vmem:[#allocation2 + $0xe98] sm:$0xff]
    %v540 = vld [vmem:[#allocation2 + $0xea0] sm:$0xff]
    %v541 = vld [vmem:[#allocation2 + $0xea8] sm:$0xff]
    %v542 = vld [vmem:[#allocation2 + $0xeb0] sm:$0xff]
    %v543 = vld [vmem:[#allocation2 + $0xeb8] sm:$0xff]
    %v544 = vld [vmem:[#allocation2 + $0xec0] sm:$0xff]
    %v545 = vld [vmem:[#allocation2 + $0xec8] sm:$0xff]
    %v546 = vld [vmem:[#allocation2 + $0xed0] sm:$0xff]
    %v547 = vld [vmem:[#allocation2 + $0xed8] sm:$0xff]
    %v548 = vld [vmem:[#allocation2 + $0xee0] sm:$0xff]
    %v549 = vld [vmem:[#allocation2 + $0xee8] sm:$0xff]
    %v550 = vld [vmem:[#allocation2 + $0xef0] sm:$0xff]
    %v551 = vld [vmem:[#allocation2 + $0xef8] sm:$0xff]
    %v552 = vld [vmem:[#allocation2 + $0xf00] sm:$0xff]
    %v553 = vld [vmem:[#allocation2 + $0xf08] sm:$0xff]
    %v554 = vld [vmem:[#allocation2 + $0xf10] sm:$0xff]
    %v555 = vld [vmem:[#allocation2 + $0xf18] sm:$0xff]
    %v556 = vld [vmem:[#allocation2 + $0xf20] sm:$0xff]
    %v557 = vld [vmem:[#allocation2 + $0xf28] sm:$0xff]
    %v558 = vld [vmem:[#allocation2 + $0xf30] sm:$0xff]
    %v559 = vld [vmem:[#allocation2 + $0xf38] sm:$0xff]
    %v560 = vld [vmem:[#allocation2 + $0xf40] sm:$0xff]
    %v561 = vld [vmem:[#allocation2 + $0xf48] sm:$0xff]
    %v562 = vld [vmem:[#allocation2 + $0xf50] sm:$0xff]
    %v563 = vld [vmem:[#allocation2 + $0xf58] sm:$0xff]
    %v564 = vld [vmem:[#allocation2 + $0xf60] sm:$0xff]
    %v565 = vld [vmem:[#allocation2 + $0xf68] sm:$0xff]
    %v566 = vld [vmem:[#allocation2 + $0xf70] sm:$0xff]
    %v567 = vld [vmem:[#allocation2 + $0xf78] sm:$0xff]
    %v568 = vld [vmem:[#allocation2 + $0xf80] sm:$0xff]
    %v569 = vld [vmem:[#allocation2 + $0xf88] sm:$0xff]
    %v570 = vld [vmem:[#allocation2 + $0xf90] sm:$0xff]
    %v571 = vld [vmem:[#allocation2 + $0xf98] sm:$0xff]
    %v572 = vld [vmem:[#allocation2 + $0xfa0] sm:$0xff]
    %v573 = vld [vmem:[#allocation2 + $0xfa8] sm:$0xff]
    %v574 = vld [vmem:[#allocation2 + $0xfb0] sm:$0xff]
    %v575 = vld [vmem:[#allocation2 + $0xfb8] sm:$0xff]
    %v576 = vld [vmem:[#allocation2 + $0xfc0] sm:$0xff]
    %v577 = vld [vmem:[#allocation2 + $0xfc8] sm:$0xff]
    %v578 = vld [vmem:[#allocation2 + $0xfd0] sm:$0xff]
    %v579 = vld [vmem:[#allocation2 + $0xfd8] sm:$0xff]
    %v580 = vld [vmem:[#allocation2 + $0xfe0] sm:$0xff]
    %v581 = vld [vmem:[#allocation2 + $0xfe8] sm:$0xff]
    %v582 = vld [vmem:[#allocation2 + $0xff0] sm:$0xff]
    %v583 = vld [vmem:[#allocation2 + $0xff8] sm:$0xff]
    %v584 = vld [vmem:[#allocation2 + $0x1000] sm:$0xff]
    %v585 = vld [vmem:[#allocation2 + $0x1008] sm:$0xff]
    %v586 = vld [vmem:[#allocation2 + $0x1010] sm:$0xff]
    %v587 = vld [vmem:[#allocation2 + $0x1018] sm:$0xff]
    %v588 = vld [vmem:[#allocation2 + $0x1020] sm:$0xff]
    %v589 = vld [vmem:[#allocation2 + $0x1028] sm:$0xff]
    %v590 = vld [vmem:[#allocation2 + $0x1030] sm:$0xff]
    %v591 = vld [vmem:[#allocation2 + $0x1038] sm:$0xff]
    %v592 = vld [vmem:[#allocation2 + $0x1040] sm:$0xff]
    %v593 = vld [vmem:[#allocation2 + $0x1048] sm:$0xff]
    %v594 = vld [vmem:[#allocation2 + $0x1050] sm:$0xff]
    %v595 = vld [vmem:[#allocation2 + $0x1058] sm:$0xff]
    %v596 = vld [vmem:[#allocation2 + $0x1060] sm:$0xff]
    %v597 = vld [vmem:[#allocation2 + $0x1068] sm:$0xff]
    %v598 = vld [vmem:[#allocation2 + $0x1070] sm:$0xff]
    %v599 = vld [vmem:[#allocation2 + $0x1078] sm:$0xff]
    %v600 = vld [vmem:[#allocation2 + $0x1080] sm:$0xff]
    %v601 = vld [vmem:[#allocation2 + $0x1088] sm:$0xff]
    %v602 = vld [vmem:[#allocation2 + $0x1090] sm:$0xff]
    %v603 = vld [vmem:[#allocation2 + $0x1098] sm:$0xff]
    %v604 = vld [vmem:[#allocation2 + $0x10a0] sm:$0xff]
    %v605 = vld [vmem:[#allocation2 + $0x10a8] sm:$0xff]
    %v606 = vld [vmem:[#allocation2 + $0x10b0] sm:$0xff]
    %v607 = vld [vmem:[#allocation2 + $0x10b8] sm:$0xff]
    %v608 = vld [vmem:[#allocation2 + $0x10c0] sm:$0xff]
    %v609 = vld [vmem:[#allocation2 + $0x10c8] sm:$0xff]
    %v610 = vld [vmem:[#allocation2 + $0x10d0] sm:$0xff]
    %v611 = vld [vmem:[#allocation2 + $0x10d8] sm:$0xff]
    %v612 = vld [vmem:[#allocation2 + $0x10e0] sm:$0xff]
    %v613 = vld [vmem:[#allocation2 + $0x10e8] sm:$0xff]
    %v614 = vld [vmem:[#allocation2 + $0x10f0] sm:$0xff]
    %v615 = vld [vmem:[#allocation2 + $0x10f8] sm:$0xff]
    %v616 = vld [vmem:[#allocation2 + $0x1100] sm:$0xff]
    %v617 = vld [vmem:[#allocation2 + $0x1108] sm:$0xff]
    %v618 = vld [vmem:[#allocation2 + $0x1110] sm:$0xff]
    %v619 = vld [vmem:[#allocation2 + $0x1118] sm:$0xff]
    %v620 = vld [vmem:[#allocation2 + $0x1120] sm:$0xff]
    %v621 = vld [vmem:[#allocation2 + $0x1128] sm:$0xff]
    %v622 = vld [vmem:[#allocation2 + $0x1130] sm:$0xff]
    %v623 = vld [vmem:[#allocation2 + $0x1138] sm:$0xff]
    %v624 = vld [vmem:[#allocation2 + $0x1140] sm:$0xff]
    %v625 = vld [vmem:[#allocation2 + $0x1148] sm:$0xff]
    %v626 = vld [vmem:[#allocation2 + $0x1150] sm:$0xff]
    %v627 = vld [vmem:[#allocation2 + $0x1158] sm:$0xff]
    %v628 = vld [vmem:[#allocation2 + $0x1160] sm:$0xff]
    %v629 = vld [vmem:[#allocation2 + $0x1168] sm:$0xff]
    %v630 = vld [vmem:[#allocation2 + $0x1170] sm:$0xff]
    %v631 = vld [vmem:[#allocation2 + $0x1178] sm:$0xff]
    %v640 = vunpack.c.l.b16 %v64
    %v641 = vunpack.c.h.b16 %v64
    %v642 = vunpack.c.l.b16 %v65
    %v643 = vunpack.c.h.b16 %v65
    %v644 = vunpack.c.l.b16 %v66
    %v645 = vunpack.c.h.b16 %v66
    %v646 = vunpack.c.l.b16 %v67
    %v647 = vunpack.c.l.b16 %v68
    %v648 = vunpack.c.h.b16 %v68
    %v649 = vunpack.c.l.b16 %v69
    %v650 = vunpack.c.h.b16 %v69
    %v651 = vunpack.c.l.b16 %v70
    %v652 = vunpack.c.h.b16 %v70
    %v653 = vunpack.c.l.b16 %v71
    %v654 = vpack.c.b16 %v647, %v640
    %v655 = vpack.c.b16 %v648, %v641
    %v656 = vpack.c.b16 %v649, %v642
    %v657 = vpack.c.b16 %v650, %v643
    %v658 = vpack.c.b16 %v651, %v644
    %v659 = vpack.c.b16 %v652, %v645
    %v660 = vpack.c.b16 %v653, %v646
    %v1228 = vunpack.c.l.b16 %v72
    %v1229 = vunpack.c.h.b16 %v72
    %v1230 = vunpack.c.l.b16 %v73
    %v1231 = vunpack.c.h.b16 %v73
    %v1232 = vunpack.c.l.b16 %v74
    %v1233 = vunpack.c.h.b16 %v74
    %v1234 = vunpack.c.l.b16 %v75
    %v1235 = vunpack.c.h.b16 %v75
    %v1236 = vunpack.c.l.b16 %v76
    %v1237 = vunpack.c.h.b16 %v76
    %v1238 = vunpack.c.l.b16 %v77
    %v1239 = vunpack.c.h.b16 %v77
    %v1240 = vunpack.c.l.b16 %v78
    %v1241 = vunpack.c.h.b16 %v78
    %v1242 = vunpack.c.l.b16 %v79
    %v1243 = vunpack.c.h.b16 %v79
    %v1244 = vunpack.c.l.b16 %v80
    %v1245 = vunpack.c.h.b16 %v80
    %v1246 = vunpack.c.l.b16 %v81
    %v1247 = vunpack.c.h.b16 %v81
    %v1248 = vunpack.c.l.b16 %v82
    %v1249 = vunpack.c.h.b16 %v82
    %v1250 = vunpack.c.l.b16 %v83
    %v1251 = vunpack.c.h.b16 %v83
    %v1252 = vunpack.c.l.b16 %v84
    %v1253 = vunpack.c.h.b16 %v84
    %v1254 = vunpack.c.l.b16 %v85
    %v1255 = vunpack.c.h.b16 %v85
    %v1256 = vunpack.c.l.b16 %v86
    %v1257 = vunpack.c.h.b16 %v86
    %v1258 = vunpack.c.l.b16 %v87
    %v1259 = vunpack.c.h.b16 %v87
    %v1260 = vunpack.c.l.b16 %v88
    %v1261 = vunpack.c.h.b16 %v88
    %v1262 = vunpack.c.l.b16 %v89
    %v1263 = vunpack.c.h.b16 %v89
    %v1264 = vunpack.c.l.b16 %v90
    %v1265 = vunpack.c.h.b16 %v90
    %v1266 = vunpack.c.l.b16 %v91
    %v1267 = vunpack.c.h.b16 %v91
    %v1268 = vunpack.c.l.b16 %v92
    %v1269 = vunpack.c.h.b16 %v92
    %v1270 = vunpack.c.l.b16 %v93
    %v1271 = vunpack.c.h.b16 %v93
    %v1272 = vunpack.c.l.b16 %v94
    %v1273 = vunpack.c.h.b16 %v94
    %v1274 = vunpack.c.l.b16 %v95
    %v1275 = vunpack.c.h.b16 %v95
    %v1276 = vunpack.c.l.b16 %v96
    %v1277 = vunpack.c.h.b16 %v96
    %v1278 = vunpack.c.l.b16 %v97
    %v1279 = vunpack.c.h.b16 %v97
    %v1280 = vunpack.c.l.b16 %v98
    %v1281 = vunpack.c.h.b16 %v98
    %v1282 = vunpack.c.l.b16 %v99
    %v1283 = vunpack.c.h.b16 %v99
    %v1284 = vunpack.c.l.b16 %v100
    %v1285 = vunpack.c.h.b16 %v100
    %v1286 = vunpack.c.l.b16 %v101
    %v1287 = vunpack.c.h.b16 %v101
    %v1288 = vunpack.c.l.b16 %v102
    %v1289 = vunpack.c.h.b16 %v102
    %v1290 = vunpack.c.l.b16 %v103
    %v1291 = vunpack.c.h.b16 %v103
    %v1292 = vunpack.c.l.b16 %v104
    %v1293 = vunpack.c.h.b16 %v104
    %v1294 = vunpack.c.l.b16 %v105
    %v1295 = vunpack.c.h.b16 %v105
    %v1296 = vunpack.c.l.b16 %v106
    %v1297 = vunpack.c.h.b16 %v106
    %v1298 = vunpack.c.l.b16 %v107
    %v1299 = vunpack.c.h.b16 %v107
    %v1300 = vunpack.c.l.b16 %v108
    %v1301 = vunpack.c.h.b16 %v108
    %v1302 = vunpack.c.l.b16 %v109
    %v1303 = vunpack.c.h.b16 %v109
    %v1304 = vunpack.c.l.b16 %v110
    %v1305 = vunpack.c.h.b16 %v110
    %v1306 = vunpack.c.l.b16 %v111
    %v1307 = vunpack.c.h.b16 %v111
    %v1308 = vunpack.c.l.b16 %v112
    %v1309 = vunpack.c.h.b16 %v112
    %v1310 = vunpack.c.l.b16 %v113
    %v1311 = vunpack.c.h.b16 %v113
    %v1312 = vunpack.c.l.b16 %v114
    %v1313 = vunpack.c.h.b16 %v114
    %v1314 = vunpack.c.l.b16 %v115
    %v1315 = vunpack.c.h.b16 %v115
    %v1316 = vunpack.c.l.b16 %v116
    %v1317 = vunpack.c.h.b16 %v116
    %v1318 = vunpack.c.l.b16 %v117
    %v1319 = vunpack.c.h.b16 %v117
    %v1320 = vunpack.c.l.b16 %v118
    %v1321 = vunpack.c.h.b16 %v118
    %v1322 = vunpack.c.l.b16 %v119
    %v1323 = vunpack.c.h.b16 %v119
    %v1324 = vunpack.c.l.b16 %v120
    %v1325 = vunpack.c.h.b16 %v120
    %v1326 = vunpack.c.l.b16 %v121
    %v1327 = vunpack.c.h.b16 %v121
    %v1328 = vunpack.c.l.b16 %v122
    %v1329 = vunpack.c.h.b16 %v122
    %v1330 = vunpack.c.l.b16 %v123
    %v1331 = vunpack.c.h.b16 %v123
    %v1332 = vunpack.c.l.b16 %v124
    %v1333 = vunpack.c.h.b16 %v124
    %v1334 = vunpack.c.l.b16 %v125
    %v1335 = vunpack.c.h.b16 %v125
    %v1336 = vunpack.c.l.b16 %v126
    %v1337 = vunpack.c.h.b16 %v126
    %v1338 = vunpack.c.l.b16 %v127
    %v1339 = vunpack.c.h.b16 %v127
    %v1340 = vunpack.c.l.b16 %v128
    %v1341 = vunpack.c.h.b16 %v128
    %v1342 = vunpack.c.l.b16 %v129
    %v1343 = vunpack.c.h.b16 %v129
    %v1344 = vunpack.c.l.b16 %v130
    %v1345 = vunpack.c.h.b16 %v130
    %v1346 = vunpack.c.l.b16 %v131
    %v1347 = vunpack.c.h.b16 %v131
    %v1348 = vunpack.c.l.b16 %v132
    %v1349 = vunpack.c.h.b16 %v132
    %v1350 = vunpack.c.l.b16 %v133
    %v1351 = vunpack.c.h.b16 %v133
    %v1352 = vunpack.c.l.b16 %v134
    %v1353 = vunpack.c.h.b16 %v134
    %v1354 = vunpack.c.l.b16 %v135
    %v1355 = vunpack.c.h.b16 %v135
    %v1356 = vunpack.c.l.b16 %v136
    %v1357 = vunpack.c.h.b16 %v136
    %v1358 = vunpack.c.l.b16 %v137
    %v1359 = vunpack.c.h.b16 %v137
    %v1360 = vunpack.c.l.b16 %v138
    %v1361 = vunpack.c.h.b16 %v138
    %v1362 = vunpack.c.l.b16 %v139
    %v1363 = vunpack.c.h.b16 %v139
    %v1364 = vunpack.c.l.b16 %v140
    %v1365 = vunpack.c.h.b16 %v140
    %v1366 = vunpack.c.l.b16 %v141
    %v1367 = vunpack.c.h.b16 %v141
    %v1368 = vunpack.c.l.b16 %v142
    %v1369 = vunpack.c.h.b16 %v142
    %v1370 = vunpack.c.l.b16 %v143
    %v1371 = vunpack.c.h.b16 %v143
    %v1372 = vunpack.c.l.b16 %v144
    %v1373 = vunpack.c.h.b16 %v144
    %v1374 = vunpack.c.l.b16 %v145
    %v1375 = vunpack.c.h.b16 %v145
    %v1376 = vunpack.c.l.b16 %v146
    %v1377 = vunpack.c.h.b16 %v146
    %v1378 = vunpack.c.l.b16 %v147
    %v1379 = vunpack.c.h.b16 %v147
    %v1380 = vunpack.c.l.b16 %v148
    %v1381 = vunpack.c.h.b16 %v148
    %v1382 = vunpack.c.l.b16 %v149
    %v1383 = vunpack.c.h.b16 %v149
    %v1384 = vunpack.c.l.b16 %v150
    %v1385 = vunpack.c.h.b16 %v150
    %v1386 = vunpack.c.l.b16 %v151
    %v1387 = vunpack.c.h.b16 %v151
    %v1388 = vunpack.c.l.b16 %v152
    %v1389 = vunpack.c.h.b16 %v152
    %v1390 = vunpack.c.l.b16 %v153
    %v1391 = vunpack.c.h.b16 %v153
    %v1392 = vunpack.c.l.b16 %v154
    %v1393 = vunpack.c.h.b16 %v154
    %v1394 = vunpack.c.l.b16 %v155
    %v1395 = vunpack.c.h.b16 %v155
    %v1396 = vunpack.c.l.b16 %v156
    %v1397 = vunpack.c.h.b16 %v156
    %v1398 = vunpack.c.l.b16 %v157
    %v1399 = vunpack.c.h.b16 %v157
    %v1400 = vunpack.c.l.b16 %v158
    %v1401 = vunpack.c.h.b16 %v158
    %v1402 = vunpack.c.l.b16 %v159
    %v1403 = vunpack.c.h.b16 %v159
    %v1404 = vunpack.c.l.b16 %v160
    %v1405 = vunpack.c.h.b16 %v160
    %v1406 = vunpack.c.l.b16 %v161
    %v1407 = vunpack.c.h.b16 %v161
    %v1408 = vunpack.c.l.b16 %v162
    %v1409 = vunpack.c.h.b16 %v162
    %v1410 = vunpack.c.l.b16 %v163
    %v1411 = vunpack.c.h.b16 %v163
    %v1412 = vunpack.c.l.b16 %v164
    %v1413 = vunpack.c.h.b16 %v164
    %v1414 = vunpack.c.l.b16 %v165
    %v1415 = vunpack.c.h.b16 %v165
    %v1416 = vunpack.c.l.b16 %v166
    %v1417 = vunpack.c.h.b16 %v166
    %v1418 = vunpack.c.l.b16 %v167
    %v1419 = vunpack.c.h.b16 %v167
    %v1420 = vunpack.c.l.b16 %v168
    %v1421 = vunpack.c.h.b16 %v168
    %v1422 = vunpack.c.l.b16 %v169
    %v1423 = vunpack.c.h.b16 %v169
    %v1424 = vunpack.c.l.b16 %v170
    %v1425 = vunpack.c.h.b16 %v170
    %v1426 = vunpack.c.l.b16 %v171
    %v1427 = vunpack.c.h.b16 %v171
    %v1428 = vunpack.c.l.b16 %v172
    %v1429 = vunpack.c.h.b16 %v172
    %v1430 = vunpack.c.l.b16 %v173
    %v1431 = vunpack.c.h.b16 %v173
    %v1432 = vunpack.c.l.b16 %v174
    %v1433 = vunpack.c.h.b16 %v174
    %v1434 = vunpack.c.l.b16 %v175
    %v1435 = vunpack.c.h.b16 %v175
    %v1436 = vunpack.c.l.b16 %v176
    %v1437 = vunpack.c.h.b16 %v176
    %v1438 = vunpack.c.l.b16 %v177
    %v1439 = vunpack.c.h.b16 %v177
    %v1440 = vunpack.c.l.b16 %v178
    %v1441 = vunpack.c.h.b16 %v178
    %v1442 = vunpack.c.l.b16 %v179
    %v1443 = vunpack.c.h.b16 %v179
    %v1444 = vunpack.c.l.b16 %v180
    %v1445 = vunpack.c.h.b16 %v180
    %v1446 = vunpack.c.l.b16 %v181
    %v1447 = vunpack.c.h.b16 %v181
    %v1448 = vunpack.c.l.b16 %v182
    %v1449 = vunpack.c.h.b16 %v182
    %v1450 = vunpack.c.l.b16 %v183
    %v1451 = vunpack.c.h.b16 %v183
    %v1452 = vunpack.c.l.b16 %v184
    %v1453 = vunpack.c.h.b16 %v184
    %v1454 = vunpack.c.l.b16 %v185
    %v1455 = vunpack.c.h.b16 %v185
    %v1456 = vunpack.c.l.b16 %v186
    %v1457 = vunpack.c.h.b16 %v186
    %v1458 = vunpack.c.l.b16 %v187
    %v1459 = vunpack.c.h.b16 %v187
    %v1460 = vunpack.c.l.b16 %v188
    %v1461 = vunpack.c.h.b16 %v188
    %v1462 = vunpack.c.l.b16 %v189
    %v1463 = vunpack.c.h.b16 %v189
    %v1464 = vunpack.c.l.b16 %v190
    %v1465 = vunpack.c.h.b16 %v190
    %v1466 = vunpack.c.l.b16 %v191
    %v1467 = vunpack.c.h.b16 %v191
    %v1468 = vunpack.c.l.b16 %v192
    %v1469 = vunpack.c.h.b16 %v192
    %v1470 = vunpack.c.l.b16 %v193
    %v1471 = vunpack.c.h.b16 %v193
    %v1472 = vunpack.c.l.b16 %v194
    %v1473 = vunpack.c.h.b16 %v194
    %v1474 = vunpack.c.l.b16 %v195
    %v1475 = vunpack.c.h.b16 %v195
    %v1476 = vunpack.c.l.b16 %v196
    %v1477 = vunpack.c.h.b16 %v196
    %v1478 = vunpack.c.l.b16 %v197
    %v1479 = vunpack.c.h.b16 %v197
    %v1480 = vunpack.c.l.b16 %v198
    %v1481 = vunpack.c.h.b16 %v198
    %v1482 = vunpack.c.l.b16 %v199
    %v1483 = vunpack.c.h.b16 %v199
    %v1484 = vunpack.c.l.b16 %v200
    %v1485 = vunpack.c.h.b16 %v200
    %v1486 = vunpack.c.l.b16 %v201
    %v1487 = vunpack.c.h.b16 %v201
    %v1488 = vunpack.c.l.b16 %v202
    %v1489 = vunpack.c.h.b16 %v202
    %v1490 = vunpack.c.l.b16 %v203
    %v1491 = vunpack.c.h.b16 %v203
    %v1492 = vunpack.c.l.b16 %v204
    %v1493 = vunpack.c.h.b16 %v204
    %v1494 = vunpack.c.l.b16 %v205
    %v1495 = vunpack.c.h.b16 %v205
    %v1496 = vunpack.c.l.b16 %v206
    %v1497 = vunpack.c.h.b16 %v206
    %v1498 = vunpack.c.l.b16 %v207
    %v1499 = vunpack.c.h.b16 %v207
    %v1500 = vunpack.c.l.b16 %v208
    %v1501 = vunpack.c.h.b16 %v208
    %v1502 = vunpack.c.l.b16 %v209
    %v1503 = vunpack.c.h.b16 %v209
    %v1504 = vunpack.c.l.b16 %v210
    %v1505 = vunpack.c.h.b16 %v210
    %v1506 = vunpack.c.l.b16 %v211
    %v1507 = vunpack.c.h.b16 %v211
    %v1508 = vunpack.c.l.b16 %v212
    %v1509 = vunpack.c.h.b16 %v212
    %v1510 = vunpack.c.l.b16 %v213
    %v1511 = vunpack.c.h.b16 %v213
    %v1512 = vunpack.c.l.b16 %v214
    %v1513 = vunpack.c.h.b16 %v214
    %v1514 = vunpack.c.l.b16 %v215
    %v1515 = vunpack.c.h.b16 %v215
    %v1516 = vunpack.c.l.b16 %v216
    %v1517 = vunpack.c.h.b16 %v216
    %v1518 = vunpack.c.l.b16 %v217
    %v1519 = vunpack.c.h.b16 %v217
    %v1520 = vunpack.c.l.b16 %v218
    %v1521 = vunpack.c.h.b16 %v218
    %v1522 = vunpack.c.l.b16 %v219
    %v1523 = vunpack.c.h.b16 %v219
    %v1524 = vunpack.c.l.b16 %v220
    %v1525 = vunpack.c.h.b16 %v220
    %v1526 = vunpack.c.l.b16 %v221
    %v1527 = vunpack.c.h.b16 %v221
    %v1528 = vunpack.c.l.b16 %v222
    %v1529 = vunpack.c.h.b16 %v222
    %v1530 = vunpack.c.l.b16 %v223
    %v1531 = vunpack.c.h.b16 %v223
    %v1532 = vunpack.c.l.b16 %v224
    %v1533 = vunpack.c.h.b16 %v224
    %v1534 = vunpack.c.l.b16 %v225
    %v1535 = vunpack.c.h.b16 %v225
    %v1536 = vunpack.c.l.b16 %v226
    %v1537 = vunpack.c.h.b16 %v226
    %v1538 = vunpack.c.l.b16 %v227
    %v1539 = vunpack.c.h.b16 %v227
    %v1540 = vunpack.c.l.b16 %v228
    %v1541 = vunpack.c.h.b16 %v228
    %v1542 = vunpack.c.l.b16 %v229
    %v1543 = vunpack.c.h.b16 %v229
    %v1544 = vunpack.c.l.b16 %v230
    %v1545 = vunpack.c.h.b16 %v230
    %v1546 = vunpack.c.l.b16 %v231
    %v1547 = vunpack.c.h.b16 %v231
    %v1548 = vunpack.c.l.b16 %v232
    %v1549 = vunpack.c.h.b16 %v232
    %v1550 = vunpack.c.l.b16 %v233
    %v1551 = vunpack.c.h.b16 %v233
    %v1552 = vunpack.c.l.b16 %v234
    %v1553 = vunpack.c.h.b16 %v234
    %v1554 = vunpack.c.l.b16 %v235
    %v1555 = vunpack.c.h.b16 %v235
    %v1556 = vunpack.c.l.b16 %v236
    %v1557 = vunpack.c.h.b16 %v236
    %v1558 = vunpack.c.l.b16 %v237
    %v1559 = vunpack.c.h.b16 %v237
    %v1560 = vunpack.c.l.b16 %v238
    %v1561 = vunpack.c.h.b16 %v238
    %v1562 = vunpack.c.l.b16 %v239
    %v1563 = vunpack.c.h.b16 %v239
    %v1564 = vunpack.c.l.b16 %v240
    %v1565 = vunpack.c.h.b16 %v240
    %v1566 = vunpack.c.l.b16 %v241
    %v1567 = vunpack.c.h.b16 %v241
    %v1568 = vunpack.c.l.b16 %v242
    %v1569 = vunpack.c.h.b16 %v242
    %v1570 = vunpack.c.l.b16 %v243
    %v1571 = vunpack.c.h.b16 %v243
    %v1572 = vunpack.c.l.b16 %v244
    %v1573 = vunpack.c.h.b16 %v244
    %v1574 = vunpack.c.l.b16 %v245
    %v1575 = vunpack.c.h.b16 %v245
    %v1576 = vunpack.c.l.b16 %v246
    %v1577 = vunpack.c.h.b16 %v246
    %v1578 = vunpack.c.l.b16 %v247
    %v1579 = vunpack.c.h.b16 %v247
    %v1580 = vunpack.c.l.b16 %v248
    %v1581 = vunpack.c.h.b16 %v248
    %v1582 = vunpack.c.l.b16 %v249
    %v1583 = vunpack.c.h.b16 %v249
    %v1584 = vunpack.c.l.b16 %v250
    %v1585 = vunpack.c.h.b16 %v250
    %v1586 = vunpack.c.l.b16 %v251
    %v1587 = vunpack.c.h.b16 %v251
    %v1588 = vunpack.c.l.b16 %v252
    %v1589 = vunpack.c.h.b16 %v252
    %v1590 = vunpack.c.l.b16 %v253
    %v1591 = vunpack.c.h.b16 %v253
    %v1592 = vunpack.c.l.b16 %v254
    %v1593 = vunpack.c.h.b16 %v254
    %v1594 = vunpack.c.l.b16 %v255
    %v1595 = vunpack.c.h.b16 %v255
    %v1596 = vunpack.c.l.b16 %v256
    %v1597 = vunpack.c.h.b16 %v256
    %v1598 = vunpack.c.l.b16 %v257
    %v1599 = vunpack.c.h.b16 %v257
    %v1600 = vunpack.c.l.b16 %v258
    %v1601 = vunpack.c.h.b16 %v258
    %v1602 = vunpack.c.l.b16 %v259
    %v1603 = vunpack.c.h.b16 %v259
    %v1604 = vunpack.c.l.b16 %v260
    %v1605 = vunpack.c.h.b16 %v260
    %v1606 = vunpack.c.l.b16 %v261
    %v1607 = vunpack.c.h.b16 %v261
    %v1608 = vunpack.c.l.b16 %v262
    %v1609 = vunpack.c.h.b16 %v262
    %v1610 = vunpack.c.l.b16 %v263
    %v1611 = vunpack.c.h.b16 %v263
    %v1612 = vunpack.c.l.b16 %v264
    %v1613 = vunpack.c.h.b16 %v264
    %v1614 = vunpack.c.l.b16 %v265
    %v1615 = vunpack.c.h.b16 %v265
    %v1616 = vunpack.c.l.b16 %v266
    %v1617 = vunpack.c.h.b16 %v266
    %v1618 = vunpack.c.l.b16 %v267
    %v1619 = vunpack.c.h.b16 %v267
    %v1620 = vunpack.c.l.b16 %v268
    %v1621 = vunpack.c.h.b16 %v268
    %v1622 = vunpack.c.l.b16 %v269
    %v1623 = vunpack.c.h.b16 %v269
    %v1624 = vunpack.c.l.b16 %v270
    %v1625 = vunpack.c.h.b16 %v270
    %v1626 = vunpack.c.l.b16 %v271
    %v1627 = vunpack.c.h.b16 %v271
    %v1628 = vunpack.c.l.b16 %v272
    %v1629 = vunpack.c.h.b16 %v272
    %v1630 = vunpack.c.l.b16 %v273
    %v1631 = vunpack.c.h.b16 %v273
    %v1632 = vunpack.c.l.b16 %v274
    %v1633 = vunpack.c.h.b16 %v274
    %v1634 = vunpack.c.l.b16 %v275
    %v1635 = vunpack.c.h.b16 %v275
    %v1636 = vunpack.c.l.b16 %v276
    %v1637 = vunpack.c.h.b16 %v276
    %v1638 = vunpack.c.l.b16 %v277
    %v1639 = vunpack.c.h.b16 %v277
    %v1640 = vunpack.c.l.b16 %v278
    %v1641 = vunpack.c.h.b16 %v278
    %v1642 = vunpack.c.l.b16 %v279
    %v1643 = vunpack.c.h.b16 %v279
    %v1644 = vunpack.c.l.b16 %v280
    %v1645 = vunpack.c.h.b16 %v280
    %v1646 = vunpack.c.l.b16 %v281
    %v1647 = vunpack.c.h.b16 %v281
    %v1648 = vunpack.c.l.b16 %v282
    %v1649 = vunpack.c.h.b16 %v282
    %v1650 = vunpack.c.l.b16 %v283
    %v1651 = vunpack.c.h.b16 %v283
    %v1652 = vunpack.c.l.b16 %v284
    %v1653 = vunpack.c.h.b16 %v284
    %v1654 = vunpack.c.l.b16 %v285
    %v1655 = vunpack.c.h.b16 %v285
    %v1656 = vunpack.c.l.b16 %v286
    %v1657 = vunpack.c.h.b16 %v286
    %v1658 = vunpack.c.l.b16 %v287
    %v1659 = vunpack.c.h.b16 %v287
    %v1660 = vunpack.c.l.b16 %v288
    %v1661 = vunpack.c.h.b16 %v288
    %v1662 = vunpack.c.l.b16 %v289
    %v1663 = vunpack.c.h.b16 %v289
    %v1664 = vunpack.c.l.b16 %v290
    %v1665 = vunpack.c.h.b16 %v290
    %v1666 = vunpack.c.l.b16 %v291
    %v1667 = vunpack.c.h.b16 %v291
    %v1668 = vunpack.c.l.b16 %v292
    %v1669 = vunpack.c.h.b16 %v292
    %v1670 = vunpack.c.l.b16 %v293
    %v1671 = vunpack.c.h.b16 %v293
    %v1672 = vunpack.c.l.b16 %v294
    %v1673 = vunpack.c.h.b16 %v294
    %v1674 = vunpack.c.l.b16 %v295
    %v1675 = vunpack.c.h.b16 %v295
    %v1676 = vunpack.c.l.b16 %v296
    %v1677 = vunpack.c.h.b16 %v296
    %v1678 = vunpack.c.l.b16 %v297
    %v1679 = vunpack.c.h.b16 %v297
    %v1680 = vunpack.c.l.b16 %v298
    %v1681 = vunpack.c.h.b16 %v298
    %v1682 = vunpack.c.l.b16 %v299
    %v1683 = vunpack.c.h.b16 %v299
    %v1684 = vunpack.c.l.b16 %v300
    %v1685 = vunpack.c.h.b16 %v300
    %v1686 = vunpack.c.l.b16 %v301
    %v1687 = vunpack.c.h.b16 %v301
    %v1688 = vunpack.c.l.b16 %v302
    %v1689 = vunpack.c.h.b16 %v302
    %v1690 = vunpack.c.l.b16 %v303
    %v1691 = vunpack.c.h.b16 %v303
    %v1692 = vunpack.c.l.b16 %v304
    %v1693 = vunpack.c.h.b16 %v304
    %v1694 = vunpack.c.l.b16 %v305
    %v1695 = vunpack.c.h.b16 %v305
    %v1696 = vunpack.c.l.b16 %v306
    %v1697 = vunpack.c.h.b16 %v306
    %v1698 = vunpack.c.l.b16 %v307
    %v1699 = vunpack.c.h.b16 %v307
    %v1700 = vunpack.c.l.b16 %v308
    %v1701 = vunpack.c.h.b16 %v308
    %v1702 = vunpack.c.l.b16 %v309
    %v1703 = vunpack.c.h.b16 %v309
    %v1704 = vunpack.c.l.b16 %v310
    %v1705 = vunpack.c.h.b16 %v310
    %v1706 = vunpack.c.l.b16 %v311
    %v1707 = vunpack.c.h.b16 %v311
    %v1708 = vunpack.c.l.b16 %v312
    %v1709 = vunpack.c.h.b16 %v312
    %v1710 = vunpack.c.l.b16 %v313
    %v1711 = vunpack.c.h.b16 %v313
    %v1712 = vunpack.c.l.b16 %v314
    %v1713 = vunpack.c.h.b16 %v314
    %v1714 = vunpack.c.l.b16 %v315
    %v1715 = vunpack.c.h.b16 %v315
    %v1716 = vunpack.c.l.b16 %v316
    %v1717 = vunpack.c.h.b16 %v316
    %v1718 = vunpack.c.l.b16 %v317
    %v1719 = vunpack.c.h.b16 %v317
    %v1720 = vunpack.c.l.b16 %v318
    %v1721 = vunpack.c.h.b16 %v318
    %v1722 = vunpack.c.l.b16 %v319
    %v1723 = vunpack.c.h.b16 %v319
    %v1724 = vunpack.c.l.b16 %v320
    %v1725 = vunpack.c.h.b16 %v320
    %v1726 = vunpack.c.l.b16 %v321
    %v1727 = vunpack.c.h.b16 %v321
    %v1728 = vunpack.c.l.b16 %v322
    %v1729 = vunpack.c.h.b16 %v322
    %v1730 = vunpack.c.l.b16 %v323
    %v1731 = vunpack.c.h.b16 %v323
    %v1732 = vunpack.c.l.b16 %v324
    %v1733 = vunpack.c.h.b16 %v324
    %v1734 = vunpack.c.l.b16 %v325
    %v1735 = vunpack.c.h.b16 %v325
    %v1736 = vunpack.c.l.b16 %v326
    %v1737 = vunpack.c.h.b16 %v326
    %v1738 = vunpack.c.l.b16 %v327
    %v1739 = vunpack.c.h.b16 %v327
    %v1740 = vunpack.c.l.b16 %v328
    %v1741 = vunpack.c.h.b16 %v328
    %v1742 = vunpack.c.l.b16 %v329
    %v1743 = vunpack.c.h.b16 %v329
    %v1744 = vunpack.c.l.b16 %v330
    %v1745 = vunpack.c.h.b16 %v330
    %v1746 = vunpack.c.l.b16 %v331
    %v1747 = vunpack.c.h.b16 %v331
    %v1748 = vunpack.c.l.b16 %v332
    %v1749 = vunpack.c.h.b16 %v332
    %v1750 = vunpack.c.l.b16 %v333
    %v1751 = vunpack.c.h.b16 %v333
    %v1752 = vunpack.c.l.b16 %v334
    %v1753 = vunpack.c.h.b16 %v334
    %v1754 = vunpack.c.l.b16 %v335
    %v1755 = vunpack.c.h.b16 %v335
    %v1756 = vunpack.c.l.b16 %v336
    %v1757 = vunpack.c.h.b16 %v336
    %v1758 = vunpack.c.l.b16 %v337
    %v1759 = vunpack.c.h.b16 %v337
    %v1760 = vunpack.c.l.b16 %v338
    %v1761 = vunpack.c.h.b16 %v338
    %v1762 = vunpack.c.l.b16 %v339
    %v1763 = vunpack.c.h.b16 %v339
    %v1764 = vunpack.c.l.b16 %v340
    %v1765 = vunpack.c.h.b16 %v340
    %v1766 = vunpack.c.l.b16 %v341
    %v1767 = vunpack.c.h.b16 %v341
    %v1768 = vunpack.c.l.b16 %v342
    %v1769 = vunpack.c.h.b16 %v342
    %v1770 = vunpack.c.l.b16 %v343
    %v1771 = vunpack.c.h.b16 %v343
    %v1772 = vunpack.c.l.b16 %v344
    %v1773 = vunpack.c.h.b16 %v344
    %v1774 = vunpack.c.l.b16 %v345
    %v1775 = vunpack.c.h.b16 %v345
    %v1776 = vunpack.c.l.b16 %v346
    %v1777 = vunpack.c.h.b16 %v346
    %v1778 = vunpack.c.l.b16 %v347
    %v1779 = vunpack.c.h.b16 %v347
    %v1780 = vunpack.c.l.b16 %v348
    %v1781 = vunpack.c.h.b16 %v348
    %v1782 = vunpack.c.l.b16 %v349
    %v1783 = vunpack.c.h.b16 %v349
    %v1784 = vunpack.c.l.b16 %v350
    %v1785 = vunpack.c.h.b16 %v350
    %v1786 = vunpack.c.l.b16 %v351
    %v1787 = vunpack.c.h.b16 %v351
    %v1788 = vunpack.c.l.b16 %v352
    %v1789 = vunpack.c.h.b16 %v352
    %v1790 = vunpack.c.l.b16 %v353
    %v1791 = vunpack.c.h.b16 %v353
    %v1792 = vunpack.c.l.b16 %v354
    %v1793 = vunpack.c.h.b16 %v354
    %v1794 = vunpack.c.l.b16 %v355
    %v1795 = vunpack.c.h.b16 %v355
    %v1796 = vunpack.c.l.b16 %v356
    %v1797 = vunpack.c.h.b16 %v356
    %v1798 = vunpack.c.l.b16 %v357
    %v1799 = vunpack.c.h.b16 %v357
    %v1800 = vunpack.c.l.b16 %v358
    %v1801 = vunpack.c.h.b16 %v358
    %v1802 = vunpack.c.l.b16 %v359
    %v1803 = vunpack.c.h.b16 %v359
    %v1804 = vunpack.c.l.b16 %v360
    %v1805 = vunpack.c.h.b16 %v360
    %v1806 = vunpack.c.l.b16 %v361
    %v1807 = vunpack.c.h.b16 %v361
    %v1808 = vunpack.c.l.b16 %v362
    %v1809 = vunpack.c.h.b16 %v362
    %v1810 = vunpack.c.l.b16 %v363
    %v1811 = vunpack.c.h.b16 %v363
    %v1812 = vunpack.c.l.b16 %v364
    %v1813 = vunpack.c.h.b16 %v364
    %v1814 = vunpack.c.l.b16 %v365
    %v1815 = vunpack.c.h.b16 %v365
    %v1816 = vunpack.c.l.b16 %v366
    %v1817 = vunpack.c.h.b16 %v366
    %v1818 = vunpack.c.l.b16 %v367
    %v1819 = vunpack.c.h.b16 %v367
    %v1820 = vunpack.c.l.b16 %v368
    %v1821 = vunpack.c.h.b16 %v368
    %v1822 = vunpack.c.l.b16 %v369
    %v1823 = vunpack.c.h.b16 %v369
    %v1824 = vunpack.c.l.b16 %v370
    %v1825 = vunpack.c.h.b16 %v370
    %v1826 = vunpack.c.l.b16 %v371
    %v1827 = vunpack.c.h.b16 %v371
    %v1828 = vunpack.c.l.b16 %v372
    %v1829 = vunpack.c.h.b16 %v372
    %v1830 = vunpack.c.l.b16 %v373
    %v1831 = vunpack.c.h.b16 %v373
    %v1832 = vunpack.c.l.b16 %v374
    %v1833 = vunpack.c.h.b16 %v374
    %v1834 = vunpack.c.l.b16 %v375
    %v1835 = vunpack.c.h.b16 %v375
    %v1836 = vunpack.c.l.b16 %v376
    %v1837 = vunpack.c.h.b16 %v376
    %v1838 = vunpack.c.l.b16 %v377
    %v1839 = vunpack.c.h.b16 %v377
    %v1840 = vunpack.c.l.b16 %v378
    %v1841 = vunpack.c.h.b16 %v378
    %v1842 = vunpack.c.l.b16 %v379
    %v1843 = vunpack.c.h.b16 %v379
    %v1844 = vunpack.c.l.b16 %v380
    %v1845 = vunpack.c.h.b16 %v380
    %v1846 = vunpack.c.l.b16 %v381
    %v1847 = vunpack.c.h.b16 %v381
    %v1848 = vunpack.c.l.b16 %v382
    %v1849 = vunpack.c.h.b16 %v382
    %v1850 = vunpack.c.l.b16 %v383
    %v1851 = vunpack.c.h.b16 %v383
    %v1852 = vunpack.c.l.b16 %v384
    %v1853 = vunpack.c.h.b16 %v384
    %v1854 = vunpack.c.l.b16 %v385
    %v1855 = vunpack.c.h.b16 %v385
    %v1856 = vunpack.c.l.b16 %v386
    %v1857 = vunpack.c.h.b16 %v386
    %v1858 = vunpack.c.l.b16 %v387
    %v1859 = vunpack.c.h.b16 %v387
    %v1860 = vunpack.c.l.b16 %v388
    %v1861 = vunpack.c.h.b16 %v388
    %v1862 = vunpack.c.l.b16 %v389
    %v1863 = vunpack.c.h.b16 %v389
    %v1864 = vunpack.c.l.b16 %v390
    %v1865 = vunpack.c.h.b16 %v390
    %v1866 = vunpack.c.l.b16 %v391
    %v1867 = vunpack.c.h.b16 %v391
    %v1868 = vunpack.c.l.b16 %v392
    %v1869 = vunpack.c.h.b16 %v392
    %v1870 = vunpack.c.l.b16 %v393
    %v1871 = vunpack.c.h.b16 %v393
    %v1872 = vunpack.c.l.b16 %v394
    %v1873 = vunpack.c.h.b16 %v394
    %v1874 = vunpack.c.l.b16 %v395
    %v1875 = vunpack.c.h.b16 %v395
    %v1876 = vunpack.c.l.b16 %v396
    %v1877 = vunpack.c.h.b16 %v396
    %v1878 = vunpack.c.l.b16 %v397
    %v1879 = vunpack.c.h.b16 %v397
    %v1880 = vunpack.c.l.b16 %v398
    %v1881 = vunpack.c.h.b16 %v398
    %v1882 = vunpack.c.l.b16 %v399
    %v1883 = vunpack.c.h.b16 %v399
    %v1884 = vunpack.c.l.b16 %v400
    %v1885 = vunpack.c.h.b16 %v400
    %v1886 = vunpack.c.l.b16 %v401
    %v1887 = vunpack.c.h.b16 %v401
    %v1888 = vunpack.c.l.b16 %v402
    %v1889 = vunpack.c.h.b16 %v402
    %v1890 = vunpack.c.l.b16 %v403
    %v1891 = vunpack.c.h.b16 %v403
    %v1892 = vunpack.c.l.b16 %v404
    %v1893 = vunpack.c.h.b16 %v404
    %v1894 = vunpack.c.l.b16 %v405
    %v1895 = vunpack.c.h.b16 %v405
    %v1896 = vunpack.c.l.b16 %v406
    %v1897 = vunpack.c.h.b16 %v406
    %v1898 = vunpack.c.l.b16 %v407
    %v1899 = vunpack.c.h.b16 %v407
    %v1900 = vunpack.c.l.b16 %v408
    %v1901 = vunpack.c.h.b16 %v408
    %v1902 = vunpack.c.l.b16 %v409
    %v1903 = vunpack.c.h.b16 %v409
    %v1904 = vunpack.c.l.b16 %v410
    %v1905 = vunpack.c.h.b16 %v410
    %v1906 = vunpack.c.l.b16 %v411
    %v1907 = vunpack.c.h.b16 %v411
    %v1908 = vunpack.c.l.b16 %v412
    %v1909 = vunpack.c.h.b16 %v412
    %v1910 = vunpack.c.l.b16 %v413
    %v1911 = vunpack.c.h.b16 %v413
    %v1912 = vunpack.c.l.b16 %v414
    %v1913 = vunpack.c.h.b16 %v414
    %v1914 = vunpack.c.l.b16 %v415
    %v1915 = vunpack.c.h.b16 %v415
    %v1916 = vunpack.c.l.b16 %v416
    %v1917 = vunpack.c.h.b16 %v416
    %v1918 = vunpack.c.l.b16 %v417
    %v1919 = vunpack.c.h.b16 %v417
    %v1920 = vunpack.c.l.b16 %v418
    %v1921 = vunpack.c.h.b16 %v418
    %v1922 = vunpack.c.l.b16 %v419
    %v1923 = vunpack.c.h.b16 %v419
    %v1924 = vunpack.c.l.b16 %v420
    %v1925 = vunpack.c.h.b16 %v420
    %v1926 = vunpack.c.l.b16 %v421
    %v1927 = vunpack.c.h.b16 %v421
    %v1928 = vunpack.c.l.b16 %v422
    %v1929 = vunpack.c.h.b16 %v422
    %v1930 = vunpack.c.l.b16 %v423
    %v1931 = vunpack.c.h.b16 %v423
    %v1932 = vunpack.c.l.b16 %v424
    %v1933 = vunpack.c.h.b16 %v424
    %v1934 = vunpack.c.l.b16 %v425
    %v1935 = vunpack.c.h.b16 %v425
    %v1936 = vunpack.c.l.b16 %v426
    %v1937 = vunpack.c.h.b16 %v426
    %v1938 = vunpack.c.l.b16 %v427
    %v1939 = vunpack.c.h.b16 %v427
    %v1940 = vunpack.c.l.b16 %v428
    %v1941 = vunpack.c.h.b16 %v428
    %v1942 = vunpack.c.l.b16 %v429
    %v1943 = vunpack.c.h.b16 %v429
    %v1944 = vunpack.c.l.b16 %v430
    %v1945 = vunpack.c.h.b16 %v430
    %v1946 = vunpack.c.l.b16 %v431
    %v1947 = vunpack.c.h.b16 %v431
    %v1948 = vunpack.c.l.b16 %v432
    %v1949 = vunpack.c.h.b16 %v432
    %v1950 = vunpack.c.l.b16 %v433
    %v1951 = vunpack.c.h.b16 %v433
    %v1952 = vunpack.c.l.b16 %v434
    %v1953 = vunpack.c.h.b16 %v434
    %v1954 = vunpack.c.l.b16 %v435
    %v1955 = vunpack.c.h.b16 %v435
    %v1956 = vunpack.c.l.b16 %v436
    %v1957 = vunpack.c.h.b16 %v436
    %v1958 = vunpack.c.l.b16 %v437
    %v1959 = vunpack.c.h.b16 %v437
    %v1960 = vunpack.c.l.b16 %v438
    %v1961 = vunpack.c.h.b16 %v438
    %v1962 = vunpack.c.l.b16 %v439
    %v1963 = vunpack.c.h.b16 %v439
    %v1964 = vunpack.c.l.b16 %v440
    %v1965 = vunpack.c.h.b16 %v440
    %v1966 = vunpack.c.l.b16 %v441
    %v1967 = vunpack.c.h.b16 %v441
    %v1968 = vunpack.c.l.b16 %v442
    %v1969 = vunpack.c.h.b16 %v442
    %v1970 = vunpack.c.l.b16 %v443
    %v1971 = vunpack.c.h.b16 %v443
    %v1972 = vunpack.c.l.b16 %v444
    %v1973 = vunpack.c.h.b16 %v444
    %v1974 = vunpack.c.l.b16 %v445
    %v1975 = vunpack.c.h.b16 %v445
    %v1976 = vunpack.c.l.b16 %v446
    %v1977 = vunpack.c.h.b16 %v446
    %v1978 = vunpack.c.l.b16 %v447
    %v1979 = vunpack.c.h.b16 %v447
    %v1980 = vunpack.c.l.b16 %v448
    %v1981 = vunpack.c.h.b16 %v448
    %v1982 = vunpack.c.l.b16 %v449
    %v1983 = vunpack.c.h.b16 %v449
    %v1984 = vunpack.c.l.b16 %v450
    %v1985 = vunpack.c.h.b16 %v450
    %v1986 = vunpack.c.l.b16 %v451
    %v1987 = vunpack.c.h.b16 %v451
    %v1988 = vunpack.c.l.b16 %v452
    %v1989 = vunpack.c.h.b16 %v452
    %v1990 = vunpack.c.l.b16 %v453
    %v1991 = vunpack.c.h.b16 %v453
    %v1992 = vunpack.c.l.b16 %v454
    %v1993 = vunpack.c.h.b16 %v454
    %v1994 = vunpack.c.l.b16 %v455
    %v1995 = vunpack.c.h.b16 %v455
    %v1996 = vunpack.c.l.b16 %v456
    %v1997 = vunpack.c.h.b16 %v456
    %v1998 = vunpack.c.l.b16 %v457
    %v1999 = vunpack.c.h.b16 %v457
    %v2000 = vunpack.c.l.b16 %v458
    %v2001 = vunpack.c.h.b16 %v458
    %v2002 = vunpack.c.l.b16 %v459
    %v2003 = vunpack.c.h.b16 %v459
    %v2004 = vunpack.c.l.b16 %v460
    %v2005 = vunpack.c.h.b16 %v460
    %v2006 = vunpack.c.l.b16 %v461
    %v2007 = vunpack.c.h.b16 %v461
    %v2008 = vunpack.c.l.b16 %v462
    %v2009 = vunpack.c.h.b16 %v462
    %v2010 = vunpack.c.l.b16 %v463
    %v2011 = vunpack.c.h.b16 %v463
    %v2012 = vunpack.c.l.b16 %v464
    %v2013 = vunpack.c.h.b16 %v464
    %v2014 = vunpack.c.l.b16 %v465
    %v2015 = vunpack.c.h.b16 %v465
    %v2016 = vunpack.c.l.b16 %v466
    %v2017 = vunpack.c.h.b16 %v466
    %v2018 = vunpack.c.l.b16 %v467
    %v2019 = vunpack.c.h.b16 %v467
    %v2020 = vunpack.c.l.b16 %v468
    %v2021 = vunpack.c.h.b16 %v468
    %v2022 = vunpack.c.l.b16 %v469
    %v2023 = vunpack.c.h.b16 %v469
    %v2024 = vunpack.c.l.b16 %v470
    %v2025 = vunpack.c.h.b16 %v470
    %v2026 = vunpack.c.l.b16 %v471
    %v2027 = vunpack.c.h.b16 %v471
    %v2028 = vunpack.c.l.b16 %v472
    %v2029 = vunpack.c.h.b16 %v472
    %v2030 = vunpack.c.l.b16 %v473
    %v2031 = vunpack.c.h.b16 %v473
    %v2032 = vunpack.c.l.b16 %v474
    %v2033 = vunpack.c.h.b16 %v474
    %v2034 = vunpack.c.l.b16 %v475
    %v2035 = vunpack.c.h.b16 %v475
    %v2036 = vunpack.c.l.b16 %v476
    %v2037 = vunpack.c.h.b16 %v476
    %v2038 = vunpack.c.l.b16 %v477
    %v2039 = vunpack.c.h.b16 %v477
    %v2040 = vunpack.c.l.b16 %v478
    %v2041 = vunpack.c.h.b16 %v478
    %v2042 = vunpack.c.l.b16 %v479
    %v2043 = vunpack.c.h.b16 %v479
    %v2044 = vunpack.c.l.b16 %v480
    %v2045 = vunpack.c.h.b16 %v480
    %v2046 = vunpack.c.l.b16 %v481
    %v2047 = vunpack.c.h.b16 %v481
    %v2048 = vunpack.c.l.b16 %v482
    %v2049 = vunpack.c.h.b16 %v482
    %v2050 = vunpack.c.l.b16 %v483
    %v2051 = vunpack.c.h.b16 %v483
    %v2052 = vunpack.c.l.b16 %v484
    %v2053 = vunpack.c.h.b16 %v484
    %v2054 = vunpack.c.l.b16 %v485
    %v2055 = vunpack.c.h.b16 %v485
    %v2056 = vunpack.c.l.b16 %v486
    %v2057 = vunpack.c.h.b16 %v486
    %v2058 = vunpack.c.l.b16 %v487
    %v2059 = vunpack.c.h.b16 %v487
    %v2060 = vunpack.c.l.b16 %v488
    %v2061 = vunpack.c.h.b16 %v488
    %v2062 = vunpack.c.l.b16 %v489
    %v2063 = vunpack.c.h.b16 %v489
    %v2064 = vunpack.c.l.b16 %v490
    %v2065 = vunpack.c.h.b16 %v490
    %v2066 = vunpack.c.l.b16 %v491
    %v2067 = vunpack.c.h.b16 %v491
    %v2068 = vunpack.c.l.b16 %v492
    %v2069 = vunpack.c.h.b16 %v492
    %v2070 = vunpack.c.l.b16 %v493
    %v2071 = vunpack.c.h.b16 %v493
    %v2072 = vunpack.c.l.b16 %v494
    %v2073 = vunpack.c.h.b16 %v494
    %v2074 = vunpack.c.l.b16 %v495
    %v2075 = vunpack.c.h.b16 %v495
    %v2076 = vunpack.c.l.b16 %v496
    %v2077 = vunpack.c.h.b16 %v496
    %v2078 = vunpack.c.l.b16 %v497
    %v2079 = vunpack.c.h.b16 %v497
    %v2080 = vunpack.c.l.b16 %v498
    %v2081 = vunpack.c.h.b16 %v498
    %v2082 = vunpack.c.l.b16 %v499
    %v2083 = vunpack.c.h.b16 %v499
    %v2084 = vunpack.c.l.b16 %v500
    %v2085 = vunpack.c.h.b16 %v500
    %v2086 = vunpack.c.l.b16 %v501
    %v2087 = vunpack.c.h.b16 %v501
    %v2088 = vunpack.c.l.b16 %v502
    %v2089 = vunpack.c.h.b16 %v502
    %v2090 = vunpack.c.l.b16 %v503
    %v2091 = vunpack.c.h.b16 %v503
    %v2092 = vunpack.c.l.b16 %v504
    %v2093 = vunpack.c.h.b16 %v504
    %v2094 = vunpack.c.l.b16 %v505
    %v2095 = vunpack.c.h.b16 %v505
    %v2096 = vunpack.c.l.b16 %v506
    %v2097 = vunpack.c.h.b16 %v506
    %v2098 = vunpack.c.l.b16 %v507
    %v2099 = vunpack.c.h.b16 %v507
    %v2100 = vunpack.c.l.b16 %v508
    %v2101 = vunpack.c.h.b16 %v508
    %v2102 = vunpack.c.l.b16 %v509
    %v2103 = vunpack.c.h.b16 %v509
    %v2104 = vunpack.c.l.b16 %v510
    %v2105 = vunpack.c.h.b16 %v510
    %v2106 = vunpack.c.l.b16 %v511
    %v2107 = vunpack.c.h.b16 %v511
    %v2108 = vunpack.c.l.b16 %v512
    %v2109 = vunpack.c.h.b16 %v512
    %v2110 = vunpack.c.l.b16 %v513
    %v2111 = vunpack.c.h.b16 %v513
    %v2112 = vunpack.c.l.b16 %v514
    %v2113 = vunpack.c.h.b16 %v514
    %v2114 = vunpack.c.l.b16 %v515
    %v2115 = vunpack.c.h.b16 %v515
    %v2116 = vunpack.c.l.b16 %v516
    %v2117 = vunpack.c.h.b16 %v516
    %v2118 = vunpack.c.l.b16 %v517
    %v2119 = vunpack.c.h.b16 %v517
    %v2120 = vunpack.c.l.b16 %v518
    %v2121 = vunpack.c.h.b16 %v518
    %v2122 = vunpack.c.l.b16 %v519
    %v2123 = vunpack.c.h.b16 %v519
    %v2124 = vunpack.c.l.b16 %v520
    %v2125 = vunpack.c.h.b16 %v520
    %v2126 = vunpack.c.l.b16 %v521
    %v2127 = vunpack.c.h.b16 %v521
    %v2128 = vunpack.c.l.b16 %v522
    %v2129 = vunpack.c.h.b16 %v522
    %v2130 = vunpack.c.l.b16 %v523
    %v2131 = vunpack.c.h.b16 %v523
    %v2132 = vunpack.c.l.b16 %v524
    %v2133 = vunpack.c.h.b16 %v524
    %v2134 = vunpack.c.l.b16 %v525
    %v2135 = vunpack.c.h.b16 %v525
    %v2136 = vunpack.c.l.b16 %v526
    %v2137 = vunpack.c.h.b16 %v526
    %v2138 = vunpack.c.l.b16 %v527
    %v2139 = vunpack.c.h.b16 %v527
    %v2140 = vunpack.c.l.b16 %v528
    %v2141 = vunpack.c.h.b16 %v528
    %v2142 = vunpack.c.l.b16 %v529
    %v2143 = vunpack.c.h.b16 %v529
    %v2144 = vunpack.c.l.b16 %v530
    %v2145 = vunpack.c.h.b16 %v530
    %v2146 = vunpack.c.l.b16 %v531
    %v2147 = vunpack.c.h.b16 %v531
    %v2148 = vunpack.c.l.b16 %v532
    %v2149 = vunpack.c.h.b16 %v532
    %v2150 = vunpack.c.l.b16 %v533
    %v2151 = vunpack.c.h.b16 %v533
    %v2152 = vunpack.c.l.b16 %v534
    %v2153 = vunpack.c.h.b16 %v534
    %v2154 = vunpack.c.l.b16 %v535
    %v2155 = vunpack.c.h.b16 %v535
    %v2156 = vunpack.c.l.b16 %v536
    %v2157 = vunpack.c.h.b16 %v536
    %v2158 = vunpack.c.l.b16 %v537
    %v2159 = vunpack.c.h.b16 %v537
    %v2160 = vunpack.c.l.b16 %v538
    %v2161 = vunpack.c.h.b16 %v538
    %v2162 = vunpack.c.l.b16 %v539
    %v2163 = vunpack.c.h.b16 %v539
    %v2164 = vunpack.c.l.b16 %v540
    %v2165 = vunpack.c.h.b16 %v540
    %v2166 = vunpack.c.l.b16 %v541
    %v2167 = vunpack.c.h.b16 %v541
    %v2168 = vunpack.c.l.b16 %v542
    %v2169 = vunpack.c.h.b16 %v542
    %v2170 = vunpack.c.l.b16 %v543
    %v2171 = vunpack.c.h.b16 %v543
    %v2172 = vunpack.c.l.b16 %v544
    %v2173 = vunpack.c.h.b16 %v544
    %v2174 = vunpack.c.l.b16 %v545
    %v2175 = vunpack.c.h.b16 %v545
    %v2176 = vunpack.c.l.b16 %v546
    %v2177 = vunpack.c.h.b16 %v546
    %v2178 = vunpack.c.l.b16 %v547
    %v2179 = vunpack.c.h.b16 %v547
    %v2180 = vunpack.c.l.b16 %v548
    %v2181 = vunpack.c.h.b16 %v548
    %v2182 = vunpack.c.l.b16 %v549
    %v2183 = vunpack.c.h.b16 %v549
    %v2184 = vunpack.c.l.b16 %v550
    %v2185 = vunpack.c.h.b16 %v550
    %v2186 = vunpack.c.l.b16 %v551
    %v2187 = vunpack.c.h.b16 %v551
    %v2188 = vunpack.c.l.b16 %v552
    %v2189 = vunpack.c.h.b16 %v552
    %v2190 = vunpack.c.l.b16 %v553
    %v2191 = vunpack.c.h.b16 %v553
    %v2192 = vunpack.c.l.b16 %v554
    %v2193 = vunpack.c.h.b16 %v554
    %v2194 = vunpack.c.l.b16 %v555
    %v2195 = vunpack.c.h.b16 %v555
    %v2196 = vunpack.c.l.b16 %v556
    %v2197 = vunpack.c.h.b16 %v556
    %v2198 = vunpack.c.l.b16 %v557
    %v2199 = vunpack.c.h.b16 %v557
    %v2200 = vunpack.c.l.b16 %v558
    %v2201 = vunpack.c.h.b16 %v558
    %v2202 = vunpack.c.l.b16 %v559
    %v2203 = vunpack.c.h.b16 %v559
    %v2204 = vunpack.c.l.b16 %v560
    %v2205 = vunpack.c.h.b16 %v560
    %v2206 = vunpack.c.l.b16 %v561
    %v2207 = vunpack.c.h.b16 %v561
    %v2208 = vunpack.c.l.b16 %v562
    %v2209 = vunpack.c.h.b16 %v562
    %v2210 = vunpack.c.l.b16 %v563
    %v2211 = vunpack.c.h.b16 %v563
    %v2212 = vunpack.c.l.b16 %v564
    %v2213 = vunpack.c.h.b16 %v564
    %v2214 = vunpack.c.l.b16 %v565
    %v2215 = vunpack.c.h.b16 %v565
    %v2216 = vunpack.c.l.b16 %v566
    %v2217 = vunpack.c.h.b16 %v566
    %v2218 = vunpack.c.l.b16 %v567
    %v2219 = vunpack.c.h.b16 %v567
    %v2220 = vunpack.c.l.b16 %v568
    %v2221 = vunpack.c.h.b16 %v568
    %v2222 = vunpack.c.l.b16 %v569
    %v2223 = vunpack.c.h.b16 %v569
    %v2224 = vunpack.c.l.b16 %v570
    %v2225 = vunpack.c.h.b16 %v570
    %v2226 = vunpack.c.l.b16 %v571
    %v2227 = vunpack.c.h.b16 %v571
    %v2228 = vunpack.c.l.b16 %v572
    %v2229 = vunpack.c.h.b16 %v572
    %v2230 = vunpack.c.l.b16 %v573
    %v2231 = vunpack.c.h.b16 %v573
    %v2232 = vunpack.c.l.b16 %v574
    %v2233 = vunpack.c.h.b16 %v574
    %v2234 = vunpack.c.l.b16 %v575
    %v2235 = vunpack.c.h.b16 %v575
    %v2236 = vunpack.c.l.b16 %v576
    %v2237 = vunpack.c.h.b16 %v576
    %v2238 = vunpack.c.l.b16 %v577
    %v2239 = vunpack.c.h.b16 %v577
    %v2240 = vunpack.c.l.b16 %v578
    %v2241 = vunpack.c.h.b16 %v578
    %v2242 = vunpack.c.l.b16 %v579
    %v2243 = vunpack.c.h.b16 %v579
    %v2244 = vunpack.c.l.b16 %v580
    %v2245 = vunpack.c.h.b16 %v580
    %v2246 = vunpack.c.l.b16 %v581
    %v2247 = vunpack.c.h.b16 %v581
    %v2248 = vunpack.c.l.b16 %v582
    %v2249 = vunpack.c.h.b16 %v582
    %v2250 = vunpack.c.l.b16 %v583
    %v2251 = vunpack.c.h.b16 %v583
    %v2252 = vunpack.c.l.b16 %v584
    %v2253 = vunpack.c.h.b16 %v584
    %v2254 = vunpack.c.l.b16 %v585
    %v2255 = vunpack.c.h.b16 %v585
    %v2256 = vunpack.c.l.b16 %v586
    %v2257 = vunpack.c.h.b16 %v586
    %v2258 = vunpack.c.l.b16 %v587
    %v2259 = vunpack.c.h.b16 %v587
    %v2260 = vunpack.c.l.b16 %v588
    %v2261 = vunpack.c.h.b16 %v588
    %v2262 = vunpack.c.l.b16 %v589
    %v2263 = vunpack.c.h.b16 %v589
    %v2264 = vunpack.c.l.b16 %v590
    %v2265 = vunpack.c.h.b16 %v590
    %v2266 = vunpack.c.l.b16 %v591
    %v2267 = vunpack.c.h.b16 %v591
    %v2268 = vunpack.c.l.b16 %v592
    %v2269 = vunpack.c.h.b16 %v592
    %v2270 = vunpack.c.l.b16 %v593
    %v2271 = vunpack.c.h.b16 %v593
    %v2272 = vunpack.c.l.b16 %v594
    %v2273 = vunpack.c.h.b16 %v594
    %v2274 = vunpack.c.l.b16 %v595
    %v2275 = vunpack.c.h.b16 %v595
    %v2276 = vunpack.c.l.b16 %v596
    %v2277 = vunpack.c.h.b16 %v596
    %v2278 = vunpack.c.l.b16 %v597
    %v2279 = vunpack.c.h.b16 %v597
    %v2280 = vunpack.c.l.b16 %v598
    %v2281 = vunpack.c.h.b16 %v598
    %v2282 = vunpack.c.l.b16 %v599
    %v2283 = vunpack.c.h.b16 %v599
    %v2284 = vunpack.c.l.b16 %v600
    %v2285 = vunpack.c.h.b16 %v600
    %v2286 = vunpack.c.l.b16 %v601
    %v2287 = vunpack.c.h.b16 %v601
    %v2288 = vunpack.c.l.b16 %v602
    %v2289 = vunpack.c.h.b16 %v602
    %v2290 = vunpack.c.l.b16 %v603
    %v2291 = vunpack.c.h.b16 %v603
    %v2292 = vunpack.c.l.b16 %v604
    %v2293 = vunpack.c.h.b16 %v604
    %v2294 = vunpack.c.l.b16 %v605
    %v2295 = vunpack.c.h.b16 %v605
    %v2296 = vunpack.c.l.b16 %v606
    %v2297 = vunpack.c.h.b16 %v606
    %v2298 = vunpack.c.l.b16 %v607
    %v2299 = vunpack.c.h.b16 %v607
    %v2300 = vunpack.c.l.b16 %v608
    %v2301 = vunpack.c.h.b16 %v608
    %v2302 = vunpack.c.l.b16 %v609
    %v2303 = vunpack.c.h.b16 %v609
    %v2304 = vunpack.c.l.b16 %v610
    %v2305 = vunpack.c.h.b16 %v610
    %v2306 = vunpack.c.l.b16 %v611
    %v2307 = vunpack.c.h.b16 %v611
    %v2308 = vunpack.c.l.b16 %v612
    %v2309 = vunpack.c.h.b16 %v612
    %v2310 = vunpack.c.l.b16 %v613
    %v2311 = vunpack.c.h.b16 %v613
    %v2312 = vunpack.c.l.b16 %v614
    %v2313 = vunpack.c.h.b16 %v614
    %v2314 = vunpack.c.l.b16 %v615
    %v2315 = vunpack.c.h.b16 %v615
    %v2316 = vunpack.c.l.b16 %v616
    %v2317 = vunpack.c.h.b16 %v616
    %v2318 = vunpack.c.l.b16 %v617
    %v2319 = vunpack.c.h.b16 %v617
    %v2320 = vunpack.c.l.b16 %v618
    %v2321 = vunpack.c.h.b16 %v618
    %v2322 = vunpack.c.l.b16 %v619
    %v2323 = vunpack.c.h.b16 %v619
    %v2324 = vunpack.c.l.b16 %v620
    %v2325 = vunpack.c.h.b16 %v620
    %v2326 = vunpack.c.l.b16 %v621
    %v2327 = vunpack.c.h.b16 %v621
    %v2328 = vunpack.c.l.b16 %v622
    %v2329 = vunpack.c.h.b16 %v622
    %v2330 = vunpack.c.l.b16 %v623
    %v2331 = vunpack.c.h.b16 %v623
    %v2332 = vunpack.c.l.b16 %v624
    %v2333 = vunpack.c.h.b16 %v624
    %v2334 = vunpack.c.l.b16 %v625
    %v2335 = vunpack.c.h.b16 %v625
    %v2336 = vunpack.c.l.b16 %v626
    %v2337 = vunpack.c.h.b16 %v626
    %v2338 = vunpack.c.l.b16 %v627
    %v2339 = vunpack.c.h.b16 %v627
    %v2340 = vunpack.c.l.b16 %v628
    %v2341 = vunpack.c.h.b16 %v628
    %v2342 = vunpack.c.l.b16 %v629
    %v2343 = vunpack.c.h.b16 %v629
    %v2344 = vunpack.c.l.b16 %v630
    %v2345 = vunpack.c.h.b16 %v630
    %v2346 = vunpack.c.l.b16 %v631
    %v2347 = vunpack.c.h.b16 %v631
    %v2348 = vpack.c.b16 %v1238, %v1228
    %v2349 = vpack.c.b16 %v1239, %v1229
    %v2350 = vpack.c.b16 %v1240, %v1230
    %v2351 = vpack.c.b16 %v1241, %v1231
    %v2352 = vpack.c.b16 %v1242, %v1232
    %v2353 = vpack.c.b16 %v1243, %v1233
    %v2354 = vpack.c.b16 %v1244, %v1234
    %v2355 = vpack.c.b16 %v1245, %v1235
    %v2356 = vpack.c.b16 %v1246, %v1236
    %v2357 = vpack.c.b16 %v1247, %v1237
    %v2358 = vpack.c.b16 %v1258, %v1248
    %v2359 = vpack.c.b16 %v1259, %v1249
    %v2360 = vpack.c.b16 %v1260, %v1250
    %v2361 = vpack.c.b16 %v1261, %v1251
    %v2362 = vpack.c.b16 %v1262, %v1252
    %v2363 = vpack.c.b16 %v1263, %v1253
    %v2364 = vpack.c.b16 %v1264, %v1254
    %v2365 = vpack.c.b16 %v1265, %v1255
    %v2366 = vpack.c.b16 %v1266, %v1256
    %v2367 = vpack.c.b16 %v1267, %v1257
    %v2368 = vpack.c.b16 %v1278, %v1268
    %v2369 = vpack.c.b16 %v1279, %v1269
    %v2370 = vpack.c.b16 %v1280, %v1270
    %v2371 = vpack.c.b16 %v1281, %v1271
    %v2372 = vpack.c.b16 %v1282, %v1272
    %v2373 = vpack.c.b16 %v1283, %v1273
    %v2374 = vpack.c.b16 %v1284, %v1274
    %v2375 = vpack.c.b16 %v1285, %v1275
    %v2376 = vpack.c.b16 %v1286, %v1276
    %v2377 = vpack.c.b16 %v1287, %v1277
    %v2378 = vpack.c.b16 %v1298, %v1288
    %v2379 = vpack.c.b16 %v1299, %v1289
    %v2380 = vpack.c.b16 %v1300, %v1290
    %v2381 = vpack.c.b16 %v1301, %v1291
    %v2382 = vpack.c.b16 %v1302, %v1292
    %v2383 = vpack.c.b16 %v1303, %v1293
    %v2384 = vpack.c.b16 %v1304, %v1294
    %v2385 = vpack.c.b16 %v1305, %v1295
    %v2386 = vpack.c.b16 %v1306, %v1296
    %v2387 = vpack.c.b16 %v1307, %v1297
    %v2388 = vpack.c.b16 %v1318, %v1308
    %v2389 = vpack.c.b16 %v1319, %v1309
    %v2390 = vpack.c.b16 %v1320, %v1310
    %v2391 = vpack.c.b16 %v1321, %v1311
    %v2392 = vpack.c.b16 %v1322, %v1312
    %v2393 = vpack.c.b16 %v1323, %v1313
    %v2394 = vpack.c.b16 %v1324, %v1314
    %v2395 = vpack.c.b16 %v1325, %v1315
    %v2396 = vpack.c.b16 %v1326, %v1316
    %v2397 = vpack.c.b16 %v1327, %v1317
    %v2398 = vpack.c.b16 %v1338, %v1328
    %v2399 = vpack.c.b16 %v1339, %v1329
    %v2400 = vpack.c.b16 %v1340, %v1330
    %v2401 = vpack.c.b16 %v1341, %v1331
    %v2402 = vpack.c.b16 %v1342, %v1332
    %v2403 = vpack.c.b16 %v1343, %v1333
    %v2404 = vpack.c.b16 %v1344, %v1334
    %v2405 = vpack.c.b16 %v1345, %v1335
    %v2406 = vpack.c.b16 %v1346, %v1336
    %v2407 = vpack.c.b16 %v1347, %v1337
    %v2408 = vpack.c.b16 %v1358, %v1348
    %v2409 = vpack.c.b16 %v1359, %v1349
    %v2410 = vpack.c.b16 %v1360, %v1350
    %v2411 = vpack.c.b16 %v1361, %v1351
    %v2412 = vpack.c.b16 %v1362, %v1352
    %v2413 = vpack.c.b16 %v1363, %v1353
    %v2414 = vpack.c.b16 %v1364, %v1354
    %v2415 = vpack.c.b16 %v1365, %v1355
    %v2416 = vpack.c.b16 %v1366, %v1356
    %v2417 = vpack.c.b16 %v1367, %v1357
    %v2418 = vpack.c.b16 %v1378, %v1368
    %v2419 = vpack.c.b16 %v1379, %v1369
    %v2420 = vpack.c.b16 %v1380, %v1370
    %v2421 = vpack.c.b16 %v1381, %v1371
    %v2422 = vpack.c.b16 %v1382, %v1372
    %v2423 = vpack.c.b16 %v1383, %v1373
    %v2424 = vpack.c.b16 %v1384, %v1374
    %v2425 = vpack.c.b16 %v1385, %v1375
    %v2426 = vpack.c.b16 %v1386, %v1376
    %v2427 = vpack.c.b16 %v1387, %v1377
    %v2428 = vpack.c.b16 %v1398, %v1388
    %v2429 = vpack.c.b16 %v1399, %v1389
    %v2430 = vpack.c.b16 %v1400, %v1390
    %v2431 = vpack.c.b16 %v1401, %v1391
    %v2432 = vpack.c.b16 %v1402, %v1392
    %v2433 = vpack.c.b16 %v1403, %v1393
    %v2434 = vpack.c.b16 %v1404, %v1394
    %v2435 = vpack.c.b16 %v1405, %v1395
    %v2436 = vpack.c.b16 %v1406, %v1396
    %v2437 = vpack.c.b16 %v1407, %v1397
    %v2438 = vpack.c.b16 %v1418, %v1408
    %v2439 = vpack.c.b16 %v1419, %v1409
    %v2440 = vpack.c.b16 %v1420, %v1410
    %v2441 = vpack.c.b16 %v1421, %v1411
    %v2442 = vpack.c.b16 %v1422, %v1412
    %v2443 = vpack.c.b16 %v1423, %v1413
    %v2444 = vpack.c.b16 %v1424, %v1414
    %v2445 = vpack.c.b16 %v1425, %v1415
    %v2446 = vpack.c.b16 %v1426, %v1416
    %v2447 = vpack.c.b16 %v1427, %v1417
    %v2448 = vpack.c.b16 %v1438, %v1428
    %v2449 = vpack.c.b16 %v1439, %v1429
    %v2450 = vpack.c.b16 %v1440, %v1430
    %v2451 = vpack.c.b16 %v1441, %v1431
    %v2452 = vpack.c.b16 %v1442, %v1432
    %v2453 = vpack.c.b16 %v1443, %v1433
    %v2454 = vpack.c.b16 %v1444, %v1434
    %v2455 = vpack.c.b16 %v1445, %v1435
    %v2456 = vpack.c.b16 %v1446, %v1436
    %v2457 = vpack.c.b16 %v1447, %v1437
    %v2458 = vpack.c.b16 %v1458, %v1448
    %v2459 = vpack.c.b16 %v1459, %v1449
    %v2460 = vpack.c.b16 %v1460, %v1450
    %v2461 = vpack.c.b16 %v1461, %v1451
    %v2462 = vpack.c.b16 %v1462, %v1452
    %v2463 = vpack.c.b16 %v1463, %v1453
    %v2464 = vpack.c.b16 %v1464, %v1454
    %v2465 = vpack.c.b16 %v1465, %v1455
    %v2466 = vpack.c.b16 %v1466, %v1456
    %v2467 = vpack.c.b16 %v1467, %v1457
    %v2468 = vpack.c.b16 %v1478, %v1468
    %v2469 = vpack.c.b16 %v1479, %v1469
    %v2470 = vpack.c.b16 %v1480, %v1470
    %v2471 = vpack.c.b16 %v1481, %v1471
    %v2472 = vpack.c.b16 %v1482, %v1472
    %v2473 = vpack.c.b16 %v1483, %v1473
    %v2474 = vpack.c.b16 %v1484, %v1474
    %v2475 = vpack.c.b16 %v1485, %v1475
    %v2476 = vpack.c.b16 %v1486, %v1476
    %v2477 = vpack.c.b16 %v1487, %v1477
    %v2478 = vpack.c.b16 %v1498, %v1488
    %v2479 = vpack.c.b16 %v1499, %v1489
    %v2480 = vpack.c.b16 %v1500, %v1490
    %v2481 = vpack.c.b16 %v1501, %v1491
    %v2482 = vpack.c.b16 %v1502, %v1492
    %v2483 = vpack.c.b16 %v1503, %v1493
    %v2484 = vpack.c.b16 %v1504, %v1494
    %v2485 = vpack.c.b16 %v1505, %v1495
    %v2486 = vpack.c.b16 %v1506, %v1496
    %v2487 = vpack.c.b16 %v1507, %v1497
    %v2488 = vpack.c.b16 %v1518, %v1508
    %v2489 = vpack.c.b16 %v1519, %v1509
    %v2490 = vpack.c.b16 %v1520, %v1510
    %v2491 = vpack.c.b16 %v1521, %v1511
    %v2492 = vpack.c.b16 %v1522, %v1512
    %v2493 = vpack.c.b16 %v1523, %v1513
    %v2494 = vpack.c.b16 %v1524, %v1514
    %v2495 = vpack.c.b16 %v1525, %v1515
    %v2496 = vpack.c.b16 %v1526, %v1516
    %v2497 = vpack.c.b16 %v1527, %v1517
    %v2498 = vpack.c.b16 %v1538, %v1528
    %v2499 = vpack.c.b16 %v1539, %v1529
    %v2500 = vpack.c.b16 %v1540, %v1530
    %v2501 = vpack.c.b16 %v1541, %v1531
    %v2502 = vpack.c.b16 %v1542, %v1532
    %v2503 = vpack.c.b16 %v1543, %v1533
    %v2504 = vpack.c.b16 %v1544, %v1534
    %v2505 = vpack.c.b16 %v1545, %v1535
    %v2506 = vpack.c.b16 %v1546, %v1536
    %v2507 = vpack.c.b16 %v1547, %v1537
    %v2508 = vpack.c.b16 %v1558, %v1548
    %v2509 = vpack.c.b16 %v1559, %v1549
    %v2510 = vpack.c.b16 %v1560, %v1550
    %v2511 = vpack.c.b16 %v1561, %v1551
    %v2512 = vpack.c.b16 %v1562, %v1552
    %v2513 = vpack.c.b16 %v1563, %v1553
    %v2514 = vpack.c.b16 %v1564, %v1554
    %v2515 = vpack.c.b16 %v1565, %v1555
    %v2516 = vpack.c.b16 %v1566, %v1556
    %v2517 = vpack.c.b16 %v1567, %v1557
    %v2518 = vpack.c.b16 %v1578, %v1568
    %v2519 = vpack.c.b16 %v1579, %v1569
    %v2520 = vpack.c.b16 %v1580, %v1570
    %v2521 = vpack.c.b16 %v1581, %v1571
    %v2522 = vpack.c.b16 %v1582, %v1572
    %v2523 = vpack.c.b16 %v1583, %v1573
    %v2524 = vpack.c.b16 %v1584, %v1574
    %v2525 = vpack.c.b16 %v1585, %v1575
    %v2526 = vpack.c.b16 %v1586, %v1576
    %v2527 = vpack.c.b16 %v1587, %v1577
    %v2528 = vpack.c.b16 %v1598, %v1588
    %v2529 = vpack.c.b16 %v1599, %v1589
    %v2530 = vpack.c.b16 %v1600, %v1590
    %v2531 = vpack.c.b16 %v1601, %v1591
    %v2532 = vpack.c.b16 %v1602, %v1592
    %v2533 = vpack.c.b16 %v1603, %v1593
    %v2534 = vpack.c.b16 %v1604, %v1594
    %v2535 = vpack.c.b16 %v1605, %v1595
    %v2536 = vpack.c.b16 %v1606, %v1596
    %v2537 = vpack.c.b16 %v1607, %v1597
    %v2538 = vpack.c.b16 %v1618, %v1608
    %v2539 = vpack.c.b16 %v1619, %v1609
    %v2540 = vpack.c.b16 %v1620, %v1610
    %v2541 = vpack.c.b16 %v1621, %v1611
    %v2542 = vpack.c.b16 %v1622, %v1612
    %v2543 = vpack.c.b16 %v1623, %v1613
    %v2544 = vpack.c.b16 %v1624, %v1614
    %v2545 = vpack.c.b16 %v1625, %v1615
    %v2546 = vpack.c.b16 %v1626, %v1616
    %v2547 = vpack.c.b16 %v1627, %v1617
    %v2548 = vpack.c.b16 %v1638, %v1628
    %v2549 = vpack.c.b16 %v1639, %v1629
    %v2550 = vpack.c.b16 %v1640, %v1630
    %v2551 = vpack.c.b16 %v1641, %v1631
    %v2552 = vpack.c.b16 %v1642, %v1632
    %v2553 = vpack.c.b16 %v1643, %v1633
    %v2554 = vpack.c.b16 %v1644, %v1634
    %v2555 = vpack.c.b16 %v1645, %v1635
    %v2556 = vpack.c.b16 %v1646, %v1636
    %v2557 = vpack.c.b16 %v1647, %v1637
    %v2558 = vpack.c.b16 %v1658, %v1648
    %v2559 = vpack.c.b16 %v1659, %v1649
    %v2560 = vpack.c.b16 %v1660, %v1650
    %v2561 = vpack.c.b16 %v1661, %v1651
    %v2562 = vpack.c.b16 %v1662, %v1652
    %v2563 = vpack.c.b16 %v1663, %v1653
    %v2564 = vpack.c.b16 %v1664, %v1654
    %v2565 = vpack.c.b16 %v1665, %v1655
    %v2566 = vpack.c.b16 %v1666, %v1656
    %v2567 = vpack.c.b16 %v1667, %v1657
    %v2568 = vpack.c.b16 %v1678, %v1668
    %v2569 = vpack.c.b16 %v1679, %v1669
    %v2570 = vpack.c.b16 %v1680, %v1670
    %v2571 = vpack.c.b16 %v1681, %v1671
    %v2572 = vpack.c.b16 %v1682, %v1672
    %v2573 = vpack.c.b16 %v1683, %v1673
    %v2574 = vpack.c.b16 %v1684, %v1674
    %v2575 = vpack.c.b16 %v1685, %v1675
    %v2576 = vpack.c.b16 %v1686, %v1676
    %v2577 = vpack.c.b16 %v1687, %v1677
    %v2578 = vpack.c.b16 %v1698, %v1688
    %v2579 = vpack.c.b16 %v1699, %v1689
    %v2580 = vpack.c.b16 %v1700, %v1690
    %v2581 = vpack.c.b16 %v1701, %v1691
    %v2582 = vpack.c.b16 %v1702, %v1692
    %v2583 = vpack.c.b16 %v1703, %v1693
    %v2584 = vpack.c.b16 %v1704, %v1694
    %v2585 = vpack.c.b16 %v1705, %v1695
    %v2586 = vpack.c.b16 %v1706, %v1696
    %v2587 = vpack.c.b16 %v1707, %v1697
    %v2588 = vpack.c.b16 %v1718, %v1708
    %v2589 = vpack.c.b16 %v1719, %v1709
    %v2590 = vpack.c.b16 %v1720, %v1710
    %v2591 = vpack.c.b16 %v1721, %v1711
    %v2592 = vpack.c.b16 %v1722, %v1712
    %v2593 = vpack.c.b16 %v1723, %v1713
    %v2594 = vpack.c.b16 %v1724, %v1714
    %v2595 = vpack.c.b16 %v1725, %v1715
    %v2596 = vpack.c.b16 %v1726, %v1716
    %v2597 = vpack.c.b16 %v1727, %v1717
    %v2598 = vpack.c.b16 %v1738, %v1728
    %v2599 = vpack.c.b16 %v1739, %v1729
    %v2600 = vpack.c.b16 %v1740, %v1730
    %v2601 = vpack.c.b16 %v1741, %v1731
    %v2602 = vpack.c.b16 %v1742, %v1732
    %v2603 = vpack.c.b16 %v1743, %v1733
    %v2604 = vpack.c.b16 %v1744, %v1734
    %v2605 = vpack.c.b16 %v1745, %v1735
    %v2606 = vpack.c.b16 %v1746, %v1736
    %v2607 = vpack.c.b16 %v1747, %v1737
    %v2608 = vpack.c.b16 %v1758, %v1748
    %v2609 = vpack.c.b16 %v1759, %v1749
    %v2610 = vpack.c.b16 %v1760, %v1750
    %v2611 = vpack.c.b16 %v1761, %v1751
    %v2612 = vpack.c.b16 %v1762, %v1752
    %v2613 = vpack.c.b16 %v1763, %v1753
    %v2614 = vpack.c.b16 %v1764, %v1754
    %v2615 = vpack.c.b16 %v1765, %v1755
    %v2616 = vpack.c.b16 %v1766, %v1756
    %v2617 = vpack.c.b16 %v1767, %v1757
    %v2618 = vpack.c.b16 %v1778, %v1768
    %v2619 = vpack.c.b16 %v1779, %v1769
    %v2620 = vpack.c.b16 %v1780, %v1770
    %v2621 = vpack.c.b16 %v1781, %v1771
    %v2622 = vpack.c.b16 %v1782, %v1772
    %v2623 = vpack.c.b16 %v1783, %v1773
    %v2624 = vpack.c.b16 %v1784, %v1774
    %v2625 = vpack.c.b16 %v1785, %v1775
    %v2626 = vpack.c.b16 %v1786, %v1776
    %v2627 = vpack.c.b16 %v1787, %v1777
    %v2628 = vpack.c.b16 %v1798, %v1788
    %v2629 = vpack.c.b16 %v1799, %v1789
    %v2630 = vpack.c.b16 %v1800, %v1790
    %v2631 = vpack.c.b16 %v1801, %v1791
    %v2632 = vpack.c.b16 %v1802, %v1792
    %v2633 = vpack.c.b16 %v1803, %v1793
    %v2634 = vpack.c.b16 %v1804, %v1794
    %v2635 = vpack.c.b16 %v1805, %v1795
    %v2636 = vpack.c.b16 %v1806, %v1796
    %v2637 = vpack.c.b16 %v1807, %v1797
    %v2638 = vpack.c.b16 %v1818, %v1808
    %v2639 = vpack.c.b16 %v1819, %v1809
    %v2640 = vpack.c.b16 %v1820, %v1810
    %v2641 = vpack.c.b16 %v1821, %v1811
    %v2642 = vpack.c.b16 %v1822, %v1812
    %v2643 = vpack.c.b16 %v1823, %v1813
    %v2644 = vpack.c.b16 %v1824, %v1814
    %v2645 = vpack.c.b16 %v1825, %v1815
    %v2646 = vpack.c.b16 %v1826, %v1816
    %v2647 = vpack.c.b16 %v1827, %v1817
    %v2648 = vpack.c.b16 %v1838, %v1828
    %v2649 = vpack.c.b16 %v1839, %v1829
    %v2650 = vpack.c.b16 %v1840, %v1830
    %v2651 = vpack.c.b16 %v1841, %v1831
    %v2652 = vpack.c.b16 %v1842, %v1832
    %v2653 = vpack.c.b16 %v1843, %v1833
    %v2654 = vpack.c.b16 %v1844, %v1834
    %v2655 = vpack.c.b16 %v1845, %v1835
    %v2656 = vpack.c.b16 %v1846, %v1836
    %v2657 = vpack.c.b16 %v1847, %v1837
    %v2658 = vpack.c.b16 %v1858, %v1848
    %v2659 = vpack.c.b16 %v1859, %v1849
    %v2660 = vpack.c.b16 %v1860, %v1850
    %v2661 = vpack.c.b16 %v1861, %v1851
    %v2662 = vpack.c.b16 %v1862, %v1852
    %v2663 = vpack.c.b16 %v1863, %v1853
    %v2664 = vpack.c.b16 %v1864, %v1854
    %v2665 = vpack.c.b16 %v1865, %v1855
    %v2666 = vpack.c.b16 %v1866, %v1856
    %v2667 = vpack.c.b16 %v1867, %v1857
    %v2668 = vpack.c.b16 %v1878, %v1868
    %v2669 = vpack.c.b16 %v1879, %v1869
    %v2670 = vpack.c.b16 %v1880, %v1870
    %v2671 = vpack.c.b16 %v1881, %v1871
    %v2672 = vpack.c.b16 %v1882, %v1872
    %v2673 = vpack.c.b16 %v1883, %v1873
    %v2674 = vpack.c.b16 %v1884, %v1874
    %v2675 = vpack.c.b16 %v1885, %v1875
    %v2676 = vpack.c.b16 %v1886, %v1876
    %v2677 = vpack.c.b16 %v1887, %v1877
    %v2678 = vpack.c.b16 %v1898, %v1888
    %v2679 = vpack.c.b16 %v1899, %v1889
    %v2680 = vpack.c.b16 %v1900, %v1890
    %v2681 = vpack.c.b16 %v1901, %v1891
    %v2682 = vpack.c.b16 %v1902, %v1892
    %v2683 = vpack.c.b16 %v1903, %v1893
    %v2684 = vpack.c.b16 %v1904, %v1894
    %v2685 = vpack.c.b16 %v1905, %v1895
    %v2686 = vpack.c.b16 %v1906, %v1896
    %v2687 = vpack.c.b16 %v1907, %v1897
    %v2688 = vpack.c.b16 %v1918, %v1908
    %v2689 = vpack.c.b16 %v1919, %v1909
    %v2690 = vpack.c.b16 %v1920, %v1910
    %v2691 = vpack.c.b16 %v1921, %v1911
    %v2692 = vpack.c.b16 %v1922, %v1912
    %v2693 = vpack.c.b16 %v1923, %v1913
    %v2694 = vpack.c.b16 %v1924, %v1914
    %v2695 = vpack.c.b16 %v1925, %v1915
    %v2696 = vpack.c.b16 %v1926, %v1916
    %v2697 = vpack.c.b16 %v1927, %v1917
    %v2698 = vpack.c.b16 %v1938, %v1928
    %v2699 = vpack.c.b16 %v1939, %v1929
    %v2700 = vpack.c.b16 %v1940, %v1930
    %v2701 = vpack.c.b16 %v1941, %v1931
    %v2702 = vpack.c.b16 %v1942, %v1932
    %v2703 = vpack.c.b16 %v1943, %v1933
    %v2704 = vpack.c.b16 %v1944, %v1934
    %v2705 = vpack.c.b16 %v1945, %v1935
    %v2706 = vpack.c.b16 %v1946, %v1936
    %v2707 = vpack.c.b16 %v1947, %v1937
    %v2708 = vpack.c.b16 %v1958, %v1948
    %v2709 = vpack.c.b16 %v1959, %v1949
    %v2710 = vpack.c.b16 %v1960, %v1950
    %v2711 = vpack.c.b16 %v1961, %v1951
    %v2712 = vpack.c.b16 %v1962, %v1952
    %v2713 = vpack.c.b16 %v1963, %v1953
    %v2714 = vpack.c.b16 %v1964, %v1954
    %v2715 = vpack.c.b16 %v1965, %v1955
    %v2716 = vpack.c.b16 %v1966, %v1956
    %v2717 = vpack.c.b16 %v1967, %v1957
    %v2718 = vpack.c.b16 %v1978, %v1968
    %v2719 = vpack.c.b16 %v1979, %v1969
    %v2720 = vpack.c.b16 %v1980, %v1970
    %v2721 = vpack.c.b16 %v1981, %v1971
    %v2722 = vpack.c.b16 %v1982, %v1972
    %v2723 = vpack.c.b16 %v1983, %v1973
    %v2724 = vpack.c.b16 %v1984, %v1974
    %v2725 = vpack.c.b16 %v1985, %v1975
    %v2726 = vpack.c.b16 %v1986, %v1976
    %v2727 = vpack.c.b16 %v1987, %v1977
    %v2728 = vpack.c.b16 %v1998, %v1988
    %v2729 = vpack.c.b16 %v1999, %v1989
    %v2730 = vpack.c.b16 %v2000, %v1990
    %v2731 = vpack.c.b16 %v2001, %v1991
    %v2732 = vpack.c.b16 %v2002, %v1992
    %v2733 = vpack.c.b16 %v2003, %v1993
    %v2734 = vpack.c.b16 %v2004, %v1994
    %v2735 = vpack.c.b16 %v2005, %v1995
    %v2736 = vpack.c.b16 %v2006, %v1996
    %v2737 = vpack.c.b16 %v2007, %v1997
    %v2738 = vpack.c.b16 %v2018, %v2008
    %v2739 = vpack.c.b16 %v2019, %v2009
    %v2740 = vpack.c.b16 %v2020, %v2010
    %v2741 = vpack.c.b16 %v2021, %v2011
    %v2742 = vpack.c.b16 %v2022, %v2012
    %v2743 = vpack.c.b16 %v2023, %v2013
    %v2744 = vpack.c.b16 %v2024, %v2014
    %v2745 = vpack.c.b16 %v2025, %v2015
    %v2746 = vpack.c.b16 %v2026, %v2016
    %v2747 = vpack.c.b16 %v2027, %v2017
    %v2748 = vpack.c.b16 %v2038, %v2028
    %v2749 = vpack.c.b16 %v2039, %v2029
    %v2750 = vpack.c.b16 %v2040, %v2030
    %v2751 = vpack.c.b16 %v2041, %v2031
    %v2752 = vpack.c.b16 %v2042, %v2032
    %v2753 = vpack.c.b16 %v2043, %v2033
    %v2754 = vpack.c.b16 %v2044, %v2034
    %v2755 = vpack.c.b16 %v2045, %v2035
    %v2756 = vpack.c.b16 %v2046, %v2036
    %v2757 = vpack.c.b16 %v2047, %v2037
    %v2758 = vpack.c.b16 %v2058, %v2048
    %v2759 = vpack.c.b16 %v2059, %v2049
    %v2760 = vpack.c.b16 %v2060, %v2050
    %v2761 = vpack.c.b16 %v2061, %v2051
    %v2762 = vpack.c.b16 %v2062, %v2052
    %v2763 = vpack.c.b16 %v2063, %v2053
    %v2764 = vpack.c.b16 %v2064, %v2054
    %v2765 = vpack.c.b16 %v2065, %v2055
    %v2766 = vpack.c.b16 %v2066, %v2056
    %v2767 = vpack.c.b16 %v2067, %v2057
    %v2768 = vpack.c.b16 %v2078, %v2068
    %v2769 = vpack.c.b16 %v2079, %v2069
    %v2770 = vpack.c.b16 %v2080, %v2070
    %v2771 = vpack.c.b16 %v2081, %v2071
    %v2772 = vpack.c.b16 %v2082, %v2072
    %v2773 = vpack.c.b16 %v2083, %v2073
    %v2774 = vpack.c.b16 %v2084, %v2074
    %v2775 = vpack.c.b16 %v2085, %v2075
    %v2776 = vpack.c.b16 %v2086, %v2076
    %v2777 = vpack.c.b16 %v2087, %v2077
    %v2778 = vpack.c.b16 %v2098, %v2088
    %v2779 = vpack.c.b16 %v2099, %v2089
    %v2780 = vpack.c.b16 %v2100, %v2090
    %v2781 = vpack.c.b16 %v2101, %v2091
    %v2782 = vpack.c.b16 %v2102, %v2092
    %v2783 = vpack.c.b16 %v2103, %v2093
    %v2784 = vpack.c.b16 %v2104, %v2094
    %v2785 = vpack.c.b16 %v2105, %v2095
    %v2786 = vpack.c.b16 %v2106, %v2096
    %v2787 = vpack.c.b16 %v2107, %v2097
    %v2788 = vpack.c.b16 %v2118, %v2108
    %v2789 = vpack.c.b16 %v2119, %v2109
    %v2790 = vpack.c.b16 %v2120, %v2110
    %v2791 = vpack.c.b16 %v2121, %v2111
    %v2792 = vpack.c.b16 %v2122, %v2112
    %v2793 = vpack.c.b16 %v2123, %v2113
    %v2794 = vpack.c.b16 %v2124, %v2114
    %v2795 = vpack.c.b16 %v2125, %v2115
    %v2796 = vpack.c.b16 %v2126, %v2116
    %v2797 = vpack.c.b16 %v2127, %v2117
    %v2798 = vpack.c.b16 %v2138, %v2128
    %v2799 = vpack.c.b16 %v2139, %v2129
    %v2800 = vpack.c.b16 %v2140, %v2130
    %v2801 = vpack.c.b16 %v2141, %v2131
    %v2802 = vpack.c.b16 %v2142, %v2132
    %v2803 = vpack.c.b16 %v2143, %v2133
    %v2804 = vpack.c.b16 %v2144, %v2134
    %v2805 = vpack.c.b16 %v2145, %v2135
    %v2806 = vpack.c.b16 %v2146, %v2136
    %v2807 = vpack.c.b16 %v2147, %v2137
    %v2808 = vpack.c.b16 %v2158, %v2148
    %v2809 = vpack.c.b16 %v2159, %v2149
    %v2810 = vpack.c.b16 %v2160, %v2150
    %v2811 = vpack.c.b16 %v2161, %v2151
    %v2812 = vpack.c.b16 %v2162, %v2152
    %v2813 = vpack.c.b16 %v2163, %v2153
    %v2814 = vpack.c.b16 %v2164, %v2154
    %v2815 = vpack.c.b16 %v2165, %v2155
    %v2816 = vpack.c.b16 %v2166, %v2156
    %v2817 = vpack.c.b16 %v2167, %v2157
    %v2818 = vpack.c.b16 %v2178, %v2168
    %v2819 = vpack.c.b16 %v2179, %v2169
    %v2820 = vpack.c.b16 %v2180, %v2170
    %v2821 = vpack.c.b16 %v2181, %v2171
    %v2822 = vpack.c.b16 %v2182, %v2172
    %v2823 = vpack.c.b16 %v2183, %v2173
    %v2824 = vpack.c.b16 %v2184, %v2174
    %v2825 = vpack.c.b16 %v2185, %v2175
    %v2826 = vpack.c.b16 %v2186, %v2176
    %v2827 = vpack.c.b16 %v2187, %v2177
    %v2828 = vpack.c.b16 %v2198, %v2188
    %v2829 = vpack.c.b16 %v2199, %v2189
    %v2830 = vpack.c.b16 %v2200, %v2190
    %v2831 = vpack.c.b16 %v2201, %v2191
    %v2832 = vpack.c.b16 %v2202, %v2192
    %v2833 = vpack.c.b16 %v2203, %v2193
    %v2834 = vpack.c.b16 %v2204, %v2194
    %v2835 = vpack.c.b16 %v2205, %v2195
    %v2836 = vpack.c.b16 %v2206, %v2196
    %v2837 = vpack.c.b16 %v2207, %v2197
    %v2838 = vpack.c.b16 %v2218, %v2208
    %v2839 = vpack.c.b16 %v2219, %v2209
    %v2840 = vpack.c.b16 %v2220, %v2210
    %v2841 = vpack.c.b16 %v2221, %v2211
    %v2842 = vpack.c.b16 %v2222, %v2212
    %v2843 = vpack.c.b16 %v2223, %v2213
    %v2844 = vpack.c.b16 %v2224, %v2214
    %v2845 = vpack.c.b16 %v2225, %v2215
    %v2846 = vpack.c.b16 %v2226, %v2216
    %v2847 = vpack.c.b16 %v2227, %v2217
    %v2848 = vpack.c.b16 %v2238, %v2228
    %v2849 = vpack.c.b16 %v2239, %v2229
    %v2850 = vpack.c.b16 %v2240, %v2230
    %v2851 = vpack.c.b16 %v2241, %v2231
    %v2852 = vpack.c.b16 %v2242, %v2232
    %v2853 = vpack.c.b16 %v2243, %v2233
    %v2854 = vpack.c.b16 %v2244, %v2234
    %v2855 = vpack.c.b16 %v2245, %v2235
    %v2856 = vpack.c.b16 %v2246, %v2236
    %v2857 = vpack.c.b16 %v2247, %v2237
    %v2858 = vpack.c.b16 %v2258, %v2248
    %v2859 = vpack.c.b16 %v2259, %v2249
    %v2860 = vpack.c.b16 %v2260, %v2250
    %v2861 = vpack.c.b16 %v2261, %v2251
    %v2862 = vpack.c.b16 %v2262, %v2252
    %v2863 = vpack.c.b16 %v2263, %v2253
    %v2864 = vpack.c.b16 %v2264, %v2254
    %v2865 = vpack.c.b16 %v2265, %v2255
    %v2866 = vpack.c.b16 %v2266, %v2256
    %v2867 = vpack.c.b16 %v2267, %v2257
    %v2868 = vpack.c.b16 %v2278, %v2268
    %v2869 = vpack.c.b16 %v2279, %v2269
    %v2870 = vpack.c.b16 %v2280, %v2270
    %v2871 = vpack.c.b16 %v2281, %v2271
    %v2872 = vpack.c.b16 %v2282, %v2272
    %v2873 = vpack.c.b16 %v2283, %v2273
    %v2874 = vpack.c.b16 %v2284, %v2274
    %v2875 = vpack.c.b16 %v2285, %v2275
    %v2876 = vpack.c.b16 %v2286, %v2276
    %v2877 = vpack.c.b16 %v2287, %v2277
    %v2878 = vpack.c.b16 %v2298, %v2288
    %v2879 = vpack.c.b16 %v2299, %v2289
    %v2880 = vpack.c.b16 %v2300, %v2290
    %v2881 = vpack.c.b16 %v2301, %v2291
    %v2882 = vpack.c.b16 %v2302, %v2292
    %v2883 = vpack.c.b16 %v2303, %v2293
    %v2884 = vpack.c.b16 %v2304, %v2294
    %v2885 = vpack.c.b16 %v2305, %v2295
    %v2886 = vpack.c.b16 %v2306, %v2296
    %v2887 = vpack.c.b16 %v2307, %v2297
    %v2888 = vpack.c.b16 %v2318, %v2308
    %v2889 = vpack.c.b16 %v2319, %v2309
    %v2890 = vpack.c.b16 %v2320, %v2310
    %v2891 = vpack.c.b16 %v2321, %v2311
    %v2892 = vpack.c.b16 %v2322, %v2312
    %v2893 = vpack.c.b16 %v2323, %v2313
    %v2894 = vpack.c.b16 %v2324, %v2314
    %v2895 = vpack.c.b16 %v2325, %v2315
    %v2896 = vpack.c.b16 %v2326, %v2316
    %v2897 = vpack.c.b16 %v2327, %v2317
    %v2898 = vpack.c.b16 %v2338, %v2328
    %v2899 = vpack.c.b16 %v2339, %v2329
    %v2900 = vpack.c.b16 %v2340, %v2330
    %v2901 = vpack.c.b16 %v2341, %v2331
    %v2902 = vpack.c.b16 %v2342, %v2332
    %v2903 = vpack.c.b16 %v2343, %v2333
    %v2904 = vpack.c.b16 %v2344, %v2334
    %v2905 = vpack.c.b16 %v2345, %v2335
    %v2906 = vpack.c.b16 %v2346, %v2336
    %v2907 = vpack.c.b16 %v2347, %v2337
    %3468 = vmatpush.bf16.msra.mxu0 %v2418
    %3469 = vmatpush.bf16.msra.mxu0 %v2408
    %3470 = vmatpush.bf16.msra.mxu0 %v2398
    %3471 = vmatpush.bf16.msra.mxu0 %v2388
    %3472 = vmatpush.bf16.msra.mxu0 %v2378
    %3473 = vmatpush.bf16.msra.mxu0 %v2368
    %3474 = vmatpush.bf16.msra.mxu0 %v2358
    %3475 = vmatpush.bf16.msra.mxu0 %v2348
    %3476 = vmatmul.bf16.gmra.mxu0 %v654
    %v3477 = vpop.f32.mrf.mxu0
    %v3478 = vadd.f32 0.0, %v3477
    %v3479 = vpop.f32.mrf.mxu0
    %v3480 = vadd.f32 0.0, %v3479
    %3481 = vdwg.mxu0
    %3482 = vmatpush.bf16.msra.mxu0 %v2498
    %3483 = vmatpush.bf16.msra.mxu0 %v2488
    %3484 = vmatpush.bf16.msra.mxu0 %v2478
    %3485 = vmatpush.bf16.msra.mxu0 %v2468
    %3486 = vmatpush.bf16.msra.mxu0 %v2458
    %3487 = vmatpush.bf16.msra.mxu0 %v2448
    %3488 = vmatpush.bf16.msra.mxu0 %v2438
    %3489 = vmatpush.bf16.msra.mxu0 %v2428
    %3490 = vmatmul.bf16.gmra.mxu0 %v655
    %v3491 = vpop.f32.mrf.mxu0
    %v3492 = vadd.f32 %v3478, %v3491
    %v3493 = vpop.f32.mrf.mxu0
    %v3494 = vadd.f32 %v3480, %v3493
    %3495 = vdwg.mxu0
    %3496 = vmatpush.bf16.msra.mxu0 %v2578
    %3497 = vmatpush.bf16.msra.mxu0 %v2568
    %3498 = vmatpush.bf16.msra.mxu0 %v2558
    %3499 = vmatpush.bf16.msra.mxu0 %v2548
    %3500 = vmatpush.bf16.msra.mxu0 %v2538
    %3501 = vmatpush.bf16.msra.mxu0 %v2528
    %3502 = vmatpush.bf16.msra.mxu0 %v2518
    %3503 = vmatpush.bf16.msra.mxu0 %v2508
    %3504 = vmatmul.bf16.gmra.mxu0 %v656
    %v3505 = vpop.f32.mrf.mxu0
    %v3506 = vadd.f32 %v3492, %v3505
    %v3507 = vpop.f32.mrf.mxu0
    %v3508 = vadd.f32 %v3494, %v3507
    %3509 = vdwg.mxu0
    %3510 = vmatpush.bf16.msra.mxu0 %v2658
    %3511 = vmatpush.bf16.msra.mxu0 %v2648
    %3512 = vmatpush.bf16.msra.mxu0 %v2638
    %3513 = vmatpush.bf16.msra.mxu0 %v2628
    %3514 = vmatpush.bf16.msra.mxu0 %v2618
    %3515 = vmatpush.bf16.msra.mxu0 %v2608
    %3516 = vmatpush.bf16.msra.mxu0 %v2598
    %3517 = vmatpush.bf16.msra.mxu0 %v2588
    %3518 = vmatmul.bf16.gmra.mxu0 %v657
    %v3519 = vpop.f32.mrf.mxu0
    %v3520 = vadd.f32 %v3506, %v3519
    %v3521 = vpop.f32.mrf.mxu0
    %v3522 = vadd.f32 %v3508, %v3521
    %3523 = vdwg.mxu0
    %3524 = vmatpush.bf16.msra.mxu0 %v2738
    %3525 = vmatpush.bf16.msra.mxu0 %v2728
    %3526 = vmatpush.bf16.msra.mxu0 %v2718
    %3527 = vmatpush.bf16.msra.mxu0 %v2708
    %3528 = vmatpush.bf16.msra.mxu0 %v2698
    %3529 = vmatpush.bf16.msra.mxu0 %v2688
    %3530 = vmatpush.bf16.msra.mxu0 %v2678
    %3531 = vmatpush.bf16.msra.mxu0 %v2668
    %3532 = vmatmul.bf16.gmra.mxu0 %v658
    %v3533 = vpop.f32.mrf.mxu0
    %v3534 = vadd.f32 %v3520, %v3533
    %v3535 = vpop.f32.mrf.mxu0
    %v3536 = vadd.f32 %v3522, %v3535
    %3537 = vdwg.mxu0
    %3538 = vmatpush.bf16.msra.mxu0 %v2818
    %3539 = vmatpush.bf16.msra.mxu0 %v2808
    %3540 = vmatpush.bf16.msra.mxu0 %v2798
    %3541 = vmatpush.bf16.msra.mxu0 %v2788
    %3542 = vmatpush.bf16.msra.mxu0 %v2778
    %3543 = vmatpush.bf16.msra.mxu0 %v2768
    %3544 = vmatpush.bf16.msra.mxu0 %v2758
    %3545 = vmatpush.bf16.msra.mxu0 %v2748
    %3546 = vmatmul.bf16.gmra.mxu0 %v659
    %v3547 = vpop.f32.mrf.mxu0
    %v3548 = vadd.f32 %v3534, %v3547
    %v3549 = vpop.f32.mrf.mxu0
    %v3550 = vadd.f32 %v3536, %v3549
    %3551 = vdwg.mxu0
    %3552 = vmatpush.bf16.msra.mxu0 %v2898
    %3553 = vmatpush.bf16.msra.mxu0 %v2888
    %3554 = vmatpush.bf16.msra.mxu0 %v2878
    %3555 = vmatpush.bf16.msra.mxu0 %v2868
    %3556 = vmatpush.bf16.msra.mxu0 %v2858
    %3557 = vmatpush.bf16.msra.mxu0 %v2848
    %3558 = vmatpush.bf16.msra.mxu0 %v2838
    %3559 = vmatpush.bf16.msra.mxu0 %v2828
    %3560 = vmatmul.bf16.gmra.mxu0 %v660
    %v3561 = vpop.f32.mrf.mxu0
    %v3562 = vadd.f32 %v3548, %v3561
    %v3563 = vpop.f32.mrf.mxu0
    %v3564 = vadd.f32 %v3550, %v3563
    %3565 = vdwg.mxu0
    %3566 = vmatpush.bf16.msra.mxu0 %v2419
    %3567 = vmatpush.bf16.msra.mxu0 %v2409
    %3568 = vmatpush.bf16.msra.mxu0 %v2399
    %3569 = vmatpush.bf16.msra.mxu0 %v2389
    %3570 = vmatpush.bf16.msra.mxu0 %v2379
    %3571 = vmatpush.bf16.msra.mxu0 %v2369
    %3572 = vmatpush.bf16.msra.mxu0 %v2359
    %3573 = vmatpush.bf16.msra.mxu0 %v2349
    %3574 = vmatmul.bf16.gmra.mxu0 %v654
    %v3575 = vpop.f32.mrf.mxu0
    %v3576 = vadd.f32 0.0, %v3575
    %v3577 = vpop.f32.mrf.mxu0
    %v3578 = vadd.f32 0.0, %v3577
    %3579 = vdwg.mxu0
    %3580 = vmatpush.bf16.msra.mxu0 %v2499
    %3581 = vmatpush.bf16.msra.mxu0 %v2489
    %3582 = vmatpush.bf16.msra.mxu0 %v2479
    %3583 = vmatpush.bf16.msra.mxu0 %v2469
    %3584 = vmatpush.bf16.msra.mxu0 %v2459
    %3585 = vmatpush.bf16.msra.mxu0 %v2449
    %3586 = vmatpush.bf16.msra.mxu0 %v2439
    %3587 = vmatpush.bf16.msra.mxu0 %v2429
    %3588 = vmatmul.bf16.gmra.mxu0 %v655
    %v3589 = vpop.f32.mrf.mxu0
    %v3590 = vadd.f32 %v3576, %v3589
    %v3591 = vpop.f32.mrf.mxu0
    %v3592 = vadd.f32 %v3578, %v3591
    %3593 = vdwg.mxu0
    %3594 = vmatpush.bf16.msra.mxu0 %v2579
    %3595 = vmatpush.bf16.msra.mxu0 %v2569
    %3596 = vmatpush.bf16.msra.mxu0 %v2559
    %3597 = vmatpush.bf16.msra.mxu0 %v2549
    %3598 = vmatpush.bf16.msra.mxu0 %v2539
    %3599 = vmatpush.bf16.msra.mxu0 %v2529
    %3600 = vmatpush.bf16.msra.mxu0 %v2519
    %3601 = vmatpush.bf16.msra.mxu0 %v2509
    %3602 = vmatmul.bf16.gmra.mxu0 %v656
    %v3603 = vpop.f32.mrf.mxu0
    %v3604 = vadd.f32 %v3590, %v3603
    %v3605 = vpop.f32.mrf.mxu0
    %v3606 = vadd.f32 %v3592, %v3605
    %3607 = vdwg.mxu0
    %3608 = vmatpush.bf16.msra.mxu0 %v2659
    %3609 = vmatpush.bf16.msra.mxu0 %v2649
    %3610 = vmatpush.bf16.msra.mxu0 %v2639
    %3611 = vmatpush.bf16.msra.mxu0 %v2629
    %3612 = vmatpush.bf16.msra.mxu0 %v2619
    %3613 = vmatpush.bf16.msra.mxu0 %v2609
    %3614 = vmatpush.bf16.msra.mxu0 %v2599
    %3615 = vmatpush.bf16.msra.mxu0 %v2589
    %3616 = vmatmul.bf16.gmra.mxu0 %v657
    %v3617 = vpop.f32.mrf.mxu0
    %v3618 = vadd.f32 %v3604, %v3617
    %v3619 = vpop.f32.mrf.mxu0
    %v3620 = vadd.f32 %v3606, %v3619
    %3621 = vdwg.mxu0
    %3622 = vmatpush.bf16.msra.mxu0 %v2739
    %3623 = vmatpush.bf16.msra.mxu0 %v2729
    %3624 = vmatpush.bf16.msra.mxu0 %v2719
    %3625 = vmatpush.bf16.msra.mxu0 %v2709
    %3626 = vmatpush.bf16.msra.mxu0 %v2699
    %3627 = vmatpush.bf16.msra.mxu0 %v2689
    %3628 = vmatpush.bf16.msra.mxu0 %v2679
    %3629 = vmatpush.bf16.msra.mxu0 %v2669
    %3630 = vmatmul.bf16.gmra.mxu0 %v658
    %v3631 = vpop.f32.mrf.mxu0
    %v3632 = vadd.f32 %v3618, %v3631
    %v3633 = vpop.f32.mrf.mxu0
    %v3634 = vadd.f32 %v3620, %v3633
    %3635 = vdwg.mxu0
    %3636 = vmatpush.bf16.msra.mxu0 %v2819
    %3637 = vmatpush.bf16.msra.mxu0 %v2809
    %3638 = vmatpush.bf16.msra.mxu0 %v2799
    %3639 = vmatpush.bf16.msra.mxu0 %v2789
    %3640 = vmatpush.bf16.msra.mxu0 %v2779
    %3641 = vmatpush.bf16.msra.mxu0 %v2769
    %3642 = vmatpush.bf16.msra.mxu0 %v2759
    %3643 = vmatpush.bf16.msra.mxu0 %v2749
    %3644 = vmatmul.bf16.gmra.mxu0 %v659
    %v3645 = vpop.f32.mrf.mxu0
    %v3646 = vadd.f32 %v3632, %v3645
    %v3647 = vpop.f32.mrf.mxu0
    %v3648 = vadd.f32 %v3634, %v3647
    %3649 = vdwg.mxu0
    %3650 = vmatpush.bf16.msra.mxu0 %v2899
    %3651 = vmatpush.bf16.msra.mxu0 %v2889
    %3652 = vmatpush.bf16.msra.mxu0 %v2879
    %3653 = vmatpush.bf16.msra.mxu0 %v2869
    %3654 = vmatpush.bf16.msra.mxu0 %v2859
    %3655 = vmatpush.bf16.msra.mxu0 %v2849
    %3656 = vmatpush.bf16.msra.mxu0 %v2839
    %3657 = vmatpush.bf16.msra.mxu0 %v2829
    %3658 = vmatmul.bf16.gmra.mxu0 %v660
    %v3659 = vpop.f32.mrf.mxu0
    %v3660 = vadd.f32 %v3646, %v3659
    %v3661 = vpop.f32.mrf.mxu0
    %v3662 = vadd.f32 %v3648, %v3661
    %3663 = vdwg.mxu0
    %3664 = vmatpush.bf16.msra.mxu0 %v2420
    %3665 = vmatpush.bf16.msra.mxu0 %v2410
    %3666 = vmatpush.bf16.msra.mxu0 %v2400
    %3667 = vmatpush.bf16.msra.mxu0 %v2390
    %3668 = vmatpush.bf16.msra.mxu0 %v2380
    %3669 = vmatpush.bf16.msra.mxu0 %v2370
    %3670 = vmatpush.bf16.msra.mxu0 %v2360
    %3671 = vmatpush.bf16.msra.mxu0 %v2350
    %3672 = vmatmul.bf16.gmra.mxu0 %v654
    %v3673 = vpop.f32.mrf.mxu0
    %v3674 = vadd.f32 0.0, %v3673
    %v3675 = vpop.f32.mrf.mxu0
    %v3676 = vadd.f32 0.0, %v3675
    %3677 = vdwg.mxu0
    %3678 = vmatpush.bf16.msra.mxu0 %v2500
    %3679 = vmatpush.bf16.msra.mxu0 %v2490
    %3680 = vmatpush.bf16.msra.mxu0 %v2480
    %3681 = vmatpush.bf16.msra.mxu0 %v2470
    %3682 = vmatpush.bf16.msra.mxu0 %v2460
    %3683 = vmatpush.bf16.msra.mxu0 %v2450
    %3684 = vmatpush.bf16.msra.mxu0 %v2440
    %3685 = vmatpush.bf16.msra.mxu0 %v2430
    %3686 = vmatmul.bf16.gmra.mxu0 %v655
    %v3687 = vpop.f32.mrf.mxu0
    %v3688 = vadd.f32 %v3674, %v3687
    %v3689 = vpop.f32.mrf.mxu0
    %v3690 = vadd.f32 %v3676, %v3689
    %3691 = vdwg.mxu0
    %3692 = vmatpush.bf16.msra.mxu0 %v2580
    %3693 = vmatpush.bf16.msra.mxu0 %v2570
    %3694 = vmatpush.bf16.msra.mxu0 %v2560
    %3695 = vmatpush.bf16.msra.mxu0 %v2550
    %3696 = vmatpush.bf16.msra.mxu0 %v2540
    %3697 = vmatpush.bf16.msra.mxu0 %v2530
    %3698 = vmatpush.bf16.msra.mxu0 %v2520
    %3699 = vmatpush.bf16.msra.mxu0 %v2510
    %3700 = vmatmul.bf16.gmra.mxu0 %v656
    %v3701 = vpop.f32.mrf.mxu0
    %v3702 = vadd.f32 %v3688, %v3701
    %v3703 = vpop.f32.mrf.mxu0
    %v3704 = vadd.f32 %v3690, %v3703
    %3705 = vdwg.mxu0
    %3706 = vmatpush.bf16.msra.mxu0 %v2660
    %3707 = vmatpush.bf16.msra.mxu0 %v2650
    %3708 = vmatpush.bf16.msra.mxu0 %v2640
    %3709 = vmatpush.bf16.msra.mxu0 %v2630
    %3710 = vmatpush.bf16.msra.mxu0 %v2620
    %3711 = vmatpush.bf16.msra.mxu0 %v2610
    %3712 = vmatpush.bf16.msra.mxu0 %v2600
    %3713 = vmatpush.bf16.msra.mxu0 %v2590
    %3714 = vmatmul.bf16.gmra.mxu0 %v657
    %v3715 = vpop.f32.mrf.mxu0
    %v3716 = vadd.f32 %v3702, %v3715
    %v3717 = vpop.f32.mrf.mxu0
    %v3718 = vadd.f32 %v3704, %v3717
    %3719 = vdwg.mxu0
    %3720 = vmatpush.bf16.msra.mxu0 %v2740
    %3721 = vmatpush.bf16.msra.mxu0 %v2730
    %3722 = vmatpush.bf16.msra.mxu0 %v2720
    %3723 = vmatpush.bf16.msra.mxu0 %v2710
    %3724 = vmatpush.bf16.msra.mxu0 %v2700
    %3725 = vmatpush.bf16.msra.mxu0 %v2690
    %3726 = vmatpush.bf16.msra.mxu0 %v2680
    %3727 = vmatpush.bf16.msra.mxu0 %v2670
    %3728 = vmatmul.bf16.gmra.mxu0 %v658
    %v3729 = vpop.f32.mrf.mxu0
    %v3730 = vadd.f32 %v3716, %v3729
    %v3731 = vpop.f32.mrf.mxu0
    %v3732 = vadd.f32 %v3718, %v3731
    %3733 = vdwg.mxu0
    %3734 = vmatpush.bf16.msra.mxu0 %v2820
    %3735 = vmatpush.bf16.msra.mxu0 %v2810
    %3736 = vmatpush.bf16.msra.mxu0 %v2800
    %3737 = vmatpush.bf16.msra.mxu0 %v2790
    %3738 = vmatpush.bf16.msra.mxu0 %v2780
    %3739 = vmatpush.bf16.msra.mxu0 %v2770
    %3740 = vmatpush.bf16.msra.mxu0 %v2760
    %3741 = vmatpush.bf16.msra.mxu0 %v2750
    %3742 = vmatmul.bf16.gmra.mxu0 %v659
    %v3743 = vpop.f32.mrf.mxu0
    %v3744 = vadd.f32 %v3730, %v3743
    %v3745 = vpop.f32.mrf.mxu0
    %v3746 = vadd.f32 %v3732, %v3745
    %3747 = vdwg.mxu0
    %3748 = vmatpush.bf16.msra.mxu0 %v2900
    %3749 = vmatpush.bf16.msra.mxu0 %v2890
    %3750 = vmatpush.bf16.msra.mxu0 %v2880
    %3751 = vmatpush.bf16.msra.mxu0 %v2870
    %3752 = vmatpush.bf16.msra.mxu0 %v2860
    %3753 = vmatpush.bf16.msra.mxu0 %v2850
    %3754 = vmatpush.bf16.msra.mxu0 %v2840
    %3755 = vmatpush.bf16.msra.mxu0 %v2830
    %3756 = vmatmul.bf16.gmra.mxu0 %v660
    %v3757 = vpop.f32.mrf.mxu0
    %v3758 = vadd.f32 %v3744, %v3757
    %v3759 = vpop.f32.mrf.mxu0
    %v3760 = vadd.f32 %v3746, %v3759
    %3761 = vdwg.mxu0
    %3762 = vmatpush.bf16.msra.mxu0 %v2421
    %3763 = vmatpush.bf16.msra.mxu0 %v2411
    %3764 = vmatpush.bf16.msra.mxu0 %v2401
    %3765 = vmatpush.bf16.msra.mxu0 %v2391
    %3766 = vmatpush.bf16.msra.mxu0 %v2381
    %3767 = vmatpush.bf16.msra.mxu0 %v2371
    %3768 = vmatpush.bf16.msra.mxu0 %v2361
    %3769 = vmatpush.bf16.msra.mxu0 %v2351
    %3770 = vmatmul.bf16.gmra.mxu0 %v654
    %v3771 = vpop.f32.mrf.mxu0
    %v3772 = vadd.f32 0.0, %v3771
    %v3773 = vpop.f32.mrf.mxu0
    %v3774 = vadd.f32 0.0, %v3773
    %3775 = vdwg.mxu0
    %3776 = vmatpush.bf16.msra.mxu0 %v2501
    %3777 = vmatpush.bf16.msra.mxu0 %v2491
    %3778 = vmatpush.bf16.msra.mxu0 %v2481
    %3779 = vmatpush.bf16.msra.mxu0 %v2471
    %3780 = vmatpush.bf16.msra.mxu0 %v2461
    %3781 = vmatpush.bf16.msra.mxu0 %v2451
    %3782 = vmatpush.bf16.msra.mxu0 %v2441
    %3783 = vmatpush.bf16.msra.mxu0 %v2431
    %3784 = vmatmul.bf16.gmra.mxu0 %v655
    %v3785 = vpop.f32.mrf.mxu0
    %v3786 = vadd.f32 %v3772, %v3785
    %v3787 = vpop.f32.mrf.mxu0
    %v3788 = vadd.f32 %v3774, %v3787
    %3789 = vdwg.mxu0
    %3790 = vmatpush.bf16.msra.mxu0 %v2581
    %3791 = vmatpush.bf16.msra.mxu0 %v2571
    %3792 = vmatpush.bf16.msra.mxu0 %v2561
    %3793 = vmatpush.bf16.msra.mxu0 %v2551
    %3794 = vmatpush.bf16.msra.mxu0 %v2541
    %3795 = vmatpush.bf16.msra.mxu0 %v2531
    %3796 = vmatpush.bf16.msra.mxu0 %v2521
    %3797 = vmatpush.bf16.msra.mxu0 %v2511
    %3798 = vmatmul.bf16.gmra.mxu0 %v656
    %v3799 = vpop.f32.mrf.mxu0
    %v3800 = vadd.f32 %v3786, %v3799
    %v3801 = vpop.f32.mrf.mxu0
    %v3802 = vadd.f32 %v3788, %v3801
    %3803 = vdwg.mxu0
    %3804 = vmatpush.bf16.msra.mxu0 %v2661
    %3805 = vmatpush.bf16.msra.mxu0 %v2651
    %3806 = vmatpush.bf16.msra.mxu0 %v2641
    %3807 = vmatpush.bf16.msra.mxu0 %v2631
    %3808 = vmatpush.bf16.msra.mxu0 %v2621
    %3809 = vmatpush.bf16.msra.mxu0 %v2611
    %3810 = vmatpush.bf16.msra.mxu0 %v2601
    %3811 = vmatpush.bf16.msra.mxu0 %v2591
    %3812 = vmatmul.bf16.gmra.mxu0 %v657
    %v3813 = vpop.f32.mrf.mxu0
    %v3814 = vadd.f32 %v3800, %v3813
    %v3815 = vpop.f32.mrf.mxu0
    %v3816 = vadd.f32 %v3802, %v3815
    %3817 = vdwg.mxu0
    %3818 = vmatpush.bf16.msra.mxu0 %v2741
    %3819 = vmatpush.bf16.msra.mxu0 %v2731
    %3820 = vmatpush.bf16.msra.mxu0 %v2721
    %3821 = vmatpush.bf16.msra.mxu0 %v2711
    %3822 = vmatpush.bf16.msra.mxu0 %v2701
    %3823 = vmatpush.bf16.msra.mxu0 %v2691
    %3824 = vmatpush.bf16.msra.mxu0 %v2681
    %3825 = vmatpush.bf16.msra.mxu0 %v2671
    %3826 = vmatmul.bf16.gmra.mxu0 %v658
    %v3827 = vpop.f32.mrf.mxu0
    %v3828 = vadd.f32 %v3814, %v3827
    %v3829 = vpop.f32.mrf.mxu0
    %v3830 = vadd.f32 %v3816, %v3829
    %3831 = vdwg.mxu0
    %3832 = vmatpush.bf16.msra.mxu0 %v2821
    %3833 = vmatpush.bf16.msra.mxu0 %v2811
    %3834 = vmatpush.bf16.msra.mxu0 %v2801
    %3835 = vmatpush.bf16.msra.mxu0 %v2791
    %3836 = vmatpush.bf16.msra.mxu0 %v2781
    %3837 = vmatpush.bf16.msra.mxu0 %v2771
    %3838 = vmatpush.bf16.msra.mxu0 %v2761
    %3839 = vmatpush.bf16.msra.mxu0 %v2751
    %3840 = vmatmul.bf16.gmra.mxu0 %v659
    %v3841 = vpop.f32.mrf.mxu0
    %v3842 = vadd.f32 %v3828, %v3841
    %v3843 = vpop.f32.mrf.mxu0
    %v3844 = vadd.f32 %v3830, %v3843
    %3845 = vdwg.mxu0
    %3846 = vmatpush.bf16.msra.mxu0 %v2901
    %3847 = vmatpush.bf16.msra.mxu0 %v2891
    %3848 = vmatpush.bf16.msra.mxu0 %v2881
    %3849 = vmatpush.bf16.msra.mxu0 %v2871
    %3850 = vmatpush.bf16.msra.mxu0 %v2861
    %3851 = vmatpush.bf16.msra.mxu0 %v2851
    %3852 = vmatpush.bf16.msra.mxu0 %v2841
    %3853 = vmatpush.bf16.msra.mxu0 %v2831
    %3854 = vmatmul.bf16.gmra.mxu0 %v660
    %v3855 = vpop.f32.mrf.mxu0
    %v3856 = vadd.f32 %v3842, %v3855
    %v3857 = vpop.f32.mrf.mxu0
    %v3858 = vadd.f32 %v3844, %v3857
    %3859 = vdwg.mxu0
    %3860 = vmatpush.bf16.msra.mxu0 %v2422
    %3861 = vmatpush.bf16.msra.mxu0 %v2412
    %3862 = vmatpush.bf16.msra.mxu0 %v2402
    %3863 = vmatpush.bf16.msra.mxu0 %v2392
    %3864 = vmatpush.bf16.msra.mxu0 %v2382
    %3865 = vmatpush.bf16.msra.mxu0 %v2372
    %3866 = vmatpush.bf16.msra.mxu0 %v2362
    %3867 = vmatpush.bf16.msra.mxu0 %v2352
    %3868 = vmatmul.bf16.gmra.mxu0 %v654
    %v3869 = vpop.f32.mrf.mxu0
    %v3870 = vadd.f32 0.0, %v3869
    %v3871 = vpop.f32.mrf.mxu0
    %v3872 = vadd.f32 0.0, %v3871
    %3873 = vdwg.mxu0
    %3874 = vmatpush.bf16.msra.mxu0 %v2502
    %3875 = vmatpush.bf16.msra.mxu0 %v2492
    %3876 = vmatpush.bf16.msra.mxu0 %v2482
    %3877 = vmatpush.bf16.msra.mxu0 %v2472
    %3878 = vmatpush.bf16.msra.mxu0 %v2462
    %3879 = vmatpush.bf16.msra.mxu0 %v2452
    %3880 = vmatpush.bf16.msra.mxu0 %v2442
    %3881 = vmatpush.bf16.msra.mxu0 %v2432
    %3882 = vmatmul.bf16.gmra.mxu0 %v655
    %v3883 = vpop.f32.mrf.mxu0
    %v3884 = vadd.f32 %v3870, %v3883
    %v3885 = vpop.f32.mrf.mxu0
    %v3886 = vadd.f32 %v3872, %v3885
    %3887 = vdwg.mxu0
    %3888 = vmatpush.bf16.msra.mxu0 %v2582
    %3889 = vmatpush.bf16.msra.mxu0 %v2572
    %3890 = vmatpush.bf16.msra.mxu0 %v2562
    %3891 = vmatpush.bf16.msra.mxu0 %v2552
    %3892 = vmatpush.bf16.msra.mxu0 %v2542
    %3893 = vmatpush.bf16.msra.mxu0 %v2532
    %3894 = vmatpush.bf16.msra.mxu0 %v2522
    %3895 = vmatpush.bf16.msra.mxu0 %v2512
    %3896 = vmatmul.bf16.gmra.mxu0 %v656
    %v3897 = vpop.f32.mrf.mxu0
    %v3898 = vadd.f32 %v3884, %v3897
    %v3899 = vpop.f32.mrf.mxu0
    %v3900 = vadd.f32 %v3886, %v3899
    %3901 = vdwg.mxu0
    %3902 = vmatpush.bf16.msra.mxu0 %v2662
    %3903 = vmatpush.bf16.msra.mxu0 %v2652
    %3904 = vmatpush.bf16.msra.mxu0 %v2642
    %3905 = vmatpush.bf16.msra.mxu0 %v2632
    %3906 = vmatpush.bf16.msra.mxu0 %v2622
    %3907 = vmatpush.bf16.msra.mxu0 %v2612
    %3908 = vmatpush.bf16.msra.mxu0 %v2602
    %3909 = vmatpush.bf16.msra.mxu0 %v2592
    %3910 = vmatmul.bf16.gmra.mxu0 %v657
    %v3911 = vpop.f32.mrf.mxu0
    %v3912 = vadd.f32 %v3898, %v3911
    %v3913 = vpop.f32.mrf.mxu0
    %v3914 = vadd.f32 %v3900, %v3913
    %3915 = vdwg.mxu0
    %3916 = vmatpush.bf16.msra.mxu0 %v2742
    %3917 = vmatpush.bf16.msra.mxu0 %v2732
    %3918 = vmatpush.bf16.msra.mxu0 %v2722
    %3919 = vmatpush.bf16.msra.mxu0 %v2712
    %3920 = vmatpush.bf16.msra.mxu0 %v2702
    %3921 = vmatpush.bf16.msra.mxu0 %v2692
    %3922 = vmatpush.bf16.msra.mxu0 %v2682
    %3923 = vmatpush.bf16.msra.mxu0 %v2672
    %3924 = vmatmul.bf16.gmra.mxu0 %v658
    %v3925 = vpop.f32.mrf.mxu0
    %v3926 = vadd.f32 %v3912, %v3925
    %v3927 = vpop.f32.mrf.mxu0
    %v3928 = vadd.f32 %v3914, %v3927
    %3929 = vdwg.mxu0
    %3930 = vmatpush.bf16.msra.mxu0 %v2822
    %3931 = vmatpush.bf16.msra.mxu0 %v2812
    %3932 = vmatpush.bf16.msra.mxu0 %v2802
    %3933 = vmatpush.bf16.msra.mxu0 %v2792
    %3934 = vmatpush.bf16.msra.mxu0 %v2782
    %3935 = vmatpush.bf16.msra.mxu0 %v2772
    %3936 = vmatpush.bf16.msra.mxu0 %v2762
    %3937 = vmatpush.bf16.msra.mxu0 %v2752
    %3938 = vmatmul.bf16.gmra.mxu0 %v659
    %v3939 = vpop.f32.mrf.mxu0
    %v3940 = vadd.f32 %v3926, %v3939
    %v3941 = vpop.f32.mrf.mxu0
    %v3942 = vadd.f32 %v3928, %v3941
    %3943 = vdwg.mxu0
    %3944 = vmatpush.bf16.msra.mxu0 %v2902
    %3945 = vmatpush.bf16.msra.mxu0 %v2892
    %3946 = vmatpush.bf16.msra.mxu0 %v2882
    %3947 = vmatpush.bf16.msra.mxu0 %v2872
    %3948 = vmatpush.bf16.msra.mxu0 %v2862
    %3949 = vmatpush.bf16.msra.mxu0 %v2852
    %3950 = vmatpush.bf16.msra.mxu0 %v2842
    %3951 = vmatpush.bf16.msra.mxu0 %v2832
    %3952 = vmatmul.bf16.gmra.mxu0 %v660
    %v3953 = vpop.f32.mrf.mxu0
    %v3954 = vadd.f32 %v3940, %v3953
    %v3955 = vpop.f32.mrf.mxu0
    %v3956 = vadd.f32 %v3942, %v3955
    %3957 = vdwg.mxu0
    %3958 = vmatpush.bf16.msra.mxu0 %v2423
    %3959 = vmatpush.bf16.msra.mxu0 %v2413
    %3960 = vmatpush.bf16.msra.mxu0 %v2403
    %3961 = vmatpush.bf16.msra.mxu0 %v2393
    %3962 = vmatpush.bf16.msra.mxu0 %v2383
    %3963 = vmatpush.bf16.msra.mxu0 %v2373
    %3964 = vmatpush.bf16.msra.mxu0 %v2363
    %3965 = vmatpush.bf16.msra.mxu0 %v2353
    %3966 = vmatmul.bf16.gmra.mxu0 %v654
    %v3967 = vpop.f32.mrf.mxu0
    %v3968 = vadd.f32 0.0, %v3967
    %v3969 = vpop.f32.mrf.mxu0
    %v3970 = vadd.f32 0.0, %v3969
    %3971 = vdwg.mxu0
    %3972 = vmatpush.bf16.msra.mxu0 %v2503
    %3973 = vmatpush.bf16.msra.mxu0 %v2493
    %3974 = vmatpush.bf16.msra.mxu0 %v2483
    %3975 = vmatpush.bf16.msra.mxu0 %v2473
    %3976 = vmatpush.bf16.msra.mxu0 %v2463
    %3977 = vmatpush.bf16.msra.mxu0 %v2453
    %3978 = vmatpush.bf16.msra.mxu0 %v2443
    %3979 = vmatpush.bf16.msra.mxu0 %v2433
    %3980 = vmatmul.bf16.gmra.mxu0 %v655
    %v3981 = vpop.f32.mrf.mxu0
    %v3982 = vadd.f32 %v3968, %v3981
    %v3983 = vpop.f32.mrf.mxu0
    %v3984 = vadd.f32 %v3970, %v3983
    %3985 = vdwg.mxu0
    %3986 = vmatpush.bf16.msra.mxu0 %v2583
    %3987 = vmatpush.bf16.msra.mxu0 %v2573
    %3988 = vmatpush.bf16.msra.mxu0 %v2563
    %3989 = vmatpush.bf16.msra.mxu0 %v2553
    %3990 = vmatpush.bf16.msra.mxu0 %v2543
    %3991 = vmatpush.bf16.msra.mxu0 %v2533
    %3992 = vmatpush.bf16.msra.mxu0 %v2523
    %3993 = vmatpush.bf16.msra.mxu0 %v2513
    %3994 = vmatmul.bf16.gmra.mxu0 %v656
    %v3995 = vpop.f32.mrf.mxu0
    %v3996 = vadd.f32 %v3982, %v3995
    %v3997 = vpop.f32.mrf.mxu0
    %v3998 = vadd.f32 %v3984, %v3997
    %3999 = vdwg.mxu0
    %4000 = vmatpush.bf16.msra.mxu0 %v2663
    %4001 = vmatpush.bf16.msra.mxu0 %v2653
    %4002 = vmatpush.bf16.msra.mxu0 %v2643
    %4003 = vmatpush.bf16.msra.mxu0 %v2633
    %4004 = vmatpush.bf16.msra.mxu0 %v2623
    %4005 = vmatpush.bf16.msra.mxu0 %v2613
    %4006 = vmatpush.bf16.msra.mxu0 %v2603
    %4007 = vmatpush.bf16.msra.mxu0 %v2593
    %4008 = vmatmul.bf16.gmra.mxu0 %v657
    %v4009 = vpop.f32.mrf.mxu0
    %v4010 = vadd.f32 %v3996, %v4009
    %v4011 = vpop.f32.mrf.mxu0
    %v4012 = vadd.f32 %v3998, %v4011
    %4013 = vdwg.mxu0
    %4014 = vmatpush.bf16.msra.mxu0 %v2743
    %4015 = vmatpush.bf16.msra.mxu0 %v2733
    %4016 = vmatpush.bf16.msra.mxu0 %v2723
    %4017 = vmatpush.bf16.msra.mxu0 %v2713
    %4018 = vmatpush.bf16.msra.mxu0 %v2703
    %4019 = vmatpush.bf16.msra.mxu0 %v2693
    %4020 = vmatpush.bf16.msra.mxu0 %v2683
    %4021 = vmatpush.bf16.msra.mxu0 %v2673
    %4022 = vmatmul.bf16.gmra.mxu0 %v658
    %v4023 = vpop.f32.mrf.mxu0
    %v4024 = vadd.f32 %v4010, %v4023
    %v4025 = vpop.f32.mrf.mxu0
    %v4026 = vadd.f32 %v4012, %v4025
    %4027 = vdwg.mxu0
    %4028 = vmatpush.bf16.msra.mxu0 %v2823
    %4029 = vmatpush.bf16.msra.mxu0 %v2813
    %4030 = vmatpush.bf16.msra.mxu0 %v2803
    %4031 = vmatpush.bf16.msra.mxu0 %v2793
    %4032 = vmatpush.bf16.msra.mxu0 %v2783
    %4033 = vmatpush.bf16.msra.mxu0 %v2773
    %4034 = vmatpush.bf16.msra.mxu0 %v2763
    %4035 = vmatpush.bf16.msra.mxu0 %v2753
    %4036 = vmatmul.bf16.gmra.mxu0 %v659
    %v4037 = vpop.f32.mrf.mxu0
    %v4038 = vadd.f32 %v4024, %v4037
    %v4039 = vpop.f32.mrf.mxu0
    %v4040 = vadd.f32 %v4026, %v4039
    %4041 = vdwg.mxu0
    %4042 = vmatpush.bf16.msra.mxu0 %v2903
    %4043 = vmatpush.bf16.msra.mxu0 %v2893
    %4044 = vmatpush.bf16.msra.mxu0 %v2883
    %4045 = vmatpush.bf16.msra.mxu0 %v2873
    %4046 = vmatpush.bf16.msra.mxu0 %v2863
    %4047 = vmatpush.bf16.msra.mxu0 %v2853
    %4048 = vmatpush.bf16.msra.mxu0 %v2843
    %4049 = vmatpush.bf16.msra.mxu0 %v2833
    %4050 = vmatmul.bf16.gmra.mxu0 %v660
    %v4051 = vpop.f32.mrf.mxu0
    %v4052 = vadd.f32 %v4038, %v4051
    %v4053 = vpop.f32.mrf.mxu0
    %v4054 = vadd.f32 %v4040, %v4053
    %4055 = vdwg.mxu0
    %4056 = vmatpush.bf16.msra.mxu0 %v2424
    %4057 = vmatpush.bf16.msra.mxu0 %v2414
    %4058 = vmatpush.bf16.msra.mxu0 %v2404
    %4059 = vmatpush.bf16.msra.mxu0 %v2394
    %4060 = vmatpush.bf16.msra.mxu0 %v2384
    %4061 = vmatpush.bf16.msra.mxu0 %v2374
    %4062 = vmatpush.bf16.msra.mxu0 %v2364
    %4063 = vmatpush.bf16.msra.mxu0 %v2354
    %4064 = vmatmul.bf16.gmra.mxu0 %v654
    %v4065 = vpop.f32.mrf.mxu0
    %v4066 = vadd.f32 0.0, %v4065
    %v4067 = vpop.f32.mrf.mxu0
    %v4068 = vadd.f32 0.0, %v4067
    %4069 = vdwg.mxu0
    %4070 = vmatpush.bf16.msra.mxu0 %v2504
    %4071 = vmatpush.bf16.msra.mxu0 %v2494
    %4072 = vmatpush.bf16.msra.mxu0 %v2484
    %4073 = vmatpush.bf16.msra.mxu0 %v2474
    %4074 = vmatpush.bf16.msra.mxu0 %v2464
    %4075 = vmatpush.bf16.msra.mxu0 %v2454
    %4076 = vmatpush.bf16.msra.mxu0 %v2444
    %4077 = vmatpush.bf16.msra.mxu0 %v2434
    %4078 = vmatmul.bf16.gmra.mxu0 %v655
    %v4079 = vpop.f32.mrf.mxu0
    %v4080 = vadd.f32 %v4066, %v4079
    %v4081 = vpop.f32.mrf.mxu0
    %v4082 = vadd.f32 %v4068, %v4081
    %4083 = vdwg.mxu0
    %4084 = vmatpush.bf16.msra.mxu0 %v2584
    %4085 = vmatpush.bf16.msra.mxu0 %v2574
    %4086 = vmatpush.bf16.msra.mxu0 %v2564
    %4087 = vmatpush.bf16.msra.mxu0 %v2554
    %4088 = vmatpush.bf16.msra.mxu0 %v2544
    %4089 = vmatpush.bf16.msra.mxu0 %v2534
    %4090 = vmatpush.bf16.msra.mxu0 %v2524
    %4091 = vmatpush.bf16.msra.mxu0 %v2514
    %4092 = vmatmul.bf16.gmra.mxu0 %v656
    %v4093 = vpop.f32.mrf.mxu0
    %v4094 = vadd.f32 %v4080, %v4093
    %v4095 = vpop.f32.mrf.mxu0
    %v4096 = vadd.f32 %v4082, %v4095
    %4097 = vdwg.mxu0
    %4098 = vmatpush.bf16.msra.mxu0 %v2664
    %4099 = vmatpush.bf16.msra.mxu0 %v2654
    %4100 = vmatpush.bf16.msra.mxu0 %v2644
    %4101 = vmatpush.bf16.msra.mxu0 %v2634
    %4102 = vmatpush.bf16.msra.mxu0 %v2624
    %4103 = vmatpush.bf16.msra.mxu0 %v2614
    %4104 = vmatpush.bf16.msra.mxu0 %v2604
    %4105 = vmatpush.bf16.msra.mxu0 %v2594
    %4106 = vmatmul.bf16.gmra.mxu0 %v657
    %v4107 = vpop.f32.mrf.mxu0
    %v4108 = vadd.f32 %v4094, %v4107
    %v4109 = vpop.f32.mrf.mxu0
    %v4110 = vadd.f32 %v4096, %v4109
    %4111 = vdwg.mxu0
    %4112 = vmatpush.bf16.msra.mxu0 %v2744
    %4113 = vmatpush.bf16.msra.mxu0 %v2734
    %4114 = vmatpush.bf16.msra.mxu0 %v2724
    %4115 = vmatpush.bf16.msra.mxu0 %v2714
    %4116 = vmatpush.bf16.msra.mxu0 %v2704
    %4117 = vmatpush.bf16.msra.mxu0 %v2694
    %4118 = vmatpush.bf16.msra.mxu0 %v2684
    %4119 = vmatpush.bf16.msra.mxu0 %v2674
    %4120 = vmatmul.bf16.gmra.mxu0 %v658
    %v4121 = vpop.f32.mrf.mxu0
    %v4122 = vadd.f32 %v4108, %v4121
    %v4123 = vpop.f32.mrf.mxu0
    %v4124 = vadd.f32 %v4110, %v4123
    %4125 = vdwg.mxu0
    %4126 = vmatpush.bf16.msra.mxu0 %v2824
    %4127 = vmatpush.bf16.msra.mxu0 %v2814
    %4128 = vmatpush.bf16.msra.mxu0 %v2804
    %4129 = vmatpush.bf16.msra.mxu0 %v2794
    %4130 = vmatpush.bf16.msra.mxu0 %v2784
    %4131 = vmatpush.bf16.msra.mxu0 %v2774
    %4132 = vmatpush.bf16.msra.mxu0 %v2764
    %4133 = vmatpush.bf16.msra.mxu0 %v2754
    %4134 = vmatmul.bf16.gmra.mxu0 %v659
    %v4135 = vpop.f32.mrf.mxu0
    %v4136 = vadd.f32 %v4122, %v4135
    %v4137 = vpop.f32.mrf.mxu0
    %v4138 = vadd.f32 %v4124, %v4137
    %4139 = vdwg.mxu0
    %4140 = vmatpush.bf16.msra.mxu0 %v2904
    %4141 = vmatpush.bf16.msra.mxu0 %v2894
    %4142 = vmatpush.bf16.msra.mxu0 %v2884
    %4143 = vmatpush.bf16.msra.mxu0 %v2874
    %4144 = vmatpush.bf16.msra.mxu0 %v2864
    %4145 = vmatpush.bf16.msra.mxu0 %v2854
    %4146 = vmatpush.bf16.msra.mxu0 %v2844
    %4147 = vmatpush.bf16.msra.mxu0 %v2834
    %4148 = vmatmul.bf16.gmra.mxu0 %v660
    %v4149 = vpop.f32.mrf.mxu0
    %v4150 = vadd.f32 %v4136, %v4149
    %v4151 = vpop.f32.mrf.mxu0
    %v4152 = vadd.f32 %v4138, %v4151
    %4153 = vdwg.mxu0
    %4154 = vmatpush.bf16.msra.mxu0 %v2425
    %4155 = vmatpush.bf16.msra.mxu0 %v2415
    %4156 = vmatpush.bf16.msra.mxu0 %v2405
    %4157 = vmatpush.bf16.msra.mxu0 %v2395
    %4158 = vmatpush.bf16.msra.mxu0 %v2385
    %4159 = vmatpush.bf16.msra.mxu0 %v2375
    %4160 = vmatpush.bf16.msra.mxu0 %v2365
    %4161 = vmatpush.bf16.msra.mxu0 %v2355
    %4162 = vmatmul.bf16.gmra.mxu0 %v654
    %v4163 = vpop.f32.mrf.mxu0
    %v4164 = vadd.f32 0.0, %v4163
    %v4165 = vpop.f32.mrf.mxu0
    %v4166 = vadd.f32 0.0, %v4165
    %4167 = vdwg.mxu0
    %4168 = vmatpush.bf16.msra.mxu0 %v2505
    %4169 = vmatpush.bf16.msra.mxu0 %v2495
    %4170 = vmatpush.bf16.msra.mxu0 %v2485
    %4171 = vmatpush.bf16.msra.mxu0 %v2475
    %4172 = vmatpush.bf16.msra.mxu0 %v2465
    %4173 = vmatpush.bf16.msra.mxu0 %v2455
    %4174 = vmatpush.bf16.msra.mxu0 %v2445
    %4175 = vmatpush.bf16.msra.mxu0 %v2435
    %4176 = vmatmul.bf16.gmra.mxu0 %v655
    %v4177 = vpop.f32.mrf.mxu0
    %v4178 = vadd.f32 %v4164, %v4177
    %v4179 = vpop.f32.mrf.mxu0
    %v4180 = vadd.f32 %v4166, %v4179
    %4181 = vdwg.mxu0
    %4182 = vmatpush.bf16.msra.mxu0 %v2585
    %4183 = vmatpush.bf16.msra.mxu0 %v2575
    %4184 = vmatpush.bf16.msra.mxu0 %v2565
    %4185 = vmatpush.bf16.msra.mxu0 %v2555
    %4186 = vmatpush.bf16.msra.mxu0 %v2545
    %4187 = vmatpush.bf16.msra.mxu0 %v2535
    %4188 = vmatpush.bf16.msra.mxu0 %v2525
    %4189 = vmatpush.bf16.msra.mxu0 %v2515
    %4190 = vmatmul.bf16.gmra.mxu0 %v656
    %v4191 = vpop.f32.mrf.mxu0
    %v4192 = vadd.f32 %v4178, %v4191
    %v4193 = vpop.f32.mrf.mxu0
    %v4194 = vadd.f32 %v4180, %v4193
    %4195 = vdwg.mxu0
    %4196 = vmatpush.bf16.msra.mxu0 %v2665
    %4197 = vmatpush.bf16.msra.mxu0 %v2655
    %4198 = vmatpush.bf16.msra.mxu0 %v2645
    %4199 = vmatpush.bf16.msra.mxu0 %v2635
    %4200 = vmatpush.bf16.msra.mxu0 %v2625
    %4201 = vmatpush.bf16.msra.mxu0 %v2615
    %4202 = vmatpush.bf16.msra.mxu0 %v2605
    %4203 = vmatpush.bf16.msra.mxu0 %v2595
    %4204 = vmatmul.bf16.gmra.mxu0 %v657
    %v4205 = vpop.f32.mrf.mxu0
    %v4206 = vadd.f32 %v4192, %v4205
    %v4207 = vpop.f32.mrf.mxu0
    %v4208 = vadd.f32 %v4194, %v4207
    %4209 = vdwg.mxu0
    %4210 = vmatpush.bf16.msra.mxu0 %v2745
    %4211 = vmatpush.bf16.msra.mxu0 %v2735
    %4212 = vmatpush.bf16.msra.mxu0 %v2725
    %4213 = vmatpush.bf16.msra.mxu0 %v2715
    %4214 = vmatpush.bf16.msra.mxu0 %v2705
    %4215 = vmatpush.bf16.msra.mxu0 %v2695
    %4216 = vmatpush.bf16.msra.mxu0 %v2685
    %4217 = vmatpush.bf16.msra.mxu0 %v2675
    %4218 = vmatmul.bf16.gmra.mxu0 %v658
    %v4219 = vpop.f32.mrf.mxu0
    %v4220 = vadd.f32 %v4206, %v4219
    %v4221 = vpop.f32.mrf.mxu0
    %v4222 = vadd.f32 %v4208, %v4221
    %4223 = vdwg.mxu0
    %4224 = vmatpush.bf16.msra.mxu0 %v2825
    %4225 = vmatpush.bf16.msra.mxu0 %v2815
    %4226 = vmatpush.bf16.msra.mxu0 %v2805
    %4227 = vmatpush.bf16.msra.mxu0 %v2795
    %4228 = vmatpush.bf16.msra.mxu0 %v2785
    %4229 = vmatpush.bf16.msra.mxu0 %v2775
    %4230 = vmatpush.bf16.msra.mxu0 %v2765
    %4231 = vmatpush.bf16.msra.mxu0 %v2755
    %4232 = vmatmul.bf16.gmra.mxu0 %v659
    %v4233 = vpop.f32.mrf.mxu0
    %v4234 = vadd.f32 %v4220, %v4233
    %v4235 = vpop.f32.mrf.mxu0
    %v4236 = vadd.f32 %v4222, %v4235
    %4237 = vdwg.mxu0
    %4238 = vmatpush.bf16.msra.mxu0 %v2905
    %4239 = vmatpush.bf16.msra.mxu0 %v2895
    %4240 = vmatpush.bf16.msra.mxu0 %v2885
    %4241 = vmatpush.bf16.msra.mxu0 %v2875
    %4242 = vmatpush.bf16.msra.mxu0 %v2865
    %4243 = vmatpush.bf16.msra.mxu0 %v2855
    %4244 = vmatpush.bf16.msra.mxu0 %v2845
    %4245 = vmatpush.bf16.msra.mxu0 %v2835
    %4246 = vmatmul.bf16.gmra.mxu0 %v660
    %v4247 = vpop.f32.mrf.mxu0
    %v4248 = vadd.f32 %v4234, %v4247
    %v4249 = vpop.f32.mrf.mxu0
    %v4250 = vadd.f32 %v4236, %v4249
    %4251 = vdwg.mxu0
    %4252 = vmatpush.bf16.msra.mxu0 %v2426
    %4253 = vmatpush.bf16.msra.mxu0 %v2416
    %4254 = vmatpush.bf16.msra.mxu0 %v2406
    %4255 = vmatpush.bf16.msra.mxu0 %v2396
    %4256 = vmatpush.bf16.msra.mxu0 %v2386
    %4257 = vmatpush.bf16.msra.mxu0 %v2376
    %4258 = vmatpush.bf16.msra.mxu0 %v2366
    %4259 = vmatpush.bf16.msra.mxu0 %v2356
    %4260 = vmatmul.bf16.gmra.mxu0 %v654
    %v4261 = vpop.f32.mrf.mxu0
    %v4262 = vadd.f32 0.0, %v4261
    %v4263 = vpop.f32.mrf.mxu0
    %v4264 = vadd.f32 0.0, %v4263
    %4265 = vdwg.mxu0
    %4266 = vmatpush.bf16.msra.mxu0 %v2506
    %4267 = vmatpush.bf16.msra.mxu0 %v2496
    %4268 = vmatpush.bf16.msra.mxu0 %v2486
    %4269 = vmatpush.bf16.msra.mxu0 %v2476
    %4270 = vmatpush.bf16.msra.mxu0 %v2466
    %4271 = vmatpush.bf16.msra.mxu0 %v2456
    %4272 = vmatpush.bf16.msra.mxu0 %v2446
    %4273 = vmatpush.bf16.msra.mxu0 %v2436
    %4274 = vmatmul.bf16.gmra.mxu0 %v655
    %v4275 = vpop.f32.mrf.mxu0
    %v4276 = vadd.f32 %v4262, %v4275
    %v4277 = vpop.f32.mrf.mxu0
    %v4278 = vadd.f32 %v4264, %v4277
    %4279 = vdwg.mxu0
    %4280 = vmatpush.bf16.msra.mxu0 %v2586
    %4281 = vmatpush.bf16.msra.mxu0 %v2576
    %4282 = vmatpush.bf16.msra.mxu0 %v2566
    %4283 = vmatpush.bf16.msra.mxu0 %v2556
    %4284 = vmatpush.bf16.msra.mxu0 %v2546
    %4285 = vmatpush.bf16.msra.mxu0 %v2536
    %4286 = vmatpush.bf16.msra.mxu0 %v2526
    %4287 = vmatpush.bf16.msra.mxu0 %v2516
    %4288 = vmatmul.bf16.gmra.mxu0 %v656
    %v4289 = vpop.f32.mrf.mxu0
    %v4290 = vadd.f32 %v4276, %v4289
    %v4291 = vpop.f32.mrf.mxu0
    %v4292 = vadd.f32 %v4278, %v4291
    %4293 = vdwg.mxu0
    %4294 = vmatpush.bf16.msra.mxu0 %v2666
    %4295 = vmatpush.bf16.msra.mxu0 %v2656
    %4296 = vmatpush.bf16.msra.mxu0 %v2646
    %4297 = vmatpush.bf16.msra.mxu0 %v2636
    %4298 = vmatpush.bf16.msra.mxu0 %v2626
    %4299 = vmatpush.bf16.msra.mxu0 %v2616
    %4300 = vmatpush.bf16.msra.mxu0 %v2606
    %4301 = vmatpush.bf16.msra.mxu0 %v2596
    %4302 = vmatmul.bf16.gmra.mxu0 %v657
    %v4303 = vpop.f32.mrf.mxu0
    %v4304 = vadd.f32 %v4290, %v4303
    %v4305 = vpop.f32.mrf.mxu0
    %v4306 = vadd.f32 %v4292, %v4305
    %4307 = vdwg.mxu0
    %4308 = vmatpush.bf16.msra.mxu0 %v2746
    %4309 = vmatpush.bf16.msra.mxu0 %v2736
    %4310 = vmatpush.bf16.msra.mxu0 %v2726
    %4311 = vmatpush.bf16.msra.mxu0 %v2716
    %4312 = vmatpush.bf16.msra.mxu0 %v2706
    %4313 = vmatpush.bf16.msra.mxu0 %v2696
    %4314 = vmatpush.bf16.msra.mxu0 %v2686
    %4315 = vmatpush.bf16.msra.mxu0 %v2676
    %4316 = vmatmul.bf16.gmra.mxu0 %v658
    %v4317 = vpop.f32.mrf.mxu0
    %v4318 = vadd.f32 %v4304, %v4317
    %v4319 = vpop.f32.mrf.mxu0
    %v4320 = vadd.f32 %v4306, %v4319
    %4321 = vdwg.mxu0
    %4322 = vmatpush.bf16.msra.mxu0 %v2826
    %4323 = vmatpush.bf16.msra.mxu0 %v2816
    %4324 = vmatpush.bf16.msra.mxu0 %v2806
    %4325 = vmatpush.bf16.msra.mxu0 %v2796
    %4326 = vmatpush.bf16.msra.mxu0 %v2786
    %4327 = vmatpush.bf16.msra.mxu0 %v2776
    %4328 = vmatpush.bf16.msra.mxu0 %v2766
    %4329 = vmatpush.bf16.msra.mxu0 %v2756
    %4330 = vmatmul.bf16.gmra.mxu0 %v659
    %v4331 = vpop.f32.mrf.mxu0
    %v4332 = vadd.f32 %v4318, %v4331
    %v4333 = vpop.f32.mrf.mxu0
    %v4334 = vadd.f32 %v4320, %v4333
    %4335 = vdwg.mxu0
    %4336 = vmatpush.bf16.msra.mxu0 %v2906
    %4337 = vmatpush.bf16.msra.mxu0 %v2896
    %4338 = vmatpush.bf16.msra.mxu0 %v2886
    %4339 = vmatpush.bf16.msra.mxu0 %v2876
    %4340 = vmatpush.bf16.msra.mxu0 %v2866
    %4341 = vmatpush.bf16.msra.mxu0 %v2856
    %4342 = vmatpush.bf16.msra.mxu0 %v2846
    %4343 = vmatpush.bf16.msra.mxu0 %v2836
    %4344 = vmatmul.bf16.gmra.mxu0 %v660
    %v4345 = vpop.f32.mrf.mxu0
    %v4346 = vadd.f32 %v4332, %v4345
    %v4347 = vpop.f32.mrf.mxu0
    %v4348 = vadd.f32 %v4334, %v4347
    %4349 = vdwg.mxu0
    %4350 = vmatpush.bf16.msra.mxu0 %v2427
    %4351 = vmatpush.bf16.msra.mxu0 %v2417
    %4352 = vmatpush.bf16.msra.mxu0 %v2407
    %4353 = vmatpush.bf16.msra.mxu0 %v2397
    %4354 = vmatpush.bf16.msra.mxu0 %v2387
    %4355 = vmatpush.bf16.msra.mxu0 %v2377
    %4356 = vmatpush.bf16.msra.mxu0 %v2367
    %4357 = vmatpush.bf16.msra.mxu0 %v2357
    %4358 = vmatmul.bf16.gmra.mxu0 %v654
    %v4359 = vpop.f32.mrf.mxu0
    %v4360 = vadd.f32 0.0, %v4359
    %v4361 = vpop.f32.mrf.mxu0
    %v4362 = vadd.f32 0.0, %v4361
    %4363 = vdwg.mxu0
    %4364 = vmatpush.bf16.msra.mxu0 %v2507
    %4365 = vmatpush.bf16.msra.mxu0 %v2497
    %4366 = vmatpush.bf16.msra.mxu0 %v2487
    %4367 = vmatpush.bf16.msra.mxu0 %v2477
    %4368 = vmatpush.bf16.msra.mxu0 %v2467
    %4369 = vmatpush.bf16.msra.mxu0 %v2457
    %4370 = vmatpush.bf16.msra.mxu0 %v2447
    %4371 = vmatpush.bf16.msra.mxu0 %v2437
    %4372 = vmatmul.bf16.gmra.mxu0 %v655
    %v4373 = vpop.f32.mrf.mxu0
    %v4374 = vadd.f32 %v4360, %v4373
    %v4375 = vpop.f32.mrf.mxu0
    %v4376 = vadd.f32 %v4362, %v4375
    %4377 = vdwg.mxu0
    %4378 = vmatpush.bf16.msra.mxu0 %v2587
    %4379 = vmatpush.bf16.msra.mxu0 %v2577
    %4380 = vmatpush.bf16.msra.mxu0 %v2567
    %4381 = vmatpush.bf16.msra.mxu0 %v2557
    %4382 = vmatpush.bf16.msra.mxu0 %v2547
    %4383 = vmatpush.bf16.msra.mxu0 %v2537
    %4384 = vmatpush.bf16.msra.mxu0 %v2527
    %4385 = vmatpush.bf16.msra.mxu0 %v2517
    %4386 = vmatmul.bf16.gmra.mxu0 %v656
    %v4387 = vpop.f32.mrf.mxu0
    %v4388 = vadd.f32 %v4374, %v4387
    %v4389 = vpop.f32.mrf.mxu0
    %v4390 = vadd.f32 %v4376, %v4389
    %4391 = vdwg.mxu0
    %4392 = vmatpush.bf16.msra.mxu0 %v2667
    %4393 = vmatpush.bf16.msra.mxu0 %v2657
    %4394 = vmatpush.bf16.msra.mxu0 %v2647
    %4395 = vmatpush.bf16.msra.mxu0 %v2637
    %4396 = vmatpush.bf16.msra.mxu0 %v2627
    %4397 = vmatpush.bf16.msra.mxu0 %v2617
    %4398 = vmatpush.bf16.msra.mxu0 %v2607
    %4399 = vmatpush.bf16.msra.mxu0 %v2597
    %4400 = vmatmul.bf16.gmra.mxu0 %v657
    %v4401 = vpop.f32.mrf.mxu0
    %v4402 = vadd.f32 %v4388, %v4401
    %v4403 = vpop.f32.mrf.mxu0
    %v4404 = vadd.f32 %v4390, %v4403
    %4405 = vdwg.mxu0
    %4406 = vmatpush.bf16.msra.mxu0 %v2747
    %4407 = vmatpush.bf16.msra.mxu0 %v2737
    %4408 = vmatpush.bf16.msra.mxu0 %v2727
    %4409 = vmatpush.bf16.msra.mxu0 %v2717
    %4410 = vmatpush.bf16.msra.mxu0 %v2707
    %4411 = vmatpush.bf16.msra.mxu0 %v2697
    %4412 = vmatpush.bf16.msra.mxu0 %v2687
    %4413 = vmatpush.bf16.msra.mxu0 %v2677
    %4414 = vmatmul.bf16.gmra.mxu0 %v658
    %v4415 = vpop.f32.mrf.mxu0
    %v4416 = vadd.f32 %v4402, %v4415
    %v4417 = vpop.f32.mrf.mxu0
    %v4418 = vadd.f32 %v4404, %v4417
    %4419 = vdwg.mxu0
    %4420 = vmatpush.bf16.msra.mxu0 %v2827
    %4421 = vmatpush.bf16.msra.mxu0 %v2817
    %4422 = vmatpush.bf16.msra.mxu0 %v2807
    %4423 = vmatpush.bf16.msra.mxu0 %v2797
    %4424 = vmatpush.bf16.msra.mxu0 %v2787
    %4425 = vmatpush.bf16.msra.mxu0 %v2777
    %4426 = vmatpush.bf16.msra.mxu0 %v2767
    %4427 = vmatpush.bf16.msra.mxu0 %v2757
    %4428 = vmatmul.bf16.gmra.mxu0 %v659
    %v4429 = vpop.f32.mrf.mxu0
    %v4430 = vadd.f32 %v4416, %v4429
    %v4431 = vpop.f32.mrf.mxu0
    %v4432 = vadd.f32 %v4418, %v4431
    %4433 = vdwg.mxu0
    %4434 = vmatpush.bf16.msra.mxu0 %v2907
    %4435 = vmatpush.bf16.msra.mxu0 %v2897
    %4436 = vmatpush.bf16.msra.mxu0 %v2887
    %4437 = vmatpush.bf16.msra.mxu0 %v2877
    %4438 = vmatpush.bf16.msra.mxu0 %v2867
    %4439 = vmatpush.bf16.msra.mxu0 %v2857
    %4440 = vmatpush.bf16.msra.mxu0 %v2847
    %4441 = vmatpush.bf16.msra.mxu0 %v2837
    %4442 = vmatmul.bf16.gmra.mxu0 %v660
    %v4443 = vpop.f32.mrf.mxu0
    %v4444 = vadd.f32 %v4430, %v4443
    %v4445 = vpop.f32.mrf.mxu0
    %v4446 = vadd.f32 %v4432, %v4445
    %4447 = vdwg.mxu0
    %v4448 = vmax.f32 %v3562, 0.0
    %v4449 = vmax.f32 %v3660, 0.0
    %v4450 = vmax.f32 %v3758, 0.0
    %v4451 = vmax.f32 %v3856, 0.0
    %v4452 = vmax.f32 %v3954, 0.0
    %v4453 = vmax.f32 %v4052, 0.0
    %v4454 = vmax.f32 %v4150, 0.0
    %v4455 = vmax.f32 %v4248, 0.0
    %v4456 = vmax.f32 %v4346, 0.0
    %v4457 = vmax.f32 %v4444, 0.0
    %v4458 = vmax.f32 %v3564, 0.0
    %v4459 = vmax.f32 %v3662, 0.0
    %v4460 = vmax.f32 %v3760, 0.0
    %v4461 = vmax.f32 %v3858, 0.0
    %v4462 = vmax.f32 %v3956, 0.0
    %v4463 = vmax.f32 %v4054, 0.0
    %v4464 = vmax.f32 %v4152, 0.0
    %v4465 = vmax.f32 %v4250, 0.0
    %v4466 = vmax.f32 %v4348, 0.0
    %v4467 = vmax.f32 %v4446, 0.0
    %v4468 = vpack.c.bf16 %v4458, %v4448
    %v4469 = vpack.c.bf16 %v4459, %v4449
    %v4470 = vpack.c.bf16 %v4460, %v4450
    %v4471 = vpack.c.bf16 %v4461, %v4451
    %v4472 = vpack.c.bf16 %v4462, %v4452
    %v4473 = vpack.c.bf16 %v4463, %v4453
    %v4474 = vpack.c.bf16 %v4464, %v4454
    %v4475 = vpack.c.bf16 %v4465, %v4455
    %v4476 = vpack.c.bf16 %v4466, %v4456
    %v4477 = vpack.c.bf16 %v4467, %v4457
    %v4478 = vld [vmem:[#allocation4] sm:$0xff]
    %v4479 = vld [vmem:[#allocation4 + $0x8] sm:$0xff]
    %v4480 = vld [vmem:[#allocation4 + $0x10] sm:$0xff]
    %v4481 = vld [vmem:[#allocation4 + $0x18] sm:$0xff]
    %v4482 = vld [vmem:[#allocation4 + $0x20] sm:$0xff]
    %v4483 = vld [vmem:[#allocation4 + $0x28] sm:$0xff]
    %v4484 = vld [vmem:[#allocation4 + $0x30] sm:$0xff]
    %v4485 = vld [vmem:[#allocation4 + $0x38] sm:$0xff]
    %v4486 = vld [vmem:[#allocation4 + $0x40] sm:$0xff]
    %v4487 = vld [vmem:[#allocation4 + $0x48] sm:$0xff]
    %v4488 = vld [vmem:[#allocation4 + $0x50] sm:$0xff]
    %v4489 = vld [vmem:[#allocation4 + $0x58] sm:$0xff]
    %v4490 = vld [vmem:[#allocation4 + $0x60] sm:$0xff]
    %v4491 = vld [vmem:[#allocation4 + $0x68] sm:$0xff]
    %v4492 = vld [vmem:[#allocation4 + $0x70] sm:$0xff]
    %v4493 = vld [vmem:[#allocation4 + $0x78] sm:$0xff]
    %v4494 = vld [vmem:[#allocation4 + $0x80] sm:$0xff]
    %v4495 = vld [vmem:[#allocation4 + $0x88] sm:$0xff]
    %v4496 = vld [vmem:[#allocation4 + $0x90] sm:$0xff]
    %v4497 = vld [vmem:[#allocation4 + $0x98] sm:$0xff]
    %v4498 = vld [vmem:[#allocation4 + $0xa0] sm:$0xff]
    %v4499 = vld [vmem:[#allocation4 + $0xa8] sm:$0xff]
    %v4500 = vld [vmem:[#allocation4 + $0xb0] sm:$0xff]
    %v4501 = vld [vmem:[#allocation4 + $0xb8] sm:$0xff]
    %v4502 = vld [vmem:[#allocation4 + $0xc0] sm:$0xff]
    %v4503 = vld [vmem:[#allocation4 + $0xc8] sm:$0xff]
    %v4504 = vld [vmem:[#allocation4 + $0xd0] sm:$0xff]
    %v4505 = vld [vmem:[#allocation4 + $0xd8] sm:$0xff]
    %v4506 = vld [vmem:[#allocation4 + $0xe0] sm:$0xff]
    %v4507 = vld [vmem:[#allocation4 + $0xe8] sm:$0xff]
    %v4508 = vld [vmem:[#allocation4 + $0xf0] sm:$0xff]
    %v4509 = vld [vmem:[#allocation4 + $0xf8] sm:$0xff]
    %v4510 = vld [vmem:[#allocation4 + $0x100] sm:$0xff]
    %v4511 = vld [vmem:[#allocation4 + $0x108] sm:$0xff]
    %v4512 = vld [vmem:[#allocation4 + $0x110] sm:$0xff]
    %v4513 = vld [vmem:[#allocation4 + $0x118] sm:$0xff]
    %v4514 = vld [vmem:[#allocation4 + $0x120] sm:$0xff]
    %v4515 = vld [vmem:[#allocation4 + $0x128] sm:$0xff]
    %v4516 = vld [vmem:[#allocation4 + $0x130] sm:$0xff]
    %v4517 = vld [vmem:[#allocation4 + $0x138] sm:$0xff]
    %v4518 = vld [vmem:[#allocation4 + $0x140] sm:$0xff]
    %v4519 = vld [vmem:[#allocation4 + $0x148] sm:$0xff]
    %v4520 = vld [vmem:[#allocation4 + $0x150] sm:$0xff]
    %v4521 = vld [vmem:[#allocation4 + $0x158] sm:$0xff]
    %v4522 = vld [vmem:[#allocation4 + $0x160] sm:$0xff]
    %v4523 = vld [vmem:[#allocation4 + $0x168] sm:$0xff]
    %v4524 = vld [vmem:[#allocation4 + $0x170] sm:$0xff]
    %v4525 = vld [vmem:[#allocation4 + $0x178] sm:$0xff]
    %v4526 = vld [vmem:[#allocation4 + $0x180] sm:$0xff]
    %v4527 = vld [vmem:[#allocation4 + $0x188] sm:$0xff]
    %v4528 = vld [vmem:[#allocation4 + $0x190] sm:$0xff]
    %v4529 = vld [vmem:[#allocation4 + $0x198] sm:$0xff]
    %v4530 = vld [vmem:[#allocation4 + $0x1a0] sm:$0xff]
    %v4531 = vld [vmem:[#allocation4 + $0x1a8] sm:$0xff]
    %v4532 = vld [vmem:[#allocation4 + $0x1b0] sm:$0xff]
    %v4533 = vld [vmem:[#allocation4 + $0x1b8] sm:$0xff]
    %v4534 = vld [vmem:[#allocation4 + $0x1c0] sm:$0xff]
    %v4535 = vld [vmem:[#allocation4 + $0x1c8] sm:$0xff]
    %v4536 = vld [vmem:[#allocation4 + $0x1d0] sm:$0xff]
    %v4537 = vld [vmem:[#allocation4 + $0x1d8] sm:$0xff]
    %v4538 = vld [vmem:[#allocation4 + $0x1e0] sm:$0xff]
    %v4539 = vld [vmem:[#allocation4 + $0x1e8] sm:$0xff]
    %v4540 = vld [vmem:[#allocation4 + $0x1f0] sm:$0xff]
    %v4541 = vld [vmem:[#allocation4 + $0x1f8] sm:$0xff]
    %v4542 = vld [vmem:[#allocation4 + $0x200] sm:$0xff]
    %v4543 = vld [vmem:[#allocation4 + $0x208] sm:$0xff]
    %v4544 = vld [vmem:[#allocation4 + $0x210] sm:$0xff]
    %v4545 = vld [vmem:[#allocation4 + $0x218] sm:$0xff]
    %v4546 = vld [vmem:[#allocation4 + $0x220] sm:$0xff]
    %v4547 = vld [vmem:[#allocation4 + $0x228] sm:$0xff]
    %v4548 = vld [vmem:[#allocation4 + $0x230] sm:$0xff]
    %v4549 = vld [vmem:[#allocation4 + $0x238] sm:$0xff]
    %v4550 = vld [vmem:[#allocation4 + $0x240] sm:$0xff]
    %v4551 = vld [vmem:[#allocation4 + $0x248] sm:$0xff]
    %v4552 = vld [vmem:[#allocation4 + $0x250] sm:$0xff]
    %v4553 = vld [vmem:[#allocation4 + $0x258] sm:$0xff]
    %v4554 = vld [vmem:[#allocation4 + $0x260] sm:$0xff]
    %v4555 = vld [vmem:[#allocation4 + $0x268] sm:$0xff]
    %v4556 = vld [vmem:[#allocation4 + $0x270] sm:$0xff]
    %v4557 = vld [vmem:[#allocation4 + $0x278] sm:$0xff]
    %v4558 = vld [vmem:[#allocation4 + $0x280] sm:$0xff]
    %v4559 = vld [vmem:[#allocation4 + $0x288] sm:$0xff]
    %v4560 = vld [vmem:[#allocation4 + $0x290] sm:$0xff]
    %v4561 = vld [vmem:[#allocation4 + $0x298] sm:$0xff]
    %v4562 = vld [vmem:[#allocation4 + $0x2a0] sm:$0xff]
    %v4563 = vld [vmem:[#allocation4 + $0x2a8] sm:$0xff]
    %v4564 = vld [vmem:[#allocation4 + $0x2b0] sm:$0xff]
    %v4565 = vld [vmem:[#allocation4 + $0x2b8] sm:$0xff]
    %v4566 = vld [vmem:[#allocation4 + $0x2c0] sm:$0xff]
    %v4567 = vld [vmem:[#allocation4 + $0x2c8] sm:$0xff]
    %v4568 = vld [vmem:[#allocation4 + $0x2d0] sm:$0xff]
    %v4569 = vld [vmem:[#allocation4 + $0x2d8] sm:$0xff]
    %v4570 = vld [vmem:[#allocation4 + $0x2e0] sm:$0xff]
    %v4571 = vld [vmem:[#allocation4 + $0x2e8] sm:$0xff]
    %v4572 = vld [vmem:[#allocation4 + $0x2f0] sm:$0xff]
    %v4573 = vld [vmem:[#allocation4 + $0x2f8] sm:$0xff]
    %v4574 = vld [vmem:[#allocation4 + $0x300] sm:$0xff]
    %v4575 = vld [vmem:[#allocation4 + $0x308] sm:$0xff]
    %v4576 = vld [vmem:[#allocation4 + $0x310] sm:$0xff]
    %v4577 = vld [vmem:[#allocation4 + $0x318] sm:$0xff]
    %v4578 = vld [vmem:[#allocation4 + $0x320] sm:$0xff]
    %v4579 = vld [vmem:[#allocation4 + $0x328] sm:$0xff]
    %v4580 = vld [vmem:[#allocation4 + $0x330] sm:$0xff]
    %v4581 = vld [vmem:[#allocation4 + $0x338] sm:$0xff]
    %v4582 = vld [vmem:[#allocation4 + $0x340] sm:$0xff]
    %v4583 = vld [vmem:[#allocation4 + $0x348] sm:$0xff]
    %v4584 = vld [vmem:[#allocation4 + $0x350] sm:$0xff]
    %v4585 = vld [vmem:[#allocation4 + $0x358] sm:$0xff]
    %v4586 = vld [vmem:[#allocation4 + $0x360] sm:$0xff]
    %v4587 = vld [vmem:[#allocation4 + $0x368] sm:$0xff]
    %v4588 = vld [vmem:[#allocation4 + $0x370] sm:$0xff]
    %v4589 = vld [vmem:[#allocation4 + $0x378] sm:$0xff]
    %v4590 = vld [vmem:[#allocation4 + $0x380] sm:$0xff]
    %v4591 = vld [vmem:[#allocation4 + $0x388] sm:$0xff]
    %v4592 = vld [vmem:[#allocation4 + $0x390] sm:$0xff]
    %v4593 = vld [vmem:[#allocation4 + $0x398] sm:$0xff]
    %v4594 = vld [vmem:[#allocation4 + $0x3a0] sm:$0xff]
    %v4595 = vld [vmem:[#allocation4 + $0x3a8] sm:$0xff]
    %v4596 = vld [vmem:[#allocation4 + $0x3b0] sm:$0xff]
    %v4597 = vld [vmem:[#allocation4 + $0x3b8] sm:$0xff]
    %v4598 = vld [vmem:[#allocation4 + $0x3c0] sm:$0xff]
    %v4599 = vld [vmem:[#allocation4 + $0x3c8] sm:$0xff]
    %v4600 = vld [vmem:[#allocation4 + $0x3d0] sm:$0xff]
    %v4601 = vld [vmem:[#allocation4 + $0x3d8] sm:$0xff]
    %v4602 = vld [vmem:[#allocation4 + $0x3e0] sm:$0xff]
    %v4603 = vld [vmem:[#allocation4 + $0x3e8] sm:$0xff]
    %v4604 = vld [vmem:[#allocation4 + $0x3f0] sm:$0xff]
    %v4605 = vld [vmem:[#allocation4 + $0x3f8] sm:$0xff]
    %v4606 = vld [vmem:[#allocation4 + $0x400] sm:$0xff]
    %v4607 = vld [vmem:[#allocation4 + $0x408] sm:$0xff]
    %v4608 = vld [vmem:[#allocation4 + $0x410] sm:$0xff]
    %v4609 = vld [vmem:[#allocation4 + $0x418] sm:$0xff]
    %v4610 = vld [vmem:[#allocation4 + $0x420] sm:$0xff]
    %v4611 = vld [vmem:[#allocation4 + $0x428] sm:$0xff]
    %v4612 = vld [vmem:[#allocation4 + $0x430] sm:$0xff]
    %v4613 = vld [vmem:[#allocation4 + $0x438] sm:$0xff]
    %v4614 = vld [vmem:[#allocation4 + $0x440] sm:$0xff]
    %v4615 = vld [vmem:[#allocation4 + $0x448] sm:$0xff]
    %v4616 = vld [vmem:[#allocation4 + $0x450] sm:$0xff]
    %v4617 = vld [vmem:[#allocation4 + $0x458] sm:$0xff]
    %v4618 = vld [vmem:[#allocation4 + $0x460] sm:$0xff]
    %v4619 = vld [vmem:[#allocation4 + $0x468] sm:$0xff]
    %v4620 = vld [vmem:[#allocation4 + $0x470] sm:$0xff]
    %v4621 = vld [vmem:[#allocation4 + $0x478] sm:$0xff]
    %v4622 = vld [vmem:[#allocation4 + $0x480] sm:$0xff]
    %v4623 = vld [vmem:[#allocation4 + $0x488] sm:$0xff]
    %v4624 = vld [vmem:[#allocation4 + $0x490] sm:$0xff]
    %v4625 = vld [vmem:[#allocation4 + $0x498] sm:$0xff]
    %v4626 = vld [vmem:[#allocation4 + $0x4a0] sm:$0xff]
    %v4627 = vld [vmem:[#allocation4 + $0x4a8] sm:$0xff]
    %v4628 = vld [vmem:[#allocation4 + $0x4b0] sm:$0xff]
    %v4629 = vld [vmem:[#allocation4 + $0x4b8] sm:$0xff]
    %v4630 = vld [vmem:[#allocation4 + $0x4c0] sm:$0xff]
    %v4631 = vld [vmem:[#allocation4 + $0x4c8] sm:$0xff]
    %v4632 = vld [vmem:[#allocation4 + $0x4d0] sm:$0xff]
    %v4633 = vld [vmem:[#allocation4 + $0x4d8] sm:$0xff]
    %v4634 = vld [vmem:[#allocation4 + $0x4e0] sm:$0xff]
    %v4635 = vld [vmem:[#allocation4 + $0x4e8] sm:$0xff]
    %v4636 = vld [vmem:[#allocation4 + $0x4f0] sm:$0xff]
    %v4637 = vld [vmem:[#allocation4 + $0x4f8] sm:$0xff]
    %v4638 = vld [vmem:[#allocation4 + $0x500] sm:$0xff]
    %v4639 = vld [vmem:[#allocation4 + $0x508] sm:$0xff]
    %v4640 = vld [vmem:[#allocation4 + $0x510] sm:$0xff]
    %v4641 = vld [vmem:[#allocation4 + $0x518] sm:$0xff]
    %v4642 = vld [vmem:[#allocation4 + $0x520] sm:$0xff]
    %v4643 = vld [vmem:[#allocation4 + $0x528] sm:$0xff]
    %v4644 = vld [vmem:[#allocation4 + $0x530] sm:$0xff]
    %v4645 = vld [vmem:[#allocation4 + $0x538] sm:$0xff]
    %v4646 = vld [vmem:[#allocation4 + $0x540] sm:$0xff]
    %v4647 = vld [vmem:[#allocation4 + $0x548] sm:$0xff]
    %v4648 = vld [vmem:[#allocation4 + $0x550] sm:$0xff]
    %v4649 = vld [vmem:[#allocation4 + $0x558] sm:$0xff]
    %v4650 = vld [vmem:[#allocation4 + $0x560] sm:$0xff]
    %v4651 = vld [vmem:[#allocation4 + $0x568] sm:$0xff]
    %v4652 = vld [vmem:[#allocation4 + $0x570] sm:$0xff]
    %v4653 = vld [vmem:[#allocation4 + $0x578] sm:$0xff]
    %v4654 = vld [vmem:[#allocation4 + $0x580] sm:$0xff]
    %v4655 = vld [vmem:[#allocation4 + $0x588] sm:$0xff]
    %v4656 = vld [vmem:[#allocation4 + $0x590] sm:$0xff]
    %v4657 = vld [vmem:[#allocation4 + $0x598] sm:$0xff]
    %v4658 = vld [vmem:[#allocation4 + $0x5a0] sm:$0xff]
    %v4659 = vld [vmem:[#allocation4 + $0x5a8] sm:$0xff]
    %v4660 = vld [vmem:[#allocation4 + $0x5b0] sm:$0xff]
    %v4661 = vld [vmem:[#allocation4 + $0x5b8] sm:$0xff]
    %v4662 = vld [vmem:[#allocation4 + $0x5c0] sm:$0xff]
    %v4663 = vld [vmem:[#allocation4 + $0x5c8] sm:$0xff]
    %v4664 = vld [vmem:[#allocation4 + $0x5d0] sm:$0xff]
    %v4665 = vld [vmem:[#allocation4 + $0x5d8] sm:$0xff]
    %v4666 = vld [vmem:[#allocation4 + $0x5e0] sm:$0xff]
    %v4667 = vld [vmem:[#allocation4 + $0x5e8] sm:$0xff]
    %v4668 = vld [vmem:[#allocation4 + $0x5f0] sm:$0xff]
    %v4669 = vld [vmem:[#allocation4 + $0x5f8] sm:$0xff]
    %v4670 = vld [vmem:[#allocation4 + $0x600] sm:$0xff]
    %v4671 = vld [vmem:[#allocation4 + $0x608] sm:$0xff]
    %v4672 = vld [vmem:[#allocation4 + $0x610] sm:$0xff]
    %v4673 = vld [vmem:[#allocation4 + $0x618] sm:$0xff]
    %v4674 = vld [vmem:[#allocation4 + $0x620] sm:$0xff]
    %v4675 = vld [vmem:[#allocation4 + $0x628] sm:$0xff]
    %v4676 = vld [vmem:[#allocation4 + $0x630] sm:$0xff]
    %v4677 = vld [vmem:[#allocation4 + $0x638] sm:$0xff]
    %v4678 = vld [vmem:[#allocation4 + $0x640] sm:$0xff]
    %v4679 = vld [vmem:[#allocation4 + $0x648] sm:$0xff]
    %v4680 = vld [vmem:[#allocation4 + $0x650] sm:$0xff]
    %v4681 = vld [vmem:[#allocation4 + $0x658] sm:$0xff]
    %v4682 = vld [vmem:[#allocation4 + $0x660] sm:$0xff]
    %v4683 = vld [vmem:[#allocation4 + $0x668] sm:$0xff]
    %v4684 = vld [vmem:[#allocation4 + $0x670] sm:$0xff]
    %v4685 = vld [vmem:[#allocation4 + $0x678] sm:$0xff]
    %v4686 = vld [vmem:[#allocation4 + $0x680] sm:$0xff]
    %v4687 = vld [vmem:[#allocation4 + $0x688] sm:$0xff]
    %v4688 = vld [vmem:[#allocation4 + $0x690] sm:$0xff]
    %v4689 = vld [vmem:[#allocation4 + $0x698] sm:$0xff]
    %v4690 = vld [vmem:[#allocation4 + $0x6a0] sm:$0xff]
    %v4691 = vld [vmem:[#allocation4 + $0x6a8] sm:$0xff]
    %v4692 = vld [vmem:[#allocation4 + $0x6b0] sm:$0xff]
    %v4693 = vld [vmem:[#allocation4 + $0x6b8] sm:$0xff]
    %v4694 = vld [vmem:[#allocation4 + $0x6c0] sm:$0xff]
    %v4695 = vld [vmem:[#allocation4 + $0x6c8] sm:$0xff]
    %v4696 = vld [vmem:[#allocation4 + $0x6d0] sm:$0xff]
    %v4697 = vld [vmem:[#allocation4 + $0x6d8] sm:$0xff]
    %v4698 = vld [vmem:[#allocation4 + $0x6e0] sm:$0xff]
    %v4699 = vld [vmem:[#allocation4 + $0x6e8] sm:$0xff]
    %v4700 = vld [vmem:[#allocation4 + $0x6f0] sm:$0xff]
    %v4701 = vld [vmem:[#allocation4 + $0x6f8] sm:$0xff]
    %v4702 = vld [vmem:[#allocation4 + $0x700] sm:$0xff]
    %v4703 = vld [vmem:[#allocation4 + $0x708] sm:$0xff]
    %v4704 = vld [vmem:[#allocation4 + $0x710] sm:$0xff]
    %v4705 = vld [vmem:[#allocation4 + $0x718] sm:$0xff]
    %v4706 = vld [vmem:[#allocation4 + $0x720] sm:$0xff]
    %v4707 = vld [vmem:[#allocation4 + $0x728] sm:$0xff]
    %v4708 = vld [vmem:[#allocation4 + $0x730] sm:$0xff]
    %v4709 = vld [vmem:[#allocation4 + $0x738] sm:$0xff]
    %v4710 = vld [vmem:[#allocation4 + $0x740] sm:$0xff]
    %v4711 = vld [vmem:[#allocation4 + $0x748] sm:$0xff]
    %v4712 = vld [vmem:[#allocation4 + $0x750] sm:$0xff]
    %v4713 = vld [vmem:[#allocation4 + $0x758] sm:$0xff]
    %v4714 = vld [vmem:[#allocation4 + $0x760] sm:$0xff]
    %v4715 = vld [vmem:[#allocation4 + $0x768] sm:$0xff]
    %v4716 = vld [vmem:[#allocation4 + $0x770] sm:$0xff]
    %v4717 = vld [vmem:[#allocation4 + $0x778] sm:$0xff]
    %v4718 = vld [vmem:[#allocation4 + $0x780] sm:$0xff]
    %v4719 = vld [vmem:[#allocation4 + $0x788] sm:$0xff]
    %v4720 = vld [vmem:[#allocation4 + $0x790] sm:$0xff]
    %v4721 = vld [vmem:[#allocation4 + $0x798] sm:$0xff]
    %v4722 = vld [vmem:[#allocation4 + $0x7a0] sm:$0xff]
    %v4723 = vld [vmem:[#allocation4 + $0x7a8] sm:$0xff]
    %v4724 = vld [vmem:[#allocation4 + $0x7b0] sm:$0xff]
    %v4725 = vld [vmem:[#allocation4 + $0x7b8] sm:$0xff]
    %v4726 = vld [vmem:[#allocation4 + $0x7c0] sm:$0xff]
    %v4727 = vld [vmem:[#allocation4 + $0x7c8] sm:$0xff]
    %v4728 = vld [vmem:[#allocation4 + $0x7d0] sm:$0xff]
    %v4729 = vld [vmem:[#allocation4 + $0x7d8] sm:$0xff]
    %v4730 = vld [vmem:[#allocation4 + $0x7e0] sm:$0xff]
    %v4731 = vld [vmem:[#allocation4 + $0x7e8] sm:$0xff]
    %v4732 = vld [vmem:[#allocation4 + $0x7f0] sm:$0xff]
    %v4733 = vld [vmem:[#allocation4 + $0x7f8] sm:$0xff]
    %v4734 = vld [vmem:[#allocation4 + $0x800] sm:$0xff]
    %v4735 = vld [vmem:[#allocation4 + $0x808] sm:$0xff]
    %v4736 = vld [vmem:[#allocation4 + $0x810] sm:$0xff]
    %v4737 = vld [vmem:[#allocation4 + $0x818] sm:$0xff]
    %v4738 = vld [vmem:[#allocation4 + $0x820] sm:$0xff]
    %v4739 = vld [vmem:[#allocation4 + $0x828] sm:$0xff]
    %v4740 = vld [vmem:[#allocation4 + $0x830] sm:$0xff]
    %v4741 = vld [vmem:[#allocation4 + $0x838] sm:$0xff]
    %v4742 = vld [vmem:[#allocation4 + $0x840] sm:$0xff]
    %v4743 = vld [vmem:[#allocation4 + $0x848] sm:$0xff]
    %v4744 = vld [vmem:[#allocation4 + $0x850] sm:$0xff]
    %v4745 = vld [vmem:[#allocation4 + $0x858] sm:$0xff]
    %v4746 = vld [vmem:[#allocation4 + $0x860] sm:$0xff]
    %v4747 = vld [vmem:[#allocation4 + $0x868] sm:$0xff]
    %v4748 = vld [vmem:[#allocation4 + $0x870] sm:$0xff]
    %v4749 = vld [vmem:[#allocation4 + $0x878] sm:$0xff]
    %v4750 = vld [vmem:[#allocation4 + $0x880] sm:$0xff]
    %v4751 = vld [vmem:[#allocation4 + $0x888] sm:$0xff]
    %v4752 = vld [vmem:[#allocation4 + $0x890] sm:$0xff]
    %v4753 = vld [vmem:[#allocation4 + $0x898] sm:$0xff]
    %v4754 = vld [vmem:[#allocation4 + $0x8a0] sm:$0xff]
    %v4755 = vld [vmem:[#allocation4 + $0x8a8] sm:$0xff]
    %v4756 = vld [vmem:[#allocation4 + $0x8b0] sm:$0xff]
    %v4757 = vld [vmem:[#allocation4 + $0x8b8] sm:$0xff]
    %v4758 = vld [vmem:[#allocation4 + $0x8c0] sm:$0xff]
    %v4759 = vld [vmem:[#allocation4 + $0x8c8] sm:$0xff]
    %v4760 = vld [vmem:[#allocation4 + $0x8d0] sm:$0xff]
    %v4761 = vld [vmem:[#allocation4 + $0x8d8] sm:$0xff]
    %v4762 = vld [vmem:[#allocation4 + $0x8e0] sm:$0xff]
    %v4763 = vld [vmem:[#allocation4 + $0x8e8] sm:$0xff]
    %v4764 = vld [vmem:[#allocation4 + $0x8f0] sm:$0xff]
    %v4765 = vld [vmem:[#allocation4 + $0x8f8] sm:$0xff]
    %v4766 = vld [vmem:[#allocation4 + $0x900] sm:$0xff]
    %v4767 = vld [vmem:[#allocation4 + $0x908] sm:$0xff]
    %v4768 = vld [vmem:[#allocation4 + $0x910] sm:$0xff]
    %v4769 = vld [vmem:[#allocation4 + $0x918] sm:$0xff]
    %v4770 = vld [vmem:[#allocation4 + $0x920] sm:$0xff]
    %v4771 = vld [vmem:[#allocation4 + $0x928] sm:$0xff]
    %v4772 = vld [vmem:[#allocation4 + $0x930] sm:$0xff]
    %v4773 = vld [vmem:[#allocation4 + $0x938] sm:$0xff]
    %v4774 = vld [vmem:[#allocation4 + $0x940] sm:$0xff]
    %v4775 = vld [vmem:[#allocation4 + $0x948] sm:$0xff]
    %v4776 = vld [vmem:[#allocation4 + $0x950] sm:$0xff]
    %v4777 = vld [vmem:[#allocation4 + $0x958] sm:$0xff]
    %v4778 = vld [vmem:[#allocation4 + $0x960] sm:$0xff]
    %v4779 = vld [vmem:[#allocation4 + $0x968] sm:$0xff]
    %v4780 = vld [vmem:[#allocation4 + $0x970] sm:$0xff]
    %v4781 = vld [vmem:[#allocation4 + $0x978] sm:$0xff]
    %v4782 = vld [vmem:[#allocation4 + $0x980] sm:$0xff]
    %v4783 = vld [vmem:[#allocation4 + $0x988] sm:$0xff]
    %v4784 = vld [vmem:[#allocation4 + $0x990] sm:$0xff]
    %v4785 = vld [vmem:[#allocation4 + $0x998] sm:$0xff]
    %v4786 = vld [vmem:[#allocation4 + $0x9a0] sm:$0xff]
    %v4787 = vld [vmem:[#allocation4 + $0x9a8] sm:$0xff]
    %v4788 = vld [vmem:[#allocation4 + $0x9b0] sm:$0xff]
    %v4789 = vld [vmem:[#allocation4 + $0x9b8] sm:$0xff]
    %v4790 = vld [vmem:[#allocation4 + $0x9c0] sm:$0xff]
    %v4791 = vld [vmem:[#allocation4 + $0x9c8] sm:$0xff]
    %v4792 = vld [vmem:[#allocation4 + $0x9d0] sm:$0xff]
    %v4793 = vld [vmem:[#allocation4 + $0x9d8] sm:$0xff]
    %v4794 = vld [vmem:[#allocation4 + $0x9e0] sm:$0xff]
    %v4795 = vld [vmem:[#allocation4 + $0x9e8] sm:$0xff]
    %v4796 = vld [vmem:[#allocation4 + $0x9f0] sm:$0xff]
    %v4797 = vld [vmem:[#allocation4 + $0x9f8] sm:$0xff]
    %v4798 = vld [vmem:[#allocation4 + $0xa00] sm:$0xff]
    %v4799 = vld [vmem:[#allocation4 + $0xa08] sm:$0xff]
    %v4800 = vld [vmem:[#allocation4 + $0xa10] sm:$0xff]
    %v4801 = vld [vmem:[#allocation4 + $0xa18] sm:$0xff]
    %v4802 = vld [vmem:[#allocation4 + $0xa20] sm:$0xff]
    %v4803 = vld [vmem:[#allocation4 + $0xa28] sm:$0xff]
    %v4804 = vld [vmem:[#allocation4 + $0xa30] sm:$0xff]
    %v4805 = vld [vmem:[#allocation4 + $0xa38] sm:$0xff]
    %v4806 = vld [vmem:[#allocation4 + $0xa40] sm:$0xff]
    %v4807 = vld [vmem:[#allocation4 + $0xa48] sm:$0xff]
    %v4808 = vld [vmem:[#allocation4 + $0xa50] sm:$0xff]
    %v4809 = vld [vmem:[#allocation4 + $0xa58] sm:$0xff]
    %v4810 = vld [vmem:[#allocation4 + $0xa60] sm:$0xff]
    %v4811 = vld [vmem:[#allocation4 + $0xa68] sm:$0xff]
    %v4812 = vld [vmem:[#allocation4 + $0xa70] sm:$0xff]
    %v4813 = vld [vmem:[#allocation4 + $0xa78] sm:$0xff]
    %v4814 = vld [vmem:[#allocation4 + $0xa80] sm:$0xff]
    %v4815 = vld [vmem:[#allocation4 + $0xa88] sm:$0xff]
    %v4816 = vld [vmem:[#allocation4 + $0xa90] sm:$0xff]
    %v4817 = vld [vmem:[#allocation4 + $0xa98] sm:$0xff]
    %v4818 = vld [vmem:[#allocation4 + $0xaa0] sm:$0xff]
    %v4819 = vld [vmem:[#allocation4 + $0xaa8] sm:$0xff]
    %v4820 = vld [vmem:[#allocation4 + $0xab0] sm:$0xff]
    %v4821 = vld [vmem:[#allocation4 + $0xab8] sm:$0xff]
    %v4822 = vld [vmem:[#allocation4 + $0xac0] sm:$0xff]
    %v4823 = vld [vmem:[#allocation4 + $0xac8] sm:$0xff]
    %v4824 = vld [vmem:[#allocation4 + $0xad0] sm:$0xff]
    %v4825 = vld [vmem:[#allocation4 + $0xad8] sm:$0xff]
    %v4826 = vld [vmem:[#allocation4 + $0xae0] sm:$0xff]
    %v4827 = vld [vmem:[#allocation4 + $0xae8] sm:$0xff]
    %v4828 = vld [vmem:[#allocation4 + $0xaf0] sm:$0xff]
    %v4829 = vld [vmem:[#allocation4 + $0xaf8] sm:$0xff]
    %v4830 = vld [vmem:[#allocation4 + $0xb00] sm:$0xff]
    %v4831 = vld [vmem:[#allocation4 + $0xb08] sm:$0xff]
    %v4832 = vld [vmem:[#allocation4 + $0xb10] sm:$0xff]
    %v4833 = vld [vmem:[#allocation4 + $0xb18] sm:$0xff]
    %v4834 = vld [vmem:[#allocation4 + $0xb20] sm:$0xff]
    %v4835 = vld [vmem:[#allocation4 + $0xb28] sm:$0xff]
    %v4836 = vld [vmem:[#allocation4 + $0xb30] sm:$0xff]
    %v4837 = vld [vmem:[#allocation4 + $0xb38] sm:$0xff]
    %v4838 = vld [vmem:[#allocation4 + $0xb40] sm:$0xff]
    %v4839 = vld [vmem:[#allocation4 + $0xb48] sm:$0xff]
    %v4840 = vld [vmem:[#allocation4 + $0xb50] sm:$0xff]
    %v4841 = vld [vmem:[#allocation4 + $0xb58] sm:$0xff]
    %v4842 = vld [vmem:[#allocation4 + $0xb60] sm:$0xff]
    %v4843 = vld [vmem:[#allocation4 + $0xb68] sm:$0xff]
    %v4844 = vld [vmem:[#allocation4 + $0xb70] sm:$0xff]
    %v4845 = vld [vmem:[#allocation4 + $0xb78] sm:$0xff]
    %v4846 = vld [vmem:[#allocation4 + $0xb80] sm:$0xff]
    %v4847 = vld [vmem:[#allocation4 + $0xb88] sm:$0xff]
    %v4848 = vld [vmem:[#allocation4 + $0xb90] sm:$0xff]
    %v4849 = vld [vmem:[#allocation4 + $0xb98] sm:$0xff]
    %v4850 = vld [vmem:[#allocation4 + $0xba0] sm:$0xff]
    %v4851 = vld [vmem:[#allocation4 + $0xba8] sm:$0xff]
    %v4852 = vld [vmem:[#allocation4 + $0xbb0] sm:$0xff]
    %v4853 = vld [vmem:[#allocation4 + $0xbb8] sm:$0xff]
    %v4854 = vld [vmem:[#allocation4 + $0xbc0] sm:$0xff]
    %v4855 = vld [vmem:[#allocation4 + $0xbc8] sm:$0xff]
    %v4856 = vld [vmem:[#allocation4 + $0xbd0] sm:$0xff]
    %v4857 = vld [vmem:[#allocation4 + $0xbd8] sm:$0xff]
    %v4858 = vld [vmem:[#allocation4 + $0xbe0] sm:$0xff]
    %v4859 = vld [vmem:[#allocation4 + $0xbe8] sm:$0xff]
    %v4860 = vld [vmem:[#allocation4 + $0xbf0] sm:$0xff]
    %v4861 = vld [vmem:[#allocation4 + $0xbf8] sm:$0xff]
    %v4862 = vld [vmem:[#allocation4 + $0xc00] sm:$0xff]
    %v4863 = vld [vmem:[#allocation4 + $0xc08] sm:$0xff]
    %v4864 = vld [vmem:[#allocation4 + $0xc10] sm:$0xff]
    %v4865 = vld [vmem:[#allocation4 + $0xc18] sm:$0xff]
    %v4866 = vld [vmem:[#allocation4 + $0xc20] sm:$0xff]
    %v4867 = vld [vmem:[#allocation4 + $0xc28] sm:$0xff]
    %v4868 = vld [vmem:[#allocation4 + $0xc30] sm:$0xff]
    %v4869 = vld [vmem:[#allocation4 + $0xc38] sm:$0xff]
    %v4870 = vld [vmem:[#allocation4 + $0xc40] sm:$0xff]
    %v4871 = vld [vmem:[#allocation4 + $0xc48] sm:$0xff]
    %v4872 = vld [vmem:[#allocation4 + $0xc50] sm:$0xff]
    %v4873 = vld [vmem:[#allocation4 + $0xc58] sm:$0xff]
    %v4874 = vld [vmem:[#allocation4 + $0xc60] sm:$0xff]
    %v4875 = vld [vmem:[#allocation4 + $0xc68] sm:$0xff]
    %v4876 = vld [vmem:[#allocation4 + $0xc70] sm:$0xff]
    %v4877 = vld [vmem:[#allocation4 + $0xc78] sm:$0xff]
    %v4878 = vld [vmem:[#allocation4 + $0xc80] sm:$0xff]
    %v4879 = vld [vmem:[#allocation4 + $0xc88] sm:$0xff]
    %v4880 = vld [vmem:[#allocation4 + $0xc90] sm:$0xff]
    %v4881 = vld [vmem:[#allocation4 + $0xc98] sm:$0xff]
    %v4882 = vld [vmem:[#allocation4 + $0xca0] sm:$0xff]
    %v4883 = vld [vmem:[#allocation4 + $0xca8] sm:$0xff]
    %v4884 = vld [vmem:[#allocation4 + $0xcb0] sm:$0xff]
    %v4885 = vld [vmem:[#allocation4 + $0xcb8] sm:$0xff]
    %v4886 = vld [vmem:[#allocation4 + $0xcc0] sm:$0xff]
    %v4887 = vld [vmem:[#allocation4 + $0xcc8] sm:$0xff]
    %v4888 = vld [vmem:[#allocation4 + $0xcd0] sm:$0xff]
    %v4889 = vld [vmem:[#allocation4 + $0xcd8] sm:$0xff]
    %v4890 = vld [vmem:[#allocation4 + $0xce0] sm:$0xff]
    %v4891 = vld [vmem:[#allocation4 + $0xce8] sm:$0xff]
    %v4892 = vld [vmem:[#allocation4 + $0xcf0] sm:$0xff]
    %v4893 = vld [vmem:[#allocation4 + $0xcf8] sm:$0xff]
    %v4894 = vld [vmem:[#allocation4 + $0xd00] sm:$0xff]
    %v4895 = vld [vmem:[#allocation4 + $0xd08] sm:$0xff]
    %v4896 = vld [vmem:[#allocation4 + $0xd10] sm:$0xff]
    %v4897 = vld [vmem:[#allocation4 + $0xd18] sm:$0xff]
    %v4898 = vld [vmem:[#allocation4 + $0xd20] sm:$0xff]
    %v4899 = vld [vmem:[#allocation4 + $0xd28] sm:$0xff]
    %v4900 = vld [vmem:[#allocation4 + $0xd30] sm:$0xff]
    %v4901 = vld [vmem:[#allocation4 + $0xd38] sm:$0xff]
    %v4902 = vld [vmem:[#allocation4 + $0xd40] sm:$0xff]
    %v4903 = vld [vmem:[#allocation4 + $0xd48] sm:$0xff]
    %v4904 = vld [vmem:[#allocation4 + $0xd50] sm:$0xff]
    %v4905 = vld [vmem:[#allocation4 + $0xd58] sm:$0xff]
    %v4906 = vld [vmem:[#allocation4 + $0xd60] sm:$0xff]
    %v4907 = vld [vmem:[#allocation4 + $0xd68] sm:$0xff]
    %v4908 = vld [vmem:[#allocation4 + $0xd70] sm:$0xff]
    %v4909 = vld [vmem:[#allocation4 + $0xd78] sm:$0xff]
    %v4910 = vld [vmem:[#allocation4 + $0xd80] sm:$0xff]
    %v4911 = vld [vmem:[#allocation4 + $0xd88] sm:$0xff]
    %v4912 = vld [vmem:[#allocation4 + $0xd90] sm:$0xff]
    %v4913 = vld [vmem:[#allocation4 + $0xd98] sm:$0xff]
    %v4914 = vld [vmem:[#allocation4 + $0xda0] sm:$0xff]
    %v4915 = vld [vmem:[#allocation4 + $0xda8] sm:$0xff]
    %v4916 = vld [vmem:[#allocation4 + $0xdb0] sm:$0xff]
    %v4917 = vld [vmem:[#allocation4 + $0xdb8] sm:$0xff]
    %v4918 = vld [vmem:[#allocation4 + $0xdc0] sm:$0xff]
    %v4919 = vld [vmem:[#allocation4 + $0xdc8] sm:$0xff]
    %v4920 = vld [vmem:[#allocation4 + $0xdd0] sm:$0xff]
    %v4921 = vld [vmem:[#allocation4 + $0xdd8] sm:$0xff]
    %v4922 = vld [vmem:[#allocation4 + $0xde0] sm:$0xff]
    %v4923 = vld [vmem:[#allocation4 + $0xde8] sm:$0xff]
    %v4924 = vld [vmem:[#allocation4 + $0xdf0] sm:$0xff]
    %v4925 = vld [vmem:[#allocation4 + $0xdf8] sm:$0xff]
    %v4926 = vld [vmem:[#allocation4 + $0xe00] sm:$0xff]
    %v4927 = vld [vmem:[#allocation4 + $0xe08] sm:$0xff]
    %v4928 = vld [vmem:[#allocation4 + $0xe10] sm:$0xff]
    %v4929 = vld [vmem:[#allocation4 + $0xe18] sm:$0xff]
    %v4930 = vld [vmem:[#allocation4 + $0xe20] sm:$0xff]
    %v4931 = vld [vmem:[#allocation4 + $0xe28] sm:$0xff]
    %v4932 = vld [vmem:[#allocation4 + $0xe30] sm:$0xff]
    %v4933 = vld [vmem:[#allocation4 + $0xe38] sm:$0xff]
    %v4934 = vld [vmem:[#allocation4 + $0xe40] sm:$0xff]
    %v4935 = vld [vmem:[#allocation4 + $0xe48] sm:$0xff]
    %v4936 = vld [vmem:[#allocation4 + $0xe50] sm:$0xff]
    %v4937 = vld [vmem:[#allocation4 + $0xe58] sm:$0xff]
    %v4938 = vld [vmem:[#allocation4 + $0xe60] sm:$0xff]
    %v4939 = vld [vmem:[#allocation4 + $0xe68] sm:$0xff]
    %v4940 = vld [vmem:[#allocation4 + $0xe70] sm:$0xff]
    %v4941 = vld [vmem:[#allocation4 + $0xe78] sm:$0xff]
    %v4942 = vld [vmem:[#allocation4 + $0xe80] sm:$0xff]
    %v4943 = vld [vmem:[#allocation4 + $0xe88] sm:$0xff]
    %v4944 = vld [vmem:[#allocation4 + $0xe90] sm:$0xff]
    %v4945 = vld [vmem:[#allocation4 + $0xe98] sm:$0xff]
    %v4946 = vld [vmem:[#allocation4 + $0xea0] sm:$0xff]
    %v4947 = vld [vmem:[#allocation4 + $0xea8] sm:$0xff]
    %v4948 = vld [vmem:[#allocation4 + $0xeb0] sm:$0xff]
    %v4949 = vld [vmem:[#allocation4 + $0xeb8] sm:$0xff]
    %v4950 = vld [vmem:[#allocation4 + $0xec0] sm:$0xff]
    %v4951 = vld [vmem:[#allocation4 + $0xec8] sm:$0xff]
    %v4952 = vld [vmem:[#allocation4 + $0xed0] sm:$0xff]
    %v4953 = vld [vmem:[#allocation4 + $0xed8] sm:$0xff]
    %v4954 = vld [vmem:[#allocation4 + $0xee0] sm:$0xff]
    %v4955 = vld [vmem:[#allocation4 + $0xee8] sm:$0xff]
    %v4956 = vld [vmem:[#allocation4 + $0xef0] sm:$0xff]
    %v4957 = vld [vmem:[#allocation4 + $0xef8] sm:$0xff]
    %v4958 = vld [vmem:[#allocation4 + $0xf00] sm:$0xff]
    %v4959 = vld [vmem:[#allocation4 + $0xf08] sm:$0xff]
    %v4960 = vld [vmem:[#allocation4 + $0xf10] sm:$0xff]
    %v4961 = vld [vmem:[#allocation4 + $0xf18] sm:$0xff]
    %v4962 = vld [vmem:[#allocation4 + $0xf20] sm:$0xff]
    %v4963 = vld [vmem:[#allocation4 + $0xf28] sm:$0xff]
    %v4964 = vld [vmem:[#allocation4 + $0xf30] sm:$0xff]
    %v4965 = vld [vmem:[#allocation4 + $0xf38] sm:$0xff]
    %v4966 = vld [vmem:[#allocation4 + $0xf40] sm:$0xff]
    %v4967 = vld [vmem:[#allocation4 + $0xf48] sm:$0xff]
    %v4968 = vld [vmem:[#allocation4 + $0xf50] sm:$0xff]
    %v4969 = vld [vmem:[#allocation4 + $0xf58] sm:$0xff]
    %v4970 = vld [vmem:[#allocation4 + $0xf60] sm:$0xff]
    %v4971 = vld [vmem:[#allocation4 + $0xf68] sm:$0xff]
    %v4972 = vld [vmem:[#allocation4 + $0xf70] sm:$0xff]
    %v4973 = vld [vmem:[#allocation4 + $0xf78] sm:$0xff]
    %v4974 = vld [vmem:[#allocation4 + $0xf80] sm:$0xff]
    %v4975 = vld [vmem:[#allocation4 + $0xf88] sm:$0xff]
    %v4976 = vld [vmem:[#allocation4 + $0xf90] sm:$0xff]
    %v4977 = vld [vmem:[#allocation4 + $0xf98] sm:$0xff]
    %v4978 = vld [vmem:[#allocation4 + $0xfa0] sm:$0xff]
    %v4979 = vld [vmem:[#allocation4 + $0xfa8] sm:$0xff]
    %v4980 = vld [vmem:[#allocation4 + $0xfb0] sm:$0xff]
    %v4981 = vld [vmem:[#allocation4 + $0xfb8] sm:$0xff]
    %v4982 = vld [vmem:[#allocation4 + $0xfc0] sm:$0xff]
    %v4983 = vld [vmem:[#allocation4 + $0xfc8] sm:$0xff]
    %v4984 = vld [vmem:[#allocation4 + $0xfd0] sm:$0xff]
    %v4985 = vld [vmem:[#allocation4 + $0xfd8] sm:$0xff]
    %v4986 = vld [vmem:[#allocation4 + $0xfe0] sm:$0xff]
    %v4987 = vld [vmem:[#allocation4 + $0xfe8] sm:$0xff]
    %v4988 = vld [vmem:[#allocation4 + $0xff0] sm:$0xff]
    %v4989 = vld [vmem:[#allocation4 + $0xff8] sm:$0xff]
    %v4990 = vld [vmem:[#allocation4 + $0x1000] sm:$0xff]
    %v4991 = vld [vmem:[#allocation4 + $0x1008] sm:$0xff]
    %v4992 = vld [vmem:[#allocation4 + $0x1010] sm:$0xff]
    %v4993 = vld [vmem:[#allocation4 + $0x1018] sm:$0xff]
    %v4994 = vld [vmem:[#allocation4 + $0x1020] sm:$0xff]
    %v4995 = vld [vmem:[#allocation4 + $0x1028] sm:$0xff]
    %v4996 = vld [vmem:[#allocation4 + $0x1030] sm:$0xff]
    %v4997 = vld [vmem:[#allocation4 + $0x1038] sm:$0xff]
    %v4998 = vld [vmem:[#allocation4 + $0x1040] sm:$0xff]
    %v4999 = vld [vmem:[#allocation4 + $0x1048] sm:$0xff]
    %v5000 = vld [vmem:[#allocation4 + $0x1050] sm:$0xff]
    %v5001 = vld [vmem:[#allocation4 + $0x1058] sm:$0xff]
    %v5002 = vld [vmem:[#allocation4 + $0x1060] sm:$0xff]
    %v5003 = vld [vmem:[#allocation4 + $0x1068] sm:$0xff]
    %v5004 = vld [vmem:[#allocation4 + $0x1070] sm:$0xff]
    %v5005 = vld [vmem:[#allocation4 + $0x1078] sm:$0xff]
    %v5006 = vld [vmem:[#allocation4 + $0x1080] sm:$0xff]
    %v5007 = vld [vmem:[#allocation4 + $0x1088] sm:$0xff]
    %v5008 = vld [vmem:[#allocation4 + $0x1090] sm:$0xff]
    %v5009 = vld [vmem:[#allocation4 + $0x1098] sm:$0xff]
    %v5010 = vld [vmem:[#allocation4 + $0x10a0] sm:$0xff]
    %v5011 = vld [vmem:[#allocation4 + $0x10a8] sm:$0xff]
    %v5012 = vld [vmem:[#allocation4 + $0x10b0] sm:$0xff]
    %v5013 = vld [vmem:[#allocation4 + $0x10b8] sm:$0xff]
    %v5014 = vld [vmem:[#allocation4 + $0x10c0] sm:$0xff]
    %v5015 = vld [vmem:[#allocation4 + $0x10c8] sm:$0xff]
    %v5016 = vld [vmem:[#allocation4 + $0x10d0] sm:$0xff]
    %v5017 = vld [vmem:[#allocation4 + $0x10d8] sm:$0xff]
    %v5018 = vld [vmem:[#allocation4 + $0x10e0] sm:$0xff]
    %v5019 = vld [vmem:[#allocation4 + $0x10e8] sm:$0xff]
    %v5020 = vld [vmem:[#allocation4 + $0x10f0] sm:$0xff]
    %v5021 = vld [vmem:[#allocation4 + $0x10f8] sm:$0xff]
    %v5022 = vld [vmem:[#allocation4 + $0x1100] sm:$0xff]
    %v5023 = vld [vmem:[#allocation4 + $0x1108] sm:$0xff]
    %v5024 = vld [vmem:[#allocation4 + $0x1110] sm:$0xff]
    %v5025 = vld [vmem:[#allocation4 + $0x1118] sm:$0xff]
    %v5026 = vld [vmem:[#allocation4 + $0x1120] sm:$0xff]
    %v5027 = vld [vmem:[#allocation4 + $0x1128] sm:$0xff]
    %v5028 = vld [vmem:[#allocation4 + $0x1130] sm:$0xff]
    %v5029 = vld [vmem:[#allocation4 + $0x1138] sm:$0xff]
    %v5030 = vld [vmem:[#allocation4 + $0x1140] sm:$0xff]
    %v5031 = vld [vmem:[#allocation4 + $0x1148] sm:$0xff]
    %v5032 = vld [vmem:[#allocation4 + $0x1150] sm:$0xff]
    %v5033 = vld [vmem:[#allocation4 + $0x1158] sm:$0xff]
    %v5034 = vld [vmem:[#allocation4 + $0x1160] sm:$0xff]
    %v5035 = vld [vmem:[#allocation4 + $0x1168] sm:$0xff]
    %v5036 = vld [vmem:[#allocation4 + $0x1170] sm:$0xff]
    %v5037 = vld [vmem:[#allocation4 + $0x1178] sm:$0xff]
    %v5038 = vld [vmem:[#allocation4 + $0x1180] sm:$0xff]
    %v5039 = vld [vmem:[#allocation4 + $0x1188] sm:$0xff]
    %v5040 = vld [vmem:[#allocation4 + $0x1190] sm:$0xff]
    %v5041 = vld [vmem:[#allocation4 + $0x1198] sm:$0xff]
    %v5042 = vld [vmem:[#allocation4 + $0x11a0] sm:$0xff]
    %v5043 = vld [vmem:[#allocation4 + $0x11a8] sm:$0xff]
    %v5044 = vld [vmem:[#allocation4 + $0x11b0] sm:$0xff]
    %v5045 = vld [vmem:[#allocation4 + $0x11b8] sm:$0xff]
    %v5046 = vld [vmem:[#allocation4 + $0x11c0] sm:$0xff]
    %v5047 = vld [vmem:[#allocation4 + $0x11c8] sm:$0xff]
    %v5048 = vld [vmem:[#allocation4 + $0x11d0] sm:$0xff]
    %v5049 = vld [vmem:[#allocation4 + $0x11d8] sm:$0xff]
    %v5050 = vld [vmem:[#allocation4 + $0x11e0] sm:$0xff]
    %v5051 = vld [vmem:[#allocation4 + $0x11e8] sm:$0xff]
    %v5052 = vld [vmem:[#allocation4 + $0x11f0] sm:$0xff]
    %v5053 = vld [vmem:[#allocation4 + $0x11f8] sm:$0xff]
    %v5054 = vld [vmem:[#allocation4 + $0x1200] sm:$0xff]
    %v5055 = vld [vmem:[#allocation4 + $0x1208] sm:$0xff]
    %v5056 = vld [vmem:[#allocation4 + $0x1210] sm:$0xff]
    %v5057 = vld [vmem:[#allocation4 + $0x1218] sm:$0xff]
    %v5058 = vld [vmem:[#allocation4 + $0x1220] sm:$0xff]
    %v5059 = vld [vmem:[#allocation4 + $0x1228] sm:$0xff]
    %v5060 = vld [vmem:[#allocation4 + $0x1230] sm:$0xff]
    %v5061 = vld [vmem:[#allocation4 + $0x1238] sm:$0xff]
    %v5062 = vld [vmem:[#allocation4 + $0x1240] sm:$0xff]
    %v5063 = vld [vmem:[#allocation4 + $0x1248] sm:$0xff]
    %v5064 = vld [vmem:[#allocation4 + $0x1250] sm:$0xff]
    %v5065 = vld [vmem:[#allocation4 + $0x1258] sm:$0xff]
    %v5066 = vld [vmem:[#allocation4 + $0x1260] sm:$0xff]
    %v5067 = vld [vmem:[#allocation4 + $0x1268] sm:$0xff]
    %v5068 = vld [vmem:[#allocation4 + $0x1270] sm:$0xff]
    %v5069 = vld [vmem:[#allocation4 + $0x1278] sm:$0xff]
    %v5070 = vld [vmem:[#allocation4 + $0x1280] sm:$0xff]
    %v5071 = vld [vmem:[#allocation4 + $0x1288] sm:$0xff]
    %v5072 = vld [vmem:[#allocation4 + $0x1290] sm:$0xff]
    %v5073 = vld [vmem:[#allocation4 + $0x1298] sm:$0xff]
    %v5074 = vld [vmem:[#allocation4 + $0x12a0] sm:$0xff]
    %v5075 = vld [vmem:[#allocation4 + $0x12a8] sm:$0xff]
    %v5076 = vld [vmem:[#allocation4 + $0x12b0] sm:$0xff]
    %v5077 = vld [vmem:[#allocation4 + $0x12b8] sm:$0xff]
    %v5078 = vld [vmem:[#allocation4 + $0x12c0] sm:$0xff]
    %v5079 = vld [vmem:[#allocation4 + $0x12c8] sm:$0xff]
    %v5080 = vld [vmem:[#allocation4 + $0x12d0] sm:$0xff]
    %v5081 = vld [vmem:[#allocation4 + $0x12d8] sm:$0xff]
    %v5082 = vld [vmem:[#allocation4 + $0x12e0] sm:$0xff]
    %v5083 = vld [vmem:[#allocation4 + $0x12e8] sm:$0xff]
    %v5084 = vld [vmem:[#allocation4 + $0x12f0] sm:$0xff]
    %v5085 = vld [vmem:[#allocation4 + $0x12f8] sm:$0xff]
    %v5086 = vld [vmem:[#allocation4 + $0x1300] sm:$0xff]
    %v5087 = vld [vmem:[#allocation4 + $0x1308] sm:$0xff]
    %v5088 = vld [vmem:[#allocation4 + $0x1310] sm:$0xff]
    %v5089 = vld [vmem:[#allocation4 + $0x1318] sm:$0xff]
    %v5090 = vld [vmem:[#allocation4 + $0x1320] sm:$0xff]
    %v5091 = vld [vmem:[#allocation4 + $0x1328] sm:$0xff]
    %v5092 = vld [vmem:[#allocation4 + $0x1330] sm:$0xff]
    %v5093 = vld [vmem:[#allocation4 + $0x1338] sm:$0xff]
    %v5094 = vld [vmem:[#allocation4 + $0x1340] sm:$0xff]
    %v5095 = vld [vmem:[#allocation4 + $0x1348] sm:$0xff]
    %v5096 = vld [vmem:[#allocation4 + $0x1350] sm:$0xff]
    %v5097 = vld [vmem:[#allocation4 + $0x1358] sm:$0xff]
    %v5098 = vld [vmem:[#allocation4 + $0x1360] sm:$0xff]
    %v5099 = vld [vmem:[#allocation4 + $0x1368] sm:$0xff]
    %v5100 = vld [vmem:[#allocation4 + $0x1370] sm:$0xff]
    %v5101 = vld [vmem:[#allocation4 + $0x1378] sm:$0xff]
    %v5102 = vld [vmem:[#allocation4 + $0x1380] sm:$0xff]
    %v5103 = vld [vmem:[#allocation4 + $0x1388] sm:$0xff]
    %v5104 = vld [vmem:[#allocation4 + $0x1390] sm:$0xff]
    %v5105 = vld [vmem:[#allocation4 + $0x1398] sm:$0xff]
    %v5106 = vld [vmem:[#allocation4 + $0x13a0] sm:$0xff]
    %v5107 = vld [vmem:[#allocation4 + $0x13a8] sm:$0xff]
    %v5108 = vld [vmem:[#allocation4 + $0x13b0] sm:$0xff]
    %v5109 = vld [vmem:[#allocation4 + $0x13b8] sm:$0xff]
    %v5110 = vld [vmem:[#allocation4 + $0x13c0] sm:$0xff]
    %v5111 = vld [vmem:[#allocation4 + $0x13c8] sm:$0xff]
    %v5112 = vld [vmem:[#allocation4 + $0x13d0] sm:$0xff]
    %v5113 = vld [vmem:[#allocation4 + $0x13d8] sm:$0xff]
    %v5114 = vld [vmem:[#allocation4 + $0x13e0] sm:$0xff]
    %v5115 = vld [vmem:[#allocation4 + $0x13e8] sm:$0xff]
    %v5116 = vld [vmem:[#allocation4 + $0x13f0] sm:$0xff]
    %v5117 = vld [vmem:[#allocation4 + $0x13f8] sm:$0xff]
    %v5118 = vld [vmem:[#allocation4 + $0x1400] sm:$0xff]
    %v5119 = vld [vmem:[#allocation4 + $0x1408] sm:$0xff]
    %v5120 = vld [vmem:[#allocation4 + $0x1410] sm:$0xff]
    %v5121 = vld [vmem:[#allocation4 + $0x1418] sm:$0xff]
    %v5122 = vld [vmem:[#allocation4 + $0x1420] sm:$0xff]
    %v5123 = vld [vmem:[#allocation4 + $0x1428] sm:$0xff]
    %v5124 = vld [vmem:[#allocation4 + $0x1430] sm:$0xff]
    %v5125 = vld [vmem:[#allocation4 + $0x1438] sm:$0xff]
    %v5126 = vld [vmem:[#allocation4 + $0x1440] sm:$0xff]
    %v5127 = vld [vmem:[#allocation4 + $0x1448] sm:$0xff]
    %v5128 = vld [vmem:[#allocation4 + $0x1450] sm:$0xff]
    %v5129 = vld [vmem:[#allocation4 + $0x1458] sm:$0xff]
    %v5130 = vld [vmem:[#allocation4 + $0x1460] sm:$0xff]
    %v5131 = vld [vmem:[#allocation4 + $0x1468] sm:$0xff]
    %v5132 = vld [vmem:[#allocation4 + $0x1470] sm:$0xff]
    %v5133 = vld [vmem:[#allocation4 + $0x1478] sm:$0xff]
    %v5134 = vld [vmem:[#allocation4 + $0x1480] sm:$0xff]
    %v5135 = vld [vmem:[#allocation4 + $0x1488] sm:$0xff]
    %v5136 = vld [vmem:[#allocation4 + $0x1490] sm:$0xff]
    %v5137 = vld [vmem:[#allocation4 + $0x1498] sm:$0xff]
    %v5138 = vld [vmem:[#allocation4 + $0x14a0] sm:$0xff]
    %v5139 = vld [vmem:[#allocation4 + $0x14a8] sm:$0xff]
    %v5140 = vld [vmem:[#allocation4 + $0x14b0] sm:$0xff]
    %v5141 = vld [vmem:[#allocation4 + $0x14b8] sm:$0xff]
    %v5142 = vld [vmem:[#allocation4 + $0x14c0] sm:$0xff]
    %v5143 = vld [vmem:[#allocation4 + $0x14c8] sm:$0xff]
    %v5144 = vld [vmem:[#allocation4 + $0x14d0] sm:$0xff]
    %v5145 = vld [vmem:[#allocation4 + $0x14d8] sm:$0xff]
    %v5146 = vld [vmem:[#allocation4 + $0x14e0] sm:$0xff]
    %v5147 = vld [vmem:[#allocation4 + $0x14e8] sm:$0xff]
    %v5148 = vld [vmem:[#allocation4 + $0x14f0] sm:$0xff]
    %v5149 = vld [vmem:[#allocation4 + $0x14f8] sm:$0xff]
    %v5150 = vld [vmem:[#allocation4 + $0x1500] sm:$0xff]
    %v5151 = vld [vmem:[#allocation4 + $0x1508] sm:$0xff]
    %v5152 = vld [vmem:[#allocation4 + $0x1510] sm:$0xff]
    %v5153 = vld [vmem:[#allocation4 + $0x1518] sm:$0xff]
    %v5154 = vld [vmem:[#allocation4 + $0x1520] sm:$0xff]
    %v5155 = vld [vmem:[#allocation4 + $0x1528] sm:$0xff]
    %v5156 = vld [vmem:[#allocation4 + $0x1530] sm:$0xff]
    %v5157 = vld [vmem:[#allocation4 + $0x1538] sm:$0xff]
    %v5158 = vld [vmem:[#allocation4 + $0x1540] sm:$0xff]
    %v5159 = vld [vmem:[#allocation4 + $0x1548] sm:$0xff]
    %v5160 = vld [vmem:[#allocation4 + $0x1550] sm:$0xff]
    %v5161 = vld [vmem:[#allocation4 + $0x1558] sm:$0xff]
    %v5162 = vld [vmem:[#allocation4 + $0x1560] sm:$0xff]
    %v5163 = vld [vmem:[#allocation4 + $0x1568] sm:$0xff]
    %v5164 = vld [vmem:[#allocation4 + $0x1570] sm:$0xff]
    %v5165 = vld [vmem:[#allocation4 + $0x1578] sm:$0xff]
    %v5166 = vld [vmem:[#allocation4 + $0x1580] sm:$0xff]
    %v5167 = vld [vmem:[#allocation4 + $0x1588] sm:$0xff]
    %v5168 = vld [vmem:[#allocation4 + $0x1590] sm:$0xff]
    %v5169 = vld [vmem:[#allocation4 + $0x1598] sm:$0xff]
    %v5170 = vld [vmem:[#allocation4 + $0x15a0] sm:$0xff]
    %v5171 = vld [vmem:[#allocation4 + $0x15a8] sm:$0xff]
    %v5172 = vld [vmem:[#allocation4 + $0x15b0] sm:$0xff]
    %v5173 = vld [vmem:[#allocation4 + $0x15b8] sm:$0xff]
    %v5174 = vld [vmem:[#allocation4 + $0x15c0] sm:$0xff]
    %v5175 = vld [vmem:[#allocation4 + $0x15c8] sm:$0xff]
    %v5176 = vld [vmem:[#allocation4 + $0x15d0] sm:$0xff]
    %v5177 = vld [vmem:[#allocation4 + $0x15d8] sm:$0xff]
    %v5178 = vld [vmem:[#allocation4 + $0x15e0] sm:$0xff]
    %v5179 = vld [vmem:[#allocation4 + $0x15e8] sm:$0xff]
    %v5180 = vld [vmem:[#allocation4 + $0x15f0] sm:$0xff]
    %v5181 = vld [vmem:[#allocation4 + $0x15f8] sm:$0xff]
    %v5182 = vld [vmem:[#allocation4 + $0x1600] sm:$0xff]
    %v5183 = vld [vmem:[#allocation4 + $0x1608] sm:$0xff]
    %v5184 = vld [vmem:[#allocation4 + $0x1610] sm:$0xff]
    %v5185 = vld [vmem:[#allocation4 + $0x1618] sm:$0xff]
    %v5186 = vld [vmem:[#allocation4 + $0x1620] sm:$0xff]
    %v5187 = vld [vmem:[#allocation4 + $0x1628] sm:$0xff]
    %v5188 = vld [vmem:[#allocation4 + $0x1630] sm:$0xff]
    %v5189 = vld [vmem:[#allocation4 + $0x1638] sm:$0xff]
    %v5190 = vld [vmem:[#allocation4 + $0x1640] sm:$0xff]
    %v5191 = vld [vmem:[#allocation4 + $0x1648] sm:$0xff]
    %v5192 = vld [vmem:[#allocation4 + $0x1650] sm:$0xff]
    %v5193 = vld [vmem:[#allocation4 + $0x1658] sm:$0xff]
    %v5194 = vld [vmem:[#allocation4 + $0x1660] sm:$0xff]
    %v5195 = vld [vmem:[#allocation4 + $0x1668] sm:$0xff]
    %v5196 = vld [vmem:[#allocation4 + $0x1670] sm:$0xff]
    %v5197 = vld [vmem:[#allocation4 + $0x1678] sm:$0xff]
    %v5198 = vld [vmem:[#allocation4 + $0x1680] sm:$0xff]
    %v5199 = vld [vmem:[#allocation4 + $0x1688] sm:$0xff]
    %v5200 = vld [vmem:[#allocation4 + $0x1690] sm:$0xff]
    %v5201 = vld [vmem:[#allocation4 + $0x1698] sm:$0xff]
    %v5202 = vld [vmem:[#allocation4 + $0x16a0] sm:$0xff]
    %v5203 = vld [vmem:[#allocation4 + $0x16a8] sm:$0xff]
    %v5204 = vld [vmem:[#allocation4 + $0x16b0] sm:$0xff]
    %v5205 = vld [vmem:[#allocation4 + $0x16b8] sm:$0xff]
    %v5206 = vld [vmem:[#allocation4 + $0x16c0] sm:$0xff]
    %v5207 = vld [vmem:[#allocation4 + $0x16c8] sm:$0xff]
    %v5208 = vld [vmem:[#allocation4 + $0x16d0] sm:$0xff]
    %v5209 = vld [vmem:[#allocation4 + $0x16d8] sm:$0xff]
    %v5210 = vld [vmem:[#allocation4 + $0x16e0] sm:$0xff]
    %v5211 = vld [vmem:[#allocation4 + $0x16e8] sm:$0xff]
    %v5212 = vld [vmem:[#allocation4 + $0x16f0] sm:$0xff]
    %v5213 = vld [vmem:[#allocation4 + $0x16f8] sm:$0xff]
    %v5214 = vld [vmem:[#allocation4 + $0x1700] sm:$0xff]
    %v5215 = vld [vmem:[#allocation4 + $0x1708] sm:$0xff]
    %v5216 = vld [vmem:[#allocation4 + $0x1710] sm:$0xff]
    %v5217 = vld [vmem:[#allocation4 + $0x1718] sm:$0xff]
    %v5218 = vld [vmem:[#allocation4 + $0x1720] sm:$0xff]
    %v5219 = vld [vmem:[#allocation4 + $0x1728] sm:$0xff]
    %v5220 = vld [vmem:[#allocation4 + $0x1730] sm:$0xff]
    %v5221 = vld [vmem:[#allocation4 + $0x1738] sm:$0xff]
    %v5222 = vld [vmem:[#allocation4 + $0x1740] sm:$0xff]
    %v5223 = vld [vmem:[#allocation4 + $0x1748] sm:$0xff]
    %v5224 = vld [vmem:[#allocation4 + $0x1750] sm:$0xff]
    %v5225 = vld [vmem:[#allocation4 + $0x1758] sm:$0xff]
    %v5226 = vld [vmem:[#allocation4 + $0x1760] sm:$0xff]
    %v5227 = vld [vmem:[#allocation4 + $0x1768] sm:$0xff]
    %v5228 = vld [vmem:[#allocation4 + $0x1770] sm:$0xff]
    %v5229 = vld [vmem:[#allocation4 + $0x1778] sm:$0xff]
    %v5230 = vld [vmem:[#allocation4 + $0x1780] sm:$0xff]
    %v5231 = vld [vmem:[#allocation4 + $0x1788] sm:$0xff]
    %v5232 = vld [vmem:[#allocation4 + $0x1790] sm:$0xff]
    %v5233 = vld [vmem:[#allocation4 + $0x1798] sm:$0xff]
    %v5234 = vld [vmem:[#allocation4 + $0x17a0] sm:$0xff]
    %v5235 = vld [vmem:[#allocation4 + $0x17a8] sm:$0xff]
    %v5236 = vld [vmem:[#allocation4 + $0x17b0] sm:$0xff]
    %v5237 = vld [vmem:[#allocation4 + $0x17b8] sm:$0xff]
    %v5238 = vld [vmem:[#allocation4 + $0x17c0] sm:$0xff]
    %v5239 = vld [vmem:[#allocation4 + $0x17c8] sm:$0xff]
    %v5240 = vld [vmem:[#allocation4 + $0x17d0] sm:$0xff]
    %v5241 = vld [vmem:[#allocation4 + $0x17d8] sm:$0xff]
    %v5242 = vld [vmem:[#allocation4 + $0x17e0] sm:$0xff]
    %v5243 = vld [vmem:[#allocation4 + $0x17e8] sm:$0xff]
    %v5244 = vld [vmem:[#allocation4 + $0x17f0] sm:$0xff]
    %v5245 = vld [vmem:[#allocation4 + $0x17f8] sm:$0xff]
    %v5246 = vld [vmem:[#allocation4 + $0x1800] sm:$0xff]
    %v5247 = vld [vmem:[#allocation4 + $0x1808] sm:$0xff]
    %v5248 = vld [vmem:[#allocation4 + $0x1810] sm:$0xff]
    %v5249 = vld [vmem:[#allocation4 + $0x1818] sm:$0xff]
    %v5250 = vld [vmem:[#allocation4 + $0x1820] sm:$0xff]
    %v5251 = vld [vmem:[#allocation4 + $0x1828] sm:$0xff]
    %v5252 = vld [vmem:[#allocation4 + $0x1830] sm:$0xff]
    %v5253 = vld [vmem:[#allocation4 + $0x1838] sm:$0xff]
    %v5254 = vld [vmem:[#allocation4 + $0x1840] sm:$0xff]
    %v5255 = vld [vmem:[#allocation4 + $0x1848] sm:$0xff]
    %v5256 = vld [vmem:[#allocation4 + $0x1850] sm:$0xff]
    %v5257 = vld [vmem:[#allocation4 + $0x1858] sm:$0xff]
    %v5258 = vld [vmem:[#allocation4 + $0x1860] sm:$0xff]
    %v5259 = vld [vmem:[#allocation4 + $0x1868] sm:$0xff]
    %v5260 = vld [vmem:[#allocation4 + $0x1870] sm:$0xff]
    %v5261 = vld [vmem:[#allocation4 + $0x1878] sm:$0xff]
    %v5262 = vld [vmem:[#allocation4 + $0x1880] sm:$0xff]
    %v5263 = vld [vmem:[#allocation4 + $0x1888] sm:$0xff]
    %v5264 = vld [vmem:[#allocation4 + $0x1890] sm:$0xff]
    %v5265 = vld [vmem:[#allocation4 + $0x1898] sm:$0xff]
    %v5266 = vld [vmem:[#allocation4 + $0x18a0] sm:$0xff]
    %v5267 = vld [vmem:[#allocation4 + $0x18a8] sm:$0xff]
    %v5268 = vld [vmem:[#allocation4 + $0x18b0] sm:$0xff]
    %v5269 = vld [vmem:[#allocation4 + $0x18b8] sm:$0xff]
    %v5270 = vld [vmem:[#allocation4 + $0x18c0] sm:$0xff]
    %v5271 = vld [vmem:[#allocation4 + $0x18c8] sm:$0xff]
    %v5272 = vld [vmem:[#allocation4 + $0x18d0] sm:$0xff]
    %v5273 = vld [vmem:[#allocation4 + $0x18d8] sm:$0xff]
    %v5274 = vld [vmem:[#allocation4 + $0x18e0] sm:$0xff]
    %v5275 = vld [vmem:[#allocation4 + $0x18e8] sm:$0xff]
    %v5276 = vld [vmem:[#allocation4 + $0x18f0] sm:$0xff]
    %v5277 = vld [vmem:[#allocation4 + $0x18f8] sm:$0xff]
    %v6078 = vunpack.c.l.b16 %v4478
    %v6079 = vunpack.c.h.b16 %v4478
    %v6080 = vunpack.c.l.b16 %v4479
    %v6081 = vunpack.c.h.b16 %v4479
    %v6082 = vunpack.c.l.b16 %v4480
    %v6083 = vunpack.c.h.b16 %v4480
    %v6084 = vunpack.c.l.b16 %v4481
    %v6085 = vunpack.c.h.b16 %v4481
    %v6086 = vunpack.c.l.b16 %v4482
    %v6087 = vunpack.c.h.b16 %v4482
    %v6088 = vunpack.c.l.b16 %v4483
    %v6089 = vunpack.c.h.b16 %v4483
    %v6090 = vunpack.c.l.b16 %v4484
    %v6091 = vunpack.c.h.b16 %v4484
    %v6092 = vunpack.c.l.b16 %v4485
    %v6093 = vunpack.c.h.b16 %v4485
    %v6094 = vunpack.c.l.b16 %v4486
    %v6095 = vunpack.c.h.b16 %v4486
    %v6096 = vunpack.c.l.b16 %v4487
    %v6097 = vunpack.c.h.b16 %v4487
    %v6098 = vunpack.c.l.b16 %v4488
    %v6099 = vunpack.c.h.b16 %v4488
    %v6100 = vunpack.c.l.b16 %v4489
    %v6101 = vunpack.c.h.b16 %v4489
    %v6102 = vunpack.c.l.b16 %v4490
    %v6103 = vunpack.c.h.b16 %v4490
    %v6104 = vunpack.c.l.b16 %v4491
    %v6105 = vunpack.c.h.b16 %v4491
    %v6106 = vunpack.c.l.b16 %v4492
    %v6107 = vunpack.c.h.b16 %v4492
    %v6108 = vunpack.c.l.b16 %v4493
    %v6109 = vunpack.c.h.b16 %v4493
    %v6110 = vunpack.c.l.b16 %v4494
    %v6111 = vunpack.c.h.b16 %v4494
    %v6112 = vunpack.c.l.b16 %v4495
    %v6113 = vunpack.c.h.b16 %v4495
    %v6114 = vunpack.c.l.b16 %v4496
    %v6115 = vunpack.c.h.b16 %v4496
    %v6116 = vunpack.c.l.b16 %v4497
    %v6117 = vunpack.c.h.b16 %v4497
    %v6118 = vunpack.c.l.b16 %v4498
    %v6119 = vunpack.c.h.b16 %v4498
    %v6120 = vunpack.c.l.b16 %v4499
    %v6121 = vunpack.c.h.b16 %v4499
    %v6122 = vunpack.c.l.b16 %v4500
    %v6123 = vunpack.c.h.b16 %v4500
    %v6124 = vunpack.c.l.b16 %v4501
    %v6125 = vunpack.c.h.b16 %v4501
    %v6126 = vunpack.c.l.b16 %v4502
    %v6127 = vunpack.c.h.b16 %v4502
    %v6128 = vunpack.c.l.b16 %v4503
    %v6129 = vunpack.c.h.b16 %v4503
    %v6130 = vunpack.c.l.b16 %v4504
    %v6131 = vunpack.c.h.b16 %v4504
    %v6132 = vunpack.c.l.b16 %v4505
    %v6133 = vunpack.c.h.b16 %v4505
    %v6134 = vunpack.c.l.b16 %v4506
    %v6135 = vunpack.c.h.b16 %v4506
    %v6136 = vunpack.c.l.b16 %v4507
    %v6137 = vunpack.c.h.b16 %v4507
    %v6138 = vunpack.c.l.b16 %v4508
    %v6139 = vunpack.c.h.b16 %v4508
    %v6140 = vunpack.c.l.b16 %v4509
    %v6141 = vunpack.c.h.b16 %v4509
    %v6142 = vunpack.c.l.b16 %v4510
    %v6143 = vunpack.c.h.b16 %v4510
    %v6144 = vunpack.c.l.b16 %v4511
    %v6145 = vunpack.c.h.b16 %v4511
    %v6146 = vunpack.c.l.b16 %v4512
    %v6147 = vunpack.c.h.b16 %v4512
    %v6148 = vunpack.c.l.b16 %v4513
    %v6149 = vunpack.c.h.b16 %v4513
    %v6150 = vunpack.c.l.b16 %v4514
    %v6151 = vunpack.c.h.b16 %v4514
    %v6152 = vunpack.c.l.b16 %v4515
    %v6153 = vunpack.c.h.b16 %v4515
    %v6154 = vunpack.c.l.b16 %v4516
    %v6155 = vunpack.c.h.b16 %v4516
    %v6156 = vunpack.c.l.b16 %v4517
    %v6157 = vunpack.c.h.b16 %v4517
    %v6158 = vunpack.c.l.b16 %v4518
    %v6159 = vunpack.c.h.b16 %v4518
    %v6160 = vunpack.c.l.b16 %v4519
    %v6161 = vunpack.c.h.b16 %v4519
    %v6162 = vunpack.c.l.b16 %v4520
    %v6163 = vunpack.c.h.b16 %v4520
    %v6164 = vunpack.c.l.b16 %v4521
    %v6165 = vunpack.c.h.b16 %v4521
    %v6166 = vunpack.c.l.b16 %v4522
    %v6167 = vunpack.c.h.b16 %v4522
    %v6168 = vunpack.c.l.b16 %v4523
    %v6169 = vunpack.c.h.b16 %v4523
    %v6170 = vunpack.c.l.b16 %v4524
    %v6171 = vunpack.c.h.b16 %v4524
    %v6172 = vunpack.c.l.b16 %v4525
    %v6173 = vunpack.c.h.b16 %v4525
    %v6174 = vunpack.c.l.b16 %v4526
    %v6175 = vunpack.c.h.b16 %v4526
    %v6176 = vunpack.c.l.b16 %v4527
    %v6177 = vunpack.c.h.b16 %v4527
    %v6178 = vunpack.c.l.b16 %v4528
    %v6179 = vunpack.c.h.b16 %v4528
    %v6180 = vunpack.c.l.b16 %v4529
    %v6181 = vunpack.c.h.b16 %v4529
    %v6182 = vunpack.c.l.b16 %v4530
    %v6183 = vunpack.c.h.b16 %v4530
    %v6184 = vunpack.c.l.b16 %v4531
    %v6185 = vunpack.c.h.b16 %v4531
    %v6186 = vunpack.c.l.b16 %v4532
    %v6187 = vunpack.c.h.b16 %v4532
    %v6188 = vunpack.c.l.b16 %v4533
    %v6189 = vunpack.c.h.b16 %v4533
    %v6190 = vunpack.c.l.b16 %v4534
    %v6191 = vunpack.c.h.b16 %v4534
    %v6192 = vunpack.c.l.b16 %v4535
    %v6193 = vunpack.c.h.b16 %v4535
    %v6194 = vunpack.c.l.b16 %v4536
    %v6195 = vunpack.c.h.b16 %v4536
    %v6196 = vunpack.c.l.b16 %v4537
    %v6197 = vunpack.c.h.b16 %v4537
    %v6198 = vunpack.c.l.b16 %v4538
    %v6199 = vunpack.c.h.b16 %v4538
    %v6200 = vunpack.c.l.b16 %v4539
    %v6201 = vunpack.c.h.b16 %v4539
    %v6202 = vunpack.c.l.b16 %v4540
    %v6203 = vunpack.c.h.b16 %v4540
    %v6204 = vunpack.c.l.b16 %v4541
    %v6205 = vunpack.c.h.b16 %v4541
    %v6206 = vunpack.c.l.b16 %v4542
    %v6207 = vunpack.c.h.b16 %v4542
    %v6208 = vunpack.c.l.b16 %v4543
    %v6209 = vunpack.c.h.b16 %v4543
    %v6210 = vunpack.c.l.b16 %v4544
    %v6211 = vunpack.c.h.b16 %v4544
    %v6212 = vunpack.c.l.b16 %v4545
    %v6213 = vunpack.c.h.b16 %v4545
    %v6214 = vunpack.c.l.b16 %v4546
    %v6215 = vunpack.c.h.b16 %v4546
    %v6216 = vunpack.c.l.b16 %v4547
    %v6217 = vunpack.c.h.b16 %v4547
    %v6218 = vunpack.c.l.b16 %v4548
    %v6219 = vunpack.c.h.b16 %v4548
    %v6220 = vunpack.c.l.b16 %v4549
    %v6221 = vunpack.c.h.b16 %v4549
    %v6222 = vunpack.c.l.b16 %v4550
    %v6223 = vunpack.c.h.b16 %v4550
    %v6224 = vunpack.c.l.b16 %v4551
    %v6225 = vunpack.c.h.b16 %v4551
    %v6226 = vunpack.c.l.b16 %v4552
    %v6227 = vunpack.c.h.b16 %v4552
    %v6228 = vunpack.c.l.b16 %v4553
    %v6229 = vunpack.c.h.b16 %v4553
    %v6230 = vunpack.c.l.b16 %v4554
    %v6231 = vunpack.c.h.b16 %v4554
    %v6232 = vunpack.c.l.b16 %v4555
    %v6233 = vunpack.c.h.b16 %v4555
    %v6234 = vunpack.c.l.b16 %v4556
    %v6235 = vunpack.c.h.b16 %v4556
    %v6236 = vunpack.c.l.b16 %v4557
    %v6237 = vunpack.c.h.b16 %v4557
    %v6238 = vunpack.c.l.b16 %v4558
    %v6239 = vunpack.c.h.b16 %v4558
    %v6240 = vunpack.c.l.b16 %v4559
    %v6241 = vunpack.c.h.b16 %v4559
    %v6242 = vunpack.c.l.b16 %v4560
    %v6243 = vunpack.c.h.b16 %v4560
    %v6244 = vunpack.c.l.b16 %v4561
    %v6245 = vunpack.c.h.b16 %v4561
    %v6246 = vunpack.c.l.b16 %v4562
    %v6247 = vunpack.c.h.b16 %v4562
    %v6248 = vunpack.c.l.b16 %v4563
    %v6249 = vunpack.c.h.b16 %v4563
    %v6250 = vunpack.c.l.b16 %v4564
    %v6251 = vunpack.c.h.b16 %v4564
    %v6252 = vunpack.c.l.b16 %v4565
    %v6253 = vunpack.c.h.b16 %v4565
    %v6254 = vunpack.c.l.b16 %v4566
    %v6255 = vunpack.c.h.b16 %v4566
    %v6256 = vunpack.c.l.b16 %v4567
    %v6257 = vunpack.c.h.b16 %v4567
    %v6258 = vunpack.c.l.b16 %v4568
    %v6259 = vunpack.c.h.b16 %v4568
    %v6260 = vunpack.c.l.b16 %v4569
    %v6261 = vunpack.c.h.b16 %v4569
    %v6262 = vunpack.c.l.b16 %v4570
    %v6263 = vunpack.c.h.b16 %v4570
    %v6264 = vunpack.c.l.b16 %v4571
    %v6265 = vunpack.c.h.b16 %v4571
    %v6266 = vunpack.c.l.b16 %v4572
    %v6267 = vunpack.c.h.b16 %v4572
    %v6268 = vunpack.c.l.b16 %v4573
    %v6269 = vunpack.c.h.b16 %v4573
    %v6270 = vunpack.c.l.b16 %v4574
    %v6271 = vunpack.c.h.b16 %v4574
    %v6272 = vunpack.c.l.b16 %v4575
    %v6273 = vunpack.c.h.b16 %v4575
    %v6274 = vunpack.c.l.b16 %v4576
    %v6275 = vunpack.c.h.b16 %v4576
    %v6276 = vunpack.c.l.b16 %v4577
    %v6277 = vunpack.c.h.b16 %v4577
    %v6278 = vunpack.c.l.b16 %v4578
    %v6279 = vunpack.c.h.b16 %v4578
    %v6280 = vunpack.c.l.b16 %v4579
    %v6281 = vunpack.c.h.b16 %v4579
    %v6282 = vunpack.c.l.b16 %v4580
    %v6283 = vunpack.c.h.b16 %v4580
    %v6284 = vunpack.c.l.b16 %v4581
    %v6285 = vunpack.c.h.b16 %v4581
    %v6286 = vunpack.c.l.b16 %v4582
    %v6287 = vunpack.c.h.b16 %v4582
    %v6288 = vunpack.c.l.b16 %v4583
    %v6289 = vunpack.c.h.b16 %v4583
    %v6290 = vunpack.c.l.b16 %v4584
    %v6291 = vunpack.c.h.b16 %v4584
    %v6292 = vunpack.c.l.b16 %v4585
    %v6293 = vunpack.c.h.b16 %v4585
    %v6294 = vunpack.c.l.b16 %v4586
    %v6295 = vunpack.c.h.b16 %v4586
    %v6296 = vunpack.c.l.b16 %v4587
    %v6297 = vunpack.c.h.b16 %v4587
    %v6298 = vunpack.c.l.b16 %v4588
    %v6299 = vunpack.c.h.b16 %v4588
    %v6300 = vunpack.c.l.b16 %v4589
    %v6301 = vunpack.c.h.b16 %v4589
    %v6302 = vunpack.c.l.b16 %v4590
    %v6303 = vunpack.c.h.b16 %v4590
    %v6304 = vunpack.c.l.b16 %v4591
    %v6305 = vunpack.c.h.b16 %v4591
    %v6306 = vunpack.c.l.b16 %v4592
    %v6307 = vunpack.c.h.b16 %v4592
    %v6308 = vunpack.c.l.b16 %v4593
    %v6309 = vunpack.c.h.b16 %v4593
    %v6310 = vunpack.c.l.b16 %v4594
    %v6311 = vunpack.c.h.b16 %v4594
    %v6312 = vunpack.c.l.b16 %v4595
    %v6313 = vunpack.c.h.b16 %v4595
    %v6314 = vunpack.c.l.b16 %v4596
    %v6315 = vunpack.c.h.b16 %v4596
    %v6316 = vunpack.c.l.b16 %v4597
    %v6317 = vunpack.c.h.b16 %v4597
    %v6318 = vunpack.c.l.b16 %v4598
    %v6319 = vunpack.c.h.b16 %v4598
    %v6320 = vunpack.c.l.b16 %v4599
    %v6321 = vunpack.c.h.b16 %v4599
    %v6322 = vunpack.c.l.b16 %v4600
    %v6323 = vunpack.c.h.b16 %v4600
    %v6324 = vunpack.c.l.b16 %v4601
    %v6325 = vunpack.c.h.b16 %v4601
    %v6326 = vunpack.c.l.b16 %v4602
    %v6327 = vunpack.c.h.b16 %v4602
    %v6328 = vunpack.c.l.b16 %v4603
    %v6329 = vunpack.c.h.b16 %v4603
    %v6330 = vunpack.c.l.b16 %v4604
    %v6331 = vunpack.c.h.b16 %v4604
    %v6332 = vunpack.c.l.b16 %v4605
    %v6333 = vunpack.c.h.b16 %v4605
    %v6334 = vunpack.c.l.b16 %v4606
    %v6335 = vunpack.c.h.b16 %v4606
    %v6336 = vunpack.c.l.b16 %v4607
    %v6337 = vunpack.c.h.b16 %v4607
    %v6338 = vunpack.c.l.b16 %v4608
    %v6339 = vunpack.c.h.b16 %v4608
    %v6340 = vunpack.c.l.b16 %v4609
    %v6341 = vunpack.c.h.b16 %v4609
    %v6342 = vunpack.c.l.b16 %v4610
    %v6343 = vunpack.c.h.b16 %v4610
    %v6344 = vunpack.c.l.b16 %v4611
    %v6345 = vunpack.c.h.b16 %v4611
    %v6346 = vunpack.c.l.b16 %v4612
    %v6347 = vunpack.c.h.b16 %v4612
    %v6348 = vunpack.c.l.b16 %v4613
    %v6349 = vunpack.c.h.b16 %v4613
    %v6350 = vunpack.c.l.b16 %v4614
    %v6351 = vunpack.c.h.b16 %v4614
    %v6352 = vunpack.c.l.b16 %v4615
    %v6353 = vunpack.c.h.b16 %v4615
    %v6354 = vunpack.c.l.b16 %v4616
    %v6355 = vunpack.c.h.b16 %v4616
    %v6356 = vunpack.c.l.b16 %v4617
    %v6357 = vunpack.c.h.b16 %v4617
    %v6358 = vunpack.c.l.b16 %v4618
    %v6359 = vunpack.c.h.b16 %v4618
    %v6360 = vunpack.c.l.b16 %v4619
    %v6361 = vunpack.c.h.b16 %v4619
    %v6362 = vunpack.c.l.b16 %v4620
    %v6363 = vunpack.c.h.b16 %v4620
    %v6364 = vunpack.c.l.b16 %v4621
    %v6365 = vunpack.c.h.b16 %v4621
    %v6366 = vunpack.c.l.b16 %v4622
    %v6367 = vunpack.c.h.b16 %v4622
    %v6368 = vunpack.c.l.b16 %v4623
    %v6369 = vunpack.c.h.b16 %v4623
    %v6370 = vunpack.c.l.b16 %v4624
    %v6371 = vunpack.c.h.b16 %v4624
    %v6372 = vunpack.c.l.b16 %v4625
    %v6373 = vunpack.c.h.b16 %v4625
    %v6374 = vunpack.c.l.b16 %v4626
    %v6375 = vunpack.c.h.b16 %v4626
    %v6376 = vunpack.c.l.b16 %v4627
    %v6377 = vunpack.c.h.b16 %v4627
    %v6378 = vunpack.c.l.b16 %v4628
    %v6379 = vunpack.c.h.b16 %v4628
    %v6380 = vunpack.c.l.b16 %v4629
    %v6381 = vunpack.c.h.b16 %v4629
    %v6382 = vunpack.c.l.b16 %v4630
    %v6383 = vunpack.c.h.b16 %v4630
    %v6384 = vunpack.c.l.b16 %v4631
    %v6385 = vunpack.c.h.b16 %v4631
    %v6386 = vunpack.c.l.b16 %v4632
    %v6387 = vunpack.c.h.b16 %v4632
    %v6388 = vunpack.c.l.b16 %v4633
    %v6389 = vunpack.c.h.b16 %v4633
    %v6390 = vunpack.c.l.b16 %v4634
    %v6391 = vunpack.c.h.b16 %v4634
    %v6392 = vunpack.c.l.b16 %v4635
    %v6393 = vunpack.c.h.b16 %v4635
    %v6394 = vunpack.c.l.b16 %v4636
    %v6395 = vunpack.c.h.b16 %v4636
    %v6396 = vunpack.c.l.b16 %v4637
    %v6397 = vunpack.c.h.b16 %v4637
    %v6398 = vunpack.c.l.b16 %v4638
    %v6399 = vunpack.c.h.b16 %v4638
    %v6400 = vunpack.c.l.b16 %v4639
    %v6401 = vunpack.c.h.b16 %v4639
    %v6402 = vunpack.c.l.b16 %v4640
    %v6403 = vunpack.c.h.b16 %v4640
    %v6404 = vunpack.c.l.b16 %v4641
    %v6405 = vunpack.c.h.b16 %v4641
    %v6406 = vunpack.c.l.b16 %v4642
    %v6407 = vunpack.c.h.b16 %v4642
    %v6408 = vunpack.c.l.b16 %v4643
    %v6409 = vunpack.c.h.b16 %v4643
    %v6410 = vunpack.c.l.b16 %v4644
    %v6411 = vunpack.c.h.b16 %v4644
    %v6412 = vunpack.c.l.b16 %v4645
    %v6413 = vunpack.c.h.b16 %v4645
    %v6414 = vunpack.c.l.b16 %v4646
    %v6415 = vunpack.c.h.b16 %v4646
    %v6416 = vunpack.c.l.b16 %v4647
    %v6417 = vunpack.c.h.b16 %v4647
    %v6418 = vunpack.c.l.b16 %v4648
    %v6419 = vunpack.c.h.b16 %v4648
    %v6420 = vunpack.c.l.b16 %v4649
    %v6421 = vunpack.c.h.b16 %v4649
    %v6422 = vunpack.c.l.b16 %v4650
    %v6423 = vunpack.c.h.b16 %v4650
    %v6424 = vunpack.c.l.b16 %v4651
    %v6425 = vunpack.c.h.b16 %v4651
    %v6426 = vunpack.c.l.b16 %v4652
    %v6427 = vunpack.c.h.b16 %v4652
    %v6428 = vunpack.c.l.b16 %v4653
    %v6429 = vunpack.c.h.b16 %v4653
    %v6430 = vunpack.c.l.b16 %v4654
    %v6431 = vunpack.c.h.b16 %v4654
    %v6432 = vunpack.c.l.b16 %v4655
    %v6433 = vunpack.c.h.b16 %v4655
    %v6434 = vunpack.c.l.b16 %v4656
    %v6435 = vunpack.c.h.b16 %v4656
    %v6436 = vunpack.c.l.b16 %v4657
    %v6437 = vunpack.c.h.b16 %v4657
    %v6438 = vunpack.c.l.b16 %v4658
    %v6439 = vunpack.c.h.b16 %v4658
    %v6440 = vunpack.c.l.b16 %v4659
    %v6441 = vunpack.c.h.b16 %v4659
    %v6442 = vunpack.c.l.b16 %v4660
    %v6443 = vunpack.c.h.b16 %v4660
    %v6444 = vunpack.c.l.b16 %v4661
    %v6445 = vunpack.c.h.b16 %v4661
    %v6446 = vunpack.c.l.b16 %v4662
    %v6447 = vunpack.c.h.b16 %v4662
    %v6448 = vunpack.c.l.b16 %v4663
    %v6449 = vunpack.c.h.b16 %v4663
    %v6450 = vunpack.c.l.b16 %v4664
    %v6451 = vunpack.c.h.b16 %v4664
    %v6452 = vunpack.c.l.b16 %v4665
    %v6453 = vunpack.c.h.b16 %v4665
    %v6454 = vunpack.c.l.b16 %v4666
    %v6455 = vunpack.c.h.b16 %v4666
    %v6456 = vunpack.c.l.b16 %v4667
    %v6457 = vunpack.c.h.b16 %v4667
    %v6458 = vunpack.c.l.b16 %v4668
    %v6459 = vunpack.c.h.b16 %v4668
    %v6460 = vunpack.c.l.b16 %v4669
    %v6461 = vunpack.c.h.b16 %v4669
    %v6462 = vunpack.c.l.b16 %v4670
    %v6463 = vunpack.c.h.b16 %v4670
    %v6464 = vunpack.c.l.b16 %v4671
    %v6465 = vunpack.c.h.b16 %v4671
    %v6466 = vunpack.c.l.b16 %v4672
    %v6467 = vunpack.c.h.b16 %v4672
    %v6468 = vunpack.c.l.b16 %v4673
    %v6469 = vunpack.c.h.b16 %v4673
    %v6470 = vunpack.c.l.b16 %v4674
    %v6471 = vunpack.c.h.b16 %v4674
    %v6472 = vunpack.c.l.b16 %v4675
    %v6473 = vunpack.c.h.b16 %v4675
    %v6474 = vunpack.c.l.b16 %v4676
    %v6475 = vunpack.c.h.b16 %v4676
    %v6476 = vunpack.c.l.b16 %v4677
    %v6477 = vunpack.c.h.b16 %v4677
    %v6478 = vunpack.c.l.b16 %v4678
    %v6479 = vunpack.c.h.b16 %v4678
    %v6480 = vunpack.c.l.b16 %v4679
    %v6481 = vunpack.c.h.b16 %v4679
    %v6482 = vunpack.c.l.b16 %v4680
    %v6483 = vunpack.c.h.b16 %v4680
    %v6484 = vunpack.c.l.b16 %v4681
    %v6485 = vunpack.c.h.b16 %v4681
    %v6486 = vunpack.c.l.b16 %v4682
    %v6487 = vunpack.c.h.b16 %v4682
    %v6488 = vunpack.c.l.b16 %v4683
    %v6489 = vunpack.c.h.b16 %v4683
    %v6490 = vunpack.c.l.b16 %v4684
    %v6491 = vunpack.c.h.b16 %v4684
    %v6492 = vunpack.c.l.b16 %v4685
    %v6493 = vunpack.c.h.b16 %v4685
    %v6494 = vunpack.c.l.b16 %v4686
    %v6495 = vunpack.c.h.b16 %v4686
    %v6496 = vunpack.c.l.b16 %v4687
    %v6497 = vunpack.c.h.b16 %v4687
    %v6498 = vunpack.c.l.b16 %v4688
    %v6499 = vunpack.c.h.b16 %v4688
    %v6500 = vunpack.c.l.b16 %v4689
    %v6501 = vunpack.c.h.b16 %v4689
    %v6502 = vunpack.c.l.b16 %v4690
    %v6503 = vunpack.c.h.b16 %v4690
    %v6504 = vunpack.c.l.b16 %v4691
    %v6505 = vunpack.c.h.b16 %v4691
    %v6506 = vunpack.c.l.b16 %v4692
    %v6507 = vunpack.c.h.b16 %v4692
    %v6508 = vunpack.c.l.b16 %v4693
    %v6509 = vunpack.c.h.b16 %v4693
    %v6510 = vunpack.c.l.b16 %v4694
    %v6511 = vunpack.c.h.b16 %v4694
    %v6512 = vunpack.c.l.b16 %v4695
    %v6513 = vunpack.c.h.b16 %v4695
    %v6514 = vunpack.c.l.b16 %v4696
    %v6515 = vunpack.c.h.b16 %v4696
    %v6516 = vunpack.c.l.b16 %v4697
    %v6517 = vunpack.c.h.b16 %v4697
    %v6518 = vunpack.c.l.b16 %v4698
    %v6519 = vunpack.c.h.b16 %v4698
    %v6520 = vunpack.c.l.b16 %v4699
    %v6521 = vunpack.c.h.b16 %v4699
    %v6522 = vunpack.c.l.b16 %v4700
    %v6523 = vunpack.c.h.b16 %v4700
    %v6524 = vunpack.c.l.b16 %v4701
    %v6525 = vunpack.c.h.b16 %v4701
    %v6526 = vunpack.c.l.b16 %v4702
    %v6527 = vunpack.c.h.b16 %v4702
    %v6528 = vunpack.c.l.b16 %v4703
    %v6529 = vunpack.c.h.b16 %v4703
    %v6530 = vunpack.c.l.b16 %v4704
    %v6531 = vunpack.c.h.b16 %v4704
    %v6532 = vunpack.c.l.b16 %v4705
    %v6533 = vunpack.c.h.b16 %v4705
    %v6534 = vunpack.c.l.b16 %v4706
    %v6535 = vunpack.c.h.b16 %v4706
    %v6536 = vunpack.c.l.b16 %v4707
    %v6537 = vunpack.c.h.b16 %v4707
    %v6538 = vunpack.c.l.b16 %v4708
    %v6539 = vunpack.c.h.b16 %v4708
    %v6540 = vunpack.c.l.b16 %v4709
    %v6541 = vunpack.c.h.b16 %v4709
    %v6542 = vunpack.c.l.b16 %v4710
    %v6543 = vunpack.c.h.b16 %v4710
    %v6544 = vunpack.c.l.b16 %v4711
    %v6545 = vunpack.c.h.b16 %v4711
    %v6546 = vunpack.c.l.b16 %v4712
    %v6547 = vunpack.c.h.b16 %v4712
    %v6548 = vunpack.c.l.b16 %v4713
    %v6549 = vunpack.c.h.b16 %v4713
    %v6550 = vunpack.c.l.b16 %v4714
    %v6551 = vunpack.c.h.b16 %v4714
    %v6552 = vunpack.c.l.b16 %v4715
    %v6553 = vunpack.c.h.b16 %v4715
    %v6554 = vunpack.c.l.b16 %v4716
    %v6555 = vunpack.c.h.b16 %v4716
    %v6556 = vunpack.c.l.b16 %v4717
    %v6557 = vunpack.c.h.b16 %v4717
    %v6558 = vunpack.c.l.b16 %v4718
    %v6559 = vunpack.c.h.b16 %v4718
    %v6560 = vunpack.c.l.b16 %v4719
    %v6561 = vunpack.c.h.b16 %v4719
    %v6562 = vunpack.c.l.b16 %v4720
    %v6563 = vunpack.c.h.b16 %v4720
    %v6564 = vunpack.c.l.b16 %v4721
    %v6565 = vunpack.c.h.b16 %v4721
    %v6566 = vunpack.c.l.b16 %v4722
    %v6567 = vunpack.c.h.b16 %v4722
    %v6568 = vunpack.c.l.b16 %v4723
    %v6569 = vunpack.c.h.b16 %v4723
    %v6570 = vunpack.c.l.b16 %v4724
    %v6571 = vunpack.c.h.b16 %v4724
    %v6572 = vunpack.c.l.b16 %v4725
    %v6573 = vunpack.c.h.b16 %v4725
    %v6574 = vunpack.c.l.b16 %v4726
    %v6575 = vunpack.c.h.b16 %v4726
    %v6576 = vunpack.c.l.b16 %v4727
    %v6577 = vunpack.c.h.b16 %v4727
    %v6578 = vunpack.c.l.b16 %v4728
    %v6579 = vunpack.c.h.b16 %v4728
    %v6580 = vunpack.c.l.b16 %v4729
    %v6581 = vunpack.c.h.b16 %v4729
    %v6582 = vunpack.c.l.b16 %v4730
    %v6583 = vunpack.c.h.b16 %v4730
    %v6584 = vunpack.c.l.b16 %v4731
    %v6585 = vunpack.c.h.b16 %v4731
    %v6586 = vunpack.c.l.b16 %v4732
    %v6587 = vunpack.c.h.b16 %v4732
    %v6588 = vunpack.c.l.b16 %v4733
    %v6589 = vunpack.c.h.b16 %v4733
    %v6590 = vunpack.c.l.b16 %v4734
    %v6591 = vunpack.c.h.b16 %v4734
    %v6592 = vunpack.c.l.b16 %v4735
    %v6593 = vunpack.c.h.b16 %v4735
    %v6594 = vunpack.c.l.b16 %v4736
    %v6595 = vunpack.c.h.b16 %v4736
    %v6596 = vunpack.c.l.b16 %v4737
    %v6597 = vunpack.c.h.b16 %v4737
    %v6598 = vunpack.c.l.b16 %v4738
    %v6599 = vunpack.c.h.b16 %v4738
    %v6600 = vunpack.c.l.b16 %v4739
    %v6601 = vunpack.c.h.b16 %v4739
    %v6602 = vunpack.c.l.b16 %v4740
    %v6603 = vunpack.c.h.b16 %v4740
    %v6604 = vunpack.c.l.b16 %v4741
    %v6605 = vunpack.c.h.b16 %v4741
    %v6606 = vunpack.c.l.b16 %v4742
    %v6607 = vunpack.c.h.b16 %v4742
    %v6608 = vunpack.c.l.b16 %v4743
    %v6609 = vunpack.c.h.b16 %v4743
    %v6610 = vunpack.c.l.b16 %v4744
    %v6611 = vunpack.c.h.b16 %v4744
    %v6612 = vunpack.c.l.b16 %v4745
    %v6613 = vunpack.c.h.b16 %v4745
    %v6614 = vunpack.c.l.b16 %v4746
    %v6615 = vunpack.c.h.b16 %v4746
    %v6616 = vunpack.c.l.b16 %v4747
    %v6617 = vunpack.c.h.b16 %v4747
    %v6618 = vunpack.c.l.b16 %v4748
    %v6619 = vunpack.c.h.b16 %v4748
    %v6620 = vunpack.c.l.b16 %v4749
    %v6621 = vunpack.c.h.b16 %v4749
    %v6622 = vunpack.c.l.b16 %v4750
    %v6623 = vunpack.c.h.b16 %v4750
    %v6624 = vunpack.c.l.b16 %v4751
    %v6625 = vunpack.c.h.b16 %v4751
    %v6626 = vunpack.c.l.b16 %v4752
    %v6627 = vunpack.c.h.b16 %v4752
    %v6628 = vunpack.c.l.b16 %v4753
    %v6629 = vunpack.c.h.b16 %v4753
    %v6630 = vunpack.c.l.b16 %v4754
    %v6631 = vunpack.c.h.b16 %v4754
    %v6632 = vunpack.c.l.b16 %v4755
    %v6633 = vunpack.c.h.b16 %v4755
    %v6634 = vunpack.c.l.b16 %v4756
    %v6635 = vunpack.c.h.b16 %v4756
    %v6636 = vunpack.c.l.b16 %v4757
    %v6637 = vunpack.c.h.b16 %v4757
    %v6638 = vunpack.c.l.b16 %v4758
    %v6639 = vunpack.c.h.b16 %v4758
    %v6640 = vunpack.c.l.b16 %v4759
    %v6641 = vunpack.c.h.b16 %v4759
    %v6642 = vunpack.c.l.b16 %v4760
    %v6643 = vunpack.c.h.b16 %v4760
    %v6644 = vunpack.c.l.b16 %v4761
    %v6645 = vunpack.c.h.b16 %v4761
    %v6646 = vunpack.c.l.b16 %v4762
    %v6647 = vunpack.c.h.b16 %v4762
    %v6648 = vunpack.c.l.b16 %v4763
    %v6649 = vunpack.c.h.b16 %v4763
    %v6650 = vunpack.c.l.b16 %v4764
    %v6651 = vunpack.c.h.b16 %v4764
    %v6652 = vunpack.c.l.b16 %v4765
    %v6653 = vunpack.c.h.b16 %v4765
    %v6654 = vunpack.c.l.b16 %v4766
    %v6655 = vunpack.c.h.b16 %v4766
    %v6656 = vunpack.c.l.b16 %v4767
    %v6657 = vunpack.c.h.b16 %v4767
    %v6658 = vunpack.c.l.b16 %v4768
    %v6659 = vunpack.c.h.b16 %v4768
    %v6660 = vunpack.c.l.b16 %v4769
    %v6661 = vunpack.c.h.b16 %v4769
    %v6662 = vunpack.c.l.b16 %v4770
    %v6663 = vunpack.c.h.b16 %v4770
    %v6664 = vunpack.c.l.b16 %v4771
    %v6665 = vunpack.c.h.b16 %v4771
    %v6666 = vunpack.c.l.b16 %v4772
    %v6667 = vunpack.c.h.b16 %v4772
    %v6668 = vunpack.c.l.b16 %v4773
    %v6669 = vunpack.c.h.b16 %v4773
    %v6670 = vunpack.c.l.b16 %v4774
    %v6671 = vunpack.c.h.b16 %v4774
    %v6672 = vunpack.c.l.b16 %v4775
    %v6673 = vunpack.c.h.b16 %v4775
    %v6674 = vunpack.c.l.b16 %v4776
    %v6675 = vunpack.c.h.b16 %v4776
    %v6676 = vunpack.c.l.b16 %v4777
    %v6677 = vunpack.c.h.b16 %v4777
    %v6678 = vunpack.c.l.b16 %v4778
    %v6679 = vunpack.c.h.b16 %v4778
    %v6680 = vunpack.c.l.b16 %v4779
    %v6681 = vunpack.c.h.b16 %v4779
    %v6682 = vunpack.c.l.b16 %v4780
    %v6683 = vunpack.c.h.b16 %v4780
    %v6684 = vunpack.c.l.b16 %v4781
    %v6685 = vunpack.c.h.b16 %v4781
    %v6686 = vunpack.c.l.b16 %v4782
    %v6687 = vunpack.c.h.b16 %v4782
    %v6688 = vunpack.c.l.b16 %v4783
    %v6689 = vunpack.c.h.b16 %v4783
    %v6690 = vunpack.c.l.b16 %v4784
    %v6691 = vunpack.c.h.b16 %v4784
    %v6692 = vunpack.c.l.b16 %v4785
    %v6693 = vunpack.c.h.b16 %v4785
    %v6694 = vunpack.c.l.b16 %v4786
    %v6695 = vunpack.c.h.b16 %v4786
    %v6696 = vunpack.c.l.b16 %v4787
    %v6697 = vunpack.c.h.b16 %v4787
    %v6698 = vunpack.c.l.b16 %v4788
    %v6699 = vunpack.c.h.b16 %v4788
    %v6700 = vunpack.c.l.b16 %v4789
    %v6701 = vunpack.c.h.b16 %v4789
    %v6702 = vunpack.c.l.b16 %v4790
    %v6703 = vunpack.c.h.b16 %v4790
    %v6704 = vunpack.c.l.b16 %v4791
    %v6705 = vunpack.c.h.b16 %v4791
    %v6706 = vunpack.c.l.b16 %v4792
    %v6707 = vunpack.c.h.b16 %v4792
    %v6708 = vunpack.c.l.b16 %v4793
    %v6709 = vunpack.c.h.b16 %v4793
    %v6710 = vunpack.c.l.b16 %v4794
    %v6711 = vunpack.c.h.b16 %v4794
    %v6712 = vunpack.c.l.b16 %v4795
    %v6713 = vunpack.c.h.b16 %v4795
    %v6714 = vunpack.c.l.b16 %v4796
    %v6715 = vunpack.c.h.b16 %v4796
    %v6716 = vunpack.c.l.b16 %v4797
    %v6717 = vunpack.c.h.b16 %v4797
    %v6718 = vunpack.c.l.b16 %v4798
    %v6719 = vunpack.c.h.b16 %v4798
    %v6720 = vunpack.c.l.b16 %v4799
    %v6721 = vunpack.c.h.b16 %v4799
    %v6722 = vunpack.c.l.b16 %v4800
    %v6723 = vunpack.c.h.b16 %v4800
    %v6724 = vunpack.c.l.b16 %v4801
    %v6725 = vunpack.c.h.b16 %v4801
    %v6726 = vunpack.c.l.b16 %v4802
    %v6727 = vunpack.c.h.b16 %v4802
    %v6728 = vunpack.c.l.b16 %v4803
    %v6729 = vunpack.c.h.b16 %v4803
    %v6730 = vunpack.c.l.b16 %v4804
    %v6731 = vunpack.c.h.b16 %v4804
    %v6732 = vunpack.c.l.b16 %v4805
    %v6733 = vunpack.c.h.b16 %v4805
    %v6734 = vunpack.c.l.b16 %v4806
    %v6735 = vunpack.c.h.b16 %v4806
    %v6736 = vunpack.c.l.b16 %v4807
    %v6737 = vunpack.c.h.b16 %v4807
    %v6738 = vunpack.c.l.b16 %v4808
    %v6739 = vunpack.c.h.b16 %v4808
    %v6740 = vunpack.c.l.b16 %v4809
    %v6741 = vunpack.c.h.b16 %v4809
    %v6742 = vunpack.c.l.b16 %v4810
    %v6743 = vunpack.c.h.b16 %v4810
    %v6744 = vunpack.c.l.b16 %v4811
    %v6745 = vunpack.c.h.b16 %v4811
    %v6746 = vunpack.c.l.b16 %v4812
    %v6747 = vunpack.c.h.b16 %v4812
    %v6748 = vunpack.c.l.b16 %v4813
    %v6749 = vunpack.c.h.b16 %v4813
    %v6750 = vunpack.c.l.b16 %v4814
    %v6751 = vunpack.c.h.b16 %v4814
    %v6752 = vunpack.c.l.b16 %v4815
    %v6753 = vunpack.c.h.b16 %v4815
    %v6754 = vunpack.c.l.b16 %v4816
    %v6755 = vunpack.c.h.b16 %v4816
    %v6756 = vunpack.c.l.b16 %v4817
    %v6757 = vunpack.c.h.b16 %v4817
    %v6758 = vunpack.c.l.b16 %v4818
    %v6759 = vunpack.c.h.b16 %v4818
    %v6760 = vunpack.c.l.b16 %v4819
    %v6761 = vunpack.c.h.b16 %v4819
    %v6762 = vunpack.c.l.b16 %v4820
    %v6763 = vunpack.c.h.b16 %v4820
    %v6764 = vunpack.c.l.b16 %v4821
    %v6765 = vunpack.c.h.b16 %v4821
    %v6766 = vunpack.c.l.b16 %v4822
    %v6767 = vunpack.c.h.b16 %v4822
    %v6768 = vunpack.c.l.b16 %v4823
    %v6769 = vunpack.c.h.b16 %v4823
    %v6770 = vunpack.c.l.b16 %v4824
    %v6771 = vunpack.c.h.b16 %v4824
    %v6772 = vunpack.c.l.b16 %v4825
    %v6773 = vunpack.c.h.b16 %v4825
    %v6774 = vunpack.c.l.b16 %v4826
    %v6775 = vunpack.c.h.b16 %v4826
    %v6776 = vunpack.c.l.b16 %v4827
    %v6777 = vunpack.c.h.b16 %v4827
    %v6778 = vunpack.c.l.b16 %v4828
    %v6779 = vunpack.c.h.b16 %v4828
    %v6780 = vunpack.c.l.b16 %v4829
    %v6781 = vunpack.c.h.b16 %v4829
    %v6782 = vunpack.c.l.b16 %v4830
    %v6783 = vunpack.c.h.b16 %v4830
    %v6784 = vunpack.c.l.b16 %v4831
    %v6785 = vunpack.c.h.b16 %v4831
    %v6786 = vunpack.c.l.b16 %v4832
    %v6787 = vunpack.c.h.b16 %v4832
    %v6788 = vunpack.c.l.b16 %v4833
    %v6789 = vunpack.c.h.b16 %v4833
    %v6790 = vunpack.c.l.b16 %v4834
    %v6791 = vunpack.c.h.b16 %v4834
    %v6792 = vunpack.c.l.b16 %v4835
    %v6793 = vunpack.c.h.b16 %v4835
    %v6794 = vunpack.c.l.b16 %v4836
    %v6795 = vunpack.c.h.b16 %v4836
    %v6796 = vunpack.c.l.b16 %v4837
    %v6797 = vunpack.c.h.b16 %v4837
    %v6798 = vunpack.c.l.b16 %v4838
    %v6799 = vunpack.c.h.b16 %v4838
    %v6800 = vunpack.c.l.b16 %v4839
    %v6801 = vunpack.c.h.b16 %v4839
    %v6802 = vunpack.c.l.b16 %v4840
    %v6803 = vunpack.c.h.b16 %v4840
    %v6804 = vunpack.c.l.b16 %v4841
    %v6805 = vunpack.c.h.b16 %v4841
    %v6806 = vunpack.c.l.b16 %v4842
    %v6807 = vunpack.c.h.b16 %v4842
    %v6808 = vunpack.c.l.b16 %v4843
    %v6809 = vunpack.c.h.b16 %v4843
    %v6810 = vunpack.c.l.b16 %v4844
    %v6811 = vunpack.c.h.b16 %v4844
    %v6812 = vunpack.c.l.b16 %v4845
    %v6813 = vunpack.c.h.b16 %v4845
    %v6814 = vunpack.c.l.b16 %v4846
    %v6815 = vunpack.c.h.b16 %v4846
    %v6816 = vunpack.c.l.b16 %v4847
    %v6817 = vunpack.c.h.b16 %v4847
    %v6818 = vunpack.c.l.b16 %v4848
    %v6819 = vunpack.c.h.b16 %v4848
    %v6820 = vunpack.c.l.b16 %v4849
    %v6821 = vunpack.c.h.b16 %v4849
    %v6822 = vunpack.c.l.b16 %v4850
    %v6823 = vunpack.c.h.b16 %v4850
    %v6824 = vunpack.c.l.b16 %v4851
    %v6825 = vunpack.c.h.b16 %v4851
    %v6826 = vunpack.c.l.b16 %v4852
    %v6827 = vunpack.c.h.b16 %v4852
    %v6828 = vunpack.c.l.b16 %v4853
    %v6829 = vunpack.c.h.b16 %v4853
    %v6830 = vunpack.c.l.b16 %v4854
    %v6831 = vunpack.c.h.b16 %v4854
    %v6832 = vunpack.c.l.b16 %v4855
    %v6833 = vunpack.c.h.b16 %v4855
    %v6834 = vunpack.c.l.b16 %v4856
    %v6835 = vunpack.c.h.b16 %v4856
    %v6836 = vunpack.c.l.b16 %v4857
    %v6837 = vunpack.c.h.b16 %v4857
    %v6838 = vunpack.c.l.b16 %v4858
    %v6839 = vunpack.c.h.b16 %v4858
    %v6840 = vunpack.c.l.b16 %v4859
    %v6841 = vunpack.c.h.b16 %v4859
    %v6842 = vunpack.c.l.b16 %v4860
    %v6843 = vunpack.c.h.b16 %v4860
    %v6844 = vunpack.c.l.b16 %v4861
    %v6845 = vunpack.c.h.b16 %v4861
    %v6846 = vunpack.c.l.b16 %v4862
    %v6847 = vunpack.c.h.b16 %v4862
    %v6848 = vunpack.c.l.b16 %v4863
    %v6849 = vunpack.c.h.b16 %v4863
    %v6850 = vunpack.c.l.b16 %v4864
    %v6851 = vunpack.c.h.b16 %v4864
    %v6852 = vunpack.c.l.b16 %v4865
    %v6853 = vunpack.c.h.b16 %v4865
    %v6854 = vunpack.c.l.b16 %v4866
    %v6855 = vunpack.c.h.b16 %v4866
    %v6856 = vunpack.c.l.b16 %v4867
    %v6857 = vunpack.c.h.b16 %v4867
    %v6858 = vunpack.c.l.b16 %v4868
    %v6859 = vunpack.c.h.b16 %v4868
    %v6860 = vunpack.c.l.b16 %v4869
    %v6861 = vunpack.c.h.b16 %v4869
    %v6862 = vunpack.c.l.b16 %v4870
    %v6863 = vunpack.c.h.b16 %v4870
    %v6864 = vunpack.c.l.b16 %v4871
    %v6865 = vunpack.c.h.b16 %v4871
    %v6866 = vunpack.c.l.b16 %v4872
    %v6867 = vunpack.c.h.b16 %v4872
    %v6868 = vunpack.c.l.b16 %v4873
    %v6869 = vunpack.c.h.b16 %v4873
    %v6870 = vunpack.c.l.b16 %v4874
    %v6871 = vunpack.c.h.b16 %v4874
    %v6872 = vunpack.c.l.b16 %v4875
    %v6873 = vunpack.c.h.b16 %v4875
    %v6874 = vunpack.c.l.b16 %v4876
    %v6875 = vunpack.c.h.b16 %v4876
    %v6876 = vunpack.c.l.b16 %v4877
    %v6877 = vunpack.c.h.b16 %v4877
    %v6878 = vunpack.c.l.b16 %v4878
    %v6879 = vunpack.c.h.b16 %v4878
    %v6880 = vunpack.c.l.b16 %v4879
    %v6881 = vunpack.c.h.b16 %v4879
    %v6882 = vunpack.c.l.b16 %v4880
    %v6883 = vunpack.c.h.b16 %v4880
    %v6884 = vunpack.c.l.b16 %v4881
    %v6885 = vunpack.c.h.b16 %v4881
    %v6886 = vunpack.c.l.b16 %v4882
    %v6887 = vunpack.c.h.b16 %v4882
    %v6888 = vunpack.c.l.b16 %v4883
    %v6889 = vunpack.c.h.b16 %v4883
    %v6890 = vunpack.c.l.b16 %v4884
    %v6891 = vunpack.c.h.b16 %v4884
    %v6892 = vunpack.c.l.b16 %v4885
    %v6893 = vunpack.c.h.b16 %v4885
    %v6894 = vunpack.c.l.b16 %v4886
    %v6895 = vunpack.c.h.b16 %v4886
    %v6896 = vunpack.c.l.b16 %v4887
    %v6897 = vunpack.c.h.b16 %v4887
    %v6898 = vunpack.c.l.b16 %v4888
    %v6899 = vunpack.c.h.b16 %v4888
    %v6900 = vunpack.c.l.b16 %v4889
    %v6901 = vunpack.c.h.b16 %v4889
    %v6902 = vunpack.c.l.b16 %v4890
    %v6903 = vunpack.c.h.b16 %v4890
    %v6904 = vunpack.c.l.b16 %v4891
    %v6905 = vunpack.c.h.b16 %v4891
    %v6906 = vunpack.c.l.b16 %v4892
    %v6907 = vunpack.c.h.b16 %v4892
    %v6908 = vunpack.c.l.b16 %v4893
    %v6909 = vunpack.c.h.b16 %v4893
    %v6910 = vunpack.c.l.b16 %v4894
    %v6911 = vunpack.c.h.b16 %v4894
    %v6912 = vunpack.c.l.b16 %v4895
    %v6913 = vunpack.c.h.b16 %v4895
    %v6914 = vunpack.c.l.b16 %v4896
    %v6915 = vunpack.c.h.b16 %v4896
    %v6916 = vunpack.c.l.b16 %v4897
    %v6917 = vunpack.c.h.b16 %v4897
    %v6918 = vunpack.c.l.b16 %v4898
    %v6919 = vunpack.c.h.b16 %v4898
    %v6920 = vunpack.c.l.b16 %v4899
    %v6921 = vunpack.c.h.b16 %v4899
    %v6922 = vunpack.c.l.b16 %v4900
    %v6923 = vunpack.c.h.b16 %v4900
    %v6924 = vunpack.c.l.b16 %v4901
    %v6925 = vunpack.c.h.b16 %v4901
    %v6926 = vunpack.c.l.b16 %v4902
    %v6927 = vunpack.c.h.b16 %v4902
    %v6928 = vunpack.c.l.b16 %v4903
    %v6929 = vunpack.c.h.b16 %v4903
    %v6930 = vunpack.c.l.b16 %v4904
    %v6931 = vunpack.c.h.b16 %v4904
    %v6932 = vunpack.c.l.b16 %v4905
    %v6933 = vunpack.c.h.b16 %v4905
    %v6934 = vunpack.c.l.b16 %v4906
    %v6935 = vunpack.c.h.b16 %v4906
    %v6936 = vunpack.c.l.b16 %v4907
    %v6937 = vunpack.c.h.b16 %v4907
    %v6938 = vunpack.c.l.b16 %v4908
    %v6939 = vunpack.c.h.b16 %v4908
    %v6940 = vunpack.c.l.b16 %v4909
    %v6941 = vunpack.c.h.b16 %v4909
    %v6942 = vunpack.c.l.b16 %v4910
    %v6943 = vunpack.c.h.b16 %v4910
    %v6944 = vunpack.c.l.b16 %v4911
    %v6945 = vunpack.c.h.b16 %v4911
    %v6946 = vunpack.c.l.b16 %v4912
    %v6947 = vunpack.c.h.b16 %v4912
    %v6948 = vunpack.c.l.b16 %v4913
    %v6949 = vunpack.c.h.b16 %v4913
    %v6950 = vunpack.c.l.b16 %v4914
    %v6951 = vunpack.c.h.b16 %v4914
    %v6952 = vunpack.c.l.b16 %v4915
    %v6953 = vunpack.c.h.b16 %v4915
    %v6954 = vunpack.c.l.b16 %v4916
    %v6955 = vunpack.c.h.b16 %v4916
    %v6956 = vunpack.c.l.b16 %v4917
    %v6957 = vunpack.c.h.b16 %v4917
    %v6958 = vunpack.c.l.b16 %v4918
    %v6959 = vunpack.c.h.b16 %v4918
    %v6960 = vunpack.c.l.b16 %v4919
    %v6961 = vunpack.c.h.b16 %v4919
    %v6962 = vunpack.c.l.b16 %v4920
    %v6963 = vunpack.c.h.b16 %v4920
    %v6964 = vunpack.c.l.b16 %v4921
    %v6965 = vunpack.c.h.b16 %v4921
    %v6966 = vunpack.c.l.b16 %v4922
    %v6967 = vunpack.c.h.b16 %v4922
    %v6968 = vunpack.c.l.b16 %v4923
    %v6969 = vunpack.c.h.b16 %v4923
    %v6970 = vunpack.c.l.b16 %v4924
    %v6971 = vunpack.c.h.b16 %v4924
    %v6972 = vunpack.c.l.b16 %v4925
    %v6973 = vunpack.c.h.b16 %v4925
    %v6974 = vunpack.c.l.b16 %v4926
    %v6975 = vunpack.c.h.b16 %v4926
    %v6976 = vunpack.c.l.b16 %v4927
    %v6977 = vunpack.c.h.b16 %v4927
    %v6978 = vunpack.c.l.b16 %v4928
    %v6979 = vunpack.c.h.b16 %v4928
    %v6980 = vunpack.c.l.b16 %v4929
    %v6981 = vunpack.c.h.b16 %v4929
    %v6982 = vunpack.c.l.b16 %v4930
    %v6983 = vunpack.c.h.b16 %v4930
    %v6984 = vunpack.c.l.b16 %v4931
    %v6985 = vunpack.c.h.b16 %v4931
    %v6986 = vunpack.c.l.b16 %v4932
    %v6987 = vunpack.c.h.b16 %v4932
    %v6988 = vunpack.c.l.b16 %v4933
    %v6989 = vunpack.c.h.b16 %v4933
    %v6990 = vunpack.c.l.b16 %v4934
    %v6991 = vunpack.c.h.b16 %v4934
    %v6992 = vunpack.c.l.b16 %v4935
    %v6993 = vunpack.c.h.b16 %v4935
    %v6994 = vunpack.c.l.b16 %v4936
    %v6995 = vunpack.c.h.b16 %v4936
    %v6996 = vunpack.c.l.b16 %v4937
    %v6997 = vunpack.c.h.b16 %v4937
    %v6998 = vunpack.c.l.b16 %v4938
    %v6999 = vunpack.c.h.b16 %v4938
    %v7000 = vunpack.c.l.b16 %v4939
    %v7001 = vunpack.c.h.b16 %v4939
    %v7002 = vunpack.c.l.b16 %v4940
    %v7003 = vunpack.c.h.b16 %v4940
    %v7004 = vunpack.c.l.b16 %v4941
    %v7005 = vunpack.c.h.b16 %v4941
    %v7006 = vunpack.c.l.b16 %v4942
    %v7007 = vunpack.c.h.b16 %v4942
    %v7008 = vunpack.c.l.b16 %v4943
    %v7009 = vunpack.c.h.b16 %v4943
    %v7010 = vunpack.c.l.b16 %v4944
    %v7011 = vunpack.c.h.b16 %v4944
    %v7012 = vunpack.c.l.b16 %v4945
    %v7013 = vunpack.c.h.b16 %v4945
    %v7014 = vunpack.c.l.b16 %v4946
    %v7015 = vunpack.c.h.b16 %v4946
    %v7016 = vunpack.c.l.b16 %v4947
    %v7017 = vunpack.c.h.b16 %v4947
    %v7018 = vunpack.c.l.b16 %v4948
    %v7019 = vunpack.c.h.b16 %v4948
    %v7020 = vunpack.c.l.b16 %v4949
    %v7021 = vunpack.c.h.b16 %v4949
    %v7022 = vunpack.c.l.b16 %v4950
    %v7023 = vunpack.c.h.b16 %v4950
    %v7024 = vunpack.c.l.b16 %v4951
    %v7025 = vunpack.c.h.b16 %v4951
    %v7026 = vunpack.c.l.b16 %v4952
    %v7027 = vunpack.c.h.b16 %v4952
    %v7028 = vunpack.c.l.b16 %v4953
    %v7029 = vunpack.c.h.b16 %v4953
    %v7030 = vunpack.c.l.b16 %v4954
    %v7031 = vunpack.c.h.b16 %v4954
    %v7032 = vunpack.c.l.b16 %v4955
    %v7033 = vunpack.c.h.b16 %v4955
    %v7034 = vunpack.c.l.b16 %v4956
    %v7035 = vunpack.c.h.b16 %v4956
    %v7036 = vunpack.c.l.b16 %v4957
    %v7037 = vunpack.c.h.b16 %v4957
    %v7038 = vunpack.c.l.b16 %v4958
    %v7039 = vunpack.c.h.b16 %v4958
    %v7040 = vunpack.c.l.b16 %v4959
    %v7041 = vunpack.c.h.b16 %v4959
    %v7042 = vunpack.c.l.b16 %v4960
    %v7043 = vunpack.c.h.b16 %v4960
    %v7044 = vunpack.c.l.b16 %v4961
    %v7045 = vunpack.c.h.b16 %v4961
    %v7046 = vunpack.c.l.b16 %v4962
    %v7047 = vunpack.c.h.b16 %v4962
    %v7048 = vunpack.c.l.b16 %v4963
    %v7049 = vunpack.c.h.b16 %v4963
    %v7050 = vunpack.c.l.b16 %v4964
    %v7051 = vunpack.c.h.b16 %v4964
    %v7052 = vunpack.c.l.b16 %v4965
    %v7053 = vunpack.c.h.b16 %v4965
    %v7054 = vunpack.c.l.b16 %v4966
    %v7055 = vunpack.c.h.b16 %v4966
    %v7056 = vunpack.c.l.b16 %v4967
    %v7057 = vunpack.c.h.b16 %v4967
    %v7058 = vunpack.c.l.b16 %v4968
    %v7059 = vunpack.c.h.b16 %v4968
    %v7060 = vunpack.c.l.b16 %v4969
    %v7061 = vunpack.c.h.b16 %v4969
    %v7062 = vunpack.c.l.b16 %v4970
    %v7063 = vunpack.c.h.b16 %v4970
    %v7064 = vunpack.c.l.b16 %v4971
    %v7065 = vunpack.c.h.b16 %v4971
    %v7066 = vunpack.c.l.b16 %v4972
    %v7067 = vunpack.c.h.b16 %v4972
    %v7068 = vunpack.c.l.b16 %v4973
    %v7069 = vunpack.c.h.b16 %v4973
    %v7070 = vunpack.c.l.b16 %v4974
    %v7071 = vunpack.c.h.b16 %v4974
    %v7072 = vunpack.c.l.b16 %v4975
    %v7073 = vunpack.c.h.b16 %v4975
    %v7074 = vunpack.c.l.b16 %v4976
    %v7075 = vunpack.c.h.b16 %v4976
    %v7076 = vunpack.c.l.b16 %v4977
    %v7077 = vunpack.c.h.b16 %v4977
    %v7078 = vunpack.c.l.b16 %v4978
    %v7079 = vunpack.c.h.b16 %v4978
    %v7080 = vunpack.c.l.b16 %v4979
    %v7081 = vunpack.c.h.b16 %v4979
    %v7082 = vunpack.c.l.b16 %v4980
    %v7083 = vunpack.c.h.b16 %v4980
    %v7084 = vunpack.c.l.b16 %v4981
    %v7085 = vunpack.c.h.b16 %v4981
    %v7086 = vunpack.c.l.b16 %v4982
    %v7087 = vunpack.c.h.b16 %v4982
    %v7088 = vunpack.c.l.b16 %v4983
    %v7089 = vunpack.c.h.b16 %v4983
    %v7090 = vunpack.c.l.b16 %v4984
    %v7091 = vunpack.c.h.b16 %v4984
    %v7092 = vunpack.c.l.b16 %v4985
    %v7093 = vunpack.c.h.b16 %v4985
    %v7094 = vunpack.c.l.b16 %v4986
    %v7095 = vunpack.c.h.b16 %v4986
    %v7096 = vunpack.c.l.b16 %v4987
    %v7097 = vunpack.c.h.b16 %v4987
    %v7098 = vunpack.c.l.b16 %v4988
    %v7099 = vunpack.c.h.b16 %v4988
    %v7100 = vunpack.c.l.b16 %v4989
    %v7101 = vunpack.c.h.b16 %v4989
    %v7102 = vunpack.c.l.b16 %v4990
    %v7103 = vunpack.c.h.b16 %v4990
    %v7104 = vunpack.c.l.b16 %v4991
    %v7105 = vunpack.c.h.b16 %v4991
    %v7106 = vunpack.c.l.b16 %v4992
    %v7107 = vunpack.c.h.b16 %v4992
    %v7108 = vunpack.c.l.b16 %v4993
    %v7109 = vunpack.c.h.b16 %v4993
    %v7110 = vunpack.c.l.b16 %v4994
    %v7111 = vunpack.c.h.b16 %v4994
    %v7112 = vunpack.c.l.b16 %v4995
    %v7113 = vunpack.c.h.b16 %v4995
    %v7114 = vunpack.c.l.b16 %v4996
    %v7115 = vunpack.c.h.b16 %v4996
    %v7116 = vunpack.c.l.b16 %v4997
    %v7117 = vunpack.c.h.b16 %v4997
    %v7118 = vunpack.c.l.b16 %v4998
    %v7119 = vunpack.c.h.b16 %v4998
    %v7120 = vunpack.c.l.b16 %v4999
    %v7121 = vunpack.c.h.b16 %v4999
    %v7122 = vunpack.c.l.b16 %v5000
    %v7123 = vunpack.c.h.b16 %v5000
    %v7124 = vunpack.c.l.b16 %v5001
    %v7125 = vunpack.c.h.b16 %v5001
    %v7126 = vunpack.c.l.b16 %v5002
    %v7127 = vunpack.c.h.b16 %v5002
    %v7128 = vunpack.c.l.b16 %v5003
    %v7129 = vunpack.c.h.b16 %v5003
    %v7130 = vunpack.c.l.b16 %v5004
    %v7131 = vunpack.c.h.b16 %v5004
    %v7132 = vunpack.c.l.b16 %v5005
    %v7133 = vunpack.c.h.b16 %v5005
    %v7134 = vunpack.c.l.b16 %v5006
    %v7135 = vunpack.c.h.b16 %v5006
    %v7136 = vunpack.c.l.b16 %v5007
    %v7137 = vunpack.c.h.b16 %v5007
    %v7138 = vunpack.c.l.b16 %v5008
    %v7139 = vunpack.c.h.b16 %v5008
    %v7140 = vunpack.c.l.b16 %v5009
    %v7141 = vunpack.c.h.b16 %v5009
    %v7142 = vunpack.c.l.b16 %v5010
    %v7143 = vunpack.c.h.b16 %v5010
    %v7144 = vunpack.c.l.b16 %v5011
    %v7145 = vunpack.c.h.b16 %v5011
    %v7146 = vunpack.c.l.b16 %v5012
    %v7147 = vunpack.c.h.b16 %v5012
    %v7148 = vunpack.c.l.b16 %v5013
    %v7149 = vunpack.c.h.b16 %v5013
    %v7150 = vunpack.c.l.b16 %v5014
    %v7151 = vunpack.c.h.b16 %v5014
    %v7152 = vunpack.c.l.b16 %v5015
    %v7153 = vunpack.c.h.b16 %v5015
    %v7154 = vunpack.c.l.b16 %v5016
    %v7155 = vunpack.c.h.b16 %v5016
    %v7156 = vunpack.c.l.b16 %v5017
    %v7157 = vunpack.c.h.b16 %v5017
    %v7158 = vunpack.c.l.b16 %v5018
    %v7159 = vunpack.c.h.b16 %v5018
    %v7160 = vunpack.c.l.b16 %v5019
    %v7161 = vunpack.c.h.b16 %v5019
    %v7162 = vunpack.c.l.b16 %v5020
    %v7163 = vunpack.c.h.b16 %v5020
    %v7164 = vunpack.c.l.b16 %v5021
    %v7165 = vunpack.c.h.b16 %v5021
    %v7166 = vunpack.c.l.b16 %v5022
    %v7167 = vunpack.c.h.b16 %v5022
    %v7168 = vunpack.c.l.b16 %v5023
    %v7169 = vunpack.c.h.b16 %v5023
    %v7170 = vunpack.c.l.b16 %v5024
    %v7171 = vunpack.c.h.b16 %v5024
    %v7172 = vunpack.c.l.b16 %v5025
    %v7173 = vunpack.c.h.b16 %v5025
    %v7174 = vunpack.c.l.b16 %v5026
    %v7175 = vunpack.c.h.b16 %v5026
    %v7176 = vunpack.c.l.b16 %v5027
    %v7177 = vunpack.c.h.b16 %v5027
    %v7178 = vunpack.c.l.b16 %v5028
    %v7179 = vunpack.c.h.b16 %v5028
    %v7180 = vunpack.c.l.b16 %v5029
    %v7181 = vunpack.c.h.b16 %v5029
    %v7182 = vunpack.c.l.b16 %v5030
    %v7183 = vunpack.c.h.b16 %v5030
    %v7184 = vunpack.c.l.b16 %v5031
    %v7185 = vunpack.c.h.b16 %v5031
    %v7186 = vunpack.c.l.b16 %v5032
    %v7187 = vunpack.c.h.b16 %v5032
    %v7188 = vunpack.c.l.b16 %v5033
    %v7189 = vunpack.c.h.b16 %v5033
    %v7190 = vunpack.c.l.b16 %v5034
    %v7191 = vunpack.c.h.b16 %v5034
    %v7192 = vunpack.c.l.b16 %v5035
    %v7193 = vunpack.c.h.b16 %v5035
    %v7194 = vunpack.c.l.b16 %v5036
    %v7195 = vunpack.c.h.b16 %v5036
    %v7196 = vunpack.c.l.b16 %v5037
    %v7197 = vunpack.c.h.b16 %v5037
    %v7198 = vunpack.c.l.b16 %v5038
    %v7199 = vunpack.c.h.b16 %v5038
    %v7200 = vunpack.c.l.b16 %v5039
    %v7201 = vunpack.c.h.b16 %v5039
    %v7202 = vunpack.c.l.b16 %v5040
    %v7203 = vunpack.c.h.b16 %v5040
    %v7204 = vunpack.c.l.b16 %v5041
    %v7205 = vunpack.c.h.b16 %v5041
    %v7206 = vunpack.c.l.b16 %v5042
    %v7207 = vunpack.c.h.b16 %v5042
    %v7208 = vunpack.c.l.b16 %v5043
    %v7209 = vunpack.c.h.b16 %v5043
    %v7210 = vunpack.c.l.b16 %v5044
    %v7211 = vunpack.c.h.b16 %v5044
    %v7212 = vunpack.c.l.b16 %v5045
    %v7213 = vunpack.c.h.b16 %v5045
    %v7214 = vunpack.c.l.b16 %v5046
    %v7215 = vunpack.c.h.b16 %v5046
    %v7216 = vunpack.c.l.b16 %v5047
    %v7217 = vunpack.c.h.b16 %v5047
    %v7218 = vunpack.c.l.b16 %v5048
    %v7219 = vunpack.c.h.b16 %v5048
    %v7220 = vunpack.c.l.b16 %v5049
    %v7221 = vunpack.c.h.b16 %v5049
    %v7222 = vunpack.c.l.b16 %v5050
    %v7223 = vunpack.c.h.b16 %v5050
    %v7224 = vunpack.c.l.b16 %v5051
    %v7225 = vunpack.c.h.b16 %v5051
    %v7226 = vunpack.c.l.b16 %v5052
    %v7227 = vunpack.c.h.b16 %v5052
    %v7228 = vunpack.c.l.b16 %v5053
    %v7229 = vunpack.c.h.b16 %v5053
    %v7230 = vunpack.c.l.b16 %v5054
    %v7231 = vunpack.c.h.b16 %v5054
    %v7232 = vunpack.c.l.b16 %v5055
    %v7233 = vunpack.c.h.b16 %v5055
    %v7234 = vunpack.c.l.b16 %v5056
    %v7235 = vunpack.c.h.b16 %v5056
    %v7236 = vunpack.c.l.b16 %v5057
    %v7237 = vunpack.c.h.b16 %v5057
    %v7238 = vunpack.c.l.b16 %v5058
    %v7239 = vunpack.c.h.b16 %v5058
    %v7240 = vunpack.c.l.b16 %v5059
    %v7241 = vunpack.c.h.b16 %v5059
    %v7242 = vunpack.c.l.b16 %v5060
    %v7243 = vunpack.c.h.b16 %v5060
    %v7244 = vunpack.c.l.b16 %v5061
    %v7245 = vunpack.c.h.b16 %v5061
    %v7246 = vunpack.c.l.b16 %v5062
    %v7247 = vunpack.c.h.b16 %v5062
    %v7248 = vunpack.c.l.b16 %v5063
    %v7249 = vunpack.c.h.b16 %v5063
    %v7250 = vunpack.c.l.b16 %v5064
    %v7251 = vunpack.c.h.b16 %v5064
    %v7252 = vunpack.c.l.b16 %v5065
    %v7253 = vunpack.c.h.b16 %v5065
    %v7254 = vunpack.c.l.b16 %v5066
    %v7255 = vunpack.c.h.b16 %v5066
    %v7256 = vunpack.c.l.b16 %v5067
    %v7257 = vunpack.c.h.b16 %v5067
    %v7258 = vunpack.c.l.b16 %v5068
    %v7259 = vunpack.c.h.b16 %v5068
    %v7260 = vunpack.c.l.b16 %v5069
    %v7261 = vunpack.c.h.b16 %v5069
    %v7262 = vunpack.c.l.b16 %v5070
    %v7263 = vunpack.c.h.b16 %v5070
    %v7264 = vunpack.c.l.b16 %v5071
    %v7265 = vunpack.c.h.b16 %v5071
    %v7266 = vunpack.c.l.b16 %v5072
    %v7267 = vunpack.c.h.b16 %v5072
    %v7268 = vunpack.c.l.b16 %v5073
    %v7269 = vunpack.c.h.b16 %v5073
    %v7270 = vunpack.c.l.b16 %v5074
    %v7271 = vunpack.c.h.b16 %v5074
    %v7272 = vunpack.c.l.b16 %v5075
    %v7273 = vunpack.c.h.b16 %v5075
    %v7274 = vunpack.c.l.b16 %v5076
    %v7275 = vunpack.c.h.b16 %v5076
    %v7276 = vunpack.c.l.b16 %v5077
    %v7277 = vunpack.c.h.b16 %v5077
    %v7278 = vunpack.c.l.b16 %v5078
    %v7279 = vunpack.c.h.b16 %v5078
    %v7280 = vunpack.c.l.b16 %v5079
    %v7281 = vunpack.c.h.b16 %v5079
    %v7282 = vunpack.c.l.b16 %v5080
    %v7283 = vunpack.c.h.b16 %v5080
    %v7284 = vunpack.c.l.b16 %v5081
    %v7285 = vunpack.c.h.b16 %v5081
    %v7286 = vunpack.c.l.b16 %v5082
    %v7287 = vunpack.c.h.b16 %v5082
    %v7288 = vunpack.c.l.b16 %v5083
    %v7289 = vunpack.c.h.b16 %v5083
    %v7290 = vunpack.c.l.b16 %v5084
    %v7291 = vunpack.c.h.b16 %v5084
    %v7292 = vunpack.c.l.b16 %v5085
    %v7293 = vunpack.c.h.b16 %v5085
    %v7294 = vunpack.c.l.b16 %v5086
    %v7295 = vunpack.c.h.b16 %v5086
    %v7296 = vunpack.c.l.b16 %v5087
    %v7297 = vunpack.c.h.b16 %v5087
    %v7298 = vunpack.c.l.b16 %v5088
    %v7299 = vunpack.c.h.b16 %v5088
    %v7300 = vunpack.c.l.b16 %v5089
    %v7301 = vunpack.c.h.b16 %v5089
    %v7302 = vunpack.c.l.b16 %v5090
    %v7303 = vunpack.c.h.b16 %v5090
    %v7304 = vunpack.c.l.b16 %v5091
    %v7305 = vunpack.c.h.b16 %v5091
    %v7306 = vunpack.c.l.b16 %v5092
    %v7307 = vunpack.c.h.b16 %v5092
    %v7308 = vunpack.c.l.b16 %v5093
    %v7309 = vunpack.c.h.b16 %v5093
    %v7310 = vunpack.c.l.b16 %v5094
    %v7311 = vunpack.c.h.b16 %v5094
    %v7312 = vunpack.c.l.b16 %v5095
    %v7313 = vunpack.c.h.b16 %v5095
    %v7314 = vunpack.c.l.b16 %v5096
    %v7315 = vunpack.c.h.b16 %v5096
    %v7316 = vunpack.c.l.b16 %v5097
    %v7317 = vunpack.c.h.b16 %v5097
    %v7318 = vunpack.c.l.b16 %v5098
    %v7319 = vunpack.c.h.b16 %v5098
    %v7320 = vunpack.c.l.b16 %v5099
    %v7321 = vunpack.c.h.b16 %v5099
    %v7322 = vunpack.c.l.b16 %v5100
    %v7323 = vunpack.c.h.b16 %v5100
    %v7324 = vunpack.c.l.b16 %v5101
    %v7325 = vunpack.c.h.b16 %v5101
    %v7326 = vunpack.c.l.b16 %v5102
    %v7327 = vunpack.c.h.b16 %v5102
    %v7328 = vunpack.c.l.b16 %v5103
    %v7329 = vunpack.c.h.b16 %v5103
    %v7330 = vunpack.c.l.b16 %v5104
    %v7331 = vunpack.c.h.b16 %v5104
    %v7332 = vunpack.c.l.b16 %v5105
    %v7333 = vunpack.c.h.b16 %v5105
    %v7334 = vunpack.c.l.b16 %v5106
    %v7335 = vunpack.c.h.b16 %v5106
    %v7336 = vunpack.c.l.b16 %v5107
    %v7337 = vunpack.c.h.b16 %v5107
    %v7338 = vunpack.c.l.b16 %v5108
    %v7339 = vunpack.c.h.b16 %v5108
    %v7340 = vunpack.c.l.b16 %v5109
    %v7341 = vunpack.c.h.b16 %v5109
    %v7342 = vunpack.c.l.b16 %v5110
    %v7343 = vunpack.c.h.b16 %v5110
    %v7344 = vunpack.c.l.b16 %v5111
    %v7345 = vunpack.c.h.b16 %v5111
    %v7346 = vunpack.c.l.b16 %v5112
    %v7347 = vunpack.c.h.b16 %v5112
    %v7348 = vunpack.c.l.b16 %v5113
    %v7349 = vunpack.c.h.b16 %v5113
    %v7350 = vunpack.c.l.b16 %v5114
    %v7351 = vunpack.c.h.b16 %v5114
    %v7352 = vunpack.c.l.b16 %v5115
    %v7353 = vunpack.c.h.b16 %v5115
    %v7354 = vunpack.c.l.b16 %v5116
    %v7355 = vunpack.c.h.b16 %v5116
    %v7356 = vunpack.c.l.b16 %v5117
    %v7357 = vunpack.c.h.b16 %v5117
    %v7358 = vunpack.c.l.b16 %v5118
    %v7359 = vunpack.c.h.b16 %v5118
    %v7360 = vunpack.c.l.b16 %v5119
    %v7361 = vunpack.c.h.b16 %v5119
    %v7362 = vunpack.c.l.b16 %v5120
    %v7363 = vunpack.c.h.b16 %v5120
    %v7364 = vunpack.c.l.b16 %v5121
    %v7365 = vunpack.c.h.b16 %v5121
    %v7366 = vunpack.c.l.b16 %v5122
    %v7367 = vunpack.c.h.b16 %v5122
    %v7368 = vunpack.c.l.b16 %v5123
    %v7369 = vunpack.c.h.b16 %v5123
    %v7370 = vunpack.c.l.b16 %v5124
    %v7371 = vunpack.c.h.b16 %v5124
    %v7372 = vunpack.c.l.b16 %v5125
    %v7373 = vunpack.c.h.b16 %v5125
    %v7374 = vunpack.c.l.b16 %v5126
    %v7375 = vunpack.c.h.b16 %v5126
    %v7376 = vunpack.c.l.b16 %v5127
    %v7377 = vunpack.c.h.b16 %v5127
    %v7378 = vunpack.c.l.b16 %v5128
    %v7379 = vunpack.c.h.b16 %v5128
    %v7380 = vunpack.c.l.b16 %v5129
    %v7381 = vunpack.c.h.b16 %v5129
    %v7382 = vunpack.c.l.b16 %v5130
    %v7383 = vunpack.c.h.b16 %v5130
    %v7384 = vunpack.c.l.b16 %v5131
    %v7385 = vunpack.c.h.b16 %v5131
    %v7386 = vunpack.c.l.b16 %v5132
    %v7387 = vunpack.c.h.b16 %v5132
    %v7388 = vunpack.c.l.b16 %v5133
    %v7389 = vunpack.c.h.b16 %v5133
    %v7390 = vunpack.c.l.b16 %v5134
    %v7391 = vunpack.c.h.b16 %v5134
    %v7392 = vunpack.c.l.b16 %v5135
    %v7393 = vunpack.c.h.b16 %v5135
    %v7394 = vunpack.c.l.b16 %v5136
    %v7395 = vunpack.c.h.b16 %v5136
    %v7396 = vunpack.c.l.b16 %v5137
    %v7397 = vunpack.c.h.b16 %v5137
    %v7398 = vunpack.c.l.b16 %v5138
    %v7399 = vunpack.c.h.b16 %v5138
    %v7400 = vunpack.c.l.b16 %v5139
    %v7401 = vunpack.c.h.b16 %v5139
    %v7402 = vunpack.c.l.b16 %v5140
    %v7403 = vunpack.c.h.b16 %v5140
    %v7404 = vunpack.c.l.b16 %v5141
    %v7405 = vunpack.c.h.b16 %v5141
    %v7406 = vunpack.c.l.b16 %v5142
    %v7407 = vunpack.c.h.b16 %v5142
    %v7408 = vunpack.c.l.b16 %v5143
    %v7409 = vunpack.c.h.b16 %v5143
    %v7410 = vunpack.c.l.b16 %v5144
    %v7411 = vunpack.c.h.b16 %v5144
    %v7412 = vunpack.c.l.b16 %v5145
    %v7413 = vunpack.c.h.b16 %v5145
    %v7414 = vunpack.c.l.b16 %v5146
    %v7415 = vunpack.c.h.b16 %v5146
    %v7416 = vunpack.c.l.b16 %v5147
    %v7417 = vunpack.c.h.b16 %v5147
    %v7418 = vunpack.c.l.b16 %v5148
    %v7419 = vunpack.c.h.b16 %v5148
    %v7420 = vunpack.c.l.b16 %v5149
    %v7421 = vunpack.c.h.b16 %v5149
    %v7422 = vunpack.c.l.b16 %v5150
    %v7423 = vunpack.c.h.b16 %v5150
    %v7424 = vunpack.c.l.b16 %v5151
    %v7425 = vunpack.c.h.b16 %v5151
    %v7426 = vunpack.c.l.b16 %v5152
    %v7427 = vunpack.c.h.b16 %v5152
    %v7428 = vunpack.c.l.b16 %v5153
    %v7429 = vunpack.c.h.b16 %v5153
    %v7430 = vunpack.c.l.b16 %v5154
    %v7431 = vunpack.c.h.b16 %v5154
    %v7432 = vunpack.c.l.b16 %v5155
    %v7433 = vunpack.c.h.b16 %v5155
    %v7434 = vunpack.c.l.b16 %v5156
    %v7435 = vunpack.c.h.b16 %v5156
    %v7436 = vunpack.c.l.b16 %v5157
    %v7437 = vunpack.c.h.b16 %v5157
    %v7438 = vunpack.c.l.b16 %v5158
    %v7439 = vunpack.c.h.b16 %v5158
    %v7440 = vunpack.c.l.b16 %v5159
    %v7441 = vunpack.c.h.b16 %v5159
    %v7442 = vunpack.c.l.b16 %v5160
    %v7443 = vunpack.c.h.b16 %v5160
    %v7444 = vunpack.c.l.b16 %v5161
    %v7445 = vunpack.c.h.b16 %v5161
    %v7446 = vunpack.c.l.b16 %v5162
    %v7447 = vunpack.c.h.b16 %v5162
    %v7448 = vunpack.c.l.b16 %v5163
    %v7449 = vunpack.c.h.b16 %v5163
    %v7450 = vunpack.c.l.b16 %v5164
    %v7451 = vunpack.c.h.b16 %v5164
    %v7452 = vunpack.c.l.b16 %v5165
    %v7453 = vunpack.c.h.b16 %v5165
    %v7454 = vunpack.c.l.b16 %v5166
    %v7455 = vunpack.c.h.b16 %v5166
    %v7456 = vunpack.c.l.b16 %v5167
    %v7457 = vunpack.c.h.b16 %v5167
    %v7458 = vunpack.c.l.b16 %v5168
    %v7459 = vunpack.c.h.b16 %v5168
    %v7460 = vunpack.c.l.b16 %v5169
    %v7461 = vunpack.c.h.b16 %v5169
    %v7462 = vunpack.c.l.b16 %v5170
    %v7463 = vunpack.c.h.b16 %v5170
    %v7464 = vunpack.c.l.b16 %v5171
    %v7465 = vunpack.c.h.b16 %v5171
    %v7466 = vunpack.c.l.b16 %v5172
    %v7467 = vunpack.c.h.b16 %v5172
    %v7468 = vunpack.c.l.b16 %v5173
    %v7469 = vunpack.c.h.b16 %v5173
    %v7470 = vunpack.c.l.b16 %v5174
    %v7471 = vunpack.c.h.b16 %v5174
    %v7472 = vunpack.c.l.b16 %v5175
    %v7473 = vunpack.c.h.b16 %v5175
    %v7474 = vunpack.c.l.b16 %v5176
    %v7475 = vunpack.c.h.b16 %v5176
    %v7476 = vunpack.c.l.b16 %v5177
    %v7477 = vunpack.c.h.b16 %v5177
    %v7478 = vunpack.c.l.b16 %v5178
    %v7479 = vunpack.c.h.b16 %v5178
    %v7480 = vunpack.c.l.b16 %v5179
    %v7481 = vunpack.c.h.b16 %v5179
    %v7482 = vunpack.c.l.b16 %v5180
    %v7483 = vunpack.c.h.b16 %v5180
    %v7484 = vunpack.c.l.b16 %v5181
    %v7485 = vunpack.c.h.b16 %v5181
    %v7486 = vunpack.c.l.b16 %v5182
    %v7487 = vunpack.c.h.b16 %v5182
    %v7488 = vunpack.c.l.b16 %v5183
    %v7489 = vunpack.c.h.b16 %v5183
    %v7490 = vunpack.c.l.b16 %v5184
    %v7491 = vunpack.c.h.b16 %v5184
    %v7492 = vunpack.c.l.b16 %v5185
    %v7493 = vunpack.c.h.b16 %v5185
    %v7494 = vunpack.c.l.b16 %v5186
    %v7495 = vunpack.c.h.b16 %v5186
    %v7496 = vunpack.c.l.b16 %v5187
    %v7497 = vunpack.c.h.b16 %v5187
    %v7498 = vunpack.c.l.b16 %v5188
    %v7499 = vunpack.c.h.b16 %v5188
    %v7500 = vunpack.c.l.b16 %v5189
    %v7501 = vunpack.c.h.b16 %v5189
    %v7502 = vunpack.c.l.b16 %v5190
    %v7503 = vunpack.c.h.b16 %v5190
    %v7504 = vunpack.c.l.b16 %v5191
    %v7505 = vunpack.c.h.b16 %v5191
    %v7506 = vunpack.c.l.b16 %v5192
    %v7507 = vunpack.c.h.b16 %v5192
    %v7508 = vunpack.c.l.b16 %v5193
    %v7509 = vunpack.c.h.b16 %v5193
    %v7510 = vunpack.c.l.b16 %v5194
    %v7511 = vunpack.c.h.b16 %v5194
    %v7512 = vunpack.c.l.b16 %v5195
    %v7513 = vunpack.c.h.b16 %v5195
    %v7514 = vunpack.c.l.b16 %v5196
    %v7515 = vunpack.c.h.b16 %v5196
    %v7516 = vunpack.c.l.b16 %v5197
    %v7517 = vunpack.c.h.b16 %v5197
    %v7518 = vunpack.c.l.b16 %v5198
    %v7519 = vunpack.c.h.b16 %v5198
    %v7520 = vunpack.c.l.b16 %v5199
    %v7521 = vunpack.c.h.b16 %v5199
    %v7522 = vunpack.c.l.b16 %v5200
    %v7523 = vunpack.c.h.b16 %v5200
    %v7524 = vunpack.c.l.b16 %v5201
    %v7525 = vunpack.c.h.b16 %v5201
    %v7526 = vunpack.c.l.b16 %v5202
    %v7527 = vunpack.c.h.b16 %v5202
    %v7528 = vunpack.c.l.b16 %v5203
    %v7529 = vunpack.c.h.b16 %v5203
    %v7530 = vunpack.c.l.b16 %v5204
    %v7531 = vunpack.c.h.b16 %v5204
    %v7532 = vunpack.c.l.b16 %v5205
    %v7533 = vunpack.c.h.b16 %v5205
    %v7534 = vunpack.c.l.b16 %v5206
    %v7535 = vunpack.c.h.b16 %v5206
    %v7536 = vunpack.c.l.b16 %v5207
    %v7537 = vunpack.c.h.b16 %v5207
    %v7538 = vunpack.c.l.b16 %v5208
    %v7539 = vunpack.c.h.b16 %v5208
    %v7540 = vunpack.c.l.b16 %v5209
    %v7541 = vunpack.c.h.b16 %v5209
    %v7542 = vunpack.c.l.b16 %v5210
    %v7543 = vunpack.c.h.b16 %v5210
    %v7544 = vunpack.c.l.b16 %v5211
    %v7545 = vunpack.c.h.b16 %v5211
    %v7546 = vunpack.c.l.b16 %v5212
    %v7547 = vunpack.c.h.b16 %v5212
    %v7548 = vunpack.c.l.b16 %v5213
    %v7549 = vunpack.c.h.b16 %v5213
    %v7550 = vunpack.c.l.b16 %v5214
    %v7551 = vunpack.c.h.b16 %v5214
    %v7552 = vunpack.c.l.b16 %v5215
    %v7553 = vunpack.c.h.b16 %v5215
    %v7554 = vunpack.c.l.b16 %v5216
    %v7555 = vunpack.c.h.b16 %v5216
    %v7556 = vunpack.c.l.b16 %v5217
    %v7557 = vunpack.c.h.b16 %v5217
    %v7558 = vunpack.c.l.b16 %v5218
    %v7559 = vunpack.c.h.b16 %v5218
    %v7560 = vunpack.c.l.b16 %v5219
    %v7561 = vunpack.c.h.b16 %v5219
    %v7562 = vunpack.c.l.b16 %v5220
    %v7563 = vunpack.c.h.b16 %v5220
    %v7564 = vunpack.c.l.b16 %v5221
    %v7565 = vunpack.c.h.b16 %v5221
    %v7566 = vunpack.c.l.b16 %v5222
    %v7567 = vunpack.c.h.b16 %v5222
    %v7568 = vunpack.c.l.b16 %v5223
    %v7569 = vunpack.c.h.b16 %v5223
    %v7570 = vunpack.c.l.b16 %v5224
    %v7571 = vunpack.c.h.b16 %v5224
    %v7572 = vunpack.c.l.b16 %v5225
    %v7573 = vunpack.c.h.b16 %v5225
    %v7574 = vunpack.c.l.b16 %v5226
    %v7575 = vunpack.c.h.b16 %v5226
    %v7576 = vunpack.c.l.b16 %v5227
    %v7577 = vunpack.c.h.b16 %v5227
    %v7578 = vunpack.c.l.b16 %v5228
    %v7579 = vunpack.c.h.b16 %v5228
    %v7580 = vunpack.c.l.b16 %v5229
    %v7581 = vunpack.c.h.b16 %v5229
    %v7582 = vunpack.c.l.b16 %v5230
    %v7583 = vunpack.c.h.b16 %v5230
    %v7584 = vunpack.c.l.b16 %v5231
    %v7585 = vunpack.c.h.b16 %v5231
    %v7586 = vunpack.c.l.b16 %v5232
    %v7587 = vunpack.c.h.b16 %v5232
    %v7588 = vunpack.c.l.b16 %v5233
    %v7589 = vunpack.c.h.b16 %v5233
    %v7590 = vunpack.c.l.b16 %v5234
    %v7591 = vunpack.c.h.b16 %v5234
    %v7592 = vunpack.c.l.b16 %v5235
    %v7593 = vunpack.c.h.b16 %v5235
    %v7594 = vunpack.c.l.b16 %v5236
    %v7595 = vunpack.c.h.b16 %v5236
    %v7596 = vunpack.c.l.b16 %v5237
    %v7597 = vunpack.c.h.b16 %v5237
    %v7598 = vunpack.c.l.b16 %v5238
    %v7599 = vunpack.c.h.b16 %v5238
    %v7600 = vunpack.c.l.b16 %v5239
    %v7601 = vunpack.c.h.b16 %v5239
    %v7602 = vunpack.c.l.b16 %v5240
    %v7603 = vunpack.c.h.b16 %v5240
    %v7604 = vunpack.c.l.b16 %v5241
    %v7605 = vunpack.c.h.b16 %v5241
    %v7606 = vunpack.c.l.b16 %v5242
    %v7607 = vunpack.c.h.b16 %v5242
    %v7608 = vunpack.c.l.b16 %v5243
    %v7609 = vunpack.c.h.b16 %v5243
    %v7610 = vunpack.c.l.b16 %v5244
    %v7611 = vunpack.c.h.b16 %v5244
    %v7612 = vunpack.c.l.b16 %v5245
    %v7613 = vunpack.c.h.b16 %v5245
    %v7614 = vunpack.c.l.b16 %v5246
    %v7615 = vunpack.c.h.b16 %v5246
    %v7616 = vunpack.c.l.b16 %v5247
    %v7617 = vunpack.c.h.b16 %v5247
    %v7618 = vunpack.c.l.b16 %v5248
    %v7619 = vunpack.c.h.b16 %v5248
    %v7620 = vunpack.c.l.b16 %v5249
    %v7621 = vunpack.c.h.b16 %v5249
    %v7622 = vunpack.c.l.b16 %v5250
    %v7623 = vunpack.c.h.b16 %v5250
    %v7624 = vunpack.c.l.b16 %v5251
    %v7625 = vunpack.c.h.b16 %v5251
    %v7626 = vunpack.c.l.b16 %v5252
    %v7627 = vunpack.c.h.b16 %v5252
    %v7628 = vunpack.c.l.b16 %v5253
    %v7629 = vunpack.c.h.b16 %v5253
    %v7630 = vunpack.c.l.b16 %v5254
    %v7631 = vunpack.c.h.b16 %v5254
    %v7632 = vunpack.c.l.b16 %v5255
    %v7633 = vunpack.c.h.b16 %v5255
    %v7634 = vunpack.c.l.b16 %v5256
    %v7635 = vunpack.c.h.b16 %v5256
    %v7636 = vunpack.c.l.b16 %v5257
    %v7637 = vunpack.c.h.b16 %v5257
    %v7638 = vunpack.c.l.b16 %v5258
    %v7639 = vunpack.c.h.b16 %v5258
    %v7640 = vunpack.c.l.b16 %v5259
    %v7641 = vunpack.c.h.b16 %v5259
    %v7642 = vunpack.c.l.b16 %v5260
    %v7643 = vunpack.c.h.b16 %v5260
    %v7644 = vunpack.c.l.b16 %v5261
    %v7645 = vunpack.c.h.b16 %v5261
    %v7646 = vunpack.c.l.b16 %v5262
    %v7647 = vunpack.c.h.b16 %v5262
    %v7648 = vunpack.c.l.b16 %v5263
    %v7649 = vunpack.c.h.b16 %v5263
    %v7650 = vunpack.c.l.b16 %v5264
    %v7651 = vunpack.c.h.b16 %v5264
    %v7652 = vunpack.c.l.b16 %v5265
    %v7653 = vunpack.c.h.b16 %v5265
    %v7654 = vunpack.c.l.b16 %v5266
    %v7655 = vunpack.c.h.b16 %v5266
    %v7656 = vunpack.c.l.b16 %v5267
    %v7657 = vunpack.c.h.b16 %v5267
    %v7658 = vunpack.c.l.b16 %v5268
    %v7659 = vunpack.c.h.b16 %v5268
    %v7660 = vunpack.c.l.b16 %v5269
    %v7661 = vunpack.c.h.b16 %v5269
    %v7662 = vunpack.c.l.b16 %v5270
    %v7663 = vunpack.c.h.b16 %v5270
    %v7664 = vunpack.c.l.b16 %v5271
    %v7665 = vunpack.c.h.b16 %v5271
    %v7666 = vunpack.c.l.b16 %v5272
    %v7667 = vunpack.c.h.b16 %v5272
    %v7668 = vunpack.c.l.b16 %v5273
    %v7669 = vunpack.c.h.b16 %v5273
    %v7670 = vunpack.c.l.b16 %v5274
    %v7671 = vunpack.c.h.b16 %v5274
    %v7672 = vunpack.c.l.b16 %v5275
    %v7673 = vunpack.c.h.b16 %v5275
    %v7674 = vunpack.c.l.b16 %v5276
    %v7675 = vunpack.c.h.b16 %v5276
    %v7676 = vunpack.c.l.b16 %v5277
    %v7677 = vunpack.c.h.b16 %v5277
    %v7678 = vpack.c.b16 %v6088, %v6078
    %v7679 = vpack.c.b16 %v6089, %v6079
    %v7680 = vpack.c.b16 %v6090, %v6080
    %v7681 = vpack.c.b16 %v6091, %v6081
    %v7682 = vpack.c.b16 %v6092, %v6082
    %v7683 = vpack.c.b16 %v6093, %v6083
    %v7684 = vpack.c.b16 %v6094, %v6084
    %v7685 = vpack.c.b16 %v6095, %v6085
    %v7686 = vpack.c.b16 %v6096, %v6086
    %v7687 = vpack.c.b16 %v6097, %v6087
    %v7688 = vpack.c.b16 %v6108, %v6098
    %v7689 = vpack.c.b16 %v6109, %v6099
    %v7690 = vpack.c.b16 %v6110, %v6100
    %v7691 = vpack.c.b16 %v6111, %v6101
    %v7692 = vpack.c.b16 %v6112, %v6102
    %v7693 = vpack.c.b16 %v6113, %v6103
    %v7694 = vpack.c.b16 %v6114, %v6104
    %v7695 = vpack.c.b16 %v6115, %v6105
    %v7696 = vpack.c.b16 %v6116, %v6106
    %v7697 = vpack.c.b16 %v6117, %v6107
    %v7698 = vpack.c.b16 %v6128, %v6118
    %v7699 = vpack.c.b16 %v6129, %v6119
    %v7700 = vpack.c.b16 %v6130, %v6120
    %v7701 = vpack.c.b16 %v6131, %v6121
    %v7702 = vpack.c.b16 %v6132, %v6122
    %v7703 = vpack.c.b16 %v6133, %v6123
    %v7704 = vpack.c.b16 %v6134, %v6124
    %v7705 = vpack.c.b16 %v6135, %v6125
    %v7706 = vpack.c.b16 %v6136, %v6126
    %v7707 = vpack.c.b16 %v6137, %v6127
    %v7708 = vpack.c.b16 %v6148, %v6138
    %v7709 = vpack.c.b16 %v6149, %v6139
    %v7710 = vpack.c.b16 %v6150, %v6140
    %v7711 = vpack.c.b16 %v6151, %v6141
    %v7712 = vpack.c.b16 %v6152, %v6142
    %v7713 = vpack.c.b16 %v6153, %v6143
    %v7714 = vpack.c.b16 %v6154, %v6144
    %v7715 = vpack.c.b16 %v6155, %v6145
    %v7716 = vpack.c.b16 %v6156, %v6146
    %v7717 = vpack.c.b16 %v6157, %v6147
    %v7718 = vpack.c.b16 %v6168, %v6158
    %v7719 = vpack.c.b16 %v6169, %v6159
    %v7720 = vpack.c.b16 %v6170, %v6160
    %v7721 = vpack.c.b16 %v6171, %v6161
    %v7722 = vpack.c.b16 %v6172, %v6162
    %v7723 = vpack.c.b16 %v6173, %v6163
    %v7724 = vpack.c.b16 %v6174, %v6164
    %v7725 = vpack.c.b16 %v6175, %v6165
    %v7726 = vpack.c.b16 %v6176, %v6166
    %v7727 = vpack.c.b16 %v6177, %v6167
    %v7728 = vpack.c.b16 %v6188, %v6178
    %v7729 = vpack.c.b16 %v6189, %v6179
    %v7730 = vpack.c.b16 %v6190, %v6180
    %v7731 = vpack.c.b16 %v6191, %v6181
    %v7732 = vpack.c.b16 %v6192, %v6182
    %v7733 = vpack.c.b16 %v6193, %v6183
    %v7734 = vpack.c.b16 %v6194, %v6184
    %v7735 = vpack.c.b16 %v6195, %v6185
    %v7736 = vpack.c.b16 %v6196, %v6186
    %v7737 = vpack.c.b16 %v6197, %v6187
    %v7738 = vpack.c.b16 %v6208, %v6198
    %v7739 = vpack.c.b16 %v6209, %v6199
    %v7740 = vpack.c.b16 %v6210, %v6200
    %v7741 = vpack.c.b16 %v6211, %v6201
    %v7742 = vpack.c.b16 %v6212, %v6202
    %v7743 = vpack.c.b16 %v6213, %v6203
    %v7744 = vpack.c.b16 %v6214, %v6204
    %v7745 = vpack.c.b16 %v6215, %v6205
    %v7746 = vpack.c.b16 %v6216, %v6206
    %v7747 = vpack.c.b16 %v6217, %v6207
    %v7748 = vpack.c.b16 %v6228, %v6218
    %v7749 = vpack.c.b16 %v6229, %v6219
    %v7750 = vpack.c.b16 %v6230, %v6220
    %v7751 = vpack.c.b16 %v6231, %v6221
    %v7752 = vpack.c.b16 %v6232, %v6222
    %v7753 = vpack.c.b16 %v6233, %v6223
    %v7754 = vpack.c.b16 %v6234, %v6224
    %v7755 = vpack.c.b16 %v6235, %v6225
    %v7756 = vpack.c.b16 %v6236, %v6226
    %v7757 = vpack.c.b16 %v6237, %v6227
    %v7758 = vpack.c.b16 %v6248, %v6238
    %v7759 = vpack.c.b16 %v6249, %v6239
    %v7760 = vpack.c.b16 %v6250, %v6240
    %v7761 = vpack.c.b16 %v6251, %v6241
    %v7762 = vpack.c.b16 %v6252, %v6242
    %v7763 = vpack.c.b16 %v6253, %v6243
    %v7764 = vpack.c.b16 %v6254, %v6244
    %v7765 = vpack.c.b16 %v6255, %v6245
    %v7766 = vpack.c.b16 %v6256, %v6246
    %v7767 = vpack.c.b16 %v6257, %v6247
    %v7768 = vpack.c.b16 %v6268, %v6258
    %v7769 = vpack.c.b16 %v6269, %v6259
    %v7770 = vpack.c.b16 %v6270, %v6260
    %v7771 = vpack.c.b16 %v6271, %v6261
    %v7772 = vpack.c.b16 %v6272, %v6262
    %v7773 = vpack.c.b16 %v6273, %v6263
    %v7774 = vpack.c.b16 %v6274, %v6264
    %v7775 = vpack.c.b16 %v6275, %v6265
    %v7776 = vpack.c.b16 %v6276, %v6266
    %v7777 = vpack.c.b16 %v6277, %v6267
    %v7778 = vpack.c.b16 %v6288, %v6278
    %v7779 = vpack.c.b16 %v6289, %v6279
    %v7780 = vpack.c.b16 %v6290, %v6280
    %v7781 = vpack.c.b16 %v6291, %v6281
    %v7782 = vpack.c.b16 %v6292, %v6282
    %v7783 = vpack.c.b16 %v6293, %v6283
    %v7784 = vpack.c.b16 %v6294, %v6284
    %v7785 = vpack.c.b16 %v6295, %v6285
    %v7786 = vpack.c.b16 %v6296, %v6286
    %v7787 = vpack.c.b16 %v6297, %v6287
    %v7788 = vpack.c.b16 %v6308, %v6298
    %v7789 = vpack.c.b16 %v6309, %v6299
    %v7790 = vpack.c.b16 %v6310, %v6300
    %v7791 = vpack.c.b16 %v6311, %v6301
    %v7792 = vpack.c.b16 %v6312, %v6302
    %v7793 = vpack.c.b16 %v6313, %v6303
    %v7794 = vpack.c.b16 %v6314, %v6304
    %v7795 = vpack.c.b16 %v6315, %v6305
    %v7796 = vpack.c.b16 %v6316, %v6306
    %v7797 = vpack.c.b16 %v6317, %v6307
    %v7798 = vpack.c.b16 %v6328, %v6318
    %v7799 = vpack.c.b16 %v6329, %v6319
    %v7800 = vpack.c.b16 %v6330, %v6320
    %v7801 = vpack.c.b16 %v6331, %v6321
    %v7802 = vpack.c.b16 %v6332, %v6322
    %v7803 = vpack.c.b16 %v6333, %v6323
    %v7804 = vpack.c.b16 %v6334, %v6324
    %v7805 = vpack.c.b16 %v6335, %v6325
    %v7806 = vpack.c.b16 %v6336, %v6326
    %v7807 = vpack.c.b16 %v6337, %v6327
    %v7808 = vpack.c.b16 %v6348, %v6338
    %v7809 = vpack.c.b16 %v6349, %v6339
    %v7810 = vpack.c.b16 %v6350, %v6340
    %v7811 = vpack.c.b16 %v6351, %v6341
    %v7812 = vpack.c.b16 %v6352, %v6342
    %v7813 = vpack.c.b16 %v6353, %v6343
    %v7814 = vpack.c.b16 %v6354, %v6344
    %v7815 = vpack.c.b16 %v6355, %v6345
    %v7816 = vpack.c.b16 %v6356, %v6346
    %v7817 = vpack.c.b16 %v6357, %v6347
    %v7818 = vpack.c.b16 %v6368, %v6358
    %v7819 = vpack.c.b16 %v6369, %v6359
    %v7820 = vpack.c.b16 %v6370, %v6360
    %v7821 = vpack.c.b16 %v6371, %v6361
    %v7822 = vpack.c.b16 %v6372, %v6362
    %v7823 = vpack.c.b16 %v6373, %v6363
    %v7824 = vpack.c.b16 %v6374, %v6364
    %v7825 = vpack.c.b16 %v6375, %v6365
    %v7826 = vpack.c.b16 %v6376, %v6366
    %v7827 = vpack.c.b16 %v6377, %v6367
    %v7828 = vpack.c.b16 %v6388, %v6378
    %v7829 = vpack.c.b16 %v6389, %v6379
    %v7830 = vpack.c.b16 %v6390, %v6380
    %v7831 = vpack.c.b16 %v6391, %v6381
    %v7832 = vpack.c.b16 %v6392, %v6382
    %v7833 = vpack.c.b16 %v6393, %v6383
    %v7834 = vpack.c.b16 %v6394, %v6384
    %v7835 = vpack.c.b16 %v6395, %v6385
    %v7836 = vpack.c.b16 %v6396, %v6386
    %v7837 = vpack.c.b16 %v6397, %v6387
    %v7838 = vpack.c.b16 %v6408, %v6398
    %v7839 = vpack.c.b16 %v6409, %v6399
    %v7840 = vpack.c.b16 %v6410, %v6400
    %v7841 = vpack.c.b16 %v6411, %v6401
    %v7842 = vpack.c.b16 %v6412, %v6402
    %v7843 = vpack.c.b16 %v6413, %v6403
    %v7844 = vpack.c.b16 %v6414, %v6404
    %v7845 = vpack.c.b16 %v6415, %v6405
    %v7846 = vpack.c.b16 %v6416, %v6406
    %v7847 = vpack.c.b16 %v6417, %v6407
    %v7848 = vpack.c.b16 %v6428, %v6418
    %v7849 = vpack.c.b16 %v6429, %v6419
    %v7850 = vpack.c.b16 %v6430, %v6420
    %v7851 = vpack.c.b16 %v6431, %v6421
    %v7852 = vpack.c.b16 %v6432, %v6422
    %v7853 = vpack.c.b16 %v6433, %v6423
    %v7854 = vpack.c.b16 %v6434, %v6424
    %v7855 = vpack.c.b16 %v6435, %v6425
    %v7856 = vpack.c.b16 %v6436, %v6426
    %v7857 = vpack.c.b16 %v6437, %v6427
    %v7858 = vpack.c.b16 %v6448, %v6438
    %v7859 = vpack.c.b16 %v6449, %v6439
    %v7860 = vpack.c.b16 %v6450, %v6440
    %v7861 = vpack.c.b16 %v6451, %v6441
    %v7862 = vpack.c.b16 %v6452, %v6442
    %v7863 = vpack.c.b16 %v6453, %v6443
    %v7864 = vpack.c.b16 %v6454, %v6444
    %v7865 = vpack.c.b16 %v6455, %v6445
    %v7866 = vpack.c.b16 %v6456, %v6446
    %v7867 = vpack.c.b16 %v6457, %v6447
    %v7868 = vpack.c.b16 %v6468, %v6458
    %v7869 = vpack.c.b16 %v6469, %v6459
    %v7870 = vpack.c.b16 %v6470, %v6460
    %v7871 = vpack.c.b16 %v6471, %v6461
    %v7872 = vpack.c.b16 %v6472, %v6462
    %v7873 = vpack.c.b16 %v6473, %v6463
    %v7874 = vpack.c.b16 %v6474, %v6464
    %v7875 = vpack.c.b16 %v6475, %v6465
    %v7876 = vpack.c.b16 %v6476, %v6466
    %v7877 = vpack.c.b16 %v6477, %v6467
    %v7878 = vpack.c.b16 %v6488, %v6478
    %v7879 = vpack.c.b16 %v6489, %v6479
    %v7880 = vpack.c.b16 %v6490, %v6480
    %v7881 = vpack.c.b16 %v6491, %v6481
    %v7882 = vpack.c.b16 %v6492, %v6482
    %v7883 = vpack.c.b16 %v6493, %v6483
    %v7884 = vpack.c.b16 %v6494, %v6484
    %v7885 = vpack.c.b16 %v6495, %v6485
    %v7886 = vpack.c.b16 %v6496, %v6486
    %v7887 = vpack.c.b16 %v6497, %v6487
    %v7888 = vpack.c.b16 %v6508, %v6498
    %v7889 = vpack.c.b16 %v6509, %v6499
    %v7890 = vpack.c.b16 %v6510, %v6500
    %v7891 = vpack.c.b16 %v6511, %v6501
    %v7892 = vpack.c.b16 %v6512, %v6502
    %v7893 = vpack.c.b16 %v6513, %v6503
    %v7894 = vpack.c.b16 %v6514, %v6504
    %v7895 = vpack.c.b16 %v6515, %v6505
    %v7896 = vpack.c.b16 %v6516, %v6506
    %v7897 = vpack.c.b16 %v6517, %v6507
    %v7898 = vpack.c.b16 %v6528, %v6518
    %v7899 = vpack.c.b16 %v6529, %v6519
    %v7900 = vpack.c.b16 %v6530, %v6520
    %v7901 = vpack.c.b16 %v6531, %v6521
    %v7902 = vpack.c.b16 %v6532, %v6522
    %v7903 = vpack.c.b16 %v6533, %v6523
    %v7904 = vpack.c.b16 %v6534, %v6524
    %v7905 = vpack.c.b16 %v6535, %v6525
    %v7906 = vpack.c.b16 %v6536, %v6526
    %v7907 = vpack.c.b16 %v6537, %v6527
    %v7908 = vpack.c.b16 %v6548, %v6538
    %v7909 = vpack.c.b16 %v6549, %v6539
    %v7910 = vpack.c.b16 %v6550, %v6540
    %v7911 = vpack.c.b16 %v6551, %v6541
    %v7912 = vpack.c.b16 %v6552, %v6542
    %v7913 = vpack.c.b16 %v6553, %v6543
    %v7914 = vpack.c.b16 %v6554, %v6544
    %v7915 = vpack.c.b16 %v6555, %v6545
    %v7916 = vpack.c.b16 %v6556, %v6546
    %v7917 = vpack.c.b16 %v6557, %v6547
    %v7918 = vpack.c.b16 %v6568, %v6558
    %v7919 = vpack.c.b16 %v6569, %v6559
    %v7920 = vpack.c.b16 %v6570, %v6560
    %v7921 = vpack.c.b16 %v6571, %v6561
    %v7922 = vpack.c.b16 %v6572, %v6562
    %v7923 = vpack.c.b16 %v6573, %v6563
    %v7924 = vpack.c.b16 %v6574, %v6564
    %v7925 = vpack.c.b16 %v6575, %v6565
    %v7926 = vpack.c.b16 %v6576, %v6566
    %v7927 = vpack.c.b16 %v6577, %v6567
    %v7928 = vpack.c.b16 %v6588, %v6578
    %v7929 = vpack.c.b16 %v6589, %v6579
    %v7930 = vpack.c.b16 %v6590, %v6580
    %v7931 = vpack.c.b16 %v6591, %v6581
    %v7932 = vpack.c.b16 %v6592, %v6582
    %v7933 = vpack.c.b16 %v6593, %v6583
    %v7934 = vpack.c.b16 %v6594, %v6584
    %v7935 = vpack.c.b16 %v6595, %v6585
    %v7936 = vpack.c.b16 %v6596, %v6586
    %v7937 = vpack.c.b16 %v6597, %v6587
    %v7938 = vpack.c.b16 %v6608, %v6598
    %v7939 = vpack.c.b16 %v6609, %v6599
    %v7940 = vpack.c.b16 %v6610, %v6600
    %v7941 = vpack.c.b16 %v6611, %v6601
    %v7942 = vpack.c.b16 %v6612, %v6602
    %v7943 = vpack.c.b16 %v6613, %v6603
    %v7944 = vpack.c.b16 %v6614, %v6604
    %v7945 = vpack.c.b16 %v6615, %v6605
    %v7946 = vpack.c.b16 %v6616, %v6606
    %v7947 = vpack.c.b16 %v6617, %v6607
    %v7948 = vpack.c.b16 %v6628, %v6618
    %v7949 = vpack.c.b16 %v6629, %v6619
    %v7950 = vpack.c.b16 %v6630, %v6620
    %v7951 = vpack.c.b16 %v6631, %v6621
    %v7952 = vpack.c.b16 %v6632, %v6622
    %v7953 = vpack.c.b16 %v6633, %v6623
    %v7954 = vpack.c.b16 %v6634, %v6624
    %v7955 = vpack.c.b16 %v6635, %v6625
    %v7956 = vpack.c.b16 %v6636, %v6626
    %v7957 = vpack.c.b16 %v6637, %v6627
    %v7958 = vpack.c.b16 %v6648, %v6638
    %v7959 = vpack.c.b16 %v6649, %v6639
    %v7960 = vpack.c.b16 %v6650, %v6640
    %v7961 = vpack.c.b16 %v6651, %v6641
    %v7962 = vpack.c.b16 %v6652, %v6642
    %v7963 = vpack.c.b16 %v6653, %v6643
    %v7964 = vpack.c.b16 %v6654, %v6644
    %v7965 = vpack.c.b16 %v6655, %v6645
    %v7966 = vpack.c.b16 %v6656, %v6646
    %v7967 = vpack.c.b16 %v6657, %v6647
    %v7968 = vpack.c.b16 %v6668, %v6658
    %v7969 = vpack.c.b16 %v6669, %v6659
    %v7970 = vpack.c.b16 %v6670, %v6660
    %v7971 = vpack.c.b16 %v6671, %v6661
    %v7972 = vpack.c.b16 %v6672, %v6662
    %v7973 = vpack.c.b16 %v6673, %v6663
    %v7974 = vpack.c.b16 %v6674, %v6664
    %v7975 = vpack.c.b16 %v6675, %v6665
    %v7976 = vpack.c.b16 %v6676, %v6666
    %v7977 = vpack.c.b16 %v6677, %v6667
    %v7978 = vpack.c.b16 %v6688, %v6678
    %v7979 = vpack.c.b16 %v6689, %v6679
    %v7980 = vpack.c.b16 %v6690, %v6680
    %v7981 = vpack.c.b16 %v6691, %v6681
    %v7982 = vpack.c.b16 %v6692, %v6682
    %v7983 = vpack.c.b16 %v6693, %v6683
    %v7984 = vpack.c.b16 %v6694, %v6684
    %v7985 = vpack.c.b16 %v6695, %v6685
    %v7986 = vpack.c.b16 %v6696, %v6686
    %v7987 = vpack.c.b16 %v6697, %v6687
    %v7988 = vpack.c.b16 %v6708, %v6698
    %v7989 = vpack.c.b16 %v6709, %v6699
    %v7990 = vpack.c.b16 %v6710, %v6700
    %v7991 = vpack.c.b16 %v6711, %v6701
    %v7992 = vpack.c.b16 %v6712, %v6702
    %v7993 = vpack.c.b16 %v6713, %v6703
    %v7994 = vpack.c.b16 %v6714, %v6704
    %v7995 = vpack.c.b16 %v6715, %v6705
    %v7996 = vpack.c.b16 %v6716, %v6706
    %v7997 = vpack.c.b16 %v6717, %v6707
    %v7998 = vpack.c.b16 %v6728, %v6718
    %v7999 = vpack.c.b16 %v6729, %v6719
    %v8000 = vpack.c.b16 %v6730, %v6720
    %v8001 = vpack.c.b16 %v6731, %v6721
    %v8002 = vpack.c.b16 %v6732, %v6722
    %v8003 = vpack.c.b16 %v6733, %v6723
    %v8004 = vpack.c.b16 %v6734, %v6724
    %v8005 = vpack.c.b16 %v6735, %v6725
    %v8006 = vpack.c.b16 %v6736, %v6726
    %v8007 = vpack.c.b16 %v6737, %v6727
    %v8008 = vpack.c.b16 %v6748, %v6738
    %v8009 = vpack.c.b16 %v6749, %v6739
    %v8010 = vpack.c.b16 %v6750, %v6740
    %v8011 = vpack.c.b16 %v6751, %v6741
    %v8012 = vpack.c.b16 %v6752, %v6742
    %v8013 = vpack.c.b16 %v6753, %v6743
    %v8014 = vpack.c.b16 %v6754, %v6744
    %v8015 = vpack.c.b16 %v6755, %v6745
    %v8016 = vpack.c.b16 %v6756, %v6746
    %v8017 = vpack.c.b16 %v6757, %v6747
    %v8018 = vpack.c.b16 %v6768, %v6758
    %v8019 = vpack.c.b16 %v6769, %v6759
    %v8020 = vpack.c.b16 %v6770, %v6760
    %v8021 = vpack.c.b16 %v6771, %v6761
    %v8022 = vpack.c.b16 %v6772, %v6762
    %v8023 = vpack.c.b16 %v6773, %v6763
    %v8024 = vpack.c.b16 %v6774, %v6764
    %v8025 = vpack.c.b16 %v6775, %v6765
    %v8026 = vpack.c.b16 %v6776, %v6766
    %v8027 = vpack.c.b16 %v6777, %v6767
    %v8028 = vpack.c.b16 %v6788, %v6778
    %v8029 = vpack.c.b16 %v6789, %v6779
    %v8030 = vpack.c.b16 %v6790, %v6780
    %v8031 = vpack.c.b16 %v6791, %v6781
    %v8032 = vpack.c.b16 %v6792, %v6782
    %v8033 = vpack.c.b16 %v6793, %v6783
    %v8034 = vpack.c.b16 %v6794, %v6784
    %v8035 = vpack.c.b16 %v6795, %v6785
    %v8036 = vpack.c.b16 %v6796, %v6786
    %v8037 = vpack.c.b16 %v6797, %v6787
    %v8038 = vpack.c.b16 %v6808, %v6798
    %v8039 = vpack.c.b16 %v6809, %v6799
    %v8040 = vpack.c.b16 %v6810, %v6800
    %v8041 = vpack.c.b16 %v6811, %v6801
    %v8042 = vpack.c.b16 %v6812, %v6802
    %v8043 = vpack.c.b16 %v6813, %v6803
    %v8044 = vpack.c.b16 %v6814, %v6804
    %v8045 = vpack.c.b16 %v6815, %v6805
    %v8046 = vpack.c.b16 %v6816, %v6806
    %v8047 = vpack.c.b16 %v6817, %v6807
    %v8048 = vpack.c.b16 %v6828, %v6818
    %v8049 = vpack.c.b16 %v6829, %v6819
    %v8050 = vpack.c.b16 %v6830, %v6820
    %v8051 = vpack.c.b16 %v6831, %v6821
    %v8052 = vpack.c.b16 %v6832, %v6822
    %v8053 = vpack.c.b16 %v6833, %v6823
    %v8054 = vpack.c.b16 %v6834, %v6824
    %v8055 = vpack.c.b16 %v6835, %v6825
    %v8056 = vpack.c.b16 %v6836, %v6826
    %v8057 = vpack.c.b16 %v6837, %v6827
    %v8058 = vpack.c.b16 %v6848, %v6838
    %v8059 = vpack.c.b16 %v6849, %v6839
    %v8060 = vpack.c.b16 %v6850, %v6840
    %v8061 = vpack.c.b16 %v6851, %v6841
    %v8062 = vpack.c.b16 %v6852, %v6842
    %v8063 = vpack.c.b16 %v6853, %v6843
    %v8064 = vpack.c.b16 %v6854, %v6844
    %v8065 = vpack.c.b16 %v6855, %v6845
    %v8066 = vpack.c.b16 %v6856, %v6846
    %v8067 = vpack.c.b16 %v6857, %v6847
    %v8068 = vpack.c.b16 %v6868, %v6858
    %v8069 = vpack.c.b16 %v6869, %v6859
    %v8070 = vpack.c.b16 %v6870, %v6860
    %v8071 = vpack.c.b16 %v6871, %v6861
    %v8072 = vpack.c.b16 %v6872, %v6862
    %v8073 = vpack.c.b16 %v6873, %v6863
    %v8074 = vpack.c.b16 %v6874, %v6864
    %v8075 = vpack.c.b16 %v6875, %v6865
    %v8076 = vpack.c.b16 %v6876, %v6866
    %v8077 = vpack.c.b16 %v6877, %v6867
    %v8078 = vpack.c.b16 %v6888, %v6878
    %v8079 = vpack.c.b16 %v6889, %v6879
    %v8080 = vpack.c.b16 %v6890, %v6880
    %v8081 = vpack.c.b16 %v6891, %v6881
    %v8082 = vpack.c.b16 %v6892, %v6882
    %v8083 = vpack.c.b16 %v6893, %v6883
    %v8084 = vpack.c.b16 %v6894, %v6884
    %v8085 = vpack.c.b16 %v6895, %v6885
    %v8086 = vpack.c.b16 %v6896, %v6886
    %v8087 = vpack.c.b16 %v6897, %v6887
    %v8088 = vpack.c.b16 %v6908, %v6898
    %v8089 = vpack.c.b16 %v6909, %v6899
    %v8090 = vpack.c.b16 %v6910, %v6900
    %v8091 = vpack.c.b16 %v6911, %v6901
    %v8092 = vpack.c.b16 %v6912, %v6902
    %v8093 = vpack.c.b16 %v6913, %v6903
    %v8094 = vpack.c.b16 %v6914, %v6904
    %v8095 = vpack.c.b16 %v6915, %v6905
    %v8096 = vpack.c.b16 %v6916, %v6906
    %v8097 = vpack.c.b16 %v6917, %v6907
    %v8098 = vpack.c.b16 %v6928, %v6918
    %v8099 = vpack.c.b16 %v6929, %v6919
    %v8100 = vpack.c.b16 %v6930, %v6920
    %v8101 = vpack.c.b16 %v6931, %v6921
    %v8102 = vpack.c.b16 %v6932, %v6922
    %v8103 = vpack.c.b16 %v6933, %v6923
    %v8104 = vpack.c.b16 %v6934, %v6924
    %v8105 = vpack.c.b16 %v6935, %v6925
    %v8106 = vpack.c.b16 %v6936, %v6926
    %v8107 = vpack.c.b16 %v6937, %v6927
    %v8108 = vpack.c.b16 %v6948, %v6938
    %v8109 = vpack.c.b16 %v6949, %v6939
    %v8110 = vpack.c.b16 %v6950, %v6940
    %v8111 = vpack.c.b16 %v6951, %v6941
    %v8112 = vpack.c.b16 %v6952, %v6942
    %v8113 = vpack.c.b16 %v6953, %v6943
    %v8114 = vpack.c.b16 %v6954, %v6944
    %v8115 = vpack.c.b16 %v6955, %v6945
    %v8116 = vpack.c.b16 %v6956, %v6946
    %v8117 = vpack.c.b16 %v6957, %v6947
    %v8118 = vpack.c.b16 %v6968, %v6958
    %v8119 = vpack.c.b16 %v6969, %v6959
    %v8120 = vpack.c.b16 %v6970, %v6960
    %v8121 = vpack.c.b16 %v6971, %v6961
    %v8122 = vpack.c.b16 %v6972, %v6962
    %v8123 = vpack.c.b16 %v6973, %v6963
    %v8124 = vpack.c.b16 %v6974, %v6964
    %v8125 = vpack.c.b16 %v6975, %v6965
    %v8126 = vpack.c.b16 %v6976, %v6966
    %v8127 = vpack.c.b16 %v6977, %v6967
    %v8128 = vpack.c.b16 %v6988, %v6978
    %v8129 = vpack.c.b16 %v6989, %v6979
    %v8130 = vpack.c.b16 %v6990, %v6980
    %v8131 = vpack.c.b16 %v6991, %v6981
    %v8132 = vpack.c.b16 %v6992, %v6982
    %v8133 = vpack.c.b16 %v6993, %v6983
    %v8134 = vpack.c.b16 %v6994, %v6984
    %v8135 = vpack.c.b16 %v6995, %v6985
    %v8136 = vpack.c.b16 %v6996, %v6986
    %v8137 = vpack.c.b16 %v6997, %v6987
    %v8138 = vpack.c.b16 %v7008, %v6998
    %v8139 = vpack.c.b16 %v7009, %v6999
    %v8140 = vpack.c.b16 %v7010, %v7000
    %v8141 = vpack.c.b16 %v7011, %v7001
    %v8142 = vpack.c.b16 %v7012, %v7002
    %v8143 = vpack.c.b16 %v7013, %v7003
    %v8144 = vpack.c.b16 %v7014, %v7004
    %v8145 = vpack.c.b16 %v7015, %v7005
    %v8146 = vpack.c.b16 %v7016, %v7006
    %v8147 = vpack.c.b16 %v7017, %v7007
    %v8148 = vpack.c.b16 %v7028, %v7018
    %v8149 = vpack.c.b16 %v7029, %v7019
    %v8150 = vpack.c.b16 %v7030, %v7020
    %v8151 = vpack.c.b16 %v7031, %v7021
    %v8152 = vpack.c.b16 %v7032, %v7022
    %v8153 = vpack.c.b16 %v7033, %v7023
    %v8154 = vpack.c.b16 %v7034, %v7024
    %v8155 = vpack.c.b16 %v7035, %v7025
    %v8156 = vpack.c.b16 %v7036, %v7026
    %v8157 = vpack.c.b16 %v7037, %v7027
    %v8158 = vpack.c.b16 %v7048, %v7038
    %v8159 = vpack.c.b16 %v7049, %v7039
    %v8160 = vpack.c.b16 %v7050, %v7040
    %v8161 = vpack.c.b16 %v7051, %v7041
    %v8162 = vpack.c.b16 %v7052, %v7042
    %v8163 = vpack.c.b16 %v7053, %v7043
    %v8164 = vpack.c.b16 %v7054, %v7044
    %v8165 = vpack.c.b16 %v7055, %v7045
    %v8166 = vpack.c.b16 %v7056, %v7046
    %v8167 = vpack.c.b16 %v7057, %v7047
    %v8168 = vpack.c.b16 %v7068, %v7058
    %v8169 = vpack.c.b16 %v7069, %v7059
    %v8170 = vpack.c.b16 %v7070, %v7060
    %v8171 = vpack.c.b16 %v7071, %v7061
    %v8172 = vpack.c.b16 %v7072, %v7062
    %v8173 = vpack.c.b16 %v7073, %v7063
    %v8174 = vpack.c.b16 %v7074, %v7064
    %v8175 = vpack.c.b16 %v7075, %v7065
    %v8176 = vpack.c.b16 %v7076, %v7066
    %v8177 = vpack.c.b16 %v7077, %v7067
    %v8178 = vpack.c.b16 %v7088, %v7078
    %v8179 = vpack.c.b16 %v7089, %v7079
    %v8180 = vpack.c.b16 %v7090, %v7080
    %v8181 = vpack.c.b16 %v7091, %v7081
    %v8182 = vpack.c.b16 %v7092, %v7082
    %v8183 = vpack.c.b16 %v7093, %v7083
    %v8184 = vpack.c.b16 %v7094, %v7084
    %v8185 = vpack.c.b16 %v7095, %v7085
    %v8186 = vpack.c.b16 %v7096, %v7086
    %v8187 = vpack.c.b16 %v7097, %v7087
    %v8188 = vpack.c.b16 %v7108, %v7098
    %v8189 = vpack.c.b16 %v7109, %v7099
    %v8190 = vpack.c.b16 %v7110, %v7100
    %v8191 = vpack.c.b16 %v7111, %v7101
    %v8192 = vpack.c.b16 %v7112, %v7102
    %v8193 = vpack.c.b16 %v7113, %v7103
    %v8194 = vpack.c.b16 %v7114, %v7104
    %v8195 = vpack.c.b16 %v7115, %v7105
    %v8196 = vpack.c.b16 %v7116, %v7106
    %v8197 = vpack.c.b16 %v7117, %v7107
    %v8198 = vpack.c.b16 %v7128, %v7118
    %v8199 = vpack.c.b16 %v7129, %v7119
    %v8200 = vpack.c.b16 %v7130, %v7120
    %v8201 = vpack.c.b16 %v7131, %v7121
    %v8202 = vpack.c.b16 %v7132, %v7122
    %v8203 = vpack.c.b16 %v7133, %v7123
    %v8204 = vpack.c.b16 %v7134, %v7124
    %v8205 = vpack.c.b16 %v7135, %v7125
    %v8206 = vpack.c.b16 %v7136, %v7126
    %v8207 = vpack.c.b16 %v7137, %v7127
    %v8208 = vpack.c.b16 %v7148, %v7138
    %v8209 = vpack.c.b16 %v7149, %v7139
    %v8210 = vpack.c.b16 %v7150, %v7140
    %v8211 = vpack.c.b16 %v7151, %v7141
    %v8212 = vpack.c.b16 %v7152, %v7142
    %v8213 = vpack.c.b16 %v7153, %v7143
    %v8214 = vpack.c.b16 %v7154, %v7144
    %v8215 = vpack.c.b16 %v7155, %v7145
    %v8216 = vpack.c.b16 %v7156, %v7146
    %v8217 = vpack.c.b16 %v7157, %v7147
    %v8218 = vpack.c.b16 %v7168, %v7158
    %v8219 = vpack.c.b16 %v7169, %v7159
    %v8220 = vpack.c.b16 %v7170, %v7160
    %v8221 = vpack.c.b16 %v7171, %v7161
    %v8222 = vpack.c.b16 %v7172, %v7162
    %v8223 = vpack.c.b16 %v7173, %v7163
    %v8224 = vpack.c.b16 %v7174, %v7164
    %v8225 = vpack.c.b16 %v7175, %v7165
    %v8226 = vpack.c.b16 %v7176, %v7166
    %v8227 = vpack.c.b16 %v7177, %v7167
    %v8228 = vpack.c.b16 %v7188, %v7178
    %v8229 = vpack.c.b16 %v7189, %v7179
    %v8230 = vpack.c.b16 %v7190, %v7180
    %v8231 = vpack.c.b16 %v7191, %v7181
    %v8232 = vpack.c.b16 %v7192, %v7182
    %v8233 = vpack.c.b16 %v7193, %v7183
    %v8234 = vpack.c.b16 %v7194, %v7184
    %v8235 = vpack.c.b16 %v7195, %v7185
    %v8236 = vpack.c.b16 %v7196, %v7186
    %v8237 = vpack.c.b16 %v7197, %v7187
    %v8238 = vpack.c.b16 %v7208, %v7198
    %v8239 = vpack.c.b16 %v7209, %v7199
    %v8240 = vpack.c.b16 %v7210, %v7200
    %v8241 = vpack.c.b16 %v7211, %v7201
    %v8242 = vpack.c.b16 %v7212, %v7202
    %v8243 = vpack.c.b16 %v7213, %v7203
    %v8244 = vpack.c.b16 %v7214, %v7204
    %v8245 = vpack.c.b16 %v7215, %v7205
    %v8246 = vpack.c.b16 %v7216, %v7206
    %v8247 = vpack.c.b16 %v7217, %v7207
    %v8248 = vpack.c.b16 %v7228, %v7218
    %v8249 = vpack.c.b16 %v7229, %v7219
    %v8250 = vpack.c.b16 %v7230, %v7220
    %v8251 = vpack.c.b16 %v7231, %v7221
    %v8252 = vpack.c.b16 %v7232, %v7222
    %v8253 = vpack.c.b16 %v7233, %v7223
    %v8254 = vpack.c.b16 %v7234, %v7224
    %v8255 = vpack.c.b16 %v7235, %v7225
    %v8256 = vpack.c.b16 %v7236, %v7226
    %v8257 = vpack.c.b16 %v7237, %v7227
    %v8258 = vpack.c.b16 %v7248, %v7238
    %v8259 = vpack.c.b16 %v7249, %v7239
    %v8260 = vpack.c.b16 %v7250, %v7240
    %v8261 = vpack.c.b16 %v7251, %v7241
    %v8262 = vpack.c.b16 %v7252, %v7242
    %v8263 = vpack.c.b16 %v7253, %v7243
    %v8264 = vpack.c.b16 %v7254, %v7244
    %v8265 = vpack.c.b16 %v7255, %v7245
    %v8266 = vpack.c.b16 %v7256, %v7246
    %v8267 = vpack.c.b16 %v7257, %v7247
    %v8268 = vpack.c.b16 %v7268, %v7258
    %v8269 = vpack.c.b16 %v7269, %v7259
    %v8270 = vpack.c.b16 %v7270, %v7260
    %v8271 = vpack.c.b16 %v7271, %v7261
    %v8272 = vpack.c.b16 %v7272, %v7262
    %v8273 = vpack.c.b16 %v7273, %v7263
    %v8274 = vpack.c.b16 %v7274, %v7264
    %v8275 = vpack.c.b16 %v7275, %v7265
    %v8276 = vpack.c.b16 %v7276, %v7266
    %v8277 = vpack.c.b16 %v7277, %v7267
    %v8278 = vpack.c.b16 %v7288, %v7278
    %v8279 = vpack.c.b16 %v7289, %v7279
    %v8280 = vpack.c.b16 %v7290, %v7280
    %v8281 = vpack.c.b16 %v7291, %v7281
    %v8282 = vpack.c.b16 %v7292, %v7282
    %v8283 = vpack.c.b16 %v7293, %v7283
    %v8284 = vpack.c.b16 %v7294, %v7284
    %v8285 = vpack.c.b16 %v7295, %v7285
    %v8286 = vpack.c.b16 %v7296, %v7286
    %v8287 = vpack.c.b16 %v7297, %v7287
    %v8288 = vpack.c.b16 %v7308, %v7298
    %v8289 = vpack.c.b16 %v7309, %v7299
    %v8290 = vpack.c.b16 %v7310, %v7300
    %v8291 = vpack.c.b16 %v7311, %v7301
    %v8292 = vpack.c.b16 %v7312, %v7302
    %v8293 = vpack.c.b16 %v7313, %v7303
    %v8294 = vpack.c.b16 %v7314, %v7304
    %v8295 = vpack.c.b16 %v7315, %v7305
    %v8296 = vpack.c.b16 %v7316, %v7306
    %v8297 = vpack.c.b16 %v7317, %v7307
    %v8298 = vpack.c.b16 %v7328, %v7318
    %v8299 = vpack.c.b16 %v7329, %v7319
    %v8300 = vpack.c.b16 %v7330, %v7320
    %v8301 = vpack.c.b16 %v7331, %v7321
    %v8302 = vpack.c.b16 %v7332, %v7322
    %v8303 = vpack.c.b16 %v7333, %v7323
    %v8304 = vpack.c.b16 %v7334, %v7324
    %v8305 = vpack.c.b16 %v7335, %v7325
    %v8306 = vpack.c.b16 %v7336, %v7326
    %v8307 = vpack.c.b16 %v7337, %v7327
    %v8308 = vpack.c.b16 %v7348, %v7338
    %v8309 = vpack.c.b16 %v7349, %v7339
    %v8310 = vpack.c.b16 %v7350, %v7340
    %v8311 = vpack.c.b16 %v7351, %v7341
    %v8312 = vpack.c.b16 %v7352, %v7342
    %v8313 = vpack.c.b16 %v7353, %v7343
    %v8314 = vpack.c.b16 %v7354, %v7344
    %v8315 = vpack.c.b16 %v7355, %v7345
    %v8316 = vpack.c.b16 %v7356, %v7346
    %v8317 = vpack.c.b16 %v7357, %v7347
    %v8318 = vpack.c.b16 %v7368, %v7358
    %v8319 = vpack.c.b16 %v7369, %v7359
    %v8320 = vpack.c.b16 %v7370, %v7360
    %v8321 = vpack.c.b16 %v7371, %v7361
    %v8322 = vpack.c.b16 %v7372, %v7362
    %v8323 = vpack.c.b16 %v7373, %v7363
    %v8324 = vpack.c.b16 %v7374, %v7364
    %v8325 = vpack.c.b16 %v7375, %v7365
    %v8326 = vpack.c.b16 %v7376, %v7366
    %v8327 = vpack.c.b16 %v7377, %v7367
    %v8328 = vpack.c.b16 %v7388, %v7378
    %v8329 = vpack.c.b16 %v7389, %v7379
    %v8330 = vpack.c.b16 %v7390, %v7380
    %v8331 = vpack.c.b16 %v7391, %v7381
    %v8332 = vpack.c.b16 %v7392, %v7382
    %v8333 = vpack.c.b16 %v7393, %v7383
    %v8334 = vpack.c.b16 %v7394, %v7384
    %v8335 = vpack.c.b16 %v7395, %v7385
    %v8336 = vpack.c.b16 %v7396, %v7386
    %v8337 = vpack.c.b16 %v7397, %v7387
    %v8338 = vpack.c.b16 %v7408, %v7398
    %v8339 = vpack.c.b16 %v7409, %v7399
    %v8340 = vpack.c.b16 %v7410, %v7400
    %v8341 = vpack.c.b16 %v7411, %v7401
    %v8342 = vpack.c.b16 %v7412, %v7402
    %v8343 = vpack.c.b16 %v7413, %v7403
    %v8344 = vpack.c.b16 %v7414, %v7404
    %v8345 = vpack.c.b16 %v7415, %v7405
    %v8346 = vpack.c.b16 %v7416, %v7406
    %v8347 = vpack.c.b16 %v7417, %v7407
    %v8348 = vpack.c.b16 %v7428, %v7418
    %v8349 = vpack.c.b16 %v7429, %v7419
    %v8350 = vpack.c.b16 %v7430, %v7420
    %v8351 = vpack.c.b16 %v7431, %v7421
    %v8352 = vpack.c.b16 %v7432, %v7422
    %v8353 = vpack.c.b16 %v7433, %v7423
    %v8354 = vpack.c.b16 %v7434, %v7424
    %v8355 = vpack.c.b16 %v7435, %v7425
    %v8356 = vpack.c.b16 %v7436, %v7426
    %v8357 = vpack.c.b16 %v7437, %v7427
    %v8358 = vpack.c.b16 %v7448, %v7438
    %v8359 = vpack.c.b16 %v7449, %v7439
    %v8360 = vpack.c.b16 %v7450, %v7440
    %v8361 = vpack.c.b16 %v7451, %v7441
    %v8362 = vpack.c.b16 %v7452, %v7442
    %v8363 = vpack.c.b16 %v7453, %v7443
    %v8364 = vpack.c.b16 %v7454, %v7444
    %v8365 = vpack.c.b16 %v7455, %v7445
    %v8366 = vpack.c.b16 %v7456, %v7446
    %v8367 = vpack.c.b16 %v7457, %v7447
    %v8368 = vpack.c.b16 %v7468, %v7458
    %v8369 = vpack.c.b16 %v7469, %v7459
    %v8370 = vpack.c.b16 %v7470, %v7460
    %v8371 = vpack.c.b16 %v7471, %v7461
    %v8372 = vpack.c.b16 %v7472, %v7462
    %v8373 = vpack.c.b16 %v7473, %v7463
    %v8374 = vpack.c.b16 %v7474, %v7464
    %v8375 = vpack.c.b16 %v7475, %v7465
    %v8376 = vpack.c.b16 %v7476, %v7466
    %v8377 = vpack.c.b16 %v7477, %v7467
    %v8378 = vpack.c.b16 %v7488, %v7478
    %v8379 = vpack.c.b16 %v7489, %v7479
    %v8380 = vpack.c.b16 %v7490, %v7480
    %v8381 = vpack.c.b16 %v7491, %v7481
    %v8382 = vpack.c.b16 %v7492, %v7482
    %v8383 = vpack.c.b16 %v7493, %v7483
    %v8384 = vpack.c.b16 %v7494, %v7484
    %v8385 = vpack.c.b16 %v7495, %v7485
    %v8386 = vpack.c.b16 %v7496, %v7486
    %v8387 = vpack.c.b16 %v7497, %v7487
    %v8388 = vpack.c.b16 %v7508, %v7498
    %v8389 = vpack.c.b16 %v7509, %v7499
    %v8390 = vpack.c.b16 %v7510, %v7500
    %v8391 = vpack.c.b16 %v7511, %v7501
    %v8392 = vpack.c.b16 %v7512, %v7502
    %v8393 = vpack.c.b16 %v7513, %v7503
    %v8394 = vpack.c.b16 %v7514, %v7504
    %v8395 = vpack.c.b16 %v7515, %v7505
    %v8396 = vpack.c.b16 %v7516, %v7506
    %v8397 = vpack.c.b16 %v7517, %v7507
    %v8398 = vpack.c.b16 %v7528, %v7518
    %v8399 = vpack.c.b16 %v7529, %v7519
    %v8400 = vpack.c.b16 %v7530, %v7520
    %v8401 = vpack.c.b16 %v7531, %v7521
    %v8402 = vpack.c.b16 %v7532, %v7522
    %v8403 = vpack.c.b16 %v7533, %v7523
    %v8404 = vpack.c.b16 %v7534, %v7524
    %v8405 = vpack.c.b16 %v7535, %v7525
    %v8406 = vpack.c.b16 %v7536, %v7526
    %v8407 = vpack.c.b16 %v7537, %v7527
    %v8408 = vpack.c.b16 %v7548, %v7538
    %v8409 = vpack.c.b16 %v7549, %v7539
    %v8410 = vpack.c.b16 %v7550, %v7540
    %v8411 = vpack.c.b16 %v7551, %v7541
    %v8412 = vpack.c.b16 %v7552, %v7542
    %v8413 = vpack.c.b16 %v7553, %v7543
    %v8414 = vpack.c.b16 %v7554, %v7544
    %v8415 = vpack.c.b16 %v7555, %v7545
    %v8416 = vpack.c.b16 %v7556, %v7546
    %v8417 = vpack.c.b16 %v7557, %v7547
    %v8418 = vpack.c.b16 %v7568, %v7558
    %v8419 = vpack.c.b16 %v7569, %v7559
    %v8420 = vpack.c.b16 %v7570, %v7560
    %v8421 = vpack.c.b16 %v7571, %v7561
    %v8422 = vpack.c.b16 %v7572, %v7562
    %v8423 = vpack.c.b16 %v7573, %v7563
    %v8424 = vpack.c.b16 %v7574, %v7564
    %v8425 = vpack.c.b16 %v7575, %v7565
    %v8426 = vpack.c.b16 %v7576, %v7566
    %v8427 = vpack.c.b16 %v7577, %v7567
    %v8428 = vpack.c.b16 %v7588, %v7578
    %v8429 = vpack.c.b16 %v7589, %v7579
    %v8430 = vpack.c.b16 %v7590, %v7580
    %v8431 = vpack.c.b16 %v7591, %v7581
    %v8432 = vpack.c.b16 %v7592, %v7582
    %v8433 = vpack.c.b16 %v7593, %v7583
    %v8434 = vpack.c.b16 %v7594, %v7584
    %v8435 = vpack.c.b16 %v7595, %v7585
    %v8436 = vpack.c.b16 %v7596, %v7586
    %v8437 = vpack.c.b16 %v7597, %v7587
    %v8438 = vpack.c.b16 %v7608, %v7598
    %v8439 = vpack.c.b16 %v7609, %v7599
    %v8440 = vpack.c.b16 %v7610, %v7600
    %v8441 = vpack.c.b16 %v7611, %v7601
    %v8442 = vpack.c.b16 %v7612, %v7602
    %v8443 = vpack.c.b16 %v7613, %v7603
    %v8444 = vpack.c.b16 %v7614, %v7604
    %v8445 = vpack.c.b16 %v7615, %v7605
    %v8446 = vpack.c.b16 %v7616, %v7606
    %v8447 = vpack.c.b16 %v7617, %v7607
    %v8448 = vpack.c.b16 %v7628, %v7618
    %v8449 = vpack.c.b16 %v7629, %v7619
    %v8450 = vpack.c.b16 %v7630, %v7620
    %v8451 = vpack.c.b16 %v7631, %v7621
    %v8452 = vpack.c.b16 %v7632, %v7622
    %v8453 = vpack.c.b16 %v7633, %v7623
    %v8454 = vpack.c.b16 %v7634, %v7624
    %v8455 = vpack.c.b16 %v7635, %v7625
    %v8456 = vpack.c.b16 %v7636, %v7626
    %v8457 = vpack.c.b16 %v7637, %v7627
    %v8458 = vpack.c.b16 %v7648, %v7638
    %v8459 = vpack.c.b16 %v7649, %v7639
    %v8460 = vpack.c.b16 %v7650, %v7640
    %v8461 = vpack.c.b16 %v7651, %v7641
    %v8462 = vpack.c.b16 %v7652, %v7642
    %v8463 = vpack.c.b16 %v7653, %v7643
    %v8464 = vpack.c.b16 %v7654, %v7644
    %v8465 = vpack.c.b16 %v7655, %v7645
    %v8466 = vpack.c.b16 %v7656, %v7646
    %v8467 = vpack.c.b16 %v7657, %v7647
    %v8468 = vpack.c.b16 %v7668, %v7658
    %v8469 = vpack.c.b16 %v7669, %v7659
    %v8470 = vpack.c.b16 %v7670, %v7660
    %v8471 = vpack.c.b16 %v7671, %v7661
    %v8472 = vpack.c.b16 %v7672, %v7662
    %v8473 = vpack.c.b16 %v7673, %v7663
    %v8474 = vpack.c.b16 %v7674, %v7664
    %v8475 = vpack.c.b16 %v7675, %v7665
    %v8476 = vpack.c.b16 %v7676, %v7666
    %v8477 = vpack.c.b16 %v7677, %v7667
    %9278 = vmatpush.bf16.msra.mxu0 %v7748
    %9279 = vmatpush.bf16.msra.mxu0 %v7738
    %9280 = vmatpush.bf16.msra.mxu0 %v7728
    %9281 = vmatpush.bf16.msra.mxu0 %v7718
    %9282 = vmatpush.bf16.msra.mxu0 %v7708
    %9283 = vmatpush.bf16.msra.mxu0 %v7698
    %9284 = vmatpush.bf16.msra.mxu0 %v7688
    %9285 = vmatpush.bf16.msra.mxu0 %v7678
    %9286 = vmatmul.bf16.gmra.mxu0 %v4468
    %v9287 = vpop.f32.mrf.mxu0
    %v9288 = vadd.f32 0.0, %v9287
    %v9289 = vpop.f32.mrf.mxu0
    %v9290 = vadd.f32 0.0, %v9289
    %9291 = vdwg.mxu0
    %9292 = vmatpush.bf16.msra.mxu0 %v7828
    %9293 = vmatpush.bf16.msra.mxu0 %v7818
    %9294 = vmatpush.bf16.msra.mxu0 %v7808
    %9295 = vmatpush.bf16.msra.mxu0 %v7798
    %9296 = vmatpush.bf16.msra.mxu0 %v7788
    %9297 = vmatpush.bf16.msra.mxu0 %v7778
    %9298 = vmatpush.bf16.msra.mxu0 %v7768
    %9299 = vmatpush.bf16.msra.mxu0 %v7758
    %9300 = vmatmul.bf16.gmra.mxu0 %v4469
    %v9301 = vpop.f32.mrf.mxu0
    %v9302 = vadd.f32 %v9288, %v9301
    %v9303 = vpop.f32.mrf.mxu0
    %v9304 = vadd.f32 %v9290, %v9303
    %9305 = vdwg.mxu0
    %9306 = vmatpush.bf16.msra.mxu0 %v7908
    %9307 = vmatpush.bf16.msra.mxu0 %v7898
    %9308 = vmatpush.bf16.msra.mxu0 %v7888
    %9309 = vmatpush.bf16.msra.mxu0 %v7878
    %9310 = vmatpush.bf16.msra.mxu0 %v7868
    %9311 = vmatpush.bf16.msra.mxu0 %v7858
    %9312 = vmatpush.bf16.msra.mxu0 %v7848
    %9313 = vmatpush.bf16.msra.mxu0 %v7838
    %9314 = vmatmul.bf16.gmra.mxu0 %v4470
    %v9315 = vpop.f32.mrf.mxu0
    %v9316 = vadd.f32 %v9302, %v9315
    %v9317 = vpop.f32.mrf.mxu0
    %v9318 = vadd.f32 %v9304, %v9317
    %9319 = vdwg.mxu0
    %9320 = vmatpush.bf16.msra.mxu0 %v7988
    %9321 = vmatpush.bf16.msra.mxu0 %v7978
    %9322 = vmatpush.bf16.msra.mxu0 %v7968
    %9323 = vmatpush.bf16.msra.mxu0 %v7958
    %9324 = vmatpush.bf16.msra.mxu0 %v7948
    %9325 = vmatpush.bf16.msra.mxu0 %v7938
    %9326 = vmatpush.bf16.msra.mxu0 %v7928
    %9327 = vmatpush.bf16.msra.mxu0 %v7918
    %9328 = vmatmul.bf16.gmra.mxu0 %v4471
    %v9329 = vpop.f32.mrf.mxu0
    %v9330 = vadd.f32 %v9316, %v9329
    %v9331 = vpop.f32.mrf.mxu0
    %v9332 = vadd.f32 %v9318, %v9331
    %9333 = vdwg.mxu0
    %9334 = vmatpush.bf16.msra.mxu0 %v8068
    %9335 = vmatpush.bf16.msra.mxu0 %v8058
    %9336 = vmatpush.bf16.msra.mxu0 %v8048
    %9337 = vmatpush.bf16.msra.mxu0 %v8038
    %9338 = vmatpush.bf16.msra.mxu0 %v8028
    %9339 = vmatpush.bf16.msra.mxu0 %v8018
    %9340 = vmatpush.bf16.msra.mxu0 %v8008
    %9341 = vmatpush.bf16.msra.mxu0 %v7998
    %9342 = vmatmul.bf16.gmra.mxu0 %v4472
    %v9343 = vpop.f32.mrf.mxu0
    %v9344 = vadd.f32 %v9330, %v9343
    %v9345 = vpop.f32.mrf.mxu0
    %v9346 = vadd.f32 %v9332, %v9345
    %9347 = vdwg.mxu0
    %9348 = vmatpush.bf16.msra.mxu0 %v8148
    %9349 = vmatpush.bf16.msra.mxu0 %v8138
    %9350 = vmatpush.bf16.msra.mxu0 %v8128
    %9351 = vmatpush.bf16.msra.mxu0 %v8118
    %9352 = vmatpush.bf16.msra.mxu0 %v8108
    %9353 = vmatpush.bf16.msra.mxu0 %v8098
    %9354 = vmatpush.bf16.msra.mxu0 %v8088
    %9355 = vmatpush.bf16.msra.mxu0 %v8078
    %9356 = vmatmul.bf16.gmra.mxu0 %v4473
    %v9357 = vpop.f32.mrf.mxu0
    %v9358 = vadd.f32 %v9344, %v9357
    %v9359 = vpop.f32.mrf.mxu0
    %v9360 = vadd.f32 %v9346, %v9359
    %9361 = vdwg.mxu0
    %9362 = vmatpush.bf16.msra.mxu0 %v8228
    %9363 = vmatpush.bf16.msra.mxu0 %v8218
    %9364 = vmatpush.bf16.msra.mxu0 %v8208
    %9365 = vmatpush.bf16.msra.mxu0 %v8198
    %9366 = vmatpush.bf16.msra.mxu0 %v8188
    %9367 = vmatpush.bf16.msra.mxu0 %v8178
    %9368 = vmatpush.bf16.msra.mxu0 %v8168
    %9369 = vmatpush.bf16.msra.mxu0 %v8158
    %9370 = vmatmul.bf16.gmra.mxu0 %v4474
    %v9371 = vpop.f32.mrf.mxu0
    %v9372 = vadd.f32 %v9358, %v9371
    %v9373 = vpop.f32.mrf.mxu0
    %v9374 = vadd.f32 %v9360, %v9373
    %9375 = vdwg.mxu0
    %9376 = vmatpush.bf16.msra.mxu0 %v8308
    %9377 = vmatpush.bf16.msra.mxu0 %v8298
    %9378 = vmatpush.bf16.msra.mxu0 %v8288
    %9379 = vmatpush.bf16.msra.mxu0 %v8278
    %9380 = vmatpush.bf16.msra.mxu0 %v8268
    %9381 = vmatpush.bf16.msra.mxu0 %v8258
    %9382 = vmatpush.bf16.msra.mxu0 %v8248
    %9383 = vmatpush.bf16.msra.mxu0 %v8238
    %9384 = vmatmul.bf16.gmra.mxu0 %v4475
    %v9385 = vpop.f32.mrf.mxu0
    %v9386 = vadd.f32 %v9372, %v9385
    %v9387 = vpop.f32.mrf.mxu0
    %v9388 = vadd.f32 %v9374, %v9387
    %9389 = vdwg.mxu0
    %9390 = vmatpush.bf16.msra.mxu0 %v8388
    %9391 = vmatpush.bf16.msra.mxu0 %v8378
    %9392 = vmatpush.bf16.msra.mxu0 %v8368
    %9393 = vmatpush.bf16.msra.mxu0 %v8358
    %9394 = vmatpush.bf16.msra.mxu0 %v8348
    %9395 = vmatpush.bf16.msra.mxu0 %v8338
    %9396 = vmatpush.bf16.msra.mxu0 %v8328
    %9397 = vmatpush.bf16.msra.mxu0 %v8318
    %9398 = vmatmul.bf16.gmra.mxu0 %v4476
    %v9399 = vpop.f32.mrf.mxu0
    %v9400 = vadd.f32 %v9386, %v9399
    %v9401 = vpop.f32.mrf.mxu0
    %v9402 = vadd.f32 %v9388, %v9401
    %9403 = vdwg.mxu0
    %9404 = vmatpush.bf16.msra.mxu0 %v8468
    %9405 = vmatpush.bf16.msra.mxu0 %v8458
    %9406 = vmatpush.bf16.msra.mxu0 %v8448
    %9407 = vmatpush.bf16.msra.mxu0 %v8438
    %9408 = vmatpush.bf16.msra.mxu0 %v8428
    %9409 = vmatpush.bf16.msra.mxu0 %v8418
    %9410 = vmatpush.bf16.msra.mxu0 %v8408
    %9411 = vmatpush.bf16.msra.mxu0 %v8398
    %9412 = vmatmul.bf16.gmra.mxu0 %v4477
    %v9413 = vpop.f32.mrf.mxu0
    %v9414 = vadd.f32 %v9400, %v9413
    %v9415 = vpop.f32.mrf.mxu0
    %v9416 = vadd.f32 %v9402, %v9415
    %9417 = vdwg.mxu0
    %9418 = vmatpush.bf16.msra.mxu0 %v7749
    %9419 = vmatpush.bf16.msra.mxu0 %v7739
    %9420 = vmatpush.bf16.msra.mxu0 %v7729
    %9421 = vmatpush.bf16.msra.mxu0 %v7719
    %9422 = vmatpush.bf16.msra.mxu0 %v7709
    %9423 = vmatpush.bf16.msra.mxu0 %v7699
    %9424 = vmatpush.bf16.msra.mxu0 %v7689
    %9425 = vmatpush.bf16.msra.mxu0 %v7679
    %9426 = vmatmul.bf16.gmra.mxu0 %v4468
    %v9427 = vpop.f32.mrf.mxu0
    %v9428 = vadd.f32 0.0, %v9427
    %v9429 = vpop.f32.mrf.mxu0
    %v9430 = vadd.f32 0.0, %v9429
    %9431 = vdwg.mxu0
    %9432 = vmatpush.bf16.msra.mxu0 %v7829
    %9433 = vmatpush.bf16.msra.mxu0 %v7819
    %9434 = vmatpush.bf16.msra.mxu0 %v7809
    %9435 = vmatpush.bf16.msra.mxu0 %v7799
    %9436 = vmatpush.bf16.msra.mxu0 %v7789
    %9437 = vmatpush.bf16.msra.mxu0 %v7779
    %9438 = vmatpush.bf16.msra.mxu0 %v7769
    %9439 = vmatpush.bf16.msra.mxu0 %v7759
    %9440 = vmatmul.bf16.gmra.mxu0 %v4469
    %v9441 = vpop.f32.mrf.mxu0
    %v9442 = vadd.f32 %v9428, %v9441
    %v9443 = vpop.f32.mrf.mxu0
    %v9444 = vadd.f32 %v9430, %v9443
    %9445 = vdwg.mxu0
    %9446 = vmatpush.bf16.msra.mxu0 %v7909
    %9447 = vmatpush.bf16.msra.mxu0 %v7899
    %9448 = vmatpush.bf16.msra.mxu0 %v7889
    %9449 = vmatpush.bf16.msra.mxu0 %v7879
    %9450 = vmatpush.bf16.msra.mxu0 %v7869
    %9451 = vmatpush.bf16.msra.mxu0 %v7859
    %9452 = vmatpush.bf16.msra.mxu0 %v7849
    %9453 = vmatpush.bf16.msra.mxu0 %v7839
    %9454 = vmatmul.bf16.gmra.mxu0 %v4470
    %v9455 = vpop.f32.mrf.mxu0
    %v9456 = vadd.f32 %v9442, %v9455
    %v9457 = vpop.f32.mrf.mxu0
    %v9458 = vadd.f32 %v9444, %v9457
    %9459 = vdwg.mxu0
    %9460 = vmatpush.bf16.msra.mxu0 %v7989
    %9461 = vmatpush.bf16.msra.mxu0 %v7979
    %9462 = vmatpush.bf16.msra.mxu0 %v7969
    %9463 = vmatpush.bf16.msra.mxu0 %v7959
    %9464 = vmatpush.bf16.msra.mxu0 %v7949
    %9465 = vmatpush.bf16.msra.mxu0 %v7939
    %9466 = vmatpush.bf16.msra.mxu0 %v7929
    %9467 = vmatpush.bf16.msra.mxu0 %v7919
    %9468 = vmatmul.bf16.gmra.mxu0 %v4471
    %v9469 = vpop.f32.mrf.mxu0
    %v9470 = vadd.f32 %v9456, %v9469
    %v9471 = vpop.f32.mrf.mxu0
    %v9472 = vadd.f32 %v9458, %v9471
    %9473 = vdwg.mxu0
    %9474 = vmatpush.bf16.msra.mxu0 %v8069
    %9475 = vmatpush.bf16.msra.mxu0 %v8059
    %9476 = vmatpush.bf16.msra.mxu0 %v8049
    %9477 = vmatpush.bf16.msra.mxu0 %v8039
    %9478 = vmatpush.bf16.msra.mxu0 %v8029
    %9479 = vmatpush.bf16.msra.mxu0 %v8019
    %9480 = vmatpush.bf16.msra.mxu0 %v8009
    %9481 = vmatpush.bf16.msra.mxu0 %v7999
    %9482 = vmatmul.bf16.gmra.mxu0 %v4472
    %v9483 = vpop.f32.mrf.mxu0
    %v9484 = vadd.f32 %v9470, %v9483
    %v9485 = vpop.f32.mrf.mxu0
    %v9486 = vadd.f32 %v9472, %v9485
    %9487 = vdwg.mxu0
    %9488 = vmatpush.bf16.msra.mxu0 %v8149
    %9489 = vmatpush.bf16.msra.mxu0 %v8139
    %9490 = vmatpush.bf16.msra.mxu0 %v8129
    %9491 = vmatpush.bf16.msra.mxu0 %v8119
    %9492 = vmatpush.bf16.msra.mxu0 %v8109
    %9493 = vmatpush.bf16.msra.mxu0 %v8099
    %9494 = vmatpush.bf16.msra.mxu0 %v8089
    %9495 = vmatpush.bf16.msra.mxu0 %v8079
    %9496 = vmatmul.bf16.gmra.mxu0 %v4473
    %v9497 = vpop.f32.mrf.mxu0
    %v9498 = vadd.f32 %v9484, %v9497
    %v9499 = vpop.f32.mrf.mxu0
    %v9500 = vadd.f32 %v9486, %v9499
    %9501 = vdwg.mxu0
    %9502 = vmatpush.bf16.msra.mxu0 %v8229
    %9503 = vmatpush.bf16.msra.mxu0 %v8219
    %9504 = vmatpush.bf16.msra.mxu0 %v8209
    %9505 = vmatpush.bf16.msra.mxu0 %v8199
    %9506 = vmatpush.bf16.msra.mxu0 %v8189
    %9507 = vmatpush.bf16.msra.mxu0 %v8179
    %9508 = vmatpush.bf16.msra.mxu0 %v8169
    %9509 = vmatpush.bf16.msra.mxu0 %v8159
    %9510 = vmatmul.bf16.gmra.mxu0 %v4474
    %v9511 = vpop.f32.mrf.mxu0
    %v9512 = vadd.f32 %v9498, %v9511
    %v9513 = vpop.f32.mrf.mxu0
    %v9514 = vadd.f32 %v9500, %v9513
    %9515 = vdwg.mxu0
    %9516 = vmatpush.bf16.msra.mxu0 %v8309
    %9517 = vmatpush.bf16.msra.mxu0 %v8299
    %9518 = vmatpush.bf16.msra.mxu0 %v8289
    %9519 = vmatpush.bf16.msra.mxu0 %v8279
    %9520 = vmatpush.bf16.msra.mxu0 %v8269
    %9521 = vmatpush.bf16.msra.mxu0 %v8259
    %9522 = vmatpush.bf16.msra.mxu0 %v8249
    %9523 = vmatpush.bf16.msra.mxu0 %v8239
    %9524 = vmatmul.bf16.gmra.mxu0 %v4475
    %v9525 = vpop.f32.mrf.mxu0
    %v9526 = vadd.f32 %v9512, %v9525
    %v9527 = vpop.f32.mrf.mxu0
    %v9528 = vadd.f32 %v9514, %v9527
    %9529 = vdwg.mxu0
    %9530 = vmatpush.bf16.msra.mxu0 %v8389
    %9531 = vmatpush.bf16.msra.mxu0 %v8379
    %9532 = vmatpush.bf16.msra.mxu0 %v8369
    %9533 = vmatpush.bf16.msra.mxu0 %v8359
    %9534 = vmatpush.bf16.msra.mxu0 %v8349
    %9535 = vmatpush.bf16.msra.mxu0 %v8339
    %9536 = vmatpush.bf16.msra.mxu0 %v8329
    %9537 = vmatpush.bf16.msra.mxu0 %v8319
    %9538 = vmatmul.bf16.gmra.mxu0 %v4476
    %v9539 = vpop.f32.mrf.mxu0
    %v9540 = vadd.f32 %v9526, %v9539
    %v9541 = vpop.f32.mrf.mxu0
    %v9542 = vadd.f32 %v9528, %v9541
    %9543 = vdwg.mxu0
    %9544 = vmatpush.bf16.msra.mxu0 %v8469
    %9545 = vmatpush.bf16.msra.mxu0 %v8459
    %9546 = vmatpush.bf16.msra.mxu0 %v8449
    %9547 = vmatpush.bf16.msra.mxu0 %v8439
    %9548 = vmatpush.bf16.msra.mxu0 %v8429
    %9549 = vmatpush.bf16.msra.mxu0 %v8419
    %9550 = vmatpush.bf16.msra.mxu0 %v8409
    %9551 = vmatpush.bf16.msra.mxu0 %v8399
    %9552 = vmatmul.bf16.gmra.mxu0 %v4477
    %v9553 = vpop.f32.mrf.mxu0
    %v9554 = vadd.f32 %v9540, %v9553
    %v9555 = vpop.f32.mrf.mxu0
    %v9556 = vadd.f32 %v9542, %v9555
    %9557 = vdwg.mxu0
    %9558 = vmatpush.bf16.msra.mxu0 %v7750
    %9559 = vmatpush.bf16.msra.mxu0 %v7740
    %9560 = vmatpush.bf16.msra.mxu0 %v7730
    %9561 = vmatpush.bf16.msra.mxu0 %v7720
    %9562 = vmatpush.bf16.msra.mxu0 %v7710
    %9563 = vmatpush.bf16.msra.mxu0 %v7700
    %9564 = vmatpush.bf16.msra.mxu0 %v7690
    %9565 = vmatpush.bf16.msra.mxu0 %v7680
    %9566 = vmatmul.bf16.gmra.mxu0 %v4468
    %v9567 = vpop.f32.mrf.mxu0
    %v9568 = vadd.f32 0.0, %v9567
    %v9569 = vpop.f32.mrf.mxu0
    %v9570 = vadd.f32 0.0, %v9569
    %9571 = vdwg.mxu0
    %9572 = vmatpush.bf16.msra.mxu0 %v7830
    %9573 = vmatpush.bf16.msra.mxu0 %v7820
    %9574 = vmatpush.bf16.msra.mxu0 %v7810
    %9575 = vmatpush.bf16.msra.mxu0 %v7800
    %9576 = vmatpush.bf16.msra.mxu0 %v7790
    %9577 = vmatpush.bf16.msra.mxu0 %v7780
    %9578 = vmatpush.bf16.msra.mxu0 %v7770
    %9579 = vmatpush.bf16.msra.mxu0 %v7760
    %9580 = vmatmul.bf16.gmra.mxu0 %v4469
    %v9581 = vpop.f32.mrf.mxu0
    %v9582 = vadd.f32 %v9568, %v9581
    %v9583 = vpop.f32.mrf.mxu0
    %v9584 = vadd.f32 %v9570, %v9583
    %9585 = vdwg.mxu0
    %9586 = vmatpush.bf16.msra.mxu0 %v7910
    %9587 = vmatpush.bf16.msra.mxu0 %v7900
    %9588 = vmatpush.bf16.msra.mxu0 %v7890
    %9589 = vmatpush.bf16.msra.mxu0 %v7880
    %9590 = vmatpush.bf16.msra.mxu0 %v7870
    %9591 = vmatpush.bf16.msra.mxu0 %v7860
    %9592 = vmatpush.bf16.msra.mxu0 %v7850
    %9593 = vmatpush.bf16.msra.mxu0 %v7840
    %9594 = vmatmul.bf16.gmra.mxu0 %v4470
    %v9595 = vpop.f32.mrf.mxu0
    %v9596 = vadd.f32 %v9582, %v9595
    %v9597 = vpop.f32.mrf.mxu0
    %v9598 = vadd.f32 %v9584, %v9597
    %9599 = vdwg.mxu0
    %9600 = vmatpush.bf16.msra.mxu0 %v7990
    %9601 = vmatpush.bf16.msra.mxu0 %v7980
    %9602 = vmatpush.bf16.msra.mxu0 %v7970
    %9603 = vmatpush.bf16.msra.mxu0 %v7960
    %9604 = vmatpush.bf16.msra.mxu0 %v7950
    %9605 = vmatpush.bf16.msra.mxu0 %v7940
    %9606 = vmatpush.bf16.msra.mxu0 %v7930
    %9607 = vmatpush.bf16.msra.mxu0 %v7920
    %9608 = vmatmul.bf16.gmra.mxu0 %v4471
    %v9609 = vpop.f32.mrf.mxu0
    %v9610 = vadd.f32 %v9596, %v9609
    %v9611 = vpop.f32.mrf.mxu0
    %v9612 = vadd.f32 %v9598, %v9611
    %9613 = vdwg.mxu0
    %9614 = vmatpush.bf16.msra.mxu0 %v8070
    %9615 = vmatpush.bf16.msra.mxu0 %v8060
    %9616 = vmatpush.bf16.msra.mxu0 %v8050
    %9617 = vmatpush.bf16.msra.mxu0 %v8040
    %9618 = vmatpush.bf16.msra.mxu0 %v8030
    %9619 = vmatpush.bf16.msra.mxu0 %v8020
    %9620 = vmatpush.bf16.msra.mxu0 %v8010
    %9621 = vmatpush.bf16.msra.mxu0 %v8000
    %9622 = vmatmul.bf16.gmra.mxu0 %v4472
    %v9623 = vpop.f32.mrf.mxu0
    %v9624 = vadd.f32 %v9610, %v9623
    %v9625 = vpop.f32.mrf.mxu0
    %v9626 = vadd.f32 %v9612, %v9625
    %9627 = vdwg.mxu0
    %9628 = vmatpush.bf16.msra.mxu0 %v8150
    %9629 = vmatpush.bf16.msra.mxu0 %v8140
    %9630 = vmatpush.bf16.msra.mxu0 %v8130
    %9631 = vmatpush.bf16.msra.mxu0 %v8120
    %9632 = vmatpush.bf16.msra.mxu0 %v8110
    %9633 = vmatpush.bf16.msra.mxu0 %v8100
    %9634 = vmatpush.bf16.msra.mxu0 %v8090
    %9635 = vmatpush.bf16.msra.mxu0 %v8080
    %9636 = vmatmul.bf16.gmra.mxu0 %v4473
    %v9637 = vpop.f32.mrf.mxu0
    %v9638 = vadd.f32 %v9624, %v9637
    %v9639 = vpop.f32.mrf.mxu0
    %v9640 = vadd.f32 %v9626, %v9639
    %9641 = vdwg.mxu0
    %9642 = vmatpush.bf16.msra.mxu0 %v8230
    %9643 = vmatpush.bf16.msra.mxu0 %v8220
    %9644 = vmatpush.bf16.msra.mxu0 %v8210
    %9645 = vmatpush.bf16.msra.mxu0 %v8200
    %9646 = vmatpush.bf16.msra.mxu0 %v8190
    %9647 = vmatpush.bf16.msra.mxu0 %v8180
    %9648 = vmatpush.bf16.msra.mxu0 %v8170
    %9649 = vmatpush.bf16.msra.mxu0 %v8160
    %9650 = vmatmul.bf16.gmra.mxu0 %v4474
    %v9651 = vpop.f32.mrf.mxu0
    %v9652 = vadd.f32 %v9638, %v9651
    %v9653 = vpop.f32.mrf.mxu0
    %v9654 = vadd.f32 %v9640, %v9653
    %9655 = vdwg.mxu0
    %9656 = vmatpush.bf16.msra.mxu0 %v8310
    %9657 = vmatpush.bf16.msra.mxu0 %v8300
    %9658 = vmatpush.bf16.msra.mxu0 %v8290
    %9659 = vmatpush.bf16.msra.mxu0 %v8280
    %9660 = vmatpush.bf16.msra.mxu0 %v8270
    %9661 = vmatpush.bf16.msra.mxu0 %v8260
    %9662 = vmatpush.bf16.msra.mxu0 %v8250
    %9663 = vmatpush.bf16.msra.mxu0 %v8240
    %9664 = vmatmul.bf16.gmra.mxu0 %v4475
    %v9665 = vpop.f32.mrf.mxu0
    %v9666 = vadd.f32 %v9652, %v9665
    %v9667 = vpop.f32.mrf.mxu0
    %v9668 = vadd.f32 %v9654, %v9667
    %9669 = vdwg.mxu0
    %9670 = vmatpush.bf16.msra.mxu0 %v8390
    %9671 = vmatpush.bf16.msra.mxu0 %v8380
    %9672 = vmatpush.bf16.msra.mxu0 %v8370
    %9673 = vmatpush.bf16.msra.mxu0 %v8360
    %9674 = vmatpush.bf16.msra.mxu0 %v8350
    %9675 = vmatpush.bf16.msra.mxu0 %v8340
    %9676 = vmatpush.bf16.msra.mxu0 %v8330
    %9677 = vmatpush.bf16.msra.mxu0 %v8320
    %9678 = vmatmul.bf16.gmra.mxu0 %v4476
    %v9679 = vpop.f32.mrf.mxu0
    %v9680 = vadd.f32 %v9666, %v9679
    %v9681 = vpop.f32.mrf.mxu0
    %v9682 = vadd.f32 %v9668, %v9681
    %9683 = vdwg.mxu0
    %9684 = vmatpush.bf16.msra.mxu0 %v8470
    %9685 = vmatpush.bf16.msra.mxu0 %v8460
    %9686 = vmatpush.bf16.msra.mxu0 %v8450
    %9687 = vmatpush.bf16.msra.mxu0 %v8440
    %9688 = vmatpush.bf16.msra.mxu0 %v8430
    %9689 = vmatpush.bf16.msra.mxu0 %v8420
    %9690 = vmatpush.bf16.msra.mxu0 %v8410
    %9691 = vmatpush.bf16.msra.mxu0 %v8400
    %9692 = vmatmul.bf16.gmra.mxu0 %v4477
    %v9693 = vpop.f32.mrf.mxu0
    %v9694 = vadd.f32 %v9680, %v9693
    %v9695 = vpop.f32.mrf.mxu0
    %v9696 = vadd.f32 %v9682, %v9695
    %9697 = vdwg.mxu0
    %9698 = vmatpush.bf16.msra.mxu0 %v7751
    %9699 = vmatpush.bf16.msra.mxu0 %v7741
    %9700 = vmatpush.bf16.msra.mxu0 %v7731
    %9701 = vmatpush.bf16.msra.mxu0 %v7721
    %9702 = vmatpush.bf16.msra.mxu0 %v7711
    %9703 = vmatpush.bf16.msra.mxu0 %v7701
    %9704 = vmatpush.bf16.msra.mxu0 %v7691
    %9705 = vmatpush.bf16.msra.mxu0 %v7681
    %9706 = vmatmul.bf16.gmra.mxu0 %v4468
    %v9707 = vpop.f32.mrf.mxu0
    %v9708 = vadd.f32 0.0, %v9707
    %v9709 = vpop.f32.mrf.mxu0
    %v9710 = vadd.f32 0.0, %v9709
    %9711 = vdwg.mxu0
    %9712 = vmatpush.bf16.msra.mxu0 %v7831
    %9713 = vmatpush.bf16.msra.mxu0 %v7821
    %9714 = vmatpush.bf16.msra.mxu0 %v7811
    %9715 = vmatpush.bf16.msra.mxu0 %v7801
    %9716 = vmatpush.bf16.msra.mxu0 %v7791
    %9717 = vmatpush.bf16.msra.mxu0 %v7781
    %9718 = vmatpush.bf16.msra.mxu0 %v7771
    %9719 = vmatpush.bf16.msra.mxu0 %v7761
    %9720 = vmatmul.bf16.gmra.mxu0 %v4469
    %v9721 = vpop.f32.mrf.mxu0
    %v9722 = vadd.f32 %v9708, %v9721
    %v9723 = vpop.f32.mrf.mxu0
    %v9724 = vadd.f32 %v9710, %v9723
    %9725 = vdwg.mxu0
    %9726 = vmatpush.bf16.msra.mxu0 %v7911
    %9727 = vmatpush.bf16.msra.mxu0 %v7901
    %9728 = vmatpush.bf16.msra.mxu0 %v7891
    %9729 = vmatpush.bf16.msra.mxu0 %v7881
    %9730 = vmatpush.bf16.msra.mxu0 %v7871
    %9731 = vmatpush.bf16.msra.mxu0 %v7861
    %9732 = vmatpush.bf16.msra.mxu0 %v7851
    %9733 = vmatpush.bf16.msra.mxu0 %v7841
    %9734 = vmatmul.bf16.gmra.mxu0 %v4470
    %v9735 = vpop.f32.mrf.mxu0
    %v9736 = vadd.f32 %v9722, %v9735
    %v9737 = vpop.f32.mrf.mxu0
    %v9738 = vadd.f32 %v9724, %v9737
    %9739 = vdwg.mxu0
    %9740 = vmatpush.bf16.msra.mxu0 %v7991
    %9741 = vmatpush.bf16.msra.mxu0 %v7981
    %9742 = vmatpush.bf16.msra.mxu0 %v7971
    %9743 = vmatpush.bf16.msra.mxu0 %v7961
    %9744 = vmatpush.bf16.msra.mxu0 %v7951
    %9745 = vmatpush.bf16.msra.mxu0 %v7941
    %9746 = vmatpush.bf16.msra.mxu0 %v7931
    %9747 = vmatpush.bf16.msra.mxu0 %v7921
    %9748 = vmatmul.bf16.gmra.mxu0 %v4471
    %v9749 = vpop.f32.mrf.mxu0
    %v9750 = vadd.f32 %v9736, %v9749
    %v9751 = vpop.f32.mrf.mxu0
    %v9752 = vadd.f32 %v9738, %v9751
    %9753 = vdwg.mxu0
    %9754 = vmatpush.bf16.msra.mxu0 %v8071
    %9755 = vmatpush.bf16.msra.mxu0 %v8061
    %9756 = vmatpush.bf16.msra.mxu0 %v8051
    %9757 = vmatpush.bf16.msra.mxu0 %v8041
    %9758 = vmatpush.bf16.msra.mxu0 %v8031
    %9759 = vmatpush.bf16.msra.mxu0 %v8021
    %9760 = vmatpush.bf16.msra.mxu0 %v8011
    %9761 = vmatpush.bf16.msra.mxu0 %v8001
    %9762 = vmatmul.bf16.gmra.mxu0 %v4472
    %v9763 = vpop.f32.mrf.mxu0
    %v9764 = vadd.f32 %v9750, %v9763
    %v9765 = vpop.f32.mrf.mxu0
    %v9766 = vadd.f32 %v9752, %v9765
    %9767 = vdwg.mxu0
    %9768 = vmatpush.bf16.msra.mxu0 %v8151
    %9769 = vmatpush.bf16.msra.mxu0 %v8141
    %9770 = vmatpush.bf16.msra.mxu0 %v8131
    %9771 = vmatpush.bf16.msra.mxu0 %v8121
    %9772 = vmatpush.bf16.msra.mxu0 %v8111
    %9773 = vmatpush.bf16.msra.mxu0 %v8101
    %9774 = vmatpush.bf16.msra.mxu0 %v8091
    %9775 = vmatpush.bf16.msra.mxu0 %v8081
    %9776 = vmatmul.bf16.gmra.mxu0 %v4473
    %v9777 = vpop.f32.mrf.mxu0
    %v9778 = vadd.f32 %v9764, %v9777
    %v9779 = vpop.f32.mrf.mxu0
    %v9780 = vadd.f32 %v9766, %v9779
    %9781 = vdwg.mxu0
    %9782 = vmatpush.bf16.msra.mxu0 %v8231
    %9783 = vmatpush.bf16.msra.mxu0 %v8221
    %9784 = vmatpush.bf16.msra.mxu0 %v8211
    %9785 = vmatpush.bf16.msra.mxu0 %v8201
    %9786 = vmatpush.bf16.msra.mxu0 %v8191
    %9787 = vmatpush.bf16.msra.mxu0 %v8181
    %9788 = vmatpush.bf16.msra.mxu0 %v8171
    %9789 = vmatpush.bf16.msra.mxu0 %v8161
    %9790 = vmatmul.bf16.gmra.mxu0 %v4474
    %v9791 = vpop.f32.mrf.mxu0
    %v9792 = vadd.f32 %v9778, %v9791
    %v9793 = vpop.f32.mrf.mxu0
    %v9794 = vadd.f32 %v9780, %v9793
    %9795 = vdwg.mxu0
    %9796 = vmatpush.bf16.msra.mxu0 %v8311
    %9797 = vmatpush.bf16.msra.mxu0 %v8301
    %9798 = vmatpush.bf16.msra.mxu0 %v8291
    %9799 = vmatpush.bf16.msra.mxu0 %v8281
    %9800 = vmatpush.bf16.msra.mxu0 %v8271
    %9801 = vmatpush.bf16.msra.mxu0 %v8261
    %9802 = vmatpush.bf16.msra.mxu0 %v8251
    %9803 = vmatpush.bf16.msra.mxu0 %v8241
    %9804 = vmatmul.bf16.gmra.mxu0 %v4475
    %v9805 = vpop.f32.mrf.mxu0
    %v9806 = vadd.f32 %v9792, %v9805
    %v9807 = vpop.f32.mrf.mxu0
    %v9808 = vadd.f32 %v9794, %v9807
    %9809 = vdwg.mxu0
    %9810 = vmatpush.bf16.msra.mxu0 %v8391
    %9811 = vmatpush.bf16.msra.mxu0 %v8381
    %9812 = vmatpush.bf16.msra.mxu0 %v8371
    %9813 = vmatpush.bf16.msra.mxu0 %v8361
    %9814 = vmatpush.bf16.msra.mxu0 %v8351
    %9815 = vmatpush.bf16.msra.mxu0 %v8341
    %9816 = vmatpush.bf16.msra.mxu0 %v8331
    %9817 = vmatpush.bf16.msra.mxu0 %v8321
    %9818 = vmatmul.bf16.gmra.mxu0 %v4476
    %v9819 = vpop.f32.mrf.mxu0
    %v9820 = vadd.f32 %v9806, %v9819
    %v9821 = vpop.f32.mrf.mxu0
    %v9822 = vadd.f32 %v9808, %v9821
    %9823 = vdwg.mxu0
    %9824 = vmatpush.bf16.msra.mxu0 %v8471
    %9825 = vmatpush.bf16.msra.mxu0 %v8461
    %9826 = vmatpush.bf16.msra.mxu0 %v8451
    %9827 = vmatpush.bf16.msra.mxu0 %v8441
    %9828 = vmatpush.bf16.msra.mxu0 %v8431
    %9829 = vmatpush.bf16.msra.mxu0 %v8421
    %9830 = vmatpush.bf16.msra.mxu0 %v8411
    %9831 = vmatpush.bf16.msra.mxu0 %v8401
    %9832 = vmatmul.bf16.gmra.mxu0 %v4477
    %v9833 = vpop.f32.mrf.mxu0
    %v9834 = vadd.f32 %v9820, %v9833
    %v9835 = vpop.f32.mrf.mxu0
    %v9836 = vadd.f32 %v9822, %v9835
    %9837 = vdwg.mxu0
    %9838 = vmatpush.bf16.msra.mxu0 %v7752
    %9839 = vmatpush.bf16.msra.mxu0 %v7742
    %9840 = vmatpush.bf16.msra.mxu0 %v7732
    %9841 = vmatpush.bf16.msra.mxu0 %v7722
    %9842 = vmatpush.bf16.msra.mxu0 %v7712
    %9843 = vmatpush.bf16.msra.mxu0 %v7702
    %9844 = vmatpush.bf16.msra.mxu0 %v7692
    %9845 = vmatpush.bf16.msra.mxu0 %v7682
    %9846 = vmatmul.bf16.gmra.mxu0 %v4468
    %v9847 = vpop.f32.mrf.mxu0
    %v9848 = vadd.f32 0.0, %v9847
    %v9849 = vpop.f32.mrf.mxu0
    %v9850 = vadd.f32 0.0, %v9849
    %9851 = vdwg.mxu0
    %9852 = vmatpush.bf16.msra.mxu0 %v7832
    %9853 = vmatpush.bf16.msra.mxu0 %v7822
    %9854 = vmatpush.bf16.msra.mxu0 %v7812
    %9855 = vmatpush.bf16.msra.mxu0 %v7802
    %9856 = vmatpush.bf16.msra.mxu0 %v7792
    %9857 = vmatpush.bf16.msra.mxu0 %v7782
    %9858 = vmatpush.bf16.msra.mxu0 %v7772
    %9859 = vmatpush.bf16.msra.mxu0 %v7762
    %9860 = vmatmul.bf16.gmra.mxu0 %v4469
    %v9861 = vpop.f32.mrf.mxu0
    %v9862 = vadd.f32 %v9848, %v9861
    %v9863 = vpop.f32.mrf.mxu0
    %v9864 = vadd.f32 %v9850, %v9863
    %9865 = vdwg.mxu0
    %9866 = vmatpush.bf16.msra.mxu0 %v7912
    %9867 = vmatpush.bf16.msra.mxu0 %v7902
    %9868 = vmatpush.bf16.msra.mxu0 %v7892
    %9869 = vmatpush.bf16.msra.mxu0 %v7882
    %9870 = vmatpush.bf16.msra.mxu0 %v7872
    %9871 = vmatpush.bf16.msra.mxu0 %v7862
    %9872 = vmatpush.bf16.msra.mxu0 %v7852
    %9873 = vmatpush.bf16.msra.mxu0 %v7842
    %9874 = vmatmul.bf16.gmra.mxu0 %v4470
    %v9875 = vpop.f32.mrf.mxu0
    %v9876 = vadd.f32 %v9862, %v9875
    %v9877 = vpop.f32.mrf.mxu0
    %v9878 = vadd.f32 %v9864, %v9877
    %9879 = vdwg.mxu0
    %9880 = vmatpush.bf16.msra.mxu0 %v7992
    %9881 = vmatpush.bf16.msra.mxu0 %v7982
    %9882 = vmatpush.bf16.msra.mxu0 %v7972
    %9883 = vmatpush.bf16.msra.mxu0 %v7962
    %9884 = vmatpush.bf16.msra.mxu0 %v7952
    %9885 = vmatpush.bf16.msra.mxu0 %v7942
    %9886 = vmatpush.bf16.msra.mxu0 %v7932
    %9887 = vmatpush.bf16.msra.mxu0 %v7922
    %9888 = vmatmul.bf16.gmra.mxu0 %v4471
    %v9889 = vpop.f32.mrf.mxu0
    %v9890 = vadd.f32 %v9876, %v9889
    %v9891 = vpop.f32.mrf.mxu0
    %v9892 = vadd.f32 %v9878, %v9891
    %9893 = vdwg.mxu0
    %9894 = vmatpush.bf16.msra.mxu0 %v8072
    %9895 = vmatpush.bf16.msra.mxu0 %v8062
    %9896 = vmatpush.bf16.msra.mxu0 %v8052
    %9897 = vmatpush.bf16.msra.mxu0 %v8042
    %9898 = vmatpush.bf16.msra.mxu0 %v8032
    %9899 = vmatpush.bf16.msra.mxu0 %v8022
    %9900 = vmatpush.bf16.msra.mxu0 %v8012
    %9901 = vmatpush.bf16.msra.mxu0 %v8002
    %9902 = vmatmul.bf16.gmra.mxu0 %v4472
    %v9903 = vpop.f32.mrf.mxu0
    %v9904 = vadd.f32 %v9890, %v9903
    %v9905 = vpop.f32.mrf.mxu0
    %v9906 = vadd.f32 %v9892, %v9905
    %9907 = vdwg.mxu0
    %9908 = vmatpush.bf16.msra.mxu0 %v8152
    %9909 = vmatpush.bf16.msra.mxu0 %v8142
    %9910 = vmatpush.bf16.msra.mxu0 %v8132
    %9911 = vmatpush.bf16.msra.mxu0 %v8122
    %9912 = vmatpush.bf16.msra.mxu0 %v8112
    %9913 = vmatpush.bf16.msra.mxu0 %v8102
    %9914 = vmatpush.bf16.msra.mxu0 %v8092
    %9915 = vmatpush.bf16.msra.mxu0 %v8082
    %9916 = vmatmul.bf16.gmra.mxu0 %v4473
    %v9917 = vpop.f32.mrf.mxu0
    %v9918 = vadd.f32 %v9904, %v9917
    %v9919 = vpop.f32.mrf.mxu0
    %v9920 = vadd.f32 %v9906, %v9919
    %9921 = vdwg.mxu0
    %9922 = vmatpush.bf16.msra.mxu0 %v8232
    %9923 = vmatpush.bf16.msra.mxu0 %v8222
    %9924 = vmatpush.bf16.msra.mxu0 %v8212
    %9925 = vmatpush.bf16.msra.mxu0 %v8202
    %9926 = vmatpush.bf16.msra.mxu0 %v8192
    %9927 = vmatpush.bf16.msra.mxu0 %v8182
    %9928 = vmatpush.bf16.msra.mxu0 %v8172
    %9929 = vmatpush.bf16.msra.mxu0 %v8162
    %9930 = vmatmul.bf16.gmra.mxu0 %v4474
    %v9931 = vpop.f32.mrf.mxu0
    %v9932 = vadd.f32 %v9918, %v9931
    %v9933 = vpop.f32.mrf.mxu0
    %v9934 = vadd.f32 %v9920, %v9933
    %9935 = vdwg.mxu0
    %9936 = vmatpush.bf16.msra.mxu0 %v8312
    %9937 = vmatpush.bf16.msra.mxu0 %v8302
    %9938 = vmatpush.bf16.msra.mxu0 %v8292
    %9939 = vmatpush.bf16.msra.mxu0 %v8282
    %9940 = vmatpush.bf16.msra.mxu0 %v8272
    %9941 = vmatpush.bf16.msra.mxu0 %v8262
    %9942 = vmatpush.bf16.msra.mxu0 %v8252
    %9943 = vmatpush.bf16.msra.mxu0 %v8242
    %9944 = vmatmul.bf16.gmra.mxu0 %v4475
    %v9945 = vpop.f32.mrf.mxu0
    %v9946 = vadd.f32 %v9932, %v9945
    %v9947 = vpop.f32.mrf.mxu0
    %v9948 = vadd.f32 %v9934, %v9947
    %9949 = vdwg.mxu0
    %9950 = vmatpush.bf16.msra.mxu0 %v8392
    %9951 = vmatpush.bf16.msra.mxu0 %v8382
    %9952 = vmatpush.bf16.msra.mxu0 %v8372
    %9953 = vmatpush.bf16.msra.mxu0 %v8362
    %9954 = vmatpush.bf16.msra.mxu0 %v8352
    %9955 = vmatpush.bf16.msra.mxu0 %v8342
    %9956 = vmatpush.bf16.msra.mxu0 %v8332
    %9957 = vmatpush.bf16.msra.mxu0 %v8322
    %9958 = vmatmul.bf16.gmra.mxu0 %v4476
    %v9959 = vpop.f32.mrf.mxu0
    %v9960 = vadd.f32 %v9946, %v9959
    %v9961 = vpop.f32.mrf.mxu0
    %v9962 = vadd.f32 %v9948, %v9961
    %9963 = vdwg.mxu0
    %9964 = vmatpush.bf16.msra.mxu0 %v8472
    %9965 = vmatpush.bf16.msra.mxu0 %v8462
    %9966 = vmatpush.bf16.msra.mxu0 %v8452
    %9967 = vmatpush.bf16.msra.mxu0 %v8442
    %9968 = vmatpush.bf16.msra.mxu0 %v8432
    %9969 = vmatpush.bf16.msra.mxu0 %v8422
    %9970 = vmatpush.bf16.msra.mxu0 %v8412
    %9971 = vmatpush.bf16.msra.mxu0 %v8402
    %9972 = vmatmul.bf16.gmra.mxu0 %v4477
    %v9973 = vpop.f32.mrf.mxu0
    %v9974 = vadd.f32 %v9960, %v9973
    %v9975 = vpop.f32.mrf.mxu0
    %v9976 = vadd.f32 %v9962, %v9975
    %9977 = vdwg.mxu0
    %9978 = vmatpush.bf16.msra.mxu0 %v7753
    %9979 = vmatpush.bf16.msra.mxu0 %v7743
    %9980 = vmatpush.bf16.msra.mxu0 %v7733
    %9981 = vmatpush.bf16.msra.mxu0 %v7723
    %9982 = vmatpush.bf16.msra.mxu0 %v7713
    %9983 = vmatpush.bf16.msra.mxu0 %v7703
    %9984 = vmatpush.bf16.msra.mxu0 %v7693
    %9985 = vmatpush.bf16.msra.mxu0 %v7683
    %9986 = vmatmul.bf16.gmra.mxu0 %v4468
    %v9987 = vpop.f32.mrf.mxu0
    %v9988 = vadd.f32 0.0, %v9987
    %v9989 = vpop.f32.mrf.mxu0
    %v9990 = vadd.f32 0.0, %v9989
    %9991 = vdwg.mxu0
    %9992 = vmatpush.bf16.msra.mxu0 %v7833
    %9993 = vmatpush.bf16.msra.mxu0 %v7823
    %9994 = vmatpush.bf16.msra.mxu0 %v7813
    %9995 = vmatpush.bf16.msra.mxu0 %v7803
    %9996 = vmatpush.bf16.msra.mxu0 %v7793
    %9997 = vmatpush.bf16.msra.mxu0 %v7783
    %9998 = vmatpush.bf16.msra.mxu0 %v7773
    %9999 = vmatpush.bf16.msra.mxu0 %v7763
    %10000 = vmatmul.bf16.gmra.mxu0 %v4469
    %v10001 = vpop.f32.mrf.mxu0
    %v10002 = vadd.f32 %v9988, %v10001
    %v10003 = vpop.f32.mrf.mxu0
    %v10004 = vadd.f32 %v9990, %v10003
    %10005 = vdwg.mxu0
    %10006 = vmatpush.bf16.msra.mxu0 %v7913
    %10007 = vmatpush.bf16.msra.mxu0 %v7903
    %10008 = vmatpush.bf16.msra.mxu0 %v7893
    %10009 = vmatpush.bf16.msra.mxu0 %v7883
    %10010 = vmatpush.bf16.msra.mxu0 %v7873
    %10011 = vmatpush.bf16.msra.mxu0 %v7863
    %10012 = vmatpush.bf16.msra.mxu0 %v7853
    %10013 = vmatpush.bf16.msra.mxu0 %v7843
    %10014 = vmatmul.bf16.gmra.mxu0 %v4470
    %v10015 = vpop.f32.mrf.mxu0
    %v10016 = vadd.f32 %v10002, %v10015
    %v10017 = vpop.f32.mrf.mxu0
    %v10018 = vadd.f32 %v10004, %v10017
    %10019 = vdwg.mxu0
    %10020 = vmatpush.bf16.msra.mxu0 %v7993
    %10021 = vmatpush.bf16.msra.mxu0 %v7983
    %10022 = vmatpush.bf16.msra.mxu0 %v7973
    %10023 = vmatpush.bf16.msra.mxu0 %v7963
    %10024 = vmatpush.bf16.msra.mxu0 %v7953
    %10025 = vmatpush.bf16.msra.mxu0 %v7943
    %10026 = vmatpush.bf16.msra.mxu0 %v7933
    %10027 = vmatpush.bf16.msra.mxu0 %v7923
    %10028 = vmatmul.bf16.gmra.mxu0 %v4471
    %v10029 = vpop.f32.mrf.mxu0
    %v10030 = vadd.f32 %v10016, %v10029
    %v10031 = vpop.f32.mrf.mxu0
    %v10032 = vadd.f32 %v10018, %v10031
    %10033 = vdwg.mxu0
    %10034 = vmatpush.bf16.msra.mxu0 %v8073
    %10035 = vmatpush.bf16.msra.mxu0 %v8063
    %10036 = vmatpush.bf16.msra.mxu0 %v8053
    %10037 = vmatpush.bf16.msra.mxu0 %v8043
    %10038 = vmatpush.bf16.msra.mxu0 %v8033
    %10039 = vmatpush.bf16.msra.mxu0 %v8023
    %10040 = vmatpush.bf16.msra.mxu0 %v8013
    %10041 = vmatpush.bf16.msra.mxu0 %v8003
    %10042 = vmatmul.bf16.gmra.mxu0 %v4472
    %v10043 = vpop.f32.mrf.mxu0
    %v10044 = vadd.f32 %v10030, %v10043
    %v10045 = vpop.f32.mrf.mxu0
    %v10046 = vadd.f32 %v10032, %v10045
    %10047 = vdwg.mxu0
    %10048 = vmatpush.bf16.msra.mxu0 %v8153
    %10049 = vmatpush.bf16.msra.mxu0 %v8143
    %10050 = vmatpush.bf16.msra.mxu0 %v8133
    %10051 = vmatpush.bf16.msra.mxu0 %v8123
    %10052 = vmatpush.bf16.msra.mxu0 %v8113
    %10053 = vmatpush.bf16.msra.mxu0 %v8103
    %10054 = vmatpush.bf16.msra.mxu0 %v8093
    %10055 = vmatpush.bf16.msra.mxu0 %v8083
    %10056 = vmatmul.bf16.gmra.mxu0 %v4473
    %v10057 = vpop.f32.mrf.mxu0
    %v10058 = vadd.f32 %v10044, %v10057
    %v10059 = vpop.f32.mrf.mxu0
    %v10060 = vadd.f32 %v10046, %v10059
    %10061 = vdwg.mxu0
    %10062 = vmatpush.bf16.msra.mxu0 %v8233
    %10063 = vmatpush.bf16.msra.mxu0 %v8223
    %10064 = vmatpush.bf16.msra.mxu0 %v8213
    %10065 = vmatpush.bf16.msra.mxu0 %v8203
    %10066 = vmatpush.bf16.msra.mxu0 %v8193
    %10067 = vmatpush.bf16.msra.mxu0 %v8183
    %10068 = vmatpush.bf16.msra.mxu0 %v8173
    %10069 = vmatpush.bf16.msra.mxu0 %v8163
    %10070 = vmatmul.bf16.gmra.mxu0 %v4474
    %v10071 = vpop.f32.mrf.mxu0
    %v10072 = vadd.f32 %v10058, %v10071
    %v10073 = vpop.f32.mrf.mxu0
    %v10074 = vadd.f32 %v10060, %v10073
    %10075 = vdwg.mxu0
    %10076 = vmatpush.bf16.msra.mxu0 %v8313
    %10077 = vmatpush.bf16.msra.mxu0 %v8303
    %10078 = vmatpush.bf16.msra.mxu0 %v8293
    %10079 = vmatpush.bf16.msra.mxu0 %v8283
    %10080 = vmatpush.bf16.msra.mxu0 %v8273
    %10081 = vmatpush.bf16.msra.mxu0 %v8263
    %10082 = vmatpush.bf16.msra.mxu0 %v8253
    %10083 = vmatpush.bf16.msra.mxu0 %v8243
    %10084 = vmatmul.bf16.gmra.mxu0 %v4475
    %v10085 = vpop.f32.mrf.mxu0
    %v10086 = vadd.f32 %v10072, %v10085
    %v10087 = vpop.f32.mrf.mxu0
    %v10088 = vadd.f32 %v10074, %v10087
    %10089 = vdwg.mxu0
    %10090 = vmatpush.bf16.msra.mxu0 %v8393
    %10091 = vmatpush.bf16.msra.mxu0 %v8383
    %10092 = vmatpush.bf16.msra.mxu0 %v8373
    %10093 = vmatpush.bf16.msra.mxu0 %v8363
    %10094 = vmatpush.bf16.msra.mxu0 %v8353
    %10095 = vmatpush.bf16.msra.mxu0 %v8343
    %10096 = vmatpush.bf16.msra.mxu0 %v8333
    %10097 = vmatpush.bf16.msra.mxu0 %v8323
    %10098 = vmatmul.bf16.gmra.mxu0 %v4476
    %v10099 = vpop.f32.mrf.mxu0
    %v10100 = vadd.f32 %v10086, %v10099
    %v10101 = vpop.f32.mrf.mxu0
    %v10102 = vadd.f32 %v10088, %v10101
    %10103 = vdwg.mxu0
    %10104 = vmatpush.bf16.msra.mxu0 %v8473
    %10105 = vmatpush.bf16.msra.mxu0 %v8463
    %10106 = vmatpush.bf16.msra.mxu0 %v8453
    %10107 = vmatpush.bf16.msra.mxu0 %v8443
    %10108 = vmatpush.bf16.msra.mxu0 %v8433
    %10109 = vmatpush.bf16.msra.mxu0 %v8423
    %10110 = vmatpush.bf16.msra.mxu0 %v8413
    %10111 = vmatpush.bf16.msra.mxu0 %v8403
    %10112 = vmatmul.bf16.gmra.mxu0 %v4477
    %v10113 = vpop.f32.mrf.mxu0
    %v10114 = vadd.f32 %v10100, %v10113
    %v10115 = vpop.f32.mrf.mxu0
    %v10116 = vadd.f32 %v10102, %v10115
    %10117 = vdwg.mxu0
    %10118 = vmatpush.bf16.msra.mxu0 %v7754
    %10119 = vmatpush.bf16.msra.mxu0 %v7744
    %10120 = vmatpush.bf16.msra.mxu0 %v7734
    %10121 = vmatpush.bf16.msra.mxu0 %v7724
    %10122 = vmatpush.bf16.msra.mxu0 %v7714
    %10123 = vmatpush.bf16.msra.mxu0 %v7704
    %10124 = vmatpush.bf16.msra.mxu0 %v7694
    %10125 = vmatpush.bf16.msra.mxu0 %v7684
    %10126 = vmatmul.bf16.gmra.mxu0 %v4468
    %v10127 = vpop.f32.mrf.mxu0
    %v10128 = vadd.f32 0.0, %v10127
    %v10129 = vpop.f32.mrf.mxu0
    %v10130 = vadd.f32 0.0, %v10129
    %10131 = vdwg.mxu0
    %10132 = vmatpush.bf16.msra.mxu0 %v7834
    %10133 = vmatpush.bf16.msra.mxu0 %v7824
    %10134 = vmatpush.bf16.msra.mxu0 %v7814
    %10135 = vmatpush.bf16.msra.mxu0 %v7804
    %10136 = vmatpush.bf16.msra.mxu0 %v7794
    %10137 = vmatpush.bf16.msra.mxu0 %v7784
    %10138 = vmatpush.bf16.msra.mxu0 %v7774
    %10139 = vmatpush.bf16.msra.mxu0 %v7764
    %10140 = vmatmul.bf16.gmra.mxu0 %v4469
    %v10141 = vpop.f32.mrf.mxu0
    %v10142 = vadd.f32 %v10128, %v10141
    %v10143 = vpop.f32.mrf.mxu0
    %v10144 = vadd.f32 %v10130, %v10143
    %10145 = vdwg.mxu0
    %10146 = vmatpush.bf16.msra.mxu0 %v7914
    %10147 = vmatpush.bf16.msra.mxu0 %v7904
    %10148 = vmatpush.bf16.msra.mxu0 %v7894
    %10149 = vmatpush.bf16.msra.mxu0 %v7884
    %10150 = vmatpush.bf16.msra.mxu0 %v7874
    %10151 = vmatpush.bf16.msra.mxu0 %v7864
    %10152 = vmatpush.bf16.msra.mxu0 %v7854
    %10153 = vmatpush.bf16.msra.mxu0 %v7844
    %10154 = vmatmul.bf16.gmra.mxu0 %v4470
    %v10155 = vpop.f32.mrf.mxu0
    %v10156 = vadd.f32 %v10142, %v10155
    %v10157 = vpop.f32.mrf.mxu0
    %v10158 = vadd.f32 %v10144, %v10157
    %10159 = vdwg.mxu0
    %10160 = vmatpush.bf16.msra.mxu0 %v7994
    %10161 = vmatpush.bf16.msra.mxu0 %v7984
    %10162 = vmatpush.bf16.msra.mxu0 %v7974
    %10163 = vmatpush.bf16.msra.mxu0 %v7964
    %10164 = vmatpush.bf16.msra.mxu0 %v7954
    %10165 = vmatpush.bf16.msra.mxu0 %v7944
    %10166 = vmatpush.bf16.msra.mxu0 %v7934
    %10167 = vmatpush.bf16.msra.mxu0 %v7924
    %10168 = vmatmul.bf16.gmra.mxu0 %v4471
    %v10169 = vpop.f32.mrf.mxu0
    %v10170 = vadd.f32 %v10156, %v10169
    %v10171 = vpop.f32.mrf.mxu0
    %v10172 = vadd.f32 %v10158, %v10171
    %10173 = vdwg.mxu0
    %10174 = vmatpush.bf16.msra.mxu0 %v8074
    %10175 = vmatpush.bf16.msra.mxu0 %v8064
    %10176 = vmatpush.bf16.msra.mxu0 %v8054
    %10177 = vmatpush.bf16.msra.mxu0 %v8044
    %10178 = vmatpush.bf16.msra.mxu0 %v8034
    %10179 = vmatpush.bf16.msra.mxu0 %v8024
    %10180 = vmatpush.bf16.msra.mxu0 %v8014
    %10181 = vmatpush.bf16.msra.mxu0 %v8004
    %10182 = vmatmul.bf16.gmra.mxu0 %v4472
    %v10183 = vpop.f32.mrf.mxu0
    %v10184 = vadd.f32 %v10170, %v10183
    %v10185 = vpop.f32.mrf.mxu0
    %v10186 = vadd.f32 %v10172, %v10185
    %10187 = vdwg.mxu0
    %10188 = vmatpush.bf16.msra.mxu0 %v8154
    %10189 = vmatpush.bf16.msra.mxu0 %v8144
    %10190 = vmatpush.bf16.msra.mxu0 %v8134
    %10191 = vmatpush.bf16.msra.mxu0 %v8124
    %10192 = vmatpush.bf16.msra.mxu0 %v8114
    %10193 = vmatpush.bf16.msra.mxu0 %v8104
    %10194 = vmatpush.bf16.msra.mxu0 %v8094
    %10195 = vmatpush.bf16.msra.mxu0 %v8084
    %10196 = vmatmul.bf16.gmra.mxu0 %v4473
    %v10197 = vpop.f32.mrf.mxu0
    %v10198 = vadd.f32 %v10184, %v10197
    %v10199 = vpop.f32.mrf.mxu0
    %v10200 = vadd.f32 %v10186, %v10199
    %10201 = vdwg.mxu0
    %10202 = vmatpush.bf16.msra.mxu0 %v8234
    %10203 = vmatpush.bf16.msra.mxu0 %v8224
    %10204 = vmatpush.bf16.msra.mxu0 %v8214
    %10205 = vmatpush.bf16.msra.mxu0 %v8204
    %10206 = vmatpush.bf16.msra.mxu0 %v8194
    %10207 = vmatpush.bf16.msra.mxu0 %v8184
    %10208 = vmatpush.bf16.msra.mxu0 %v8174
    %10209 = vmatpush.bf16.msra.mxu0 %v8164
    %10210 = vmatmul.bf16.gmra.mxu0 %v4474
    %v10211 = vpop.f32.mrf.mxu0
    %v10212 = vadd.f32 %v10198, %v10211
    %v10213 = vpop.f32.mrf.mxu0
    %v10214 = vadd.f32 %v10200, %v10213
    %10215 = vdwg.mxu0
    %10216 = vmatpush.bf16.msra.mxu0 %v8314
    %10217 = vmatpush.bf16.msra.mxu0 %v8304
    %10218 = vmatpush.bf16.msra.mxu0 %v8294
    %10219 = vmatpush.bf16.msra.mxu0 %v8284
    %10220 = vmatpush.bf16.msra.mxu0 %v8274
    %10221 = vmatpush.bf16.msra.mxu0 %v8264
    %10222 = vmatpush.bf16.msra.mxu0 %v8254
    %10223 = vmatpush.bf16.msra.mxu0 %v8244
    %10224 = vmatmul.bf16.gmra.mxu0 %v4475
    %v10225 = vpop.f32.mrf.mxu0
    %v10226 = vadd.f32 %v10212, %v10225
    %v10227 = vpop.f32.mrf.mxu0
    %v10228 = vadd.f32 %v10214, %v10227
    %10229 = vdwg.mxu0
    %10230 = vmatpush.bf16.msra.mxu0 %v8394
    %10231 = vmatpush.bf16.msra.mxu0 %v8384
    %10232 = vmatpush.bf16.msra.mxu0 %v8374
    %10233 = vmatpush.bf16.msra.mxu0 %v8364
    %10234 = vmatpush.bf16.msra.mxu0 %v8354
    %10235 = vmatpush.bf16.msra.mxu0 %v8344
    %10236 = vmatpush.bf16.msra.mxu0 %v8334
    %10237 = vmatpush.bf16.msra.mxu0 %v8324
    %10238 = vmatmul.bf16.gmra.mxu0 %v4476
    %v10239 = vpop.f32.mrf.mxu0
    %v10240 = vadd.f32 %v10226, %v10239
    %v10241 = vpop.f32.mrf.mxu0
    %v10242 = vadd.f32 %v10228, %v10241
    %10243 = vdwg.mxu0
    %10244 = vmatpush.bf16.msra.mxu0 %v8474
    %10245 = vmatpush.bf16.msra.mxu0 %v8464
    %10246 = vmatpush.bf16.msra.mxu0 %v8454
    %10247 = vmatpush.bf16.msra.mxu0 %v8444
    %10248 = vmatpush.bf16.msra.mxu0 %v8434
    %10249 = vmatpush.bf16.msra.mxu0 %v8424
    %10250 = vmatpush.bf16.msra.mxu0 %v8414
    %10251 = vmatpush.bf16.msra.mxu0 %v8404
    %10252 = vmatmul.bf16.gmra.mxu0 %v4477
    %v10253 = vpop.f32.mrf.mxu0
    %v10254 = vadd.f32 %v10240, %v10253
    %v10255 = vpop.f32.mrf.mxu0
    %v10256 = vadd.f32 %v10242, %v10255
    %10257 = vdwg.mxu0
    %10258 = vmatpush.bf16.msra.mxu0 %v7755
    %10259 = vmatpush.bf16.msra.mxu0 %v7745
    %10260 = vmatpush.bf16.msra.mxu0 %v7735
    %10261 = vmatpush.bf16.msra.mxu0 %v7725
    %10262 = vmatpush.bf16.msra.mxu0 %v7715
    %10263 = vmatpush.bf16.msra.mxu0 %v7705
    %10264 = vmatpush.bf16.msra.mxu0 %v7695
    %10265 = vmatpush.bf16.msra.mxu0 %v7685
    %10266 = vmatmul.bf16.gmra.mxu0 %v4468
    %v10267 = vpop.f32.mrf.mxu0
    %v10268 = vadd.f32 0.0, %v10267
    %v10269 = vpop.f32.mrf.mxu0
    %v10270 = vadd.f32 0.0, %v10269
    %10271 = vdwg.mxu0
    %10272 = vmatpush.bf16.msra.mxu0 %v7835
    %10273 = vmatpush.bf16.msra.mxu0 %v7825
    %10274 = vmatpush.bf16.msra.mxu0 %v7815
    %10275 = vmatpush.bf16.msra.mxu0 %v7805
    %10276 = vmatpush.bf16.msra.mxu0 %v7795
    %10277 = vmatpush.bf16.msra.mxu0 %v7785
    %10278 = vmatpush.bf16.msra.mxu0 %v7775
    %10279 = vmatpush.bf16.msra.mxu0 %v7765
    %10280 = vmatmul.bf16.gmra.mxu0 %v4469
    %v10281 = vpop.f32.mrf.mxu0
    %v10282 = vadd.f32 %v10268, %v10281
    %v10283 = vpop.f32.mrf.mxu0
    %v10284 = vadd.f32 %v10270, %v10283
    %10285 = vdwg.mxu0
    %10286 = vmatpush.bf16.msra.mxu0 %v7915
    %10287 = vmatpush.bf16.msra.mxu0 %v7905
    %10288 = vmatpush.bf16.msra.mxu0 %v7895
    %10289 = vmatpush.bf16.msra.mxu0 %v7885
    %10290 = vmatpush.bf16.msra.mxu0 %v7875
    %10291 = vmatpush.bf16.msra.mxu0 %v7865
    %10292 = vmatpush.bf16.msra.mxu0 %v7855
    %10293 = vmatpush.bf16.msra.mxu0 %v7845
    %10294 = vmatmul.bf16.gmra.mxu0 %v4470
    %v10295 = vpop.f32.mrf.mxu0
    %v10296 = vadd.f32 %v10282, %v10295
    %v10297 = vpop.f32.mrf.mxu0
    %v10298 = vadd.f32 %v10284, %v10297
    %10299 = vdwg.mxu0
    %10300 = vmatpush.bf16.msra.mxu0 %v7995
    %10301 = vmatpush.bf16.msra.mxu0 %v7985
    %10302 = vmatpush.bf16.msra.mxu0 %v7975
    %10303 = vmatpush.bf16.msra.mxu0 %v7965
    %10304 = vmatpush.bf16.msra.mxu0 %v7955
    %10305 = vmatpush.bf16.msra.mxu0 %v7945
    %10306 = vmatpush.bf16.msra.mxu0 %v7935
    %10307 = vmatpush.bf16.msra.mxu0 %v7925
    %10308 = vmatmul.bf16.gmra.mxu0 %v4471
    %v10309 = vpop.f32.mrf.mxu0
    %v10310 = vadd.f32 %v10296, %v10309
    %v10311 = vpop.f32.mrf.mxu0
    %v10312 = vadd.f32 %v10298, %v10311
    %10313 = vdwg.mxu0
    %10314 = vmatpush.bf16.msra.mxu0 %v8075
    %10315 = vmatpush.bf16.msra.mxu0 %v8065
    %10316 = vmatpush.bf16.msra.mxu0 %v8055
    %10317 = vmatpush.bf16.msra.mxu0 %v8045
    %10318 = vmatpush.bf16.msra.mxu0 %v8035
    %10319 = vmatpush.bf16.msra.mxu0 %v8025
    %10320 = vmatpush.bf16.msra.mxu0 %v8015
    %10321 = vmatpush.bf16.msra.mxu0 %v8005
    %10322 = vmatmul.bf16.gmra.mxu0 %v4472
    %v10323 = vpop.f32.mrf.mxu0
    %v10324 = vadd.f32 %v10310, %v10323
    %v10325 = vpop.f32.mrf.mxu0
    %v10326 = vadd.f32 %v10312, %v10325
    %10327 = vdwg.mxu0
    %10328 = vmatpush.bf16.msra.mxu0 %v8155
    %10329 = vmatpush.bf16.msra.mxu0 %v8145
    %10330 = vmatpush.bf16.msra.mxu0 %v8135
    %10331 = vmatpush.bf16.msra.mxu0 %v8125
    %10332 = vmatpush.bf16.msra.mxu0 %v8115
    %10333 = vmatpush.bf16.msra.mxu0 %v8105
    %10334 = vmatpush.bf16.msra.mxu0 %v8095
    %10335 = vmatpush.bf16.msra.mxu0 %v8085
    %10336 = vmatmul.bf16.gmra.mxu0 %v4473
    %v10337 = vpop.f32.mrf.mxu0
    %v10338 = vadd.f32 %v10324, %v10337
    %v10339 = vpop.f32.mrf.mxu0
    %v10340 = vadd.f32 %v10326, %v10339
    %10341 = vdwg.mxu0
    %10342 = vmatpush.bf16.msra.mxu0 %v8235
    %10343 = vmatpush.bf16.msra.mxu0 %v8225
    %10344 = vmatpush.bf16.msra.mxu0 %v8215
    %10345 = vmatpush.bf16.msra.mxu0 %v8205
    %10346 = vmatpush.bf16.msra.mxu0 %v8195
    %10347 = vmatpush.bf16.msra.mxu0 %v8185
    %10348 = vmatpush.bf16.msra.mxu0 %v8175
    %10349 = vmatpush.bf16.msra.mxu0 %v8165
    %10350 = vmatmul.bf16.gmra.mxu0 %v4474
    %v10351 = vpop.f32.mrf.mxu0
    %v10352 = vadd.f32 %v10338, %v10351
    %v10353 = vpop.f32.mrf.mxu0
    %v10354 = vadd.f32 %v10340, %v10353
    %10355 = vdwg.mxu0
    %10356 = vmatpush.bf16.msra.mxu0 %v8315
    %10357 = vmatpush.bf16.msra.mxu0 %v8305
    %10358 = vmatpush.bf16.msra.mxu0 %v8295
    %10359 = vmatpush.bf16.msra.mxu0 %v8285
    %10360 = vmatpush.bf16.msra.mxu0 %v8275
    %10361 = vmatpush.bf16.msra.mxu0 %v8265
    %10362 = vmatpush.bf16.msra.mxu0 %v8255
    %10363 = vmatpush.bf16.msra.mxu0 %v8245
    %10364 = vmatmul.bf16.gmra.mxu0 %v4475
    %v10365 = vpop.f32.mrf.mxu0
    %v10366 = vadd.f32 %v10352, %v10365
    %v10367 = vpop.f32.mrf.mxu0
    %v10368 = vadd.f32 %v10354, %v10367
    %10369 = vdwg.mxu0
    %10370 = vmatpush.bf16.msra.mxu0 %v8395
    %10371 = vmatpush.bf16.msra.mxu0 %v8385
    %10372 = vmatpush.bf16.msra.mxu0 %v8375
    %10373 = vmatpush.bf16.msra.mxu0 %v8365
    %10374 = vmatpush.bf16.msra.mxu0 %v8355
    %10375 = vmatpush.bf16.msra.mxu0 %v8345
    %10376 = vmatpush.bf16.msra.mxu0 %v8335
    %10377 = vmatpush.bf16.msra.mxu0 %v8325
    %10378 = vmatmul.bf16.gmra.mxu0 %v4476
    %v10379 = vpop.f32.mrf.mxu0
    %v10380 = vadd.f32 %v10366, %v10379
    %v10381 = vpop.f32.mrf.mxu0
    %v10382 = vadd.f32 %v10368, %v10381
    %10383 = vdwg.mxu0
    %10384 = vmatpush.bf16.msra.mxu0 %v8475
    %10385 = vmatpush.bf16.msra.mxu0 %v8465
    %10386 = vmatpush.bf16.msra.mxu0 %v8455
    %10387 = vmatpush.bf16.msra.mxu0 %v8445
    %10388 = vmatpush.bf16.msra.mxu0 %v8435
    %10389 = vmatpush.bf16.msra.mxu0 %v8425
    %10390 = vmatpush.bf16.msra.mxu0 %v8415
    %10391 = vmatpush.bf16.msra.mxu0 %v8405
    %10392 = vmatmul.bf16.gmra.mxu0 %v4477
    %v10393 = vpop.f32.mrf.mxu0
    %v10394 = vadd.f32 %v10380, %v10393
    %v10395 = vpop.f32.mrf.mxu0
    %v10396 = vadd.f32 %v10382, %v10395
    %10397 = vdwg.mxu0
    %10398 = vmatpush.bf16.msra.mxu0 %v7756
    %10399 = vmatpush.bf16.msra.mxu0 %v7746
    %10400 = vmatpush.bf16.msra.mxu0 %v7736
    %10401 = vmatpush.bf16.msra.mxu0 %v7726
    %10402 = vmatpush.bf16.msra.mxu0 %v7716
    %10403 = vmatpush.bf16.msra.mxu0 %v7706
    %10404 = vmatpush.bf16.msra.mxu0 %v7696
    %10405 = vmatpush.bf16.msra.mxu0 %v7686
    %10406 = vmatmul.bf16.gmra.mxu0 %v4468
    %v10407 = vpop.f32.mrf.mxu0
    %v10408 = vadd.f32 0.0, %v10407
    %v10409 = vpop.f32.mrf.mxu0
    %v10410 = vadd.f32 0.0, %v10409
    %10411 = vdwg.mxu0
    %10412 = vmatpush.bf16.msra.mxu0 %v7836
    %10413 = vmatpush.bf16.msra.mxu0 %v7826
    %10414 = vmatpush.bf16.msra.mxu0 %v7816
    %10415 = vmatpush.bf16.msra.mxu0 %v7806
    %10416 = vmatpush.bf16.msra.mxu0 %v7796
    %10417 = vmatpush.bf16.msra.mxu0 %v7786
    %10418 = vmatpush.bf16.msra.mxu0 %v7776
    %10419 = vmatpush.bf16.msra.mxu0 %v7766
    %10420 = vmatmul.bf16.gmra.mxu0 %v4469
    %v10421 = vpop.f32.mrf.mxu0
    %v10422 = vadd.f32 %v10408, %v10421
    %v10423 = vpop.f32.mrf.mxu0
    %v10424 = vadd.f32 %v10410, %v10423
    %10425 = vdwg.mxu0
    %10426 = vmatpush.bf16.msra.mxu0 %v7916
    %10427 = vmatpush.bf16.msra.mxu0 %v7906
    %10428 = vmatpush.bf16.msra.mxu0 %v7896
    %10429 = vmatpush.bf16.msra.mxu0 %v7886
    %10430 = vmatpush.bf16.msra.mxu0 %v7876
    %10431 = vmatpush.bf16.msra.mxu0 %v7866
    %10432 = vmatpush.bf16.msra.mxu0 %v7856
    %10433 = vmatpush.bf16.msra.mxu0 %v7846
    %10434 = vmatmul.bf16.gmra.mxu0 %v4470
    %v10435 = vpop.f32.mrf.mxu0
    %v10436 = vadd.f32 %v10422, %v10435
    %v10437 = vpop.f32.mrf.mxu0
    %v10438 = vadd.f32 %v10424, %v10437
    %10439 = vdwg.mxu0
    %10440 = vmatpush.bf16.msra.mxu0 %v7996
    %10441 = vmatpush.bf16.msra.mxu0 %v7986
    %10442 = vmatpush.bf16.msra.mxu0 %v7976
    %10443 = vmatpush.bf16.msra.mxu0 %v7966
    %10444 = vmatpush.bf16.msra.mxu0 %v7956
    %10445 = vmatpush.bf16.msra.mxu0 %v7946
    %10446 = vmatpush.bf16.msra.mxu0 %v7936
    %10447 = vmatpush.bf16.msra.mxu0 %v7926
    %10448 = vmatmul.bf16.gmra.mxu0 %v4471
    %v10449 = vpop.f32.mrf.mxu0
    %v10450 = vadd.f32 %v10436, %v10449
    %v10451 = vpop.f32.mrf.mxu0
    %v10452 = vadd.f32 %v10438, %v10451
    %10453 = vdwg.mxu0
    %10454 = vmatpush.bf16.msra.mxu0 %v8076
    %10455 = vmatpush.bf16.msra.mxu0 %v8066
    %10456 = vmatpush.bf16.msra.mxu0 %v8056
    %10457 = vmatpush.bf16.msra.mxu0 %v8046
    %10458 = vmatpush.bf16.msra.mxu0 %v8036
    %10459 = vmatpush.bf16.msra.mxu0 %v8026
    %10460 = vmatpush.bf16.msra.mxu0 %v8016
    %10461 = vmatpush.bf16.msra.mxu0 %v8006
    %10462 = vmatmul.bf16.gmra.mxu0 %v4472
    %v10463 = vpop.f32.mrf.mxu0
    %v10464 = vadd.f32 %v10450, %v10463
    %v10465 = vpop.f32.mrf.mxu0
    %v10466 = vadd.f32 %v10452, %v10465
    %10467 = vdwg.mxu0
    %10468 = vmatpush.bf16.msra.mxu0 %v8156
    %10469 = vmatpush.bf16.msra.mxu0 %v8146
    %10470 = vmatpush.bf16.msra.mxu0 %v8136
    %10471 = vmatpush.bf16.msra.mxu0 %v8126
    %10472 = vmatpush.bf16.msra.mxu0 %v8116
    %10473 = vmatpush.bf16.msra.mxu0 %v8106
    %10474 = vmatpush.bf16.msra.mxu0 %v8096
    %10475 = vmatpush.bf16.msra.mxu0 %v8086
    %10476 = vmatmul.bf16.gmra.mxu0 %v4473
    %v10477 = vpop.f32.mrf.mxu0
    %v10478 = vadd.f32 %v10464, %v10477
    %v10479 = vpop.f32.mrf.mxu0
    %v10480 = vadd.f32 %v10466, %v10479
    %10481 = vdwg.mxu0
    %10482 = vmatpush.bf16.msra.mxu0 %v8236
    %10483 = vmatpush.bf16.msra.mxu0 %v8226
    %10484 = vmatpush.bf16.msra.mxu0 %v8216
    %10485 = vmatpush.bf16.msra.mxu0 %v8206
    %10486 = vmatpush.bf16.msra.mxu0 %v8196
    %10487 = vmatpush.bf16.msra.mxu0 %v8186
    %10488 = vmatpush.bf16.msra.mxu0 %v8176
    %10489 = vmatpush.bf16.msra.mxu0 %v8166
    %10490 = vmatmul.bf16.gmra.mxu0 %v4474
    %v10491 = vpop.f32.mrf.mxu0
    %v10492 = vadd.f32 %v10478, %v10491
    %v10493 = vpop.f32.mrf.mxu0
    %v10494 = vadd.f32 %v10480, %v10493
    %10495 = vdwg.mxu0
    %10496 = vmatpush.bf16.msra.mxu0 %v8316
    %10497 = vmatpush.bf16.msra.mxu0 %v8306
    %10498 = vmatpush.bf16.msra.mxu0 %v8296
    %10499 = vmatpush.bf16.msra.mxu0 %v8286
    %10500 = vmatpush.bf16.msra.mxu0 %v8276
    %10501 = vmatpush.bf16.msra.mxu0 %v8266
    %10502 = vmatpush.bf16.msra.mxu0 %v8256
    %10503 = vmatpush.bf16.msra.mxu0 %v8246
    %10504 = vmatmul.bf16.gmra.mxu0 %v4475
    %v10505 = vpop.f32.mrf.mxu0
    %v10506 = vadd.f32 %v10492, %v10505
    %v10507 = vpop.f32.mrf.mxu0
    %v10508 = vadd.f32 %v10494, %v10507
    %10509 = vdwg.mxu0
    %10510 = vmatpush.bf16.msra.mxu0 %v8396
    %10511 = vmatpush.bf16.msra.mxu0 %v8386
    %10512 = vmatpush.bf16.msra.mxu0 %v8376
    %10513 = vmatpush.bf16.msra.mxu0 %v8366
    %10514 = vmatpush.bf16.msra.mxu0 %v8356
    %10515 = vmatpush.bf16.msra.mxu0 %v8346
    %10516 = vmatpush.bf16.msra.mxu0 %v8336
    %10517 = vmatpush.bf16.msra.mxu0 %v8326
    %10518 = vmatmul.bf16.gmra.mxu0 %v4476
    %v10519 = vpop.f32.mrf.mxu0
    %v10520 = vadd.f32 %v10506, %v10519
    %v10521 = vpop.f32.mrf.mxu0
    %v10522 = vadd.f32 %v10508, %v10521
    %10523 = vdwg.mxu0
    %10524 = vmatpush.bf16.msra.mxu0 %v8476
    %10525 = vmatpush.bf16.msra.mxu0 %v8466
    %10526 = vmatpush.bf16.msra.mxu0 %v8456
    %10527 = vmatpush.bf16.msra.mxu0 %v8446
    %10528 = vmatpush.bf16.msra.mxu0 %v8436
    %10529 = vmatpush.bf16.msra.mxu0 %v8426
    %10530 = vmatpush.bf16.msra.mxu0 %v8416
    %10531 = vmatpush.bf16.msra.mxu0 %v8406
    %10532 = vmatmul.bf16.gmra.mxu0 %v4477
    %v10533 = vpop.f32.mrf.mxu0
    %v10534 = vadd.f32 %v10520, %v10533
    %v10535 = vpop.f32.mrf.mxu0
    %v10536 = vadd.f32 %v10522, %v10535
    %10537 = vdwg.mxu0
    %10538 = vmatpush.bf16.msra.mxu0 %v7757
    %10539 = vmatpush.bf16.msra.mxu0 %v7747
    %10540 = vmatpush.bf16.msra.mxu0 %v7737
    %10541 = vmatpush.bf16.msra.mxu0 %v7727
    %10542 = vmatpush.bf16.msra.mxu0 %v7717
    %10543 = vmatpush.bf16.msra.mxu0 %v7707
    %10544 = vmatpush.bf16.msra.mxu0 %v7697
    %10545 = vmatpush.bf16.msra.mxu0 %v7687
    %10546 = vmatmul.bf16.gmra.mxu0 %v4468
    %v10547 = vpop.f32.mrf.mxu0
    %v10548 = vadd.f32 0.0, %v10547
    %v10549 = vpop.f32.mrf.mxu0
    %v10550 = vadd.f32 0.0, %v10549
    %10551 = vdwg.mxu0
    %10552 = vmatpush.bf16.msra.mxu0 %v7837
    %10553 = vmatpush.bf16.msra.mxu0 %v7827
    %10554 = vmatpush.bf16.msra.mxu0 %v7817
    %10555 = vmatpush.bf16.msra.mxu0 %v7807
    %10556 = vmatpush.bf16.msra.mxu0 %v7797
    %10557 = vmatpush.bf16.msra.mxu0 %v7787
    %10558 = vmatpush.bf16.msra.mxu0 %v7777
    %10559 = vmatpush.bf16.msra.mxu0 %v7767
    %10560 = vmatmul.bf16.gmra.mxu0 %v4469
    %v10561 = vpop.f32.mrf.mxu0
    %v10562 = vadd.f32 %v10548, %v10561
    %v10563 = vpop.f32.mrf.mxu0
    %v10564 = vadd.f32 %v10550, %v10563
    %10565 = vdwg.mxu0
    %10566 = vmatpush.bf16.msra.mxu0 %v7917
    %10567 = vmatpush.bf16.msra.mxu0 %v7907
    %10568 = vmatpush.bf16.msra.mxu0 %v7897
    %10569 = vmatpush.bf16.msra.mxu0 %v7887
    %10570 = vmatpush.bf16.msra.mxu0 %v7877
    %10571 = vmatpush.bf16.msra.mxu0 %v7867
    %10572 = vmatpush.bf16.msra.mxu0 %v7857
    %10573 = vmatpush.bf16.msra.mxu0 %v7847
    %10574 = vmatmul.bf16.gmra.mxu0 %v4470
    %v10575 = vpop.f32.mrf.mxu0
    %v10576 = vadd.f32 %v10562, %v10575
    %v10577 = vpop.f32.mrf.mxu0
    %v10578 = vadd.f32 %v10564, %v10577
    %10579 = vdwg.mxu0
    %10580 = vmatpush.bf16.msra.mxu0 %v7997
    %10581 = vmatpush.bf16.msra.mxu0 %v7987
    %10582 = vmatpush.bf16.msra.mxu0 %v7977
    %10583 = vmatpush.bf16.msra.mxu0 %v7967
    %10584 = vmatpush.bf16.msra.mxu0 %v7957
    %10585 = vmatpush.bf16.msra.mxu0 %v7947
    %10586 = vmatpush.bf16.msra.mxu0 %v7937
    %10587 = vmatpush.bf16.msra.mxu0 %v7927
    %10588 = vmatmul.bf16.gmra.mxu0 %v4471
    %v10589 = vpop.f32.mrf.mxu0
    %v10590 = vadd.f32 %v10576, %v10589
    %v10591 = vpop.f32.mrf.mxu0
    %v10592 = vadd.f32 %v10578, %v10591
    %10593 = vdwg.mxu0
    %10594 = vmatpush.bf16.msra.mxu0 %v8077
    %10595 = vmatpush.bf16.msra.mxu0 %v8067
    %10596 = vmatpush.bf16.msra.mxu0 %v8057
    %10597 = vmatpush.bf16.msra.mxu0 %v8047
    %10598 = vmatpush.bf16.msra.mxu0 %v8037
    %10599 = vmatpush.bf16.msra.mxu0 %v8027
    %10600 = vmatpush.bf16.msra.mxu0 %v8017
    %10601 = vmatpush.bf16.msra.mxu0 %v8007
    %10602 = vmatmul.bf16.gmra.mxu0 %v4472
    %v10603 = vpop.f32.mrf.mxu0
    %v10604 = vadd.f32 %v10590, %v10603
    %v10605 = vpop.f32.mrf.mxu0
    %v10606 = vadd.f32 %v10592, %v10605
    %10607 = vdwg.mxu0
    %10608 = vmatpush.bf16.msra.mxu0 %v8157
    %10609 = vmatpush.bf16.msra.mxu0 %v8147
    %10610 = vmatpush.bf16.msra.mxu0 %v8137
    %10611 = vmatpush.bf16.msra.mxu0 %v8127
    %10612 = vmatpush.bf16.msra.mxu0 %v8117
    %10613 = vmatpush.bf16.msra.mxu0 %v8107
    %10614 = vmatpush.bf16.msra.mxu0 %v8097
    %10615 = vmatpush.bf16.msra.mxu0 %v8087
    %10616 = vmatmul.bf16.gmra.mxu0 %v4473
    %v10617 = vpop.f32.mrf.mxu0
    %v10618 = vadd.f32 %v10604, %v10617
    %v10619 = vpop.f32.mrf.mxu0
    %v10620 = vadd.f32 %v10606, %v10619
    %10621 = vdwg.mxu0
    %10622 = vmatpush.bf16.msra.mxu0 %v8237
    %10623 = vmatpush.bf16.msra.mxu0 %v8227
    %10624 = vmatpush.bf16.msra.mxu0 %v8217
    %10625 = vmatpush.bf16.msra.mxu0 %v8207
    %10626 = vmatpush.bf16.msra.mxu0 %v8197
    %10627 = vmatpush.bf16.msra.mxu0 %v8187
    %10628 = vmatpush.bf16.msra.mxu0 %v8177
    %10629 = vmatpush.bf16.msra.mxu0 %v8167
    %10630 = vmatmul.bf16.gmra.mxu0 %v4474
    %v10631 = vpop.f32.mrf.mxu0
    %v10632 = vadd.f32 %v10618, %v10631
    %v10633 = vpop.f32.mrf.mxu0
    %v10634 = vadd.f32 %v10620, %v10633
    %10635 = vdwg.mxu0
    %10636 = vmatpush.bf16.msra.mxu0 %v8317
    %10637 = vmatpush.bf16.msra.mxu0 %v8307
    %10638 = vmatpush.bf16.msra.mxu0 %v8297
    %10639 = vmatpush.bf16.msra.mxu0 %v8287
    %10640 = vmatpush.bf16.msra.mxu0 %v8277
    %10641 = vmatpush.bf16.msra.mxu0 %v8267
    %10642 = vmatpush.bf16.msra.mxu0 %v8257
    %10643 = vmatpush.bf16.msra.mxu0 %v8247
    %10644 = vmatmul.bf16.gmra.mxu0 %v4475
    %v10645 = vpop.f32.mrf.mxu0
    %v10646 = vadd.f32 %v10632, %v10645
    %v10647 = vpop.f32.mrf.mxu0
    %v10648 = vadd.f32 %v10634, %v10647
    %10649 = vdwg.mxu0
    %10650 = vmatpush.bf16.msra.mxu0 %v8397
    %10651 = vmatpush.bf16.msra.mxu0 %v8387
    %10652 = vmatpush.bf16.msra.mxu0 %v8377
    %10653 = vmatpush.bf16.msra.mxu0 %v8367
    %10654 = vmatpush.bf16.msra.mxu0 %v8357
    %10655 = vmatpush.bf16.msra.mxu0 %v8347
    %10656 = vmatpush.bf16.msra.mxu0 %v8337
    %10657 = vmatpush.bf16.msra.mxu0 %v8327
    %10658 = vmatmul.bf16.gmra.mxu0 %v4476
    %v10659 = vpop.f32.mrf.mxu0
    %v10660 = vadd.f32 %v10646, %v10659
    %v10661 = vpop.f32.mrf.mxu0
    %v10662 = vadd.f32 %v10648, %v10661
    %10663 = vdwg.mxu0
    %10664 = vmatpush.bf16.msra.mxu0 %v8477
    %10665 = vmatpush.bf16.msra.mxu0 %v8467
    %10666 = vmatpush.bf16.msra.mxu0 %v8457
    %10667 = vmatpush.bf16.msra.mxu0 %v8447
    %10668 = vmatpush.bf16.msra.mxu0 %v8437
    %10669 = vmatpush.bf16.msra.mxu0 %v8427
    %10670 = vmatpush.bf16.msra.mxu0 %v8417
    %10671 = vmatpush.bf16.msra.mxu0 %v8407
    %10672 = vmatmul.bf16.gmra.mxu0 %v4477
    %v10673 = vpop.f32.mrf.mxu0
    %v10674 = vadd.f32 %v10660, %v10673
    %v10675 = vpop.f32.mrf.mxu0
    %v10676 = vadd.f32 %v10662, %v10675
    %10677 = vdwg.mxu0
    %v10678 = vmax.f32 %v9414, 0.0
    %v10679 = vmax.f32 %v9554, 0.0
    %v10680 = vmax.f32 %v9694, 0.0
    %v10681 = vmax.f32 %v9834, 0.0
    %v10682 = vmax.f32 %v9974, 0.0
    %v10683 = vmax.f32 %v10114, 0.0
    %v10684 = vmax.f32 %v10254, 0.0
    %v10685 = vmax.f32 %v10394, 0.0
    %v10686 = vmax.f32 %v10534, 0.0
    %v10687 = vmax.f32 %v10674, 0.0
    %v10688 = vmax.f32 %v9416, 0.0
    %v10689 = vmax.f32 %v9556, 0.0
    %v10690 = vmax.f32 %v9696, 0.0
    %v10691 = vmax.f32 %v9836, 0.0
    %v10692 = vmax.f32 %v9976, 0.0
    %v10693 = vmax.f32 %v10116, 0.0
    %v10694 = vmax.f32 %v10256, 0.0
    %v10695 = vmax.f32 %v10396, 0.0
    %v10696 = vmax.f32 %v10536, 0.0
    %v10697 = vmax.f32 %v10676, 0.0
    %v10698 = vpack.c.bf16 %v10688, %v10678
    %v10699 = vpack.c.bf16 %v10689, %v10679
    %v10700 = vpack.c.bf16 %v10690, %v10680
    %v10701 = vpack.c.bf16 %v10691, %v10681
    %v10702 = vpack.c.bf16 %v10692, %v10682
    %v10703 = vpack.c.bf16 %v10693, %v10683
    %v10704 = vpack.c.bf16 %v10694, %v10684
    %v10705 = vpack.c.bf16 %v10695, %v10685
    %v10706 = vpack.c.bf16 %v10696, %v10686
    %v10707 = vpack.c.bf16 %v10697, %v10687
    %v10708 = vld [vmem:[#allocation6] sm:$0xf]
    %v10709 = vld [vmem:[#allocation6 + $0x4] sm:$0xf]
    %v10710 = vld [vmem:[#allocation6 + $0x8] sm:$0xf]
    %v10711 = vld [vmem:[#allocation6 + $0xc] sm:$0xf]
    %v10712 = vld [vmem:[#allocation6 + $0x10] sm:$0xf]
    %v10713 = vld [vmem:[#allocation6 + $0x14] sm:$0xf]
    %v10714 = vld [vmem:[#allocation6 + $0x18] sm:$0xf]
    %v10715 = vld [vmem:[#allocation6 + $0x1c] sm:$0xf]
    %v10716 = vld [vmem:[#allocation6 + $0x20] sm:$0xf]
    %v10717 = vld [vmem:[#allocation6 + $0x24] sm:$0xf]
    %v10718 = vld [vmem:[#allocation6 + $0x28] sm:$0xf]
    %v10719 = vld [vmem:[#allocation6 + $0x2c] sm:$0xf]
    %v10720 = vld [vmem:[#allocation6 + $0x30] sm:$0xf]
    %v10721 = vld [vmem:[#allocation6 + $0x34] sm:$0xf]
    %v10722 = vld [vmem:[#allocation6 + $0x38] sm:$0xf]
    %v10723 = vld [vmem:[#allocation6 + $0x3c] sm:$0xf]
    %v10724 = vld [vmem:[#allocation6 + $0x40] sm:$0xf]
    %v10725 = vld [vmem:[#allocation6 + $0x44] sm:$0xf]
    %v10726 = vld [vmem:[#allocation6 + $0x48] sm:$0xf]
    %v10727 = vld [vmem:[#allocation6 + $0x4c] sm:$0xf]
    %v10728 = vld [vmem:[#allocation6 + $0x50] sm:$0xf]
    %v10729 = vld [vmem:[#allocation6 + $0x54] sm:$0xf]
    %v10730 = vld [vmem:[#allocation6 + $0x58] sm:$0xf]
    %v10731 = vld [vmem:[#allocation6 + $0x5c] sm:$0xf]
    %v10732 = vld [vmem:[#allocation6 + $0x60] sm:$0xf]
    %v10733 = vld [vmem:[#allocation6 + $0x64] sm:$0xf]
    %v10734 = vld [vmem:[#allocation6 + $0x68] sm:$0xf]
    %v10735 = vld [vmem:[#allocation6 + $0x6c] sm:$0xf]
    %v10736 = vld [vmem:[#allocation6 + $0x70] sm:$0xf]
    %v10737 = vld [vmem:[#allocation6 + $0x74] sm:$0xf]
    %v10738 = vld [vmem:[#allocation6 + $0x78] sm:$0xf]
    %v10739 = vld [vmem:[#allocation6 + $0x7c] sm:$0xf]
    %v10740 = vld [vmem:[#allocation6 + $0x80] sm:$0xf]
    %v10741 = vld [vmem:[#allocation6 + $0x84] sm:$0xf]
    %v10742 = vld [vmem:[#allocation6 + $0x88] sm:$0xf]
    %v10743 = vld [vmem:[#allocation6 + $0x8c] sm:$0xf]
    %v10744 = vld [vmem:[#allocation6 + $0x90] sm:$0xf]
    %v10745 = vld [vmem:[#allocation6 + $0x94] sm:$0xf]
    %v10746 = vld [vmem:[#allocation6 + $0x98] sm:$0xf]
    %v10747 = vld [vmem:[#allocation6 + $0x9c] sm:$0xf]
    %v10748 = vld [vmem:[#allocation6 + $0xa0] sm:$0xf]
    %v10749 = vld [vmem:[#allocation6 + $0xa4] sm:$0xf]
    %v10750 = vld [vmem:[#allocation6 + $0xa8] sm:$0xf]
    %v10751 = vld [vmem:[#allocation6 + $0xac] sm:$0xf]
    %v10752 = vld [vmem:[#allocation6 + $0xb0] sm:$0xf]
    %v10753 = vld [vmem:[#allocation6 + $0xb4] sm:$0xf]
    %v10754 = vld [vmem:[#allocation6 + $0xb8] sm:$0xf]
    %v10755 = vld [vmem:[#allocation6 + $0xbc] sm:$0xf]
    %v10756 = vld [vmem:[#allocation6 + $0xc0] sm:$0xf]
    %v10757 = vld [vmem:[#allocation6 + $0xc4] sm:$0xf]
    %v10758 = vld [vmem:[#allocation6 + $0xc8] sm:$0xf]
    %v10759 = vld [vmem:[#allocation6 + $0xcc] sm:$0xf]
    %v10760 = vld [vmem:[#allocation6 + $0xd0] sm:$0xf]
    %v10761 = vld [vmem:[#allocation6 + $0xd4] sm:$0xf]
    %v10762 = vld [vmem:[#allocation6 + $0xd8] sm:$0xf]
    %v10763 = vld [vmem:[#allocation6 + $0xdc] sm:$0xf]
    %v10764 = vld [vmem:[#allocation6 + $0xe0] sm:$0xf]
    %v10765 = vld [vmem:[#allocation6 + $0xe4] sm:$0xf]
    %v10766 = vld [vmem:[#allocation6 + $0xe8] sm:$0xf]
    %v10767 = vld [vmem:[#allocation6 + $0xec] sm:$0xf]
    %v10768 = vld [vmem:[#allocation6 + $0xf0] sm:$0xf]
    %v10769 = vld [vmem:[#allocation6 + $0xf4] sm:$0xf]
    %v10770 = vld [vmem:[#allocation6 + $0xf8] sm:$0xf]
    %v10771 = vld [vmem:[#allocation6 + $0xfc] sm:$0xf]
    %v10772 = vld [vmem:[#allocation6 + $0x100] sm:$0xf]
    %v10773 = vld [vmem:[#allocation6 + $0x104] sm:$0xf]
    %v10774 = vld [vmem:[#allocation6 + $0x108] sm:$0xf]
    %v10775 = vld [vmem:[#allocation6 + $0x10c] sm:$0xf]
    %v10776 = vld [vmem:[#allocation6 + $0x110] sm:$0xf]
    %v10777 = vld [vmem:[#allocation6 + $0x114] sm:$0xf]
    %v10778 = vld [vmem:[#allocation6 + $0x118] sm:$0xf]
    %v10779 = vld [vmem:[#allocation6 + $0x11c] sm:$0xf]
    %v10780 = vld [vmem:[#allocation6 + $0x120] sm:$0xf]
    %v10781 = vld [vmem:[#allocation6 + $0x124] sm:$0xf]
    %v10782 = vld [vmem:[#allocation6 + $0x128] sm:$0xf]
    %v10783 = vld [vmem:[#allocation6 + $0x12c] sm:$0xf]
    %v10784 = vld [vmem:[#allocation6 + $0x130] sm:$0xf]
    %v10785 = vld [vmem:[#allocation6 + $0x134] sm:$0xf]
    %v10786 = vld [vmem:[#allocation6 + $0x138] sm:$0xf]
    %v10787 = vld [vmem:[#allocation6 + $0x13c] sm:$0xf]
    %v10788 = vld [vmem:[#allocation6 + $0x140] sm:$0xf]
    %v10789 = vld [vmem:[#allocation6 + $0x144] sm:$0xf]
    %v10790 = vld [vmem:[#allocation6 + $0x148] sm:$0xf]
    %v10791 = vld [vmem:[#allocation6 + $0x14c] sm:$0xf]
    %v10792 = vld [vmem:[#allocation6 + $0x150] sm:$0xf]
    %v10793 = vld [vmem:[#allocation6 + $0x154] sm:$0xf]
    %v10794 = vld [vmem:[#allocation6 + $0x158] sm:$0xf]
    %v10795 = vld [vmem:[#allocation6 + $0x15c] sm:$0xf]
    %v10796 = vld [vmem:[#allocation6 + $0x160] sm:$0xf]
    %v10797 = vld [vmem:[#allocation6 + $0x164] sm:$0xf]
    %v10798 = vld [vmem:[#allocation6 + $0x168] sm:$0xf]
    %v10799 = vld [vmem:[#allocation6 + $0x16c] sm:$0xf]
    %v10800 = vld [vmem:[#allocation6 + $0x170] sm:$0xf]
    %v10801 = vld [vmem:[#allocation6 + $0x174] sm:$0xf]
    %v10802 = vld [vmem:[#allocation6 + $0x178] sm:$0xf]
    %v10803 = vld [vmem:[#allocation6 + $0x17c] sm:$0xf]
    %v10804 = vld [vmem:[#allocation6 + $0x180] sm:$0xf]
    %v10805 = vld [vmem:[#allocation6 + $0x184] sm:$0xf]
    %v10806 = vld [vmem:[#allocation6 + $0x188] sm:$0xf]
    %v10807 = vld [vmem:[#allocation6 + $0x18c] sm:$0xf]
    %v10808 = vld [vmem:[#allocation6 + $0x190] sm:$0xf]
    %v10809 = vld [vmem:[#allocation6 + $0x194] sm:$0xf]
    %v10810 = vld [vmem:[#allocation6 + $0x198] sm:$0xf]
    %v10811 = vld [vmem:[#allocation6 + $0x19c] sm:$0xf]
    %v10812 = vld [vmem:[#allocation6 + $0x1a0] sm:$0xf]
    %v10813 = vld [vmem:[#allocation6 + $0x1a4] sm:$0xf]
    %v10814 = vld [vmem:[#allocation6 + $0x1a8] sm:$0xf]
    %v10815 = vld [vmem:[#allocation6 + $0x1ac] sm:$0xf]
    %v10816 = vld [vmem:[#allocation6 + $0x1b0] sm:$0xf]
    %v10817 = vld [vmem:[#allocation6 + $0x1b4] sm:$0xf]
    %v10818 = vld [vmem:[#allocation6 + $0x1b8] sm:$0xf]
    %v10819 = vld [vmem:[#allocation6 + $0x1bc] sm:$0xf]
    %v10820 = vld [vmem:[#allocation6 + $0x1c0] sm:$0xf]
    %v10821 = vld [vmem:[#allocation6 + $0x1c4] sm:$0xf]
    %v10822 = vld [vmem:[#allocation6 + $0x1c8] sm:$0xf]
    %v10823 = vld [vmem:[#allocation6 + $0x1cc] sm:$0xf]
    %v10824 = vld [vmem:[#allocation6 + $0x1d0] sm:$0xf]
    %v10825 = vld [vmem:[#allocation6 + $0x1d4] sm:$0xf]
    %v10826 = vld [vmem:[#allocation6 + $0x1d8] sm:$0xf]
    %v10827 = vld [vmem:[#allocation6 + $0x1dc] sm:$0xf]
    %v10828 = vld [vmem:[#allocation6 + $0x1e0] sm:$0xf]
    %v10829 = vld [vmem:[#allocation6 + $0x1e4] sm:$0xf]
    %v10830 = vld [vmem:[#allocation6 + $0x1e8] sm:$0xf]
    %v10831 = vld [vmem:[#allocation6 + $0x1ec] sm:$0xf]
    %v10832 = vld [vmem:[#allocation6 + $0x1f0] sm:$0xf]
    %v10833 = vld [vmem:[#allocation6 + $0x1f4] sm:$0xf]
    %v10834 = vld [vmem:[#allocation6 + $0x1f8] sm:$0xf]
    %v10835 = vld [vmem:[#allocation6 + $0x1fc] sm:$0xf]
    %v10836 = vld [vmem:[#allocation6 + $0x200] sm:$0xf]
    %v10837 = vld [vmem:[#allocation6 + $0x204] sm:$0xf]
    %v10838 = vld [vmem:[#allocation6 + $0x208] sm:$0xf]
    %v10839 = vld [vmem:[#allocation6 + $0x20c] sm:$0xf]
    %v10840 = vld [vmem:[#allocation6 + $0x210] sm:$0xf]
    %v10841 = vld [vmem:[#allocation6 + $0x214] sm:$0xf]
    %v10842 = vld [vmem:[#allocation6 + $0x218] sm:$0xf]
    %v10843 = vld [vmem:[#allocation6 + $0x21c] sm:$0xf]
    %v10844 = vld [vmem:[#allocation6 + $0x220] sm:$0xf]
    %v10845 = vld [vmem:[#allocation6 + $0x224] sm:$0xf]
    %v10846 = vld [vmem:[#allocation6 + $0x228] sm:$0xf]
    %v10847 = vld [vmem:[#allocation6 + $0x22c] sm:$0xf]
    %v10848 = vld [vmem:[#allocation6 + $0x230] sm:$0xf]
    %v10849 = vld [vmem:[#allocation6 + $0x234] sm:$0xf]
    %v10850 = vld [vmem:[#allocation6 + $0x238] sm:$0xf]
    %v10851 = vld [vmem:[#allocation6 + $0x23c] sm:$0xf]
    %v10852 = vld [vmem:[#allocation6 + $0x240] sm:$0xf]
    %v10853 = vld [vmem:[#allocation6 + $0x244] sm:$0xf]
    %v10854 = vld [vmem:[#allocation6 + $0x248] sm:$0xf]
    %v10855 = vld [vmem:[#allocation6 + $0x24c] sm:$0xf]
    %v10856 = vld [vmem:[#allocation6 + $0x250] sm:$0xf]
    %v10857 = vld [vmem:[#allocation6 + $0x254] sm:$0xf]
    %v10858 = vld [vmem:[#allocation6 + $0x258] sm:$0xf]
    %v10859 = vld [vmem:[#allocation6 + $0x25c] sm:$0xf]
    %v10860 = vld [vmem:[#allocation6 + $0x260] sm:$0xf]
    %v10861 = vld [vmem:[#allocation6 + $0x264] sm:$0xf]
    %v10862 = vld [vmem:[#allocation6 + $0x268] sm:$0xf]
    %v10863 = vld [vmem:[#allocation6 + $0x26c] sm:$0xf]
    %v10864 = vld [vmem:[#allocation6 + $0x270] sm:$0xf]
    %v10865 = vld [vmem:[#allocation6 + $0x274] sm:$0xf]
    %v10866 = vld [vmem:[#allocation6 + $0x278] sm:$0xf]
    %v10867 = vld [vmem:[#allocation6 + $0x27c] sm:$0xf]
    %v11028 = vunpack.c.l.b16 %v10708
    %v11029 = vunpack.c.l.b16 %v10709
    %v11030 = vunpack.c.l.b16 %v10710
    %v11031 = vunpack.c.l.b16 %v10711
    %v11032 = vunpack.c.l.b16 %v10712
    %v11033 = vunpack.c.l.b16 %v10713
    %v11034 = vunpack.c.l.b16 %v10714
    %v11035 = vunpack.c.l.b16 %v10715
    %v11036 = vunpack.c.l.b16 %v10716
    %v11037 = vunpack.c.l.b16 %v10717
    %v11038 = vunpack.c.l.b16 %v10718
    %v11039 = vunpack.c.l.b16 %v10719
    %v11040 = vunpack.c.l.b16 %v10720
    %v11041 = vunpack.c.l.b16 %v10721
    %v11042 = vunpack.c.l.b16 %v10722
    %v11043 = vunpack.c.l.b16 %v10723
    %v11044 = vunpack.c.l.b16 %v10724
    %v11045 = vunpack.c.l.b16 %v10725
    %v11046 = vunpack.c.l.b16 %v10726
    %v11047 = vunpack.c.l.b16 %v10727
    %v11048 = vunpack.c.l.b16 %v10728
    %v11049 = vunpack.c.l.b16 %v10729
    %v11050 = vunpack.c.l.b16 %v10730
    %v11051 = vunpack.c.l.b16 %v10731
    %v11052 = vunpack.c.l.b16 %v10732
    %v11053 = vunpack.c.l.b16 %v10733
    %v11054 = vunpack.c.l.b16 %v10734
    %v11055 = vunpack.c.l.b16 %v10735
    %v11056 = vunpack.c.l.b16 %v10736
    %v11057 = vunpack.c.l.b16 %v10737
    %v11058 = vunpack.c.l.b16 %v10738
    %v11059 = vunpack.c.l.b16 %v10739
    %v11060 = vunpack.c.l.b16 %v10740
    %v11061 = vunpack.c.l.b16 %v10741
    %v11062 = vunpack.c.l.b16 %v10742
    %v11063 = vunpack.c.l.b16 %v10743
    %v11064 = vunpack.c.l.b16 %v10744
    %v11065 = vunpack.c.l.b16 %v10745
    %v11066 = vunpack.c.l.b16 %v10746
    %v11067 = vunpack.c.l.b16 %v10747
    %v11068 = vunpack.c.l.b16 %v10748
    %v11069 = vunpack.c.l.b16 %v10749
    %v11070 = vunpack.c.l.b16 %v10750
    %v11071 = vunpack.c.l.b16 %v10751
    %v11072 = vunpack.c.l.b16 %v10752
    %v11073 = vunpack.c.l.b16 %v10753
    %v11074 = vunpack.c.l.b16 %v10754
    %v11075 = vunpack.c.l.b16 %v10755
    %v11076 = vunpack.c.l.b16 %v10756
    %v11077 = vunpack.c.l.b16 %v10757
    %v11078 = vunpack.c.l.b16 %v10758
    %v11079 = vunpack.c.l.b16 %v10759
    %v11080 = vunpack.c.l.b16 %v10760
    %v11081 = vunpack.c.l.b16 %v10761
    %v11082 = vunpack.c.l.b16 %v10762
    %v11083 = vunpack.c.l.b16 %v10763
    %v11084 = vunpack.c.l.b16 %v10764
    %v11085 = vunpack.c.l.b16 %v10765
    %v11086 = vunpack.c.l.b16 %v10766
    %v11087 = vunpack.c.l.b16 %v10767
    %v11088 = vunpack.c.l.b16 %v10768
    %v11089 = vunpack.c.l.b16 %v10769
    %v11090 = vunpack.c.l.b16 %v10770
    %v11091 = vunpack.c.l.b16 %v10771
    %v11092 = vunpack.c.l.b16 %v10772
    %v11093 = vunpack.c.l.b16 %v10773
    %v11094 = vunpack.c.l.b16 %v10774
    %v11095 = vunpack.c.l.b16 %v10775
    %v11096 = vunpack.c.l.b16 %v10776
    %v11097 = vunpack.c.l.b16 %v10777
    %v11098 = vunpack.c.l.b16 %v10778
    %v11099 = vunpack.c.l.b16 %v10779
    %v11100 = vunpack.c.l.b16 %v10780
    %v11101 = vunpack.c.l.b16 %v10781
    %v11102 = vunpack.c.l.b16 %v10782
    %v11103 = vunpack.c.l.b16 %v10783
    %v11104 = vunpack.c.l.b16 %v10784
    %v11105 = vunpack.c.l.b16 %v10785
    %v11106 = vunpack.c.l.b16 %v10786
    %v11107 = vunpack.c.l.b16 %v10787
    %v11108 = vunpack.c.l.b16 %v10788
    %v11109 = vunpack.c.l.b16 %v10789
    %v11110 = vunpack.c.l.b16 %v10790
    %v11111 = vunpack.c.l.b16 %v10791
    %v11112 = vunpack.c.l.b16 %v10792
    %v11113 = vunpack.c.l.b16 %v10793
    %v11114 = vunpack.c.l.b16 %v10794
    %v11115 = vunpack.c.l.b16 %v10795
    %v11116 = vunpack.c.l.b16 %v10796
    %v11117 = vunpack.c.l.b16 %v10797
    %v11118 = vunpack.c.l.b16 %v10798
    %v11119 = vunpack.c.l.b16 %v10799
    %v11120 = vunpack.c.l.b16 %v10800
    %v11121 = vunpack.c.l.b16 %v10801
    %v11122 = vunpack.c.l.b16 %v10802
    %v11123 = vunpack.c.l.b16 %v10803
    %v11124 = vunpack.c.l.b16 %v10804
    %v11125 = vunpack.c.l.b16 %v10805
    %v11126 = vunpack.c.l.b16 %v10806
    %v11127 = vunpack.c.l.b16 %v10807
    %v11128 = vunpack.c.l.b16 %v10808
    %v11129 = vunpack.c.l.b16 %v10809
    %v11130 = vunpack.c.l.b16 %v10810
    %v11131 = vunpack.c.l.b16 %v10811
    %v11132 = vunpack.c.l.b16 %v10812
    %v11133 = vunpack.c.l.b16 %v10813
    %v11134 = vunpack.c.l.b16 %v10814
    %v11135 = vunpack.c.l.b16 %v10815
    %v11136 = vunpack.c.l.b16 %v10816
    %v11137 = vunpack.c.l.b16 %v10817
    %v11138 = vunpack.c.l.b16 %v10818
    %v11139 = vunpack.c.l.b16 %v10819
    %v11140 = vunpack.c.l.b16 %v10820
    %v11141 = vunpack.c.l.b16 %v10821
    %v11142 = vunpack.c.l.b16 %v10822
    %v11143 = vunpack.c.l.b16 %v10823
    %v11144 = vunpack.c.l.b16 %v10824
    %v11145 = vunpack.c.l.b16 %v10825
    %v11146 = vunpack.c.l.b16 %v10826
    %v11147 = vunpack.c.l.b16 %v10827
    %v11148 = vunpack.c.l.b16 %v10828
    %v11149 = vunpack.c.l.b16 %v10829
    %v11150 = vunpack.c.l.b16 %v10830
    %v11151 = vunpack.c.l.b16 %v10831
    %v11152 = vunpack.c.l.b16 %v10832
    %v11153 = vunpack.c.l.b16 %v10833
    %v11154 = vunpack.c.l.b16 %v10834
    %v11155 = vunpack.c.l.b16 %v10835
    %v11156 = vunpack.c.l.b16 %v10836
    %v11157 = vunpack.c.l.b16 %v10837
    %v11158 = vunpack.c.l.b16 %v10838
    %v11159 = vunpack.c.l.b16 %v10839
    %v11160 = vunpack.c.l.b16 %v10840
    %v11161 = vunpack.c.l.b16 %v10841
    %v11162 = vunpack.c.l.b16 %v10842
    %v11163 = vunpack.c.l.b16 %v10843
    %v11164 = vunpack.c.l.b16 %v10844
    %v11165 = vunpack.c.l.b16 %v10845
    %v11166 = vunpack.c.l.b16 %v10846
    %v11167 = vunpack.c.l.b16 %v10847
    %v11168 = vunpack.c.l.b16 %v10848
    %v11169 = vunpack.c.l.b16 %v10849
    %v11170 = vunpack.c.l.b16 %v10850
    %v11171 = vunpack.c.l.b16 %v10851
    %v11172 = vunpack.c.l.b16 %v10852
    %v11173 = vunpack.c.l.b16 %v10853
    %v11174 = vunpack.c.l.b16 %v10854
    %v11175 = vunpack.c.l.b16 %v10855
    %v11176 = vunpack.c.l.b16 %v10856
    %v11177 = vunpack.c.l.b16 %v10857
    %v11178 = vunpack.c.l.b16 %v10858
    %v11179 = vunpack.c.l.b16 %v10859
    %v11180 = vunpack.c.l.b16 %v10860
    %v11181 = vunpack.c.l.b16 %v10861
    %v11182 = vunpack.c.l.b16 %v10862
    %v11183 = vunpack.c.l.b16 %v10863
    %v11184 = vunpack.c.l.b16 %v10864
    %v11185 = vunpack.c.l.b16 %v10865
    %v11186 = vunpack.c.l.b16 %v10866
    %v11187 = vunpack.c.l.b16 %v10867
    %v11188 = vpack.c.b16 %v11029, %v11028
    %v11189 = vpack.c.b16 %v11031, %v11030
    %v11190 = vpack.c.b16 %v11033, %v11032
    %v11191 = vpack.c.b16 %v11035, %v11034
    %v11192 = vpack.c.b16 %v11037, %v11036
    %v11193 = vpack.c.b16 %v11039, %v11038
    %v11194 = vpack.c.b16 %v11041, %v11040
    %v11195 = vpack.c.b16 %v11043, %v11042
    %v11196 = vpack.c.b16 %v11045, %v11044
    %v11197 = vpack.c.b16 %v11047, %v11046
    %v11198 = vpack.c.b16 %v11049, %v11048
    %v11199 = vpack.c.b16 %v11051, %v11050
    %v11200 = vpack.c.b16 %v11053, %v11052
    %v11201 = vpack.c.b16 %v11055, %v11054
    %v11202 = vpack.c.b16 %v11057, %v11056
    %v11203 = vpack.c.b16 %v11059, %v11058
    %v11204 = vpack.c.b16 %v11061, %v11060
    %v11205 = vpack.c.b16 %v11063, %v11062
    %v11206 = vpack.c.b16 %v11065, %v11064
    %v11207 = vpack.c.b16 %v11067, %v11066
    %v11208 = vpack.c.b16 %v11069, %v11068
    %v11209 = vpack.c.b16 %v11071, %v11070
    %v11210 = vpack.c.b16 %v11073, %v11072
    %v11211 = vpack.c.b16 %v11075, %v11074
    %v11212 = vpack.c.b16 %v11077, %v11076
    %v11213 = vpack.c.b16 %v11079, %v11078
    %v11214 = vpack.c.b16 %v11081, %v11080
    %v11215 = vpack.c.b16 %v11083, %v11082
    %v11216 = vpack.c.b16 %v11085, %v11084
    %v11217 = vpack.c.b16 %v11087, %v11086
    %v11218 = vpack.c.b16 %v11089, %v11088
    %v11219 = vpack.c.b16 %v11091, %v11090
    %v11220 = vpack.c.b16 %v11093, %v11092
    %v11221 = vpack.c.b16 %v11095, %v11094
    %v11222 = vpack.c.b16 %v11097, %v11096
    %v11223 = vpack.c.b16 %v11099, %v11098
    %v11224 = vpack.c.b16 %v11101, %v11100
    %v11225 = vpack.c.b16 %v11103, %v11102
    %v11226 = vpack.c.b16 %v11105, %v11104
    %v11227 = vpack.c.b16 %v11107, %v11106
    %v11228 = vpack.c.b16 %v11109, %v11108
    %v11229 = vpack.c.b16 %v11111, %v11110
    %v11230 = vpack.c.b16 %v11113, %v11112
    %v11231 = vpack.c.b16 %v11115, %v11114
    %v11232 = vpack.c.b16 %v11117, %v11116
    %v11233 = vpack.c.b16 %v11119, %v11118
    %v11234 = vpack.c.b16 %v11121, %v11120
    %v11235 = vpack.c.b16 %v11123, %v11122
    %v11236 = vpack.c.b16 %v11125, %v11124
    %v11237 = vpack.c.b16 %v11127, %v11126
    %v11238 = vpack.c.b16 %v11129, %v11128
    %v11239 = vpack.c.b16 %v11131, %v11130
    %v11240 = vpack.c.b16 %v11133, %v11132
    %v11241 = vpack.c.b16 %v11135, %v11134
    %v11242 = vpack.c.b16 %v11137, %v11136
    %v11243 = vpack.c.b16 %v11139, %v11138
    %v11244 = vpack.c.b16 %v11141, %v11140
    %v11245 = vpack.c.b16 %v11143, %v11142
    %v11246 = vpack.c.b16 %v11145, %v11144
    %v11247 = vpack.c.b16 %v11147, %v11146
    %v11248 = vpack.c.b16 %v11149, %v11148
    %v11249 = vpack.c.b16 %v11151, %v11150
    %v11250 = vpack.c.b16 %v11153, %v11152
    %v11251 = vpack.c.b16 %v11155, %v11154
    %v11252 = vpack.c.b16 %v11157, %v11156
    %v11253 = vpack.c.b16 %v11159, %v11158
    %v11254 = vpack.c.b16 %v11161, %v11160
    %v11255 = vpack.c.b16 %v11163, %v11162
    %v11256 = vpack.c.b16 %v11165, %v11164
    %v11257 = vpack.c.b16 %v11167, %v11166
    %v11258 = vpack.c.b16 %v11169, %v11168
    %v11259 = vpack.c.b16 %v11171, %v11170
    %v11260 = vpack.c.b16 %v11173, %v11172
    %v11261 = vpack.c.b16 %v11175, %v11174
    %v11262 = vpack.c.b16 %v11177, %v11176
    %v11263 = vpack.c.b16 %v11179, %v11178
    %v11264 = vpack.c.b16 %v11181, %v11180
    %v11265 = vpack.c.b16 %v11183, %v11182
    %v11266 = vpack.c.b16 %v11185, %v11184
    %v11267 = vpack.c.b16 %v11187, %v11186
    %11348 = vmatpush.bf16.msra.mxu0 %v11195
    %11349 = vmatpush.bf16.msra.mxu0 %v11194
    %11350 = vmatpush.bf16.msra.mxu0 %v11193
    %11351 = vmatpush.bf16.msra.mxu0 %v11192
    %11352 = vmatpush.bf16.msra.mxu0 %v11191
    %11353 = vmatpush.bf16.msra.mxu0 %v11190
    %11354 = vmatpush.bf16.msra.mxu0 %v11189
    %11355 = vmatpush.bf16.msra.mxu0 %v11188
    %11356 = vmatmul.bf16.gmra.mxu0 %v10698
    %v11357 = vpop.f32.mrf.mxu0
    %v11358 = vadd.f32 0.0, %v11357
    %v11359 = vpop.f32.mrf.mxu0
    %v11360 = vadd.f32 0.0, %v11359
    %11361 = vdwg.mxu0
    %11362 = vmatpush.bf16.msra.mxu0 %v11203
    %11363 = vmatpush.bf16.msra.mxu0 %v11202
    %11364 = vmatpush.bf16.msra.mxu0 %v11201
    %11365 = vmatpush.bf16.msra.mxu0 %v11200
    %11366 = vmatpush.bf16.msra.mxu0 %v11199
    %11367 = vmatpush.bf16.msra.mxu0 %v11198
    %11368 = vmatpush.bf16.msra.mxu0 %v11197
    %11369 = vmatpush.bf16.msra.mxu0 %v11196
    %11370 = vmatmul.bf16.gmra.mxu0 %v10699
    %v11371 = vpop.f32.mrf.mxu0
    %v11372 = vadd.f32 %v11358, %v11371
    %v11373 = vpop.f32.mrf.mxu0
    %v11374 = vadd.f32 %v11360, %v11373
    %11375 = vdwg.mxu0
    %11376 = vmatpush.bf16.msra.mxu0 %v11211
    %11377 = vmatpush.bf16.msra.mxu0 %v11210
    %11378 = vmatpush.bf16.msra.mxu0 %v11209
    %11379 = vmatpush.bf16.msra.mxu0 %v11208
    %11380 = vmatpush.bf16.msra.mxu0 %v11207
    %11381 = vmatpush.bf16.msra.mxu0 %v11206
    %11382 = vmatpush.bf16.msra.mxu0 %v11205
    %11383 = vmatpush.bf16.msra.mxu0 %v11204
    %11384 = vmatmul.bf16.gmra.mxu0 %v10700
    %v11385 = vpop.f32.mrf.mxu0
    %v11386 = vadd.f32 %v11372, %v11385
    %v11387 = vpop.f32.mrf.mxu0
    %v11388 = vadd.f32 %v11374, %v11387
    %11389 = vdwg.mxu0
    %11390 = vmatpush.bf16.msra.mxu0 %v11219
    %11391 = vmatpush.bf16.msra.mxu0 %v11218
    %11392 = vmatpush.bf16.msra.mxu0 %v11217
    %11393 = vmatpush.bf16.msra.mxu0 %v11216
    %11394 = vmatpush.bf16.msra.mxu0 %v11215
    %11395 = vmatpush.bf16.msra.mxu0 %v11214
    %11396 = vmatpush.bf16.msra.mxu0 %v11213
    %11397 = vmatpush.bf16.msra.mxu0 %v11212
    %11398 = vmatmul.bf16.gmra.mxu0 %v10701
    %v11399 = vpop.f32.mrf.mxu0
    %v11400 = vadd.f32 %v11386, %v11399
    %v11401 = vpop.f32.mrf.mxu0
    %v11402 = vadd.f32 %v11388, %v11401
    %11403 = vdwg.mxu0
    %11404 = vmatpush.bf16.msra.mxu0 %v11227
    %11405 = vmatpush.bf16.msra.mxu0 %v11226
    %11406 = vmatpush.bf16.msra.mxu0 %v11225
    %11407 = vmatpush.bf16.msra.mxu0 %v11224
    %11408 = vmatpush.bf16.msra.mxu0 %v11223
    %11409 = vmatpush.bf16.msra.mxu0 %v11222
    %11410 = vmatpush.bf16.msra.mxu0 %v11221
    %11411 = vmatpush.bf16.msra.mxu0 %v11220
    %11412 = vmatmul.bf16.gmra.mxu0 %v10702
    %v11413 = vpop.f32.mrf.mxu0
    %v11414 = vadd.f32 %v11400, %v11413
    %v11415 = vpop.f32.mrf.mxu0
    %v11416 = vadd.f32 %v11402, %v11415
    %11417 = vdwg.mxu0
    %11418 = vmatpush.bf16.msra.mxu0 %v11235
    %11419 = vmatpush.bf16.msra.mxu0 %v11234
    %11420 = vmatpush.bf16.msra.mxu0 %v11233
    %11421 = vmatpush.bf16.msra.mxu0 %v11232
    %11422 = vmatpush.bf16.msra.mxu0 %v11231
    %11423 = vmatpush.bf16.msra.mxu0 %v11230
    %11424 = vmatpush.bf16.msra.mxu0 %v11229
    %11425 = vmatpush.bf16.msra.mxu0 %v11228
    %11426 = vmatmul.bf16.gmra.mxu0 %v10703
    %v11427 = vpop.f32.mrf.mxu0
    %v11428 = vadd.f32 %v11414, %v11427
    %v11429 = vpop.f32.mrf.mxu0
    %v11430 = vadd.f32 %v11416, %v11429
    %11431 = vdwg.mxu0
    %11432 = vmatpush.bf16.msra.mxu0 %v11243
    %11433 = vmatpush.bf16.msra.mxu0 %v11242
    %11434 = vmatpush.bf16.msra.mxu0 %v11241
    %11435 = vmatpush.bf16.msra.mxu0 %v11240
    %11436 = vmatpush.bf16.msra.mxu0 %v11239
    %11437 = vmatpush.bf16.msra.mxu0 %v11238
    %11438 = vmatpush.bf16.msra.mxu0 %v11237
    %11439 = vmatpush.bf16.msra.mxu0 %v11236
    %11440 = vmatmul.bf16.gmra.mxu0 %v10704
    %v11441 = vpop.f32.mrf.mxu0
    %v11442 = vadd.f32 %v11428, %v11441
    %v11443 = vpop.f32.mrf.mxu0
    %v11444 = vadd.f32 %v11430, %v11443
    %11445 = vdwg.mxu0
    %11446 = vmatpush.bf16.msra.mxu0 %v11251
    %11447 = vmatpush.bf16.msra.mxu0 %v11250
    %11448 = vmatpush.bf16.msra.mxu0 %v11249
    %11449 = vmatpush.bf16.msra.mxu0 %v11248
    %11450 = vmatpush.bf16.msra.mxu0 %v11247
    %11451 = vmatpush.bf16.msra.mxu0 %v11246
    %11452 = vmatpush.bf16.msra.mxu0 %v11245
    %11453 = vmatpush.bf16.msra.mxu0 %v11244
    %11454 = vmatmul.bf16.gmra.mxu0 %v10705
    %v11455 = vpop.f32.mrf.mxu0
    %v11456 = vadd.f32 %v11442, %v11455
    %v11457 = vpop.f32.mrf.mxu0
    %v11458 = vadd.f32 %v11444, %v11457
    %11459 = vdwg.mxu0
    %11460 = vmatpush.bf16.msra.mxu0 %v11259
    %11461 = vmatpush.bf16.msra.mxu0 %v11258
    %11462 = vmatpush.bf16.msra.mxu0 %v11257
    %11463 = vmatpush.bf16.msra.mxu0 %v11256
    %11464 = vmatpush.bf16.msra.mxu0 %v11255
    %11465 = vmatpush.bf16.msra.mxu0 %v11254
    %11466 = vmatpush.bf16.msra.mxu0 %v11253
    %11467 = vmatpush.bf16.msra.mxu0 %v11252
    %11468 = vmatmul.bf16.gmra.mxu0 %v10706
    %v11469 = vpop.f32.mrf.mxu0
    %v11470 = vadd.f32 %v11456, %v11469
    %v11471 = vpop.f32.mrf.mxu0
    %v11472 = vadd.f32 %v11458, %v11471
    %11473 = vdwg.mxu0
    %11474 = vmatpush.bf16.msra.mxu0 %v11267
    %11475 = vmatpush.bf16.msra.mxu0 %v11266
    %11476 = vmatpush.bf16.msra.mxu0 %v11265
    %11477 = vmatpush.bf16.msra.mxu0 %v11264
    %11478 = vmatpush.bf16.msra.mxu0 %v11263
    %11479 = vmatpush.bf16.msra.mxu0 %v11262
    %11480 = vmatpush.bf16.msra.mxu0 %v11261
    %11481 = vmatpush.bf16.msra.mxu0 %v11260
    %11482 = vmatmul.bf16.gmra.mxu0 %v10707
    %v11483 = vpop.f32.mrf.mxu0
    %v11484 = vadd.f32 %v11470, %v11483
    %v11485 = vpop.f32.mrf.mxu0
    %v11486 = vadd.f32 %v11472, %v11485
    %11487 = vdwg.mxu0
    %v11488 = vmax.f32 %v11484, 0.0
    %v11489 = vmax.f32 %v11486, 0.0
    %11490 = vst [vmem:[%s4] sm:$0xff] %v11488
    %11491 = vst [vmem:[%s4 + $0x8] sm:$0xff] %v11489
    // Predicated region
    $region30: #{ann_forward.1} parent=1 // pred_check
      _
    $region31: #{ann_forward.1} parent=1 // pred_check_branch
      %11493 = sbr.rel (0) target = $region33
    $region32: #{ann_forward.1} parent=1 // pred_region
      _
    $region33: #{ann_forward.1} parent=1 // pred_fallthru
      _
    // Predicated region
    $region34: #{ann_forward.1} parent=1 // pred_check
      _
    $region35: #{ann_forward.1} parent=1 // pred_check_branch
      %11495 = sbr.rel (0) target = $region37
    $region36: #{ann_forward.1} parent=1 // pred_region
      _
    $region37: #{ann_forward.1} parent=1 // pred_fallthru
      _
    %11496 = vsyncpa [#allocation3], 1
    %11497 = vsyncpa [#allocation5], 1

</llo_original>
